<compile_context>
chip_gen: v5e
topology: v5e:2x2
jax: 0.10.0
libtpu: 0.0.40
codegen_flags: <defaults>
</compile_context>

<pallas_src>
import functools

import jax
import jax.numpy as jnp
from jax.experimental import pallas as pl
from jax.experimental.pallas import tpu as pltpu


_VMEM_LIMIT = 32 * 1024 * 1024  # explicit, safe on v5e/v6e/v7x


# ---------------------------------------------------------------------------
# Pallas kernel: fused  W @ X + bias -> LeakyReLU(0.2) -> * scale + shift
#   w   : (Cout, K)  bf16  pre-reshaped torch conv weight (constant block)
#   x   : (K, S)     bf16  one batch element's patch matrix, S = Ho*Wo
#   aux : (Cout, 3)  f32   columns = [conv bias, bn_scale, bn_shift]
#   out : (Cout, S)  bf16  lane-dense (unmasked stores whenever S >= 128)
# ---------------------------------------------------------------------------
def _conv_gemm_kernel(w_ref, x_ref, aux_ref, o_ref):
    acc = jnp.dot(w_ref[...], x_ref[...], preferred_element_type=jnp.float32)
    acc = acc + aux_ref[:, 0:1]                      # conv bias (per channel)
    acc = jnp.where(acc >= 0, acc, 0.2 * acc)        # LeakyReLU(0.2)
    acc = acc * aux_ref[:, 1:2] + aux_ref[:, 2:3]    # folded BatchNorm (eval)
    o_ref[...] = acc.astype(o_ref.dtype)


def conv_gemm(w, patches, aux):
    """(Cout,K) @ (B,K,S) -> (B,Cout,S), fused bias/LeakyReLU/BN epilogue."""
    B, K, S = patches.shape
    Cout = w.shape[0]
    return pl.pallas_call(
        _conv_gemm_kernel,
        out_shape=jax.ShapeDtypeStruct((B, Cout, S), jnp.bfloat16),
        grid=(B,),
        in_specs=[
            pl.BlockSpec((Cout, K), lambda b: (0, 0)),         # full weight
            pl.BlockSpec((None, K, S), lambda b: (b, 0, 0)),   # this batch's patches
            pl.BlockSpec((Cout, 3), lambda b: (0, 0)),         # bias/scale/shift
        ],
        out_specs=pl.BlockSpec((None, Cout, S), lambda b: (b, 0, 0)),
        compiler_params=pltpu.CompilerParams(
            dimension_semantics=("parallel",),
            vmem_limit_bytes=_VMEM_LIMIT),
    )(w, patches, aux)


# ---------------------------------------------------------------------------
# Pallas kernel: fused FC head   Linear -> LeakyReLU(0.2) -> Linear  (all f32)
# ---------------------------------------------------------------------------
def _fc_head_kernel(x_ref, w1_ref, b1_ref, w2_ref, b2_ref, o_ref):
    x = x_ref[...].astype(jnp.float32)
    h = jnp.dot(x, w1_ref[...], preferred_element_type=jnp.float32) + b1_ref[...]
    h = jnp.where(h >= 0, h, 0.2 * h)                # LeakyReLU(0.2)
    out = jnp.dot(h, w2_ref[...], preferred_element_type=jnp.float32)
    o_ref[...] = (out + b2_ref[...]).astype(o_ref.dtype)


def fc_head(feat, w1, b1, w2, b2, *, row_tile=256):
    # Row tiling only kicks in for large batches (keeps both v7x cores busy
    # as B grows); at tiny B the whole head is one block.
    # TODO(synk): add K/N tiling of w1/w2 before scaling `dim` (v7x has only
    #             64 MiB of physical VMEM).
    M, K = feat.shape
    N1 = w1.shape[1]
    N2 = w2.shape[1]
    tm = M if M <= row_tile else row_tile
    return pl.pallas_call(
        _fc_head_kernel,
        out_shape=jax.ShapeDtypeStruct((M, N2), jnp.float32),
        grid=(pl.cdiv(M, tm),),
        in_specs=[
            pl.BlockSpec((tm, K), lambda i: (i, 0)),
            pl.BlockSpec((K, N1), lambda i: (0, 0)),
            pl.BlockSpec((1, N1), lambda i: (0, 0)),
            pl.BlockSpec((N1, N2), lambda i: (0, 0)),
            pl.BlockSpec((1, N2), lambda i: (0, 0)),
        ],
        out_specs=pl.BlockSpec((tm, N2), lambda i: (i, 0)),
        compiler_params=pltpu.CompilerParams(
            dimension_semantics=("parallel",),
            vmem_limit_bytes=_VMEM_LIMIT),
    )(feat, w1, b1, w2, b2)


# ---------------------------------------------------------------------------
# im2col glue (plain JAX, NCHW): produces (B, Cin*kh*kw, Ho*Wo) patch matrices
# whose row order (ci, di, dj) matches torch's w.reshape(Cout, -1) columns and
# whose lane axis is the (large) spatial axis.
# ---------------------------------------------------------------------------
def im2col_nchw(x, ksize, stride, pad):
    B, C, H, W = x.shape
    kh, kw = ksize
    sh, sw = stride
    ph, pw = pad
    if ph or pw:
        x = jnp.pad(x, ((0, 0), (0, 0), (ph, ph), (pw, pw)))
    Hp, Wp = H + 2 * ph, W + 2 * pw
    Ho = (Hp - kh) // sh + 1
    Wo = (Wp - kw) // sw + 1
    taps = []
    for di in range(kh):
        for dj in range(kw):
            taps.append(x[:, :, di:di + sh * Ho:sh, dj:dj + sw * Wo:sw])
    p = jnp.stack(taps, axis=2)                 # (B, C, kh*kw, Ho, Wo)
    return p.reshape(B, C * kh * kw, Ho * Wo), Ho, Wo


# ---------------------------------------------------------------------------
# Module configuration / parameters (shapes from the PyTorch __init__)
# ---------------------------------------------------------------------------
CONV_CFG = lambda dim: [
    # (cin, cout, kernel, stride, padding)
    (1,        dim,      (5, 9), (1, 1), (0, 0)),
    (dim,      2 * dim,  (5, 9), (1, 1), (0, 0)),
    (2 * dim,  4 * dim,  (4, 4), (2, 2), (1, 1)),
    (4 * dim,  8 * dim,  (4, 4), (2, 2), (1, 1)),
    (8 * dim,  16 * dim, (4, 4), (2, 2), (1, 1)),
    (16 * dim, 16 * dim, (4, 4), (2, 2), (1, 1)),
]


def init_params(key, dim):
    """Deterministic PyTorch-layout parameters (Conv2d / BN / Linear)."""
    params = {"convs": []}
    for (cin, cout, k, s, p) in CONV_CFG(dim):
        key, k1, k2, k3, k4, k5, k6 = jax.random.split(key, 7)
        params["convs"].append(dict(
            w=jax.random.normal(k1, (cout, cin, k[0], k[1]), jnp.float32) * 0.05,
            b=jax.random.normal(k2, (cout,), jnp.float32) * 0.01,
            gamma=1.0 + 0.1 * jax.random.normal(k3, (cout,), jnp.float32),
            beta=0.1 * jax.random.normal(k4, (cout,), jnp.float32),
            running_mean=0.01 * jax.random.normal(k5, (cout,), jnp.float32),
            running_var=1.0 + 0.1 * jnp.abs(jax.random.normal(k6, (cout,), jnp.float32)),
        ))
    out_size = 16 * dim * 2 * 4
    key, k1, k2, k3, k4 = jax.random.split(key, 5)
    params["fc1_w"] = jax.random.normal(k1, (out_size, out_size), jnp.float32) * 0.02
    params["fc1_b"] = jax.random.normal(k2, (out_size,), jnp.float32) * 0.01
    params["fc2_w"] = jax.random.normal(k3, (out_size, 47 * 9), jnp.float32) * 0.02
    params["fc2_b"] = jax.random.normal(k4, (47 * 9,), jnp.float32) * 0.01
    return params


def prepare_params(params, dim, eps=1e-5):
    """One-time weight-side preprocessing (hoisted out of the forward pass)."""
    prep = {"convs": []}
    for cp, (cin, cout, k, s, p) in zip(params["convs"], CONV_CFG(dim)):
        kh, kw = k
        # torch Conv2d weight (Cout, Cin, kh, kw) -> (Cout, Cin*kh*kw); column
        # order (ci, di, dj) matches im2col_nchw's row order -> no transpose.
        w2d = cp["w"].reshape(cout, cin * kh * kw)
        scale = cp["gamma"] / jnp.sqrt(cp["running_var"] + eps)
        shift = cp["beta"] - cp["running_mean"] * scale
        aux = jnp.stack([cp["b"], scale, shift], axis=1).astype(jnp.float32)  # (Cout,3)
        prep["convs"].append(dict(w=w2d.astype(jnp.bfloat16), aux=aux))
    # FC head kept in f32 (tiny; avoids bf16 drift in the hand-off).
    prep["fc1_w"] = params["fc1_w"].astype(jnp.float32)
    prep["fc1_b"] = params["fc1_b"].reshape(1, -1).astype(jnp.float32)
    prep["fc2_w"] = params["fc2_w"].astype(jnp.float32)
    prep["fc2_b"] = params["fc2_b"].reshape(1, -1).astype(jnp.float32)
    return prep


# ---------------------------------------------------------------------------
# Forward pass (matches CNN_Surrogate.forward semantics, eval-mode BN)
# ---------------------------------------------------------------------------
def cnn_surrogate_forward(x_nchw, prep, *, dim):
    B = x_nchw.shape[0]
    x = x_nchw.astype(jnp.bfloat16)                  # stays NCHW throughout

    # image_to_features: 6 x (Conv2d -> LeakyReLU(0.2) -> BatchNorm2d)
    for layer, (cin, cout, ksize, stride, pad) in zip(prep["convs"], CONV_CFG(dim)):
        patches, Ho, Wo = im2col_nchw(x, ksize, stride, pad)    # (B, K, Ho*Wo)
        out = conv_gemm(layer["w"], patches, layer["aux"])      # (B, Cout, Ho*Wo)
        x = out.reshape(B, cout, Ho, Wo)                        # free, stays NCHW

    # Channel-major flatten == torch's x.reshape(batch_size, -1); no padding.
    feat = x.reshape(B, -1)
    return fc_head(feat, prep["fc1_w"], prep["fc1_b"],
                   prep["fc2_w"], prep["fc2_b"])


if __name__ == "__main__":
    dim = 4          # small `dim`
    batch = 2
    # Spatial size 40x80 is required by the module: after the conv stack the
    # feature map is (16*dim, 2, 4), matching output_size = 16*dim*2*4.
    key = jax.random.PRNGKey(0)
    key, kx = jax.random.split(key)
    x = jax.random.normal(kx, (batch, 1, 40, 80), jnp.float32)

    params = init_params(key, dim)
    prep = prepare_params(params, dim)          # cached, outside the forward

    fwd = jax.jit(functools.partial(cnn_surrogate_forward, dim=dim))
    out = jax.block_until_ready(fwd(x, prep))

    assert out.shape == (batch, 47 * 9), out.shape
    assert out.dtype == jnp.float32
    print("KERNEL_OK")
</pallas_src>

<mosaic_0001>
module attributes {stable_mosaic.version = 11 : i64} {
  func.func @_conv_gemm_kernel(%arg0: i32, %arg1: memref<4x45xbf16, #tpu.memory_space<vmem>>, %arg2: memref<1x45x2592xbf16, #tpu.memory_space<vmem>>, %arg3: memref<4x3xf32, #tpu.memory_space<vmem>>, %arg4: memref<1x4x2592xbf16, #tpu.memory_space<vmem>>) attributes {dimension_semantics = [#tpu.dimension_semantics<parallel>], iteration_bounds = array<i64: 2>, scalar_prefetch = 0 : i64, scratch_operands = 0 : i64, tpu.core_type = #tpu.core_type<tc>, window_params = [{pipeline_mode = #tpu.pipeline_mode<synchronous>, transform_indices = @transform_0, window_bounds = array<i64: 4, 45>}, {transform_indices = @transform_1, window_bounds = array<i64: 1, 45, 2592>}, {pipeline_mode = #tpu.pipeline_mode<synchronous>, transform_indices = @transform_2, window_bounds = array<i64: 4, 3>}, {transform_indices = @transform_3, window_bounds = array<i64: 1, 4, 2592>}]} {
    %c0 = arith.constant 0 : index
    %c0_0 = arith.constant 0 : index
    %0 = vector.load %arg1[%c0, %c0_0] : memref<4x45xbf16, #tpu.memory_space<vmem>>, vector<4x45xbf16>
    %c0_1 = arith.constant 0 : index
    %c0_2 = arith.constant 0 : index
    %c0_3 = arith.constant 0 : index
    %1 = vector.load %arg2[%c0_1, %c0_2, %c0_3] : memref<1x45x2592xbf16, #tpu.memory_space<vmem>>, vector<1x45x2592xbf16>
    %2 = vector.shape_cast %1 : vector<1x45x2592xbf16> to vector<45x2592xbf16>
    %cst = arith.constant dense<0.000000e+00> : vector<4x2592xf32>
    %3 = tpu.matmul %0, %2, %cst {dimension_numbers = #tpu.dot_dimension_numbers<[1], [0], [0], [1], [0, 0, 1, 1], [], []>} : vector<4x45xbf16>, vector<45x2592xbf16>, vector<4x2592xf32> -> vector<4x2592xf32>
    %c0_4 = arith.constant 0 : index
    %c0_5 = arith.constant 0 : index
    %4 = vector.load %arg3[%c0_4, %c0_5] : memref<4x3xf32, #tpu.memory_space<vmem>>, vector<4x1xf32>
    %5 = vector.broadcast %4 : vector<4x1xf32> to vector<4x2592xf32>
    %6 = arith.addf %3, %5 : vector<4x2592xf32>
    %cst_6 = arith.constant 0.000000e+00 : f32
    %7 = vector.broadcast %cst_6 : f32 to vector<4x2592xf32>
    %8 = arith.cmpf oge, %6, %7 : vector<4x2592xf32>
    %cst_7 = arith.constant 2.000000e-01 : f32
    %9 = vector.broadcast %cst_7 : f32 to vector<4x2592xf32>
    %10 = arith.mulf %9, %6 : vector<4x2592xf32>
    %11 = arith.select %8, %6, %10 : vector<4x2592xi1>, vector<4x2592xf32>
    %c0_8 = arith.constant 0 : index
    %c1 = arith.constant 1 : index
    %12 = vector.load %arg3[%c0_8, %c1] : memref<4x3xf32, #tpu.memory_space<vmem>>, vector<4x1xf32>
    %13 = vector.broadcast %12 : vector<4x1xf32> to vector<4x2592xf32>
    %14 = arith.mulf %11, %13 : vector<4x2592xf32>
    %c0_9 = arith.constant 0 : index
    %c2 = arith.constant 2 : index
    %15 = vector.load %arg3[%c0_9, %c2] : memref<4x3xf32, #tpu.memory_space<vmem>>, vector<4x1xf32>
    %16 = vector.broadcast %15 : vector<4x1xf32> to vector<4x2592xf32>
    %17 = arith.addf %14, %16 : vector<4x2592xf32>
    %18 = arith.truncf %17 : vector<4x2592xf32> to vector<4x2592xbf16>
    %c0_10 = arith.constant 0 : index
    %c0_11 = arith.constant 0 : index
    %c0_12 = arith.constant 0 : index
    %19 = vector.load %arg4[%c0_10, %c0_11, %c0_12] : memref<1x4x2592xbf16, #tpu.memory_space<vmem>>, vector<1x4x2592xbf16>
    %20 = vector.shape_cast %19 : vector<1x4x2592xbf16> to vector<4x2592xbf16>
    %21 = vector.shape_cast %18 : vector<4x2592xbf16> to vector<1x4x2592xbf16>
    tpu.vector_store %arg4[%c0_10, %c0_11, %c0_12], %21 {strides = array<i32>} : memref<1x4x2592xbf16, #tpu.memory_space<vmem>>, vector<1x4x2592xbf16>,
    return
  }
  func.func @transform_0(%arg0: i32) -> (i32, i32) {
    %c0_i32 = arith.constant 0 : i32
    %c0_i32_0 = arith.constant 0 : i32
    %c0_i32_1 = arith.constant 0 : i32
    return %c0_i32, %c0_i32_0 : i32, i32
  }
  func.func @transform_1(%arg0: i32) -> (i32, i32, i32) {
    %c0_i32 = arith.constant 0 : i32
    %c0_i32_0 = arith.constant 0 : i32
    %c0_i32_1 = arith.constant 0 : i32
    return %arg0, %c0_i32, %c0_i32_0 : i32, i32, i32
  }
  func.func @transform_2(%arg0: i32) -> (i32, i32) {
    %c0_i32 = arith.constant 0 : i32
    %c0_i32_0 = arith.constant 0 : i32
    %c0_i32_1 = arith.constant 0 : i32
    return %c0_i32, %c0_i32_0 : i32, i32
  }
  func.func @transform_3(%arg0: i32) -> (i32, i32, i32) {
    %c0_i32 = arith.constant 0 : i32
    %c0_i32_0 = arith.constant 0 : i32
    %c0_i32_1 = arith.constant 0 : i32
    return %arg0, %c0_i32, %c0_i32_0 : i32, i32, i32
  }
}

module attributes {stable_mosaic.version = 11 : i64} {
  func.func @_conv_gemm_kernel(%arg0: i32, %arg1: memref<8x180xbf16, #tpu.memory_space<vmem>>, %arg2: memref<1x180x2048xbf16, #tpu.memory_space<vmem>>, %arg3: memref<8x3xf32, #tpu.memory_space<vmem>>, %arg4: memref<1x8x2048xbf16, #tpu.memory_space<vmem>>) attributes {dimension_semantics = [#tpu.dimension_semantics<parallel>], iteration_bounds = array<i64: 2>, scalar_prefetch = 0 : i64, scratch_operands = 0 : i64, tpu.core_type = #tpu.core_type<tc>, window_params = [{pipeline_mode = #tpu.pipeline_mode<synchronous>, transform_indices = @transform_0, window_bounds = array<i64: 8, 180>}, {transform_indices = @transform_1, window_bounds = array<i64: 1, 180, 2048>}, {pipeline_mode = #tpu.pipeline_mode<synchronous>, transform_indices = @transform_2, window_bounds = array<i64: 8, 3>}, {transform_indices = @transform_3, window_bounds = array<i64: 1, 8, 2048>}]} {
    %c0 = arith.constant 0 : index
    %c0_0 = arith.constant 0 : index
    %0 = vector.load %arg1[%c0, %c0_0] : memref<8x180xbf16, #tpu.memory_space<vmem>>, vector<8x180xbf16>
    %c0_1 = arith.constant 0 : index
    %c0_2 = arith.constant 0 : index
    %c0_3 = arith.constant 0 : index
    %1 = vector.load %arg2[%c0_1, %c0_2, %c0_3] : memref<1x180x2048xbf16, #tpu.memory_space<vmem>>, vector<1x180x2048xbf16>
    %2 = vector.shape_cast %1 : vector<1x180x2048xbf16> to vector<180x2048xbf16>
    %cst = arith.constant dense<0.000000e+00> : vector<8x2048xf32>
    %3 = tpu.matmul %0, %2, %cst {dimension_numbers = #tpu.dot_dimension_numbers<[1], [0], [0], [1], [0, 0, 1, 1], [], []>} : vector<8x180xbf16>, vector<180x2048xbf16>, vector<8x2048xf32> -> vector<8x2048xf32>
    %c0_4 = arith.constant 0 : index
    %c0_5 = arith.constant 0 : index
    %4 = vector.load %arg3[%c0_4, %c0_5] : memref<8x3xf32, #tpu.memory_space<vmem>>, vector<8x1xf32>
    %5 = vector.broadcast %4 : vector<8x1xf32> to vector<8x2048xf32>
    %6 = arith.addf %3, %5 : vector<8x2048xf32>
    %cst_6 = arith.constant 0.000000e+00 : f32
    %7 = vector.broadcast %cst_6 : f32 to vector<8x2048xf32>
    %8 = arith.cmpf oge, %6, %7 : vector<8x2048xf32>
    %cst_7 = arith.constant 2.000000e-01 : f32
    %9 = vector.broadcast %cst_7 : f32 to vector<8x2048xf32>
    %10 = arith.mulf %9, %6 : vector<8x2048xf32>
    %11 = arith.select %8, %6, %10 : vector<8x2048xi1>, vector<8x2048xf32>
    %c0_8 = arith.constant 0 : index
    %c1 = arith.constant 1 : index
    %12 = vector.load %arg3[%c0_8, %c1] : memref<8x3xf32, #tpu.memory_space<vmem>>, vector<8x1xf32>
    %13 = vector.broadcast %12 : vector<8x1xf32> to vector<8x2048xf32>
    %14 = arith.mulf %11, %13 : vector<8x2048xf32>
    %c0_9 = arith.constant 0 : index
    %c2 = arith.constant 2 : index
    %15 = vector.load %arg3[%c0_9, %c2] : memref<8x3xf32, #tpu.memory_space<vmem>>, vector<8x1xf32>
    %16 = vector.broadcast %15 : vector<8x1xf32> to vector<8x2048xf32>
    %17 = arith.addf %14, %16 : vector<8x2048xf32>
    %18 = arith.truncf %17 : vector<8x2048xf32> to vector<8x2048xbf16>
    %c0_10 = arith.constant 0 : index
    %c0_11 = arith.constant 0 : index
    %c0_12 = arith.constant 0 : index
    %19 = vector.load %arg4[%c0_10, %c0_11, %c0_12] : memref<1x8x2048xbf16, #tpu.memory_space<vmem>>, vector<1x8x2048xbf16>
    %20 = vector.shape_cast %19 : vector<1x8x2048xbf16> to vector<8x2048xbf16>
    %21 = vector.shape_cast %18 : vector<8x2048xbf16> to vector<1x8x2048xbf16>
    tpu.vector_store %arg4[%c0_10, %c0_11, %c0_12], %21 {strides = array<i32>} : memref<1x8x2048xbf16, #tpu.memory_space<vmem>>, vector<1x8x2048xbf16>,
    return
  }
  func.func @transform_0(%arg0: i32) -> (i32, i32) {
    %c0_i32 = arith.constant 0 : i32
    %c0_i32_0 = arith.constant 0 : i32
    %c0_i32_1 = arith.constant 0 : i32
    return %c0_i32, %c0_i32_0 : i32, i32
  }
  func.func @transform_1(%arg0: i32) -> (i32, i32, i32) {
    %c0_i32 = arith.constant 0 : i32
    %c0_i32_0 = arith.constant 0 : i32
    %c0_i32_1 = arith.constant 0 : i32
    return %arg0, %c0_i32, %c0_i32_0 : i32, i32, i32
  }
  func.func @transform_2(%arg0: i32) -> (i32, i32) {
    %c0_i32 = arith.constant 0 : i32
    %c0_i32_0 = arith.constant 0 : i32
    %c0_i32_1 = arith.constant 0 : i32
    return %c0_i32, %c0_i32_0 : i32, i32
  }
  func.func @transform_3(%arg0: i32) -> (i32, i32, i32) {
    %c0_i32 = arith.constant 0 : i32
    %c0_i32_0 = arith.constant 0 : i32
    %c0_i32_1 = arith.constant 0 : i32
    return %arg0, %c0_i32, %c0_i32_0 : i32, i32, i32
  }
}

module attributes {stable_mosaic.version = 11 : i64} {
  func.func @_conv_gemm_kernel(%arg0: i32, %arg1: memref<16x128xbf16, #tpu.memory_space<vmem>>, %arg2: memref<1x128x512xbf16, #tpu.memory_space<vmem>>, %arg3: memref<16x3xf32, #tpu.memory_space<vmem>>, %arg4: memref<1x16x512xbf16, #tpu.memory_space<vmem>>) attributes {dimension_semantics = [#tpu.dimension_semantics<parallel>], iteration_bounds = array<i64: 2>, scalar_prefetch = 0 : i64, scratch_operands = 0 : i64, tpu.core_type = #tpu.core_type<tc>, window_params = [{pipeline_mode = #tpu.pipeline_mode<synchronous>, transform_indices = @transform_0, window_bounds = array<i64: 16, 128>}, {transform_indices = @transform_1, window_bounds = array<i64: 1, 128, 512>}, {pipeline_mode = #tpu.pipeline_mode<synchronous>, transform_indices = @transform_2, window_bounds = array<i64: 16, 3>}, {transform_indices = @transform_3, window_bounds = array<i64: 1, 16, 512>}]} {
    %c0 = arith.constant 0 : index
    %c0_0 = arith.constant 0 : index
    %0 = vector.load %arg1[%c0, %c0_0] : memref<16x128xbf16, #tpu.memory_space<vmem>>, vector<16x128xbf16>
    %c0_1 = arith.constant 0 : index
    %c0_2 = arith.constant 0 : index
    %c0_3 = arith.constant 0 : index
    %1 = vector.load %arg2[%c0_1, %c0_2, %c0_3] : memref<1x128x512xbf16, #tpu.memory_space<vmem>>, vector<1x128x512xbf16>
    %2 = vector.shape_cast %1 : vector<1x128x512xbf16> to vector<128x512xbf16>
    %cst = arith.constant dense<0.000000e+00> : vector<16x512xf32>
    %3 = tpu.matmul %0, %2, %cst {dimension_numbers = #tpu.dot_dimension_numbers<[1], [0], [0], [1], [0, 0, 1, 1], [], []>} : vector<16x128xbf16>, vector<128x512xbf16>, vector<16x512xf32> -> vector<16x512xf32>
    %c0_4 = arith.constant 0 : index
    %c0_5 = arith.constant 0 : index
    %4 = vector.load %arg3[%c0_4, %c0_5] : memref<16x3xf32, #tpu.memory_space<vmem>>, vector<16x1xf32>
    %5 = vector.broadcast %4 : vector<16x1xf32> to vector<16x512xf32>
    %6 = arith.addf %3, %5 : vector<16x512xf32>
    %cst_6 = arith.constant 0.000000e+00 : f32
    %7 = vector.broadcast %cst_6 : f32 to vector<16x512xf32>
    %8 = arith.cmpf oge, %6, %7 : vector<16x512xf32>
    %cst_7 = arith.constant 2.000000e-01 : f32
    %9 = vector.broadcast %cst_7 : f32 to vector<16x512xf32>
    %10 = arith.mulf %9, %6 : vector<16x512xf32>
    %11 = arith.select %8, %6, %10 : vector<16x512xi1>, vector<16x512xf32>
    %c0_8 = arith.constant 0 : index
    %c1 = arith.constant 1 : index
    %12 = vector.load %arg3[%c0_8, %c1] : memref<16x3xf32, #tpu.memory_space<vmem>>, vector<16x1xf32>
    %13 = vector.broadcast %12 : vector<16x1xf32> to vector<16x512xf32>
    %14 = arith.mulf %11, %13 : vector<16x512xf32>
    %c0_9 = arith.constant 0 : index
    %c2 = arith.constant 2 : index
    %15 = vector.load %arg3[%c0_9, %c2] : memref<16x3xf32, #tpu.memory_space<vmem>>, vector<16x1xf32>
    %16 = vector.broadcast %15 : vector<16x1xf32> to vector<16x512xf32>
    %17 = arith.addf %14, %16 : vector<16x512xf32>
    %18 = arith.truncf %17 : vector<16x512xf32> to vector<16x512xbf16>
    %c0_10 = arith.constant 0 : index
    %c0_11 = arith.constant 0 : index
    %c0_12 = arith.constant 0 : index
    %19 = vector.load %arg4[%c0_10, %c0_11, %c0_12] : memref<1x16x512xbf16, #tpu.memory_space<vmem>>, vector<1x16x512xbf16>
    %20 = vector.shape_cast %19 : vector<1x16x512xbf16> to vector<16x512xbf16>
    %21 = vector.shape_cast %18 : vector<16x512xbf16> to vector<1x16x512xbf16>
    tpu.vector_store %arg4[%c0_10, %c0_11, %c0_12], %21 {strides = array<i32>} : memref<1x16x512xbf16, #tpu.memory_space<vmem>>, vector<1x16x512xbf16>,
    return
  }
  func.func @transform_0(%arg0: i32) -> (i32, i32) {
    %c0_i32 = arith.constant 0 : i32
    %c0_i32_0 = arith.constant 0 : i32
    %c0_i32_1 = arith.constant 0 : i32
    return %c0_i32, %c0_i32_0 : i32, i32
  }
  func.func @transform_1(%arg0: i32) -> (i32, i32, i32) {
    %c0_i32 = arith.constant 0 : i32
    %c0_i32_0 = arith.constant 0 : i32
    %c0_i32_1 = arith.constant 0 : i32
    return %arg0, %c0_i32, %c0_i32_0 : i32, i32, i32
  }
  func.func @transform_2(%arg0: i32) -> (i32, i32) {
    %c0_i32 = arith.constant 0 : i32
    %c0_i32_0 = arith.constant 0 : i32
    %c0_i32_1 = arith.constant 0 : i32
    return %c0_i32, %c0_i32_0 : i32, i32
  }
  func.func @transform_3(%arg0: i32) -> (i32, i32, i32) {
    %c0_i32 = arith.constant 0 : i32
    %c0_i32_0 = arith.constant 0 : i32
    %c0_i32_1 = arith.constant 0 : i32
    return %arg0, %c0_i32, %c0_i32_0 : i32, i32, i32
  }
}

module attributes {stable_mosaic.version = 11 : i64} {
  func.func @_conv_gemm_kernel(%arg0: i32, %arg1: memref<32x256xbf16, #tpu.memory_space<vmem>>, %arg2: memref<1x256x128xbf16, #tpu.memory_space<vmem>>, %arg3: memref<32x3xf32, #tpu.memory_space<vmem>>, %arg4: memref<1x32x128xbf16, #tpu.memory_space<vmem>>) attributes {dimension_semantics = [#tpu.dimension_semantics<parallel>], iteration_bounds = array<i64: 2>, scalar_prefetch = 0 : i64, scratch_operands = 0 : i64, tpu.core_type = #tpu.core_type<tc>, window_params = [{pipeline_mode = #tpu.pipeline_mode<synchronous>, transform_indices = @transform_0, window_bounds = array<i64: 32, 256>}, {transform_indices = @transform_1, window_bounds = array<i64: 1, 256, 128>}, {pipeline_mode = #tpu.pipeline_mode<synchronous>, transform_indices = @transform_2, window_bounds = array<i64: 32, 3>}, {transform_indices = @transform_3, window_bounds = array<i64: 1, 32, 128>}]} {
    %c0 = arith.constant 0 : index
    %c0_0 = arith.constant 0 : index
    %0 = vector.load %arg1[%c0, %c0_0] : memref<32x256xbf16, #tpu.memory_space<vmem>>, vector<32x256xbf16>
    %c0_1 = arith.constant 0 : index
    %c0_2 = arith.constant 0 : index
    %c0_3 = arith.constant 0 : index
    %1 = vector.load %arg2[%c0_1, %c0_2, %c0_3] : memref<1x256x128xbf16, #tpu.memory_space<vmem>>, vector<1x256x128xbf16>
    %2 = vector.shape_cast %1 : vector<1x256x128xbf16> to vector<256x128xbf16>
    %cst = arith.constant dense<0.000000e+00> : vector<32x128xf32>
    %3 = tpu.matmul %0, %2, %cst {dimension_numbers = #tpu.dot_dimension_numbers<[1], [0], [0], [1], [0, 0, 1, 1], [], []>} : vector<32x256xbf16>, vector<256x128xbf16>, vector<32x128xf32> -> vector<32x128xf32>
    %c0_4 = arith.constant 0 : index
    %c0_5 = arith.constant 0 : index
    %4 = vector.load %arg3[%c0_4, %c0_5] : memref<32x3xf32, #tpu.memory_space<vmem>>, vector<32x1xf32>
    %5 = vector.broadcast %4 : vector<32x1xf32> to vector<32x128xf32>
    %6 = arith.addf %3, %5 : vector<32x128xf32>
    %cst_6 = arith.constant 0.000000e+00 : f32
    %7 = vector.broadcast %cst_6 : f32 to vector<32x128xf32>
    %8 = arith.cmpf oge, %6, %7 : vector<32x128xf32>
    %cst_7 = arith.constant 2.000000e-01 : f32
    %9 = vector.broadcast %cst_7 : f32 to vector<32x128xf32>
    %10 = arith.mulf %9, %6 : vector<32x128xf32>
    %11 = arith.select %8, %6, %10 : vector<32x128xi1>, vector<32x128xf32>
    %c0_8 = arith.constant 0 : index
    %c1 = arith.constant 1 : index
    %12 = vector.load %arg3[%c0_8, %c1] : memref<32x3xf32, #tpu.memory_space<vmem>>, vector<32x1xf32>
    %13 = vector.broadcast %12 : vector<32x1xf32> to vector<32x128xf32>
    %14 = arith.mulf %11, %13 : vector<32x128xf32>
    %c0_9 = arith.constant 0 : index
    %c2 = arith.constant 2 : index
    %15 = vector.load %arg3[%c0_9, %c2] : memref<32x3xf32, #tpu.memory_space<vmem>>, vector<32x1xf32>
    %16 = vector.broadcast %15 : vector<32x1xf32> to vector<32x128xf32>
    %17 = arith.addf %14, %16 : vector<32x128xf32>
    %18 = arith.truncf %17 : vector<32x128xf32> to vector<32x128xbf16>
    %c0_10 = arith.constant 0 : index
    %c0_11 = arith.constant 0 : index
    %c0_12 = arith.constant 0 : index
    %19 = vector.load %arg4[%c0_10, %c0_11, %c0_12] : memref<1x32x128xbf16, #tpu.memory_space<vmem>>, vector<1x32x128xbf16>
    %20 = vector.shape_cast %19 : vector<1x32x128xbf16> to vector<32x128xbf16>
    %21 = vector.shape_cast %18 : vector<32x128xbf16> to vector<1x32x128xbf16>
    tpu.vector_store %arg4[%c0_10, %c0_11, %c0_12], %21 {strides = array<i32>} : memref<1x32x128xbf16, #tpu.memory_space<vmem>>, vector<1x32x128xbf16>,
    return
  }
  func.func @transform_0(%arg0: i32) -> (i32, i32) {
    %c0_i32 = arith.constant 0 : i32
    %c0_i32_0 = arith.constant 0 : i32
    %c0_i32_1 = arith.constant 0 : i32
    return %c0_i32, %c0_i32_0 : i32, i32
  }
  func.func @transform_1(%arg0: i32) -> (i32, i32, i32) {
    %c0_i32 = arith.constant 0 : i32
    %c0_i32_0 = arith.constant 0 : i32
    %c0_i32_1 = arith.constant 0 : i32
    return %arg0, %c0_i32, %c0_i32_0 : i32, i32, i32
  }
  func.func @transform_2(%arg0: i32) -> (i32, i32) {
    %c0_i32 = arith.constant 0 : i32
    %c0_i32_0 = arith.constant 0 : i32
    %c0_i32_1 = arith.constant 0 : i32
    return %c0_i32, %c0_i32_0 : i32, i32
  }
  func.func @transform_3(%arg0: i32) -> (i32, i32, i32) {
    %c0_i32 = arith.constant 0 : i32
    %c0_i32_0 = arith.constant 0 : i32
    %c0_i32_1 = arith.constant 0 : i32
    return %arg0, %c0_i32, %c0_i32_0 : i32, i32, i32
  }
}

module attributes {stable_mosaic.version = 11 : i64} {
  func.func @_conv_gemm_kernel(%arg0: i32, %arg1: memref<64x512xbf16, #tpu.memory_space<vmem>>, %arg2: memref<1x512x32xbf16, #tpu.memory_space<vmem>>, %arg3: memref<64x3xf32, #tpu.memory_space<vmem>>, %arg4: memref<1x64x32xbf16, #tpu.memory_space<vmem>>) attributes {dimension_semantics = [#tpu.dimension_semantics<parallel>], iteration_bounds = array<i64: 2>, scalar_prefetch = 0 : i64, scratch_operands = 0 : i64, tpu.core_type = #tpu.core_type<tc>, window_params = [{pipeline_mode = #tpu.pipeline_mode<synchronous>, transform_indices = @transform_0, window_bounds = array<i64: 64, 512>}, {transform_indices = @transform_1, window_bounds = array<i64: 1, 512, 32>}, {pipeline_mode = #tpu.pipeline_mode<synchronous>, transform_indices = @transform_2, window_bounds = array<i64: 64, 3>}, {transform_indices = @transform_3, window_bounds = array<i64: 1, 64, 32>}]} {
    %c0 = arith.constant 0 : index
    %c0_0 = arith.constant 0 : index
    %0 = vector.load %arg1[%c0, %c0_0] : memref<64x512xbf16, #tpu.memory_space<vmem>>, vector<64x512xbf16>
    %c0_1 = arith.constant 0 : index
    %c0_2 = arith.constant 0 : index
    %c0_3 = arith.constant 0 : index
    %1 = vector.load %arg2[%c0_1, %c0_2, %c0_3] : memref<1x512x32xbf16, #tpu.memory_space<vmem>>, vector<1x512x32xbf16>
    %2 = vector.shape_cast %1 : vector<1x512x32xbf16> to vector<512x32xbf16>
    %cst = arith.constant dense<0.000000e+00> : vector<64x32xf32>
    %3 = tpu.matmul %0, %2, %cst {dimension_numbers = #tpu.dot_dimension_numbers<[1], [0], [0], [1], [0, 0, 1, 1], [], []>} : vector<64x512xbf16>, vector<512x32xbf16>, vector<64x32xf32> -> vector<64x32xf32>
    %c0_4 = arith.constant 0 : index
    %c0_5 = arith.constant 0 : index
    %4 = vector.load %arg3[%c0_4, %c0_5] : memref<64x3xf32, #tpu.memory_space<vmem>>, vector<64x1xf32>
    %5 = vector.broadcast %4 : vector<64x1xf32> to vector<64x32xf32>
    %6 = arith.addf %3, %5 : vector<64x32xf32>
    %cst_6 = arith.constant 0.000000e+00 : f32
    %7 = vector.broadcast %cst_6 : f32 to vector<64x32xf32>
    %8 = arith.cmpf oge, %6, %7 : vector<64x32xf32>
    %cst_7 = arith.constant 2.000000e-01 : f32
    %9 = vector.broadcast %cst_7 : f32 to vector<64x32xf32>
    %10 = arith.mulf %9, %6 : vector<64x32xf32>
    %11 = arith.select %8, %6, %10 : vector<64x32xi1>, vector<64x32xf32>
    %c0_8 = arith.constant 0 : index
    %c1 = arith.constant 1 : index
    %12 = vector.load %arg3[%c0_8, %c1] : memref<64x3xf32, #tpu.memory_space<vmem>>, vector<64x1xf32>
    %13 = vector.broadcast %12 : vector<64x1xf32> to vector<64x32xf32>
    %14 = arith.mulf %11, %13 : vector<64x32xf32>
    %c0_9 = arith.constant 0 : index
    %c2 = arith.constant 2 : index
    %15 = vector.load %arg3[%c0_9, %c2] : memref<64x3xf32, #tpu.memory_space<vmem>>, vector<64x1xf32>
    %16 = vector.broadcast %15 : vector<64x1xf32> to vector<64x32xf32>
    %17 = arith.addf %14, %16 : vector<64x32xf32>
    %18 = arith.truncf %17 : vector<64x32xf32> to vector<64x32xbf16>
    %c0_10 = arith.constant 0 : index
    %c0_11 = arith.constant 0 : index
    %c0_12 = arith.constant 0 : index
    %19 = vector.load %arg4[%c0_10, %c0_11, %c0_12] : memref<1x64x32xbf16, #tpu.memory_space<vmem>>, vector<1x64x32xbf16>
    %20 = vector.shape_cast %19 : vector<1x64x32xbf16> to vector<64x32xbf16>
    %21 = vector.shape_cast %18 : vector<64x32xbf16> to vector<1x64x32xbf16>
    tpu.vector_store %arg4[%c0_10, %c0_11, %c0_12], %21 {strides = array<i32>} : memref<1x64x32xbf16, #tpu.memory_space<vmem>>, vector<1x64x32xbf16>,
    return
  }
  func.func @transform_0(%arg0: i32) -> (i32, i32) {
    %c0_i32 = arith.constant 0 : i32
    %c0_i32_0 = arith.constant 0 : i32
    %c0_i32_1 = arith.constant 0 : i32
    return %c0_i32, %c0_i32_0 : i32, i32
  }
  func.func @transform_1(%arg0: i32) -> (i32, i32, i32) {
    %c0_i32 = arith.constant 0 : i32
    %c0_i32_0 = arith.constant 0 : i32
    %c0_i32_1 = arith.constant 0 : i32
    return %arg0, %c0_i32, %c0_i32_0 : i32, i32, i32
  }
  func.func @transform_2(%arg0: i32) -> (i32, i32) {
    %c0_i32 = arith.constant 0 : i32
    %c0_i32_0 = arith.constant 0 : i32
    %c0_i32_1 = arith.constant 0 : i32
    return %c0_i32, %c0_i32_0 : i32, i32
  }
  func.func @transform_3(%arg0: i32) -> (i32, i32, i32) {
    %c0_i32 = arith.constant 0 : i32
    %c0_i32_0 = arith.constant 0 : i32
    %c0_i32_1 = arith.constant 0 : i32
    return %arg0, %c0_i32, %c0_i32_0 : i32, i32, i32
  }
}

module attributes {stable_mosaic.version = 11 : i64} {
  func.func @_conv_gemm_kernel(%arg0: i32, %arg1: memref<64x1024xbf16, #tpu.memory_space<vmem>>, %arg2: memref<1x1024x8xbf16, #tpu.memory_space<vmem>>, %arg3: memref<64x3xf32, #tpu.memory_space<vmem>>, %arg4: memref<1x64x8xbf16, #tpu.memory_space<vmem>>) attributes {dimension_semantics = [#tpu.dimension_semantics<parallel>], iteration_bounds = array<i64: 2>, scalar_prefetch = 0 : i64, scratch_operands = 0 : i64, tpu.core_type = #tpu.core_type<tc>, window_params = [{pipeline_mode = #tpu.pipeline_mode<synchronous>, transform_indices = @transform_0, window_bounds = array<i64: 64, 1024>}, {transform_indices = @transform_1, window_bounds = array<i64: 1, 1024, 8>}, {pipeline_mode = #tpu.pipeline_mode<synchronous>, transform_indices = @transform_2, window_bounds = array<i64: 64, 3>}, {transform_indices = @transform_3, window_bounds = array<i64: 1, 64, 8>}]} {
    %c0 = arith.constant 0 : index
    %c0_0 = arith.constant 0 : index
    %0 = vector.load %arg1[%c0, %c0_0] : memref<64x1024xbf16, #tpu.memory_space<vmem>>, vector<64x1024xbf16>
    %c0_1 = arith.constant 0 : index
    %c0_2 = arith.constant 0 : index
    %c0_3 = arith.constant 0 : index
    %1 = vector.load %arg2[%c0_1, %c0_2, %c0_3] : memref<1x1024x8xbf16, #tpu.memory_space<vmem>>, vector<1x1024x8xbf16>
    %2 = vector.shape_cast %1 : vector<1x1024x8xbf16> to vector<1024x8xbf16>
    %cst = arith.constant dense<0.000000e+00> : vector<64x8xf32>
    %3 = tpu.matmul %0, %2, %cst {dimension_numbers = #tpu.dot_dimension_numbers<[1], [0], [0], [1], [0, 0, 1, 1], [], []>} : vector<64x1024xbf16>, vector<1024x8xbf16>, vector<64x8xf32> -> vector<64x8xf32>
    %c0_4 = arith.constant 0 : index
    %c0_5 = arith.constant 0 : index
    %4 = vector.load %arg3[%c0_4, %c0_5] : memref<64x3xf32, #tpu.memory_space<vmem>>, vector<64x1xf32>
    %5 = vector.broadcast %4 : vector<64x1xf32> to vector<64x8xf32>
    %6 = arith.addf %3, %5 : vector<64x8xf32>
    %cst_6 = arith.constant 0.000000e+00 : f32
    %7 = vector.broadcast %cst_6 : f32 to vector<64x8xf32>
    %8 = arith.cmpf oge, %6, %7 : vector<64x8xf32>
    %cst_7 = arith.constant 2.000000e-01 : f32
    %9 = vector.broadcast %cst_7 : f32 to vector<64x8xf32>
    %10 = arith.mulf %9, %6 : vector<64x8xf32>
    %11 = arith.select %8, %6, %10 : vector<64x8xi1>, vector<64x8xf32>
    %c0_8 = arith.constant 0 : index
    %c1 = arith.constant 1 : index
    %12 = vector.load %arg3[%c0_8, %c1] : memref<64x3xf32, #tpu.memory_space<vmem>>, vector<64x1xf32>
    %13 = vector.broadcast %12 : vector<64x1xf32> to vector<64x8xf32>
    %14 = arith.mulf %11, %13 : vector<64x8xf32>
    %c0_9 = arith.constant 0 : index
    %c2 = arith.constant 2 : index
    %15 = vector.load %arg3[%c0_9, %c2] : memref<64x3xf32, #tpu.memory_space<vmem>>, vector<64x1xf32>
    %16 = vector.broadcast %15 : vector<64x1xf32> to vector<64x8xf32>
    %17 = arith.addf %14, %16 : vector<64x8xf32>
    %18 = arith.truncf %17 : vector<64x8xf32> to vector<64x8xbf16>
    %c0_10 = arith.constant 0 : index
    %c0_11 = arith.constant 0 : index
    %c0_12 = arith.constant 0 : index
    %19 = vector.load %arg4[%c0_10, %c0_11, %c0_12] : memref<1x64x8xbf16, #tpu.memory_space<vmem>>, vector<1x64x8xbf16>
    %20 = vector.shape_cast %19 : vector<1x64x8xbf16> to vector<64x8xbf16>
    %21 = vector.shape_cast %18 : vector<64x8xbf16> to vector<1x64x8xbf16>
    tpu.vector_store %arg4[%c0_10, %c0_11, %c0_12], %21 {strides = array<i32>} : memref<1x64x8xbf16, #tpu.memory_space<vmem>>, vector<1x64x8xbf16>,
    return
  }
  func.func @transform_0(%arg0: i32) -> (i32, i32) {
    %c0_i32 = arith.constant 0 : i32
    %c0_i32_0 = arith.constant 0 : i32
    %c0_i32_1 = arith.constant 0 : i32
    return %c0_i32, %c0_i32_0 : i32, i32
  }
  func.func @transform_1(%arg0: i32) -> (i32, i32, i32) {
    %c0_i32 = arith.constant 0 : i32
    %c0_i32_0 = arith.constant 0 : i32
    %c0_i32_1 = arith.constant 0 : i32
    return %arg0, %c0_i32, %c0_i32_0 : i32, i32, i32
  }
  func.func @transform_2(%arg0: i32) -> (i32, i32) {
    %c0_i32 = arith.constant 0 : i32
    %c0_i32_0 = arith.constant 0 : i32
    %c0_i32_1 = arith.constant 0 : i32
    return %c0_i32, %c0_i32_0 : i32, i32
  }
  func.func @transform_3(%arg0: i32) -> (i32, i32, i32) {
    %c0_i32 = arith.constant 0 : i32
    %c0_i32_0 = arith.constant 0 : i32
    %c0_i32_1 = arith.constant 0 : i32
    return %arg0, %c0_i32, %c0_i32_0 : i32, i32, i32
  }
}

module attributes {stable_mosaic.version = 11 : i64} {
  func.func @_fc_head_kernel(%arg0: i32, %arg1: memref<2x512xbf16, #tpu.memory_space<vmem>>, %arg2: memref<512x512xf32, #tpu.memory_space<vmem>>, %arg3: memref<1x512xf32, #tpu.memory_space<vmem>>, %arg4: memref<512x423xf32, #tpu.memory_space<vmem>>, %arg5: memref<1x423xf32, #tpu.memory_space<vmem>>, %arg6: memref<2x423xf32, #tpu.memory_space<vmem>>) attributes {dimension_semantics = [#tpu.dimension_semantics<parallel>], iteration_bounds = array<i64: 1>, scalar_prefetch = 0 : i64, scratch_operands = 0 : i64, tpu.core_type = #tpu.core_type<tc>, window_params = [{transform_indices = @transform_0, window_bounds = array<i64: 2, 512>}, {pipeline_mode = #tpu.pipeline_mode<synchronous>, transform_indices = @transform_1, window_bounds = array<i64: 512, 512>}, {pipeline_mode = #tpu.pipeline_mode<synchronous>, transform_indices = @transform_2, window_bounds = array<i64: 1, 512>}, {pipeline_mode = #tpu.pipeline_mode<synchronous>, transform_indices = @transform_3, window_bounds = array<i64: 512, 423>}, {pipeline_mode = #tpu.pipeline_mode<synchronous>, transform_indices = @transform_4, window_bounds = array<i64: 1, 423>}, {transform_indices = @transform_5, window_bounds = array<i64: 2, 423>}]} {
    %c0 = arith.constant 0 : index
    %c0_0 = arith.constant 0 : index
    %0 = vector.load %arg1[%c0, %c0_0] : memref<2x512xbf16, #tpu.memory_space<vmem>>, vector<2x512xbf16>
    %1 = arith.extf %0 : vector<2x512xbf16> to vector<2x512xf32>
    %c0_1 = arith.constant 0 : index
    %c0_2 = arith.constant 0 : index
    %2 = vector.load %arg2[%c0_1, %c0_2] : memref<512x512xf32, #tpu.memory_space<vmem>>, vector<512x512xf32>
    %cst = arith.constant dense<0.000000e+00> : vector<2x512xf32>
    %3 = tpu.matmul %1, %2, %cst {dimension_numbers = #tpu.dot_dimension_numbers<[1], [0], [0], [1], [0, 0, 1, 1], [], []>} : vector<2x512xf32>, vector<512x512xf32>, vector<2x512xf32> -> vector<2x512xf32>
    %c0_3 = arith.constant 0 : index
    %c0_4 = arith.constant 0 : index
    %4 = vector.load %arg3[%c0_3, %c0_4] : memref<1x512xf32, #tpu.memory_space<vmem>>, vector<1x512xf32>
    %5 = vector.broadcast %4 : vector<1x512xf32> to vector<2x512xf32>
    %6 = arith.addf %3, %5 : vector<2x512xf32>
    %cst_5 = arith.constant 0.000000e+00 : f32
    %7 = vector.broadcast %cst_5 : f32 to vector<2x512xf32>
    %8 = arith.cmpf oge, %6, %7 : vector<2x512xf32>
    %cst_6 = arith.constant 2.000000e-01 : f32
    %9 = vector.broadcast %cst_6 : f32 to vector<2x512xf32>
    %10 = arith.mulf %9, %6 : vector<2x512xf32>
    %11 = arith.select %8, %6, %10 : vector<2x512xi1>, vector<2x512xf32>
    %c0_7 = arith.constant 0 : index
    %c0_8 = arith.constant 0 : index
    %12 = vector.load %arg4[%c0_7, %c0_8] : memref<512x423xf32, #tpu.memory_space<vmem>>, vector<512x423xf32>
    %cst_9 = arith.constant dense<0.000000e+00> : vector<2x423xf32>
    %13 = tpu.matmul %11, %12, %cst_9 {dimension_numbers = #tpu.dot_dimension_numbers<[1], [0], [0], [1], [0, 0, 1, 1], [], []>} : vector<2x512xf32>, vector<512x423xf32>, vector<2x423xf32> -> vector<2x423xf32>
    %c0_10 = arith.constant 0 : index
    %c0_11 = arith.constant 0 : index
    %14 = vector.load %arg5[%c0_10, %c0_11] : memref<1x423xf32, #tpu.memory_space<vmem>>, vector<1x423xf32>
    %15 = vector.broadcast %14 : vector<1x423xf32> to vector<2x423xf32>
    %16 = arith.addf %13, %15 : vector<2x423xf32>
    %c0_12 = arith.constant 0 : index
    %c0_13 = arith.constant 0 : index
    %17 = vector.load %arg6[%c0_12, %c0_13] : memref<2x423xf32, #tpu.memory_space<vmem>>, vector<2x423xf32>
    tpu.vector_store %arg6[%c0_12, %c0_13], %16 {strides = array<i32>} : memref<2x423xf32, #tpu.memory_space<vmem>>, vector<2x423xf32>,
    return
  }
  func.func @transform_0(%arg0: i32) -> (i32, i32) {
    %c0_i32 = arith.constant 0 : i32
    %c0_i32_0 = arith.constant 0 : i32
    return %arg0, %c0_i32 : i32, i32
  }
  func.func @transform_1(%arg0: i32) -> (i32, i32) {
    %c0_i32 = arith.constant 0 : i32
    %c0_i32_0 = arith.constant 0 : i32
    %c0_i32_1 = arith.constant 0 : i32
    return %c0_i32, %c0_i32_0 : i32, i32
  }
  func.func @transform_2(%arg0: i32) -> (i32, i32) {
    %c0_i32 = arith.constant 0 : i32
    %c0_i32_0 = arith.constant 0 : i32
    %c0_i32_1 = arith.constant 0 : i32
    return %c0_i32, %c0_i32_0 : i32, i32
  }
  func.func @transform_3(%arg0: i32) -> (i32, i32) {
    %c0_i32 = arith.constant 0 : i32
    %c0_i32_0 = arith.constant 0 : i32
    %c0_i32_1 = arith.constant 0 : i32
    return %c0_i32, %c0_i32_0 : i32, i32
  }
  func.func @transform_4(%arg0: i32) -> (i32, i32) {
    %c0_i32 = arith.constant 0 : i32
    %c0_i32_0 = arith.constant 0 : i32
    %c0_i32_1 = arith.constant 0 : i32
    return %c0_i32, %c0_i32_0 : i32, i32
  }
  func.func @transform_5(%arg0: i32) -> (i32, i32) {
    %c0_i32 = arith.constant 0 : i32
    %c0_i32_0 = arith.constant 0 : i32
    return %arg0, %c0_i32 : i32, i32
  }
}

</mosaic_0001>

<llo_original>
// kernel: cnn_surrogate_forward.7
$region0: #{cnn_surrogate_forward.7}
  #allocation0 [shape = 'u32[]', space=smem, size = 0x4, offset = 0x4, fixed_abs, tag = 'smem constant byte address 0x4 - core index']
  #allocation1 [shape = 'u32[72,128]{1,0:T(1,128)}', space=vmem, size = 0x9000, scoped, tag = 'internal scratch']
  %s0 = inlined_call_operand.vmem [shape: bf16[4,45], index: 0, kind: input, shape index: {}]
  %s1 = inlined_call_operand.vmem [shape: bf16[2,45,2592], index: 1, kind: input, shape index: {}]
  %s2 = inlined_call_operand.vmem [shape: f32[4,3], index: 2, kind: input, shape index: {}]
  %s3 = inlined_call_operand.vmem [shape: bf16[2,4,2592], index: 3, kind: output, shape index: {}]
  %s4 = sld [smem:[#allocation0]]
  $region45: #{cnn_surrogate_forward.7} parent=0
    _
  %s6 = ssub.s32 1, %s4
  %s7 = scalar_select 0, %s6, %s4
  loop: start=0, step=1, limit=4
  $region2: #{cnn_surrogate_forward.7} parent=0 // loop_pre_header
    _
  $region3: #{cnn_surrogate_forward.7} parent=0 // loop_header
    %s9 = sphi 0, %s13
    %p10 = scmp.ge.s32.totalorder %s9, 4
    %s17 = sphi 0, %s17
    %s19 = sphi 0, %s17
    %s20 = sphi 0, %s19
    %s34 = sphi 0, %s20
    %s40 = sphi 0, %s42
    %s43 = sphi 0, %s40
    %s44 = sphi 0, %s43
    %s60 = sphi 0, %s44
    %s64 = sphi 0, %s64
    %s66 = sphi 0, %s64
    %s67 = sphi 0, %s66
    %s81 = sphi 0, %s67
    %s87 = sphi 0, %s89
    %s90 = sphi 0, %s87
    %s91 = sphi 0, %s90
    %s107 = sphi 0, %s91
  $region4: #{cnn_surrogate_forward.7} parent=0 // loop_header_branch
    %12 = sbr.rel (%p10) target = $region8
  $region5: #{cnn_surrogate_forward.7} parent=0 // loop_body
    %s14 = ssub.s32 %s9, 1
    %s15 = ssub.s32 %s9, 2
    %s16 = sadd.s32 %s9, 1
    %s18 = sadd.s32 %s17, 1
    %p21 = scmp.eq.s32.totalorder %s9, 1
    %p22 = scmp.ne.s32.totalorder %s17, %s19
    %p23 = scmp.eq.s32.totalorder %s9, 0
    %p24 = por %p22, %p23
    %p25 = scmp.ne.s32.totalorder %s17, %s19
    %p26 = scmp.eq.s32.totalorder %s14, 1
    %p27 = por %p25, %p26
    %p28 = scmp.ne.s32.totalorder %s19, %s20
    %p29 = scmp.eq.s32.totalorder %s14, 0
    %p30 = por %p28, %p29
    %p31 = scmp.ne.s32.totalorder %s19, %s20
    %p32 = scmp.eq.s32.totalorder %s15, 1
    %p33 = por %p31, %p32
    %p35 = scmp.ne.s32.totalorder %s20, %s34
    %p36 = scmp.eq.s32.totalorder %s15, 0
    %p37 = por %p35, %p36
    %s38 = ssub.s32 %s9, %s16
    %p39 = scmp.eq.s32.totalorder %s38, 0
    %s41 = sadd.s32 %s40, 1
    %s42 = scalar_select %p39, %s40, %s41
    %p45 = pneg %p39
    %p46 = scmp.eq.s32.totalorder %s9, 1
    %p47 = por %p45, %p46
    %p48 = scmp.ne.s32.totalorder %s40, %s43
    %p49 = scmp.eq.s32.totalorder %s9, 0
    %p50 = por %p48, %p49
    %p51 = scmp.ne.s32.totalorder %s40, %s43
    %p52 = scmp.eq.s32.totalorder %s14, 1
    %p53 = por %p51, %p52
    %p54 = scmp.ne.s32.totalorder %s43, %s44
    %p55 = scmp.eq.s32.totalorder %s14, 0
    %p56 = por %p54, %p55
    %p57 = scmp.ne.s32.totalorder %s43, %s44
    %p58 = scmp.eq.s32.totalorder %s15, 1
    %p59 = por %p57, %p58
    %p61 = scmp.ne.s32.totalorder %s44, %s60
    %p62 = scmp.eq.s32.totalorder %s15, 0
    %p63 = por %p61, %p62
    %s65 = sadd.s32 %s64, 1
    %p68 = scmp.eq.s32.totalorder %s9, 1
    %p69 = scmp.ne.s32.totalorder %s64, %s66
    %p70 = scmp.eq.s32.totalorder %s9, 0
    %p71 = por %p69, %p70
    %p72 = scmp.ne.s32.totalorder %s64, %s66
    %p73 = scmp.eq.s32.totalorder %s14, 1
    %p74 = por %p72, %p73
    %p75 = scmp.ne.s32.totalorder %s66, %s67
    %p76 = scmp.eq.s32.totalorder %s14, 0
    %p77 = por %p75, %p76
    %p78 = scmp.ne.s32.totalorder %s66, %s67
    %p79 = scmp.eq.s32.totalorder %s15, 1
    %p80 = por %p78, %p79
    %p82 = scmp.ne.s32.totalorder %s67, %s81
    %p83 = scmp.eq.s32.totalorder %s15, 0
    %p84 = por %p82, %p83
    %s85 = ssub.s32 %s9, %s16
    %p86 = scmp.eq.s32.totalorder %s85, 0
    %s88 = sadd.s32 %s87, 1
    %s89 = scalar_select %p86, %s87, %s88
    %p92 = pneg %p86
    %p93 = scmp.eq.s32.totalorder %s9, 1
    %p94 = por %p92, %p93
    %p95 = scmp.ne.s32.totalorder %s87, %s90
    %p96 = scmp.eq.s32.totalorder %s9, 0
    %p97 = por %p95, %p96
    %p98 = scmp.ne.s32.totalorder %s87, %s90
    %p99 = scmp.eq.s32.totalorder %s14, 1
    %p100 = por %p98, %p99
    %p101 = scmp.ne.s32.totalorder %s90, %s91
    %p102 = scmp.eq.s32.totalorder %s14, 0
    %p103 = por %p101, %p102
    %p104 = scmp.ne.s32.totalorder %s90, %s91
    %p105 = scmp.eq.s32.totalorder %s15, 1
    %p106 = por %p104, %p105
    %p108 = scmp.ne.s32.totalorder %s91, %s107
    %p109 = scmp.eq.s32.totalorder %s15, 0
    %p110 = por %p108, %p109
    %p111 = scmp.le.s32.totalorder 1, %s9
    %p112 = scmp.lt.s32.totalorder %s9, 3
    %p113 = pnand %p111, %p112
    %p114 = pneg %p113
    // Predicated region
    $region9: #{cnn_surrogate_forward.7} parent=5 // pred_check
      _
    $region10: #{cnn_surrogate_forward.7} parent=5 // pred_check_branch
      %116 = sbr.rel (%p113) target = $region12
    $region11: #{cnn_surrogate_forward.7} parent=5 // pred_region
      %s117 = ssub.s32 %s9, 1
      // Predicated region
      $region13: #{cnn_surrogate_forward.7} parent=11 // pred_check
        %p118 = pneg %p30
      $region14: #{cnn_surrogate_forward.7} parent=11 // pred_check_branch
        %120 = sbr.rel (%p118) target = $region16
      $region15: #{cnn_surrogate_forward.7} parent=11 // pred_region
        _
      $region16: #{cnn_surrogate_forward.7} parent=11 // pred_fallthru
        _
      // Predicated region
      $region17: #{cnn_surrogate_forward.7} parent=11 // pred_check
        %p121 = pneg %p77
      $region18: #{cnn_surrogate_forward.7} parent=11 // pred_check_branch
        %123 = sbr.rel (%p121) target = $region20
      $region19: #{cnn_surrogate_forward.7} parent=11 // pred_region
        _
      $region20: #{cnn_surrogate_forward.7} parent=11 // pred_fallthru
        _
    $region12: #{cnn_surrogate_forward.7} parent=5 // pred_fallthru
      _
    %p124 = scmp.lt.s32.totalorder %s9, 2
    // Predicated region
    $region21: #{cnn_surrogate_forward.7} parent=5 // pred_check
      %p125 = pneg %p124
    $region22: #{cnn_surrogate_forward.7} parent=5 // pred_check_branch
      %127 = sbr.rel (%p125) target = $region24
    $region23: #{cnn_surrogate_forward.7} parent=5 // pred_region
      // Predicated region
      $region25: #{cnn_surrogate_forward.7} parent=23 // pred_check
        %p128 = pneg %p50
      $region26: #{cnn_surrogate_forward.7} parent=23 // pred_check_branch
        %130 = sbr.rel (%p128) target = $region28
      $region27: #{cnn_surrogate_forward.7} parent=23 // pred_region
        %p131 = scmp.lt.s32.totalorder %s9, 1
        %s132 = scalar_select %p131, %s9, 1
        %s133 = smul.addr %s132, 126
        %s134 = smul.addr %s133, 4
        %s135 = scalar_lea.vmem %s1, %s134
      $region28: #{cnn_surrogate_forward.7} parent=23 // pred_fallthru
        _
    $region24: #{cnn_surrogate_forward.7} parent=5 // pred_fallthru
      _
    %p136 = scmp.le.s32.totalorder 1, %s9
    %p137 = scmp.lt.s32.totalorder %s9, 3
    %p138 = pnand %p136, %p137
    %p139 = pneg %p138
    // Predicated region
    $region29: #{cnn_surrogate_forward.7} parent=5 // pred_check
      _
    $region30: #{cnn_surrogate_forward.7} parent=5 // pred_check_branch
      %141 = sbr.rel (%p138) target = $region32
    $region31: #{cnn_surrogate_forward.7} parent=5 // pred_region
      %s142 = ssub.s32 %s9, 1
      %p143 = pneg %p30
      %p144 = pneg %p27
      %p145 = scmp.lt.s32.totalorder %s14, 1
      %s146 = scalar_select %p145, %s14, 1
      %s147 = smul.addr %s146, 126
      %s148 = smul.addr %s147, 4
      %s149 = scalar_lea.vmem %s1, %s148
      %p150 = pneg %p56
      %p151 = pneg %p53
      %p152 = pneg %p77
      %p153 = pneg %p74
      %p154 = pneg %p103
      %p155 = pneg %p100
      %p156 = scmp.lt.s32.totalorder %s14, 1
      %s157 = scalar_select %p156, %s14, 1
      %s158 = smul.addr %s157, 21
      %s159 = smul.addr %s158, 2
      %s160 = scalar_lea.vmem %s3, %s159
      %p161 = scmp.lt.s32.totalorder %s14, 1
      %s162 = scalar_select %p161, %s14, 1
      %s163 = smul.addr %s162, 126
      %s164 = smul.addr %s163, 4
      %s165 = scalar_lea.vmem %s1, %s164
      %p166 = scmp.lt.s32.totalorder %s14, 1
      %s167 = scalar_select %p166, %s14, 1
      %s168 = smul.addr %s167, 21
      %s169 = smul.addr %s168, 2
      %s170 = scalar_lea.vmem %s3, %s169
      %v172 = vld [vmem:[%s0] sm:$0x3]
      %v173 = vld [vmem:[%s165] sm:$0xff]
      %v174 = vld [vmem:[%s165 + $0x8] sm:$0xff]
      %v175 = vld [vmem:[%s165 + $0x10] sm:$0xff]
      %v176 = vld [vmem:[%s165 + $0x18] sm:$0xff]
      %v177 = vld [vmem:[%s165 + $0x20] sm:$0xff]
      %v178 = vld [vmem:[%s165 + $0x28] sm:$0xff]
      %v179 = vld [vmem:[%s165 + $0x30] sm:$0xff]
      %v180 = vld [vmem:[%s165 + $0x38] sm:$0xff]
      %v181 = vld [vmem:[%s165 + $0x40] sm:$0xff]
      %v182 = vld [vmem:[%s165 + $0x48] sm:$0xff]
      %v183 = vld [vmem:[%s165 + $0x50] sm:$0xf]
      %v184 = vld [vmem:[%s165 + $0x54] sm:$0xff]
      %v185 = vld [vmem:[%s165 + $0x5c] sm:$0xff]
      %v186 = vld [vmem:[%s165 + $0x64] sm:$0xff]
      %v187 = vld [vmem:[%s165 + $0x6c] sm:$0xff]
      %v188 = vld [vmem:[%s165 + $0x74] sm:$0xff]
      %v189 = vld [vmem:[%s165 + $0x7c] sm:$0xff]
      %v190 = vld [vmem:[%s165 + $0x84] sm:$0xff]
      %v191 = vld [vmem:[%s165 + $0x8c] sm:$0xff]
      %v192 = vld [vmem:[%s165 + $0x94] sm:$0xff]
      %v193 = vld [vmem:[%s165 + $0x9c] sm:$0xff]
      %v194 = vld [vmem:[%s165 + $0xa4] sm:$0xf]
      %v195 = vld [vmem:[%s165 + $0xa8] sm:$0xff]
      %v196 = vld [vmem:[%s165 + $0xb0] sm:$0xff]
      %v197 = vld [vmem:[%s165 + $0xb8] sm:$0xff]
      %v198 = vld [vmem:[%s165 + $0xc0] sm:$0xff]
      %v199 = vld [vmem:[%s165 + $0xc8] sm:$0xff]
      %v200 = vld [vmem:[%s165 + $0xd0] sm:$0xff]
      %v201 = vld [vmem:[%s165 + $0xd8] sm:$0xff]
      %v202 = vld [vmem:[%s165 + $0xe0] sm:$0xff]
      %v203 = vld [vmem:[%s165 + $0xe8] sm:$0xff]
      %v204 = vld [vmem:[%s165 + $0xf0] sm:$0xff]
      %v205 = vld [vmem:[%s165 + $0xf8] sm:$0xf]
      %v206 = vld [vmem:[%s165 + $0xfc] sm:$0xff]
      %v207 = vld [vmem:[%s165 + $0x104] sm:$0xff]
      %v208 = vld [vmem:[%s165 + $0x10c] sm:$0xff]
      %v209 = vld [vmem:[%s165 + $0x114] sm:$0xff]
      %v210 = vld [vmem:[%s165 + $0x11c] sm:$0xff]
      %v211 = vld [vmem:[%s165 + $0x124] sm:$0xff]
      %v212 = vld [vmem:[%s165 + $0x12c] sm:$0xff]
      %v213 = vld [vmem:[%s165 + $0x134] sm:$0xff]
      %v214 = vld [vmem:[%s165 + $0x13c] sm:$0xff]
      %v215 = vld [vmem:[%s165 + $0x144] sm:$0xff]
      %v216 = vld [vmem:[%s165 + $0x14c] sm:$0xf]
      %v217 = vld [vmem:[%s165 + $0x150] sm:$0xff]
      %v218 = vld [vmem:[%s165 + $0x158] sm:$0xff]
      %v219 = vld [vmem:[%s165 + $0x160] sm:$0xff]
      %v220 = vld [vmem:[%s165 + $0x168] sm:$0xff]
      %v221 = vld [vmem:[%s165 + $0x170] sm:$0xff]
      %v222 = vld [vmem:[%s165 + $0x178] sm:$0xff]
      %v223 = vld [vmem:[%s165 + $0x180] sm:$0xff]
      %v224 = vld [vmem:[%s165 + $0x188] sm:$0xff]
      %v225 = vld [vmem:[%s165 + $0x190] sm:$0xff]
      %v226 = vld [vmem:[%s165 + $0x198] sm:$0xff]
      %v227 = vld [vmem:[%s165 + $0x1a0] sm:$0xf]
      %v228 = vld [vmem:[%s165 + $0x1a4] sm:$0x77]
      %v229 = vld [vmem:[%s165 + $0x1ac] sm:$0x77]
      %v230 = vld [vmem:[%s165 + $0x1b4] sm:$0x77]
      %v231 = vld [vmem:[%s165 + $0x1bc] sm:$0x77]
      %v232 = vld [vmem:[%s165 + $0x1c4] sm:$0x77]
      %v233 = vld [vmem:[%s165 + $0x1cc] sm:$0x77]
      %v234 = vld [vmem:[%s165 + $0x1d4] sm:$0x77]
      %v235 = vld [vmem:[%s165 + $0x1dc] sm:$0x77]
      %v236 = vld [vmem:[%s165 + $0x1e4] sm:$0x77]
      %v237 = vld [vmem:[%s165 + $0x1ec] sm:$0x77]
      %v238 = vld [vmem:[%s165 + $0x1f4] sm:$0x7]
      %v239 = vld [vmem:[%s2] sm:$0xf]
      %241 = vset.pattern.permute.xlu0 0
      %242 = vperm.xlu0 %241, %v239
      %v243 = vpop.permute.xlu0 %242
      %v311 = vunpack.c.l.b16 %v173
      %v312 = vunpack.c.h.b16 %v173
      %v313 = vunpack.c.l.b16 %v174
      %v314 = vunpack.c.h.b16 %v174
      %v315 = vunpack.c.l.b16 %v175
      %v316 = vunpack.c.h.b16 %v175
      %v317 = vunpack.c.l.b16 %v176
      %v318 = vunpack.c.h.b16 %v176
      %v319 = vunpack.c.l.b16 %v177
      %v320 = vunpack.c.h.b16 %v177
      %v321 = vunpack.c.l.b16 %v178
      %v322 = vunpack.c.h.b16 %v178
      %v323 = vunpack.c.l.b16 %v179
      %v324 = vunpack.c.h.b16 %v179
      %v325 = vunpack.c.l.b16 %v180
      %v326 = vunpack.c.h.b16 %v180
      %v327 = vunpack.c.l.b16 %v181
      %v328 = vunpack.c.h.b16 %v181
      %v329 = vunpack.c.l.b16 %v182
      %v330 = vunpack.c.h.b16 %v182
      %v331 = vunpack.c.l.b16 %v183
      %v332 = vunpack.c.l.b16 %v184
      %v333 = vunpack.c.h.b16 %v184
      %v334 = vunpack.c.l.b16 %v185
      %v335 = vunpack.c.h.b16 %v185
      %v336 = vunpack.c.l.b16 %v186
      %v337 = vunpack.c.h.b16 %v186
      %v338 = vunpack.c.l.b16 %v187
      %v339 = vunpack.c.h.b16 %v187
      %v340 = vunpack.c.l.b16 %v188
      %v341 = vunpack.c.h.b16 %v188
      %v342 = vunpack.c.l.b16 %v189
      %v343 = vunpack.c.h.b16 %v189
      %v344 = vunpack.c.l.b16 %v190
      %v345 = vunpack.c.h.b16 %v190
      %v346 = vunpack.c.l.b16 %v191
      %v347 = vunpack.c.h.b16 %v191
      %v348 = vunpack.c.l.b16 %v192
      %v349 = vunpack.c.h.b16 %v192
      %v350 = vunpack.c.l.b16 %v193
      %v351 = vunpack.c.h.b16 %v193
      %v352 = vunpack.c.l.b16 %v194
      %v353 = vunpack.c.l.b16 %v195
      %v354 = vunpack.c.h.b16 %v195
      %v355 = vunpack.c.l.b16 %v196
      %v356 = vunpack.c.h.b16 %v196
      %v357 = vunpack.c.l.b16 %v197
      %v358 = vunpack.c.h.b16 %v197
      %v359 = vunpack.c.l.b16 %v198
      %v360 = vunpack.c.h.b16 %v198
      %v361 = vunpack.c.l.b16 %v199
      %v362 = vunpack.c.h.b16 %v199
      %v363 = vunpack.c.l.b16 %v200
      %v364 = vunpack.c.h.b16 %v200
      %v365 = vunpack.c.l.b16 %v201
      %v366 = vunpack.c.h.b16 %v201
      %v367 = vunpack.c.l.b16 %v202
      %v368 = vunpack.c.h.b16 %v202
      %v369 = vunpack.c.l.b16 %v203
      %v370 = vunpack.c.h.b16 %v203
      %v371 = vunpack.c.l.b16 %v204
      %v372 = vunpack.c.h.b16 %v204
      %v373 = vunpack.c.l.b16 %v205
      %v374 = vunpack.c.l.b16 %v206
      %v375 = vunpack.c.h.b16 %v206
      %v376 = vunpack.c.l.b16 %v207
      %v377 = vunpack.c.h.b16 %v207
      %v378 = vunpack.c.l.b16 %v208
      %v379 = vunpack.c.h.b16 %v208
      %v380 = vunpack.c.l.b16 %v209
      %v381 = vunpack.c.h.b16 %v209
      %v382 = vunpack.c.l.b16 %v210
      %v383 = vunpack.c.h.b16 %v210
      %v384 = vunpack.c.l.b16 %v211
      %v385 = vunpack.c.h.b16 %v211
      %v386 = vunpack.c.l.b16 %v212
      %v387 = vunpack.c.h.b16 %v212
      %v388 = vunpack.c.l.b16 %v213
      %v389 = vunpack.c.h.b16 %v213
      %v390 = vunpack.c.l.b16 %v214
      %v391 = vunpack.c.h.b16 %v214
      %v392 = vunpack.c.l.b16 %v215
      %v393 = vunpack.c.h.b16 %v215
      %v394 = vunpack.c.l.b16 %v216
      %v395 = vunpack.c.l.b16 %v217
      %v396 = vunpack.c.h.b16 %v217
      %v397 = vunpack.c.l.b16 %v218
      %v398 = vunpack.c.h.b16 %v218
      %v399 = vunpack.c.l.b16 %v219
      %v400 = vunpack.c.h.b16 %v219
      %v401 = vunpack.c.l.b16 %v220
      %v402 = vunpack.c.h.b16 %v220
      %v403 = vunpack.c.l.b16 %v221
      %v404 = vunpack.c.h.b16 %v221
      %v405 = vunpack.c.l.b16 %v222
      %v406 = vunpack.c.h.b16 %v222
      %v407 = vunpack.c.l.b16 %v223
      %v408 = vunpack.c.h.b16 %v223
      %v409 = vunpack.c.l.b16 %v224
      %v410 = vunpack.c.h.b16 %v224
      %v411 = vunpack.c.l.b16 %v225
      %v412 = vunpack.c.h.b16 %v225
      %v413 = vunpack.c.l.b16 %v226
      %v414 = vunpack.c.h.b16 %v226
      %v415 = vunpack.c.l.b16 %v227
      %v416 = vunpack.c.l.b16 %v228
      %v417 = vunpack.c.h.b16 %v228
      %v418 = vunpack.c.l.b16 %v229
      %v419 = vunpack.c.h.b16 %v229
      %v420 = vunpack.c.l.b16 %v230
      %v421 = vunpack.c.h.b16 %v230
      %v422 = vunpack.c.l.b16 %v231
      %v423 = vunpack.c.h.b16 %v231
      %v424 = vunpack.c.l.b16 %v232
      %v425 = vunpack.c.h.b16 %v232
      %v426 = vunpack.c.l.b16 %v233
      %v427 = vunpack.c.h.b16 %v233
      %v428 = vunpack.c.l.b16 %v234
      %v429 = vunpack.c.h.b16 %v234
      %v430 = vunpack.c.l.b16 %v235
      %v431 = vunpack.c.h.b16 %v235
      %v432 = vunpack.c.l.b16 %v236
      %v433 = vunpack.c.h.b16 %v236
      %v434 = vunpack.c.l.b16 %v237
      %v435 = vunpack.c.h.b16 %v237
      %v436 = vunpack.c.l.b16 %v238
      %v437 = vpack.c.b16 %v332, %v311
      %v438 = vpack.c.b16 %v333, %v312
      %v439 = vpack.c.b16 %v334, %v313
      %v440 = vpack.c.b16 %v335, %v314
      %v441 = vpack.c.b16 %v336, %v315
      %v442 = vpack.c.b16 %v337, %v316
      %v443 = vpack.c.b16 %v338, %v317
      %v444 = vpack.c.b16 %v339, %v318
      %v445 = vpack.c.b16 %v340, %v319
      %v446 = vpack.c.b16 %v341, %v320
      %v447 = vpack.c.b16 %v342, %v321
      %v448 = vpack.c.b16 %v343, %v322
      %v449 = vpack.c.b16 %v344, %v323
      %v450 = vpack.c.b16 %v345, %v324
      %v451 = vpack.c.b16 %v346, %v325
      %v452 = vpack.c.b16 %v347, %v326
      %v453 = vpack.c.b16 %v348, %v327
      %v454 = vpack.c.b16 %v349, %v328
      %v455 = vpack.c.b16 %v350, %v329
      %v456 = vpack.c.b16 %v351, %v330
      %v457 = vpack.c.b16 %v352, %v331
      %v458 = vpack.c.b16 %v374, %v353
      %v459 = vpack.c.b16 %v375, %v354
      %v460 = vpack.c.b16 %v376, %v355
      %v461 = vpack.c.b16 %v377, %v356
      %v462 = vpack.c.b16 %v378, %v357
      %v463 = vpack.c.b16 %v379, %v358
      %v464 = vpack.c.b16 %v380, %v359
      %v465 = vpack.c.b16 %v381, %v360
      %v466 = vpack.c.b16 %v382, %v361
      %v467 = vpack.c.b16 %v383, %v362
      %v468 = vpack.c.b16 %v384, %v363
      %v469 = vpack.c.b16 %v385, %v364
      %v470 = vpack.c.b16 %v386, %v365
      %v471 = vpack.c.b16 %v387, %v366
      %v472 = vpack.c.b16 %v388, %v367
      %v473 = vpack.c.b16 %v389, %v368
      %v474 = vpack.c.b16 %v390, %v369
      %v475 = vpack.c.b16 %v391, %v370
      %v476 = vpack.c.b16 %v392, %v371
      %v477 = vpack.c.b16 %v393, %v372
      %v478 = vpack.c.b16 %v394, %v373
      %v479 = vpack.c.b16 %v416, %v395
      %v480 = vpack.c.b16 %v417, %v396
      %v481 = vpack.c.b16 %v418, %v397
      %v482 = vpack.c.b16 %v419, %v398
      %v483 = vpack.c.b16 %v420, %v399
      %v484 = vpack.c.b16 %v421, %v400
      %v485 = vpack.c.b16 %v422, %v401
      %v486 = vpack.c.b16 %v423, %v402
      %v487 = vpack.c.b16 %v424, %v403
      %v488 = vpack.c.b16 %v425, %v404
      %v489 = vpack.c.b16 %v426, %v405
      %v490 = vpack.c.b16 %v427, %v406
      %v491 = vpack.c.b16 %v428, %v407
      %v492 = vpack.c.b16 %v429, %v408
      %v493 = vpack.c.b16 %v430, %v409
      %v494 = vpack.c.b16 %v431, %v410
      %v495 = vpack.c.b16 %v432, %v411
      %v496 = vpack.c.b16 %v433, %v412
      %v497 = vpack.c.b16 %v434, %v413
      %v498 = vpack.c.b16 %v435, %v414
      %v499 = vpack.c.b16 %v436, %v415
      %vm542 = vcmask 367616
      %v544 = vsel %vm542, %v172, 0
      %vm546 = vcmask 1045504
      %vm547 = vcmask 1046528
      %v548 = vsel %vm546, 4294967295, 65535
      %v549 = vsel %vm547, %v548, 0
      %v551 = vand.u32 %v479, %v549
      %v554 = vand.u32 %v480, %v549
      %v557 = vand.u32 %v481, %v549
      %v560 = vand.u32 %v482, %v549
      %v563 = vand.u32 %v483, %v549
      %v566 = vand.u32 %v484, %v549
      %v569 = vand.u32 %v485, %v549
      %v572 = vand.u32 %v486, %v549
      %v575 = vand.u32 %v487, %v549
      %v578 = vand.u32 %v488, %v549
      %v581 = vand.u32 %v489, %v549
      %v584 = vand.u32 %v490, %v549
      %v587 = vand.u32 %v491, %v549
      %v590 = vand.u32 %v492, %v549
      %v593 = vand.u32 %v493, %v549
      %v596 = vand.u32 %v494, %v549
      %v599 = vand.u32 %v495, %v549
      %v602 = vand.u32 %v496, %v549
      %v605 = vand.u32 %v497, %v549
      %v608 = vand.u32 %v498, %v549
      %v611 = vand.u32 %v499, %v549
      %613 = vmatpush.bf16.msra.mxu0 0
      %614 = vmatpush.bf16.msra.mxu0 0
      %615 = vmatpush.bf16.msra.mxu0 0
      %616 = vmatpush.bf16.msra.mxu0 0
      %617 = vmatpush.bf16.msra.mxu0 0
      %618 = vmatpush.bf16.msra.mxu0 %v551
      %619 = vmatpush.bf16.msra.mxu0 %v458
      %620 = vmatpush.bf16.msra.mxu0 %v437
      %621 = vmatmul.bf16.gmra.mxu0 %v544
      %v622 = vpop.f32.mrf.mxu0
      %v623 = vadd.f32 %v243, %v622
      %v624 = vpop.f32.mrf.mxu0
      %625 = vdwg.mxu0
      %626 = vmatpush.bf16.msra.mxu0 0
      %627 = vmatpush.bf16.msra.mxu0 0
      %628 = vmatpush.bf16.msra.mxu0 0
      %629 = vmatpush.bf16.msra.mxu0 0
      %630 = vmatpush.bf16.msra.mxu0 0
      %631 = vmatpush.bf16.msra.mxu0 %v554
      %632 = vmatpush.bf16.msra.mxu0 %v459
      %633 = vmatpush.bf16.msra.mxu0 %v438
      %634 = vmatmul.bf16.gmra.mxu0 %v544
      %v635 = vpop.f32.mrf.mxu0
      %v636 = vadd.f32 %v243, %v635
      %v637 = vpop.f32.mrf.mxu0
      %638 = vdwg.mxu0
      %639 = vmatpush.bf16.msra.mxu0 0
      %640 = vmatpush.bf16.msra.mxu0 0
      %641 = vmatpush.bf16.msra.mxu0 0
      %642 = vmatpush.bf16.msra.mxu0 0
      %643 = vmatpush.bf16.msra.mxu0 0
      %644 = vmatpush.bf16.msra.mxu0 %v557
      %645 = vmatpush.bf16.msra.mxu0 %v460
      %646 = vmatpush.bf16.msra.mxu0 %v439
      %647 = vmatmul.bf16.gmra.mxu0 %v544
      %v648 = vpop.f32.mrf.mxu0
      %v649 = vadd.f32 %v243, %v648
      %v650 = vpop.f32.mrf.mxu0
      %651 = vdwg.mxu0
      %652 = vmatpush.bf16.msra.mxu0 0
      %653 = vmatpush.bf16.msra.mxu0 0
      %654 = vmatpush.bf16.msra.mxu0 0
      %655 = vmatpush.bf16.msra.mxu0 0
      %656 = vmatpush.bf16.msra.mxu0 0
      %657 = vmatpush.bf16.msra.mxu0 %v560
      %658 = vmatpush.bf16.msra.mxu0 %v461
      %659 = vmatpush.bf16.msra.mxu0 %v440
      %660 = vmatmul.bf16.gmra.mxu0 %v544
      %v661 = vpop.f32.mrf.mxu0
      %v662 = vadd.f32 %v243, %v661
      %v663 = vpop.f32.mrf.mxu0
      %664 = vdwg.mxu0
      %665 = vmatpush.bf16.msra.mxu0 0
      %666 = vmatpush.bf16.msra.mxu0 0
      %667 = vmatpush.bf16.msra.mxu0 0
      %668 = vmatpush.bf16.msra.mxu0 0
      %669 = vmatpush.bf16.msra.mxu0 0
      %670 = vmatpush.bf16.msra.mxu0 %v563
      %671 = vmatpush.bf16.msra.mxu0 %v462
      %672 = vmatpush.bf16.msra.mxu0 %v441
      %673 = vmatmul.bf16.gmra.mxu0 %v544
      %v674 = vpop.f32.mrf.mxu0
      %v675 = vadd.f32 %v243, %v674
      %v676 = vpop.f32.mrf.mxu0
      %677 = vdwg.mxu0
      %678 = vmatpush.bf16.msra.mxu0 0
      %679 = vmatpush.bf16.msra.mxu0 0
      %680 = vmatpush.bf16.msra.mxu0 0
      %681 = vmatpush.bf16.msra.mxu0 0
      %682 = vmatpush.bf16.msra.mxu0 0
      %683 = vmatpush.bf16.msra.mxu0 %v566
      %684 = vmatpush.bf16.msra.mxu0 %v463
      %685 = vmatpush.bf16.msra.mxu0 %v442
      %686 = vmatmul.bf16.gmra.mxu0 %v544
      %v687 = vpop.f32.mrf.mxu0
      %v688 = vadd.f32 %v243, %v687
      %v689 = vpop.f32.mrf.mxu0
      %690 = vdwg.mxu0
      %691 = vmatpush.bf16.msra.mxu0 0
      %692 = vmatpush.bf16.msra.mxu0 0
      %693 = vmatpush.bf16.msra.mxu0 0
      %694 = vmatpush.bf16.msra.mxu0 0
      %695 = vmatpush.bf16.msra.mxu0 0
      %696 = vmatpush.bf16.msra.mxu0 %v569
      %697 = vmatpush.bf16.msra.mxu0 %v464
      %698 = vmatpush.bf16.msra.mxu0 %v443
      %699 = vmatmul.bf16.gmra.mxu0 %v544
      %v700 = vpop.f32.mrf.mxu0
      %v701 = vadd.f32 %v243, %v700
      %v702 = vpop.f32.mrf.mxu0
      %703 = vdwg.mxu0
      %704 = vmatpush.bf16.msra.mxu0 0
      %705 = vmatpush.bf16.msra.mxu0 0
      %706 = vmatpush.bf16.msra.mxu0 0
      %707 = vmatpush.bf16.msra.mxu0 0
      %708 = vmatpush.bf16.msra.mxu0 0
      %709 = vmatpush.bf16.msra.mxu0 %v572
      %710 = vmatpush.bf16.msra.mxu0 %v465
      %711 = vmatpush.bf16.msra.mxu0 %v444
      %712 = vmatmul.bf16.gmra.mxu0 %v544
      %v713 = vpop.f32.mrf.mxu0
      %v714 = vadd.f32 %v243, %v713
      %v715 = vpop.f32.mrf.mxu0
      %716 = vdwg.mxu0
      %717 = vmatpush.bf16.msra.mxu0 0
      %718 = vmatpush.bf16.msra.mxu0 0
      %719 = vmatpush.bf16.msra.mxu0 0
      %720 = vmatpush.bf16.msra.mxu0 0
      %721 = vmatpush.bf16.msra.mxu0 0
      %722 = vmatpush.bf16.msra.mxu0 %v575
      %723 = vmatpush.bf16.msra.mxu0 %v466
      %724 = vmatpush.bf16.msra.mxu0 %v445
      %725 = vmatmul.bf16.gmra.mxu0 %v544
      %v726 = vpop.f32.mrf.mxu0
      %v727 = vadd.f32 %v243, %v726
      %v728 = vpop.f32.mrf.mxu0
      %729 = vdwg.mxu0
      %730 = vmatpush.bf16.msra.mxu0 0
      %731 = vmatpush.bf16.msra.mxu0 0
      %732 = vmatpush.bf16.msra.mxu0 0
      %733 = vmatpush.bf16.msra.mxu0 0
      %734 = vmatpush.bf16.msra.mxu0 0
      %735 = vmatpush.bf16.msra.mxu0 %v578
      %736 = vmatpush.bf16.msra.mxu0 %v467
      %737 = vmatpush.bf16.msra.mxu0 %v446
      %738 = vmatmul.bf16.gmra.mxu0 %v544
      %v739 = vpop.f32.mrf.mxu0
      %v740 = vadd.f32 %v243, %v739
      %v741 = vpop.f32.mrf.mxu0
      %742 = vdwg.mxu0
      %743 = vmatpush.bf16.msra.mxu0 0
      %744 = vmatpush.bf16.msra.mxu0 0
      %745 = vmatpush.bf16.msra.mxu0 0
      %746 = vmatpush.bf16.msra.mxu0 0
      %747 = vmatpush.bf16.msra.mxu0 0
      %748 = vmatpush.bf16.msra.mxu0 %v581
      %749 = vmatpush.bf16.msra.mxu0 %v468
      %750 = vmatpush.bf16.msra.mxu0 %v447
      %751 = vmatmul.bf16.gmra.mxu0 %v544
      %v752 = vpop.f32.mrf.mxu0
      %v753 = vadd.f32 %v243, %v752
      %v754 = vpop.f32.mrf.mxu0
      %755 = vdwg.mxu0
      %756 = vmatpush.bf16.msra.mxu0 0
      %757 = vmatpush.bf16.msra.mxu0 0
      %758 = vmatpush.bf16.msra.mxu0 0
      %759 = vmatpush.bf16.msra.mxu0 0
      %760 = vmatpush.bf16.msra.mxu0 0
      %761 = vmatpush.bf16.msra.mxu0 %v584
      %762 = vmatpush.bf16.msra.mxu0 %v469
      %763 = vmatpush.bf16.msra.mxu0 %v448
      %764 = vmatmul.bf16.gmra.mxu0 %v544
      %v765 = vpop.f32.mrf.mxu0
      %v766 = vadd.f32 %v243, %v765
      %v767 = vpop.f32.mrf.mxu0
      %768 = vdwg.mxu0
      %769 = vmatpush.bf16.msra.mxu0 0
      %770 = vmatpush.bf16.msra.mxu0 0
      %771 = vmatpush.bf16.msra.mxu0 0
      %772 = vmatpush.bf16.msra.mxu0 0
      %773 = vmatpush.bf16.msra.mxu0 0
      %774 = vmatpush.bf16.msra.mxu0 %v587
      %775 = vmatpush.bf16.msra.mxu0 %v470
      %776 = vmatpush.bf16.msra.mxu0 %v449
      %777 = vmatmul.bf16.gmra.mxu0 %v544
      %v778 = vpop.f32.mrf.mxu0
      %v779 = vadd.f32 %v243, %v778
      %v780 = vpop.f32.mrf.mxu0
      %781 = vdwg.mxu0
      %782 = vmatpush.bf16.msra.mxu0 0
      %783 = vmatpush.bf16.msra.mxu0 0
      %784 = vmatpush.bf16.msra.mxu0 0
      %785 = vmatpush.bf16.msra.mxu0 0
      %786 = vmatpush.bf16.msra.mxu0 0
      %787 = vmatpush.bf16.msra.mxu0 %v590
      %788 = vmatpush.bf16.msra.mxu0 %v471
      %789 = vmatpush.bf16.msra.mxu0 %v450
      %790 = vmatmul.bf16.gmra.mxu0 %v544
      %v791 = vpop.f32.mrf.mxu0
      %v792 = vadd.f32 %v243, %v791
      %v793 = vpop.f32.mrf.mxu0
      %794 = vdwg.mxu0
      %795 = vmatpush.bf16.msra.mxu0 0
      %796 = vmatpush.bf16.msra.mxu0 0
      %797 = vmatpush.bf16.msra.mxu0 0
      %798 = vmatpush.bf16.msra.mxu0 0
      %799 = vmatpush.bf16.msra.mxu0 0
      %800 = vmatpush.bf16.msra.mxu0 %v593
      %801 = vmatpush.bf16.msra.mxu0 %v472
      %802 = vmatpush.bf16.msra.mxu0 %v451
      %803 = vmatmul.bf16.gmra.mxu0 %v544
      %v804 = vpop.f32.mrf.mxu0
      %v805 = vadd.f32 %v243, %v804
      %v806 = vpop.f32.mrf.mxu0
      %807 = vdwg.mxu0
      %808 = vmatpush.bf16.msra.mxu0 0
      %809 = vmatpush.bf16.msra.mxu0 0
      %810 = vmatpush.bf16.msra.mxu0 0
      %811 = vmatpush.bf16.msra.mxu0 0
      %812 = vmatpush.bf16.msra.mxu0 0
      %813 = vmatpush.bf16.msra.mxu0 %v596
      %814 = vmatpush.bf16.msra.mxu0 %v473
      %815 = vmatpush.bf16.msra.mxu0 %v452
      %816 = vmatmul.bf16.gmra.mxu0 %v544
      %v817 = vpop.f32.mrf.mxu0
      %v818 = vadd.f32 %v243, %v817
      %v819 = vpop.f32.mrf.mxu0
      %820 = vdwg.mxu0
      %821 = vmatpush.bf16.msra.mxu0 0
      %822 = vmatpush.bf16.msra.mxu0 0
      %823 = vmatpush.bf16.msra.mxu0 0
      %824 = vmatpush.bf16.msra.mxu0 0
      %825 = vmatpush.bf16.msra.mxu0 0
      %826 = vmatpush.bf16.msra.mxu0 %v599
      %827 = vmatpush.bf16.msra.mxu0 %v474
      %828 = vmatpush.bf16.msra.mxu0 %v453
      %829 = vmatmul.bf16.gmra.mxu0 %v544
      %v830 = vpop.f32.mrf.mxu0
      %v831 = vadd.f32 %v243, %v830
      %v832 = vpop.f32.mrf.mxu0
      %833 = vdwg.mxu0
      %834 = vmatpush.bf16.msra.mxu0 0
      %835 = vmatpush.bf16.msra.mxu0 0
      %836 = vmatpush.bf16.msra.mxu0 0
      %837 = vmatpush.bf16.msra.mxu0 0
      %838 = vmatpush.bf16.msra.mxu0 0
      %839 = vmatpush.bf16.msra.mxu0 %v602
      %840 = vmatpush.bf16.msra.mxu0 %v475
      %841 = vmatpush.bf16.msra.mxu0 %v454
      %842 = vmatmul.bf16.gmra.mxu0 %v544
      %v843 = vpop.f32.mrf.mxu0
      %v844 = vadd.f32 %v243, %v843
      %v845 = vpop.f32.mrf.mxu0
      %846 = vdwg.mxu0
      %847 = vmatpush.bf16.msra.mxu0 0
      %848 = vmatpush.bf16.msra.mxu0 0
      %849 = vmatpush.bf16.msra.mxu0 0
      %850 = vmatpush.bf16.msra.mxu0 0
      %851 = vmatpush.bf16.msra.mxu0 0
      %852 = vmatpush.bf16.msra.mxu0 %v605
      %853 = vmatpush.bf16.msra.mxu0 %v476
      %854 = vmatpush.bf16.msra.mxu0 %v455
      %855 = vmatmul.bf16.gmra.mxu0 %v544
      %v856 = vpop.f32.mrf.mxu0
      %v857 = vadd.f32 %v243, %v856
      %v858 = vpop.f32.mrf.mxu0
      %859 = vdwg.mxu0
      %860 = vmatpush.bf16.msra.mxu0 0
      %861 = vmatpush.bf16.msra.mxu0 0
      %862 = vmatpush.bf16.msra.mxu0 0
      %863 = vmatpush.bf16.msra.mxu0 0
      %864 = vmatpush.bf16.msra.mxu0 0
      %865 = vmatpush.bf16.msra.mxu0 %v608
      %866 = vmatpush.bf16.msra.mxu0 %v477
      %867 = vmatpush.bf16.msra.mxu0 %v456
      %868 = vmatmul.bf16.gmra.mxu0 %v544
      %v869 = vpop.f32.mrf.mxu0
      %v870 = vadd.f32 %v243, %v869
      %v871 = vpop.f32.mrf.mxu0
      %872 = vdwg.mxu0
      %873 = vmatpush.bf16.msra.mxu0 0
      %874 = vmatpush.bf16.msra.mxu0 0
      %875 = vmatpush.bf16.msra.mxu0 0
      %876 = vmatpush.bf16.msra.mxu0 0
      %877 = vmatpush.bf16.msra.mxu0 0
      %878 = vmatpush.bf16.msra.mxu0 %v611
      %879 = vmatpush.bf16.msra.mxu0 %v478
      %880 = vmatpush.bf16.msra.mxu0 %v457
      %881 = vmatmul.bf16.gmra.mxu0 %v544
      %v882 = vpop.f32.mrf.mxu0
      %v883 = vadd.f32 %v243, %v882
      %v884 = vpop.f32.mrf.mxu0
      %885 = vdwg.mxu0
      %vm886 = vcmp.ge.f32.partialorder %v623, 0.0
      %vm887 = vcmp.ge.f32.partialorder %v636, 0.0
      %vm888 = vcmp.ge.f32.partialorder %v649, 0.0
      %vm889 = vcmp.ge.f32.partialorder %v662, 0.0
      %vm890 = vcmp.ge.f32.partialorder %v675, 0.0
      %vm891 = vcmp.ge.f32.partialorder %v688, 0.0
      %vm892 = vcmp.ge.f32.partialorder %v701, 0.0
      %vm893 = vcmp.ge.f32.partialorder %v714, 0.0
      %vm894 = vcmp.ge.f32.partialorder %v727, 0.0
      %vm895 = vcmp.ge.f32.partialorder %v740, 0.0
      %vm896 = vcmp.ge.f32.partialorder %v753, 0.0
      %vm897 = vcmp.ge.f32.partialorder %v766, 0.0
      %vm898 = vcmp.ge.f32.partialorder %v779, 0.0
      %vm899 = vcmp.ge.f32.partialorder %v792, 0.0
      %vm900 = vcmp.ge.f32.partialorder %v805, 0.0
      %vm901 = vcmp.ge.f32.partialorder %v818, 0.0
      %vm902 = vcmp.ge.f32.partialorder %v831, 0.0
      %vm903 = vcmp.ge.f32.partialorder %v844, 0.0
      %vm904 = vcmp.ge.f32.partialorder %v857, 0.0
      %vm905 = vcmp.ge.f32.partialorder %v870, 0.0
      %vm906 = vcmp.ge.f32.partialorder %v883, 0.0
      %v907 = vmul.f32 %v623, 0.2
      %v908 = vmul.f32 %v636, 0.2
      %v909 = vmul.f32 %v649, 0.2
      %v910 = vmul.f32 %v662, 0.2
      %v911 = vmul.f32 %v675, 0.2
      %v912 = vmul.f32 %v688, 0.2
      %v913 = vmul.f32 %v701, 0.2
      %v914 = vmul.f32 %v714, 0.2
      %v915 = vmul.f32 %v727, 0.2
      %v916 = vmul.f32 %v740, 0.2
      %v917 = vmul.f32 %v753, 0.2
      %v918 = vmul.f32 %v766, 0.2
      %v919 = vmul.f32 %v779, 0.2
      %v920 = vmul.f32 %v792, 0.2
      %v921 = vmul.f32 %v805, 0.2
      %v922 = vmul.f32 %v818, 0.2
      %v923 = vmul.f32 %v831, 0.2
      %v924 = vmul.f32 %v844, 0.2
      %v925 = vmul.f32 %v857, 0.2
      %v926 = vmul.f32 %v870, 0.2
      %v927 = vmul.f32 %v883, 0.2
      %v928 = vsel %vm886, %v623, %v907
      %v929 = vsel %vm887, %v636, %v908
      %v930 = vsel %vm888, %v649, %v909
      %v931 = vsel %vm889, %v662, %v910
      %v932 = vsel %vm890, %v675, %v911
      %v933 = vsel %vm891, %v688, %v912
      %v934 = vsel %vm892, %v701, %v913
      %v935 = vsel %vm893, %v714, %v914
      %v936 = vsel %vm894, %v727, %v915
      %v937 = vsel %vm895, %v740, %v916
      %v938 = vsel %vm896, %v753, %v917
      %v939 = vsel %vm897, %v766, %v918
      %v940 = vsel %vm898, %v779, %v919
      %v941 = vsel %vm899, %v792, %v920
      %v942 = vsel %vm900, %v805, %v921
      %v943 = vsel %vm901, %v818, %v922
      %v944 = vsel %vm902, %v831, %v923
      %v945 = vsel %vm903, %v844, %v924
      %v946 = vsel %vm904, %v857, %v925
      %v947 = vsel %vm905, %v870, %v926
      %v948 = vsel %vm906, %v883, %v927
      %949 = vset.pattern.permute.xlu0 1
      %950 = vperm.xlu0 %949, %v239
      %v951 = vpop.permute.xlu0 %950
      %v953 = vmul.f32 %v928, %v951
      %v954 = vmul.f32 %v929, %v951
      %v955 = vmul.f32 %v930, %v951
      %v956 = vmul.f32 %v931, %v951
      %v957 = vmul.f32 %v932, %v951
      %v958 = vmul.f32 %v933, %v951
      %v959 = vmul.f32 %v934, %v951
      %v960 = vmul.f32 %v935, %v951
      %v961 = vmul.f32 %v936, %v951
      %v962 = vmul.f32 %v937, %v951
      %v963 = vmul.f32 %v938, %v951
      %v964 = vmul.f32 %v939, %v951
      %v965 = vmul.f32 %v940, %v951
      %v966 = vmul.f32 %v941, %v951
      %v967 = vmul.f32 %v942, %v951
      %v968 = vmul.f32 %v943, %v951
      %v969 = vmul.f32 %v944, %v951
      %v970 = vmul.f32 %v945, %v951
      %v971 = vmul.f32 %v946, %v951
      %v972 = vmul.f32 %v947, %v951
      %v973 = vmul.f32 %v948, %v951
      %974 = vset.pattern.permute.xlu0 2
      %975 = vperm.xlu0 %974, %v239
      %v976 = vpop.permute.xlu0 %975
      %v978 = vadd.f32 %v953, %v976
      %v979 = vadd.f32 %v954, %v976
      %v980 = vadd.f32 %v955, %v976
      %v981 = vadd.f32 %v956, %v976
      %v982 = vadd.f32 %v957, %v976
      %v983 = vadd.f32 %v958, %v976
      %v984 = vadd.f32 %v959, %v976
      %v985 = vadd.f32 %v960, %v976
      %v986 = vadd.f32 %v961, %v976
      %v987 = vadd.f32 %v962, %v976
      %v988 = vadd.f32 %v963, %v976
      %v989 = vadd.f32 %v964, %v976
      %v990 = vadd.f32 %v965, %v976
      %v991 = vadd.f32 %v966, %v976
      %v992 = vadd.f32 %v967, %v976
      %v993 = vadd.f32 %v968, %v976
      %v994 = vadd.f32 %v969, %v976
      %v995 = vadd.f32 %v970, %v976
      %v996 = vadd.f32 %v971, %v976
      %v997 = vadd.f32 %v972, %v976
      %v998 = vadd.f32 %v973, %v976
      %v999 = vpack.c.bf16 %v979, %v978
      %v1000 = vpack.c.bf16 %v981, %v980
      %v1001 = vpack.c.bf16 %v983, %v982
      %v1002 = vpack.c.bf16 %v985, %v984
      %v1003 = vpack.c.bf16 %v987, %v986
      %v1004 = vpack.c.bf16 %v989, %v988
      %v1005 = vpack.c.bf16 %v991, %v990
      %v1006 = vpack.c.bf16 %v993, %v992
      %v1007 = vpack.c.bf16 %v995, %v994
      %v1008 = vpack.c.bf16 %v997, %v996
      %v1009 = vpack.c.bf16 %v998, %v998
      %v1021 = vrot.slane %v999, 2
      %v1022 = vrot.slane %v1000, 4
      %v1023 = vrot.slane %v1000, 6
      %v1024 = vrot.slane %v1001, 2
      %v1025 = vrot.slane %v1002, 4
      %v1026 = vrot.slane %v1002, 6
      %v1027 = vrot.slane %v1003, 2
      %v1028 = vrot.slane %v1004, 4
      %v1029 = vrot.slane %v1004, 6
      %v1030 = vrot.slane %v1005, 2
      %v1031 = vrot.slane %v1006, 4
      %v1032 = vrot.slane %v1006, 6
      %v1033 = vrot.slane %v1007, 2
      %v1034 = vrot.slane %v1008, 4
      %v1035 = vrot.slane %v1008, 6
      %v1036 = vrot.slane %v1009, 2
      %vm1037 = vcmask 1041408
      %v1040 = vsel %vm1037, %v999, %v1021
      %vm1041 = vcmask 1045508
      %v1044 = vsel %vm1041, %v1022, %v1023
      %vm1045 = vcmask 1043456
      %v1046 = vsel %vm1045, %v1040, %v1044
      %v1049 = vsel %vm1037, %v1001, %v1024
      %v1052 = vsel %vm1041, %v1025, %v1026
      %v1053 = vsel %vm1045, %v1049, %v1052
      %v1056 = vsel %vm1037, %v1003, %v1027
      %v1059 = vsel %vm1041, %v1028, %v1029
      %v1060 = vsel %vm1045, %v1056, %v1059
      %v1063 = vsel %vm1037, %v1005, %v1030
      %v1066 = vsel %vm1041, %v1031, %v1032
      %v1067 = vsel %vm1045, %v1063, %v1066
      %v1070 = vsel %vm1037, %v1007, %v1033
      %v1073 = vsel %vm1041, %v1034, %v1035
      %v1074 = vsel %vm1045, %v1070, %v1073
      %v1077 = vsel %vm1037, %v1009, %v1036
      %1084 = vst [vmem:[%s170] sm:$0xff] %v1046
      %1085 = vst [vmem:[%s170 + $0x8] sm:$0xff] %v1053
      %1086 = vst [vmem:[%s170 + $0x10] sm:$0xff] %v1060
      %1087 = vst [vmem:[%s170 + $0x18] sm:$0xff] %v1067
      %1088 = vst [vmem:[%s170 + $0x20] sm:$0xff] %v1074
      %vm1089 = vcmask 254976
      %1090 = vst.msk [vmem:[%s170 + $0x28] sm:$0x3] %vm1089, %v1077
      %p1091 = scmp.lt.s32.totalorder %s14, 1
      %s1092 = scalar_select %p1091, %s14, 1
      %s1093 = smul.addr %s1092, 21
      %s1094 = smul.addr %s1093, 2
      %s1095 = scalar_lea.vmem %s3, %s1094
      // Predicated region
      $region33: #{cnn_surrogate_forward.7} parent=31 // pred_check
        %p1096 = pneg %p100
      $region34: #{cnn_surrogate_forward.7} parent=31 // pred_check_branch
        %1098 = sbr.rel (%p1096) target = $region36
      $region35: #{cnn_surrogate_forward.7} parent=31 // pred_region
        _
      $region36: #{cnn_surrogate_forward.7} parent=31 // pred_fallthru
        _
    $region32: #{cnn_surrogate_forward.7} parent=5 // pred_fallthru
      _
    %p1099 = scmp.le.s32.totalorder 2, %s9
    // Predicated region
    $region37: #{cnn_surrogate_forward.7} parent=5 // pred_check
      %p1100 = pneg %p1099
    $region38: #{cnn_surrogate_forward.7} parent=5 // pred_check_branch
      %1102 = sbr.rel (%p1100) target = $region40
    $region39: #{cnn_surrogate_forward.7} parent=5 // pred_region
      %s1103 = ssub.s32 %s9, 2
      // Predicated region
      $region41: #{cnn_surrogate_forward.7} parent=39 // pred_check
        %p1104 = pneg %p106
      $region42: #{cnn_surrogate_forward.7} parent=39 // pred_check_branch
        %1106 = sbr.rel (%p1104) target = $region44
      $region43: #{cnn_surrogate_forward.7} parent=39 // pred_region
        %p1107 = scmp.lt.s32.totalorder %s15, 1
        %s1108 = scalar_select %p1107, %s15, 1
        %s1109 = smul.addr %s1108, 21
        %s1110 = smul.addr %s1109, 2
        %s1111 = scalar_lea.vmem %s3, %s1110
      $region44: #{cnn_surrogate_forward.7} parent=39 // pred_fallthru
        _
    $region40: #{cnn_surrogate_forward.7} parent=5 // pred_fallthru
      _
  $region6: #{cnn_surrogate_forward.7} parent=0 // loop_footer
    %s13 = sadd.s32 1, %s9
  $region7: #{cnn_surrogate_forward.7} parent=0 // loop_footer_branch
    %8 = sbr.rel target = $region3
  $region8: #{cnn_surrogate_forward.7} parent=0 // loop_exit
    _

// kernel: cnn_surrogate_forward.8
$region0: #{cnn_surrogate_forward.8}
  #allocation0 [shape = 'u32[]', space=smem, size = 0x4, offset = 0x4, fixed_abs, tag = 'smem constant byte address 0x4 - core index']
  #allocation1 [shape = 'u32[72,128]{1,0:T(1,128)}', space=vmem, size = 0x9000, scoped, tag = 'internal scratch']
  %s0 = inlined_call_operand.vmem [shape: bf16[8,180], index: 0, kind: input, shape index: {}]
  %s1 = inlined_call_operand.vmem [shape: bf16[2,180,2048], index: 1, kind: input, shape index: {}]
  %s2 = inlined_call_operand.vmem [shape: f32[8,3], index: 2, kind: input, shape index: {}]
  %s3 = inlined_call_operand.vmem [shape: bf16[2,8,2048], index: 3, kind: output, shape index: {}]
  %s4 = sld [smem:[#allocation0]]
  $region45: #{cnn_surrogate_forward.8} parent=0
    _
  %s6 = ssub.s32 1, %s4
  %s7 = scalar_select 0, %s6, %s4
  loop: start=0, step=1, limit=4
  $region2: #{cnn_surrogate_forward.8} parent=0 // loop_pre_header
    _
  $region3: #{cnn_surrogate_forward.8} parent=0 // loop_header
    %s9 = sphi 0, %s13
    %p10 = scmp.ge.s32.totalorder %s9, 4
    %s17 = sphi 0, %s17
    %s19 = sphi 0, %s17
    %s20 = sphi 0, %s19
    %s34 = sphi 0, %s20
    %s40 = sphi 0, %s42
    %s43 = sphi 0, %s40
    %s44 = sphi 0, %s43
    %s60 = sphi 0, %s44
    %s64 = sphi 0, %s64
    %s66 = sphi 0, %s64
    %s67 = sphi 0, %s66
    %s81 = sphi 0, %s67
    %s87 = sphi 0, %s89
    %s90 = sphi 0, %s87
    %s91 = sphi 0, %s90
    %s107 = sphi 0, %s91
  $region4: #{cnn_surrogate_forward.8} parent=0 // loop_header_branch
    %12 = sbr.rel (%p10) target = $region8
  $region5: #{cnn_surrogate_forward.8} parent=0 // loop_body
    %s14 = ssub.s32 %s9, 1
    %s15 = ssub.s32 %s9, 2
    %s16 = sadd.s32 %s9, 1
    %s18 = sadd.s32 %s17, 1
    %p21 = scmp.eq.s32.totalorder %s9, 1
    %p22 = scmp.ne.s32.totalorder %s17, %s19
    %p23 = scmp.eq.s32.totalorder %s9, 0
    %p24 = por %p22, %p23
    %p25 = scmp.ne.s32.totalorder %s17, %s19
    %p26 = scmp.eq.s32.totalorder %s14, 1
    %p27 = por %p25, %p26
    %p28 = scmp.ne.s32.totalorder %s19, %s20
    %p29 = scmp.eq.s32.totalorder %s14, 0
    %p30 = por %p28, %p29
    %p31 = scmp.ne.s32.totalorder %s19, %s20
    %p32 = scmp.eq.s32.totalorder %s15, 1
    %p33 = por %p31, %p32
    %p35 = scmp.ne.s32.totalorder %s20, %s34
    %p36 = scmp.eq.s32.totalorder %s15, 0
    %p37 = por %p35, %p36
    %s38 = ssub.s32 %s9, %s16
    %p39 = scmp.eq.s32.totalorder %s38, 0
    %s41 = sadd.s32 %s40, 1
    %s42 = scalar_select %p39, %s40, %s41
    %p45 = pneg %p39
    %p46 = scmp.eq.s32.totalorder %s9, 1
    %p47 = por %p45, %p46
    %p48 = scmp.ne.s32.totalorder %s40, %s43
    %p49 = scmp.eq.s32.totalorder %s9, 0
    %p50 = por %p48, %p49
    %p51 = scmp.ne.s32.totalorder %s40, %s43
    %p52 = scmp.eq.s32.totalorder %s14, 1
    %p53 = por %p51, %p52
    %p54 = scmp.ne.s32.totalorder %s43, %s44
    %p55 = scmp.eq.s32.totalorder %s14, 0
    %p56 = por %p54, %p55
    %p57 = scmp.ne.s32.totalorder %s43, %s44
    %p58 = scmp.eq.s32.totalorder %s15, 1
    %p59 = por %p57, %p58
    %p61 = scmp.ne.s32.totalorder %s44, %s60
    %p62 = scmp.eq.s32.totalorder %s15, 0
    %p63 = por %p61, %p62
    %s65 = sadd.s32 %s64, 1
    %p68 = scmp.eq.s32.totalorder %s9, 1
    %p69 = scmp.ne.s32.totalorder %s64, %s66
    %p70 = scmp.eq.s32.totalorder %s9, 0
    %p71 = por %p69, %p70
    %p72 = scmp.ne.s32.totalorder %s64, %s66
    %p73 = scmp.eq.s32.totalorder %s14, 1
    %p74 = por %p72, %p73
    %p75 = scmp.ne.s32.totalorder %s66, %s67
    %p76 = scmp.eq.s32.totalorder %s14, 0
    %p77 = por %p75, %p76
    %p78 = scmp.ne.s32.totalorder %s66, %s67
    %p79 = scmp.eq.s32.totalorder %s15, 1
    %p80 = por %p78, %p79
    %p82 = scmp.ne.s32.totalorder %s67, %s81
    %p83 = scmp.eq.s32.totalorder %s15, 0
    %p84 = por %p82, %p83
    %s85 = ssub.s32 %s9, %s16
    %p86 = scmp.eq.s32.totalorder %s85, 0
    %s88 = sadd.s32 %s87, 1
    %s89 = scalar_select %p86, %s87, %s88
    %p92 = pneg %p86
    %p93 = scmp.eq.s32.totalorder %s9, 1
    %p94 = por %p92, %p93
    %p95 = scmp.ne.s32.totalorder %s87, %s90
    %p96 = scmp.eq.s32.totalorder %s9, 0
    %p97 = por %p95, %p96
    %p98 = scmp.ne.s32.totalorder %s87, %s90
    %p99 = scmp.eq.s32.totalorder %s14, 1
    %p100 = por %p98, %p99
    %p101 = scmp.ne.s32.totalorder %s90, %s91
    %p102 = scmp.eq.s32.totalorder %s14, 0
    %p103 = por %p101, %p102
    %p104 = scmp.ne.s32.totalorder %s90, %s91
    %p105 = scmp.eq.s32.totalorder %s15, 1
    %p106 = por %p104, %p105
    %p108 = scmp.ne.s32.totalorder %s91, %s107
    %p109 = scmp.eq.s32.totalorder %s15, 0
    %p110 = por %p108, %p109
    %p111 = scmp.le.s32.totalorder 1, %s9
    %p112 = scmp.lt.s32.totalorder %s9, 3
    %p113 = pnand %p111, %p112
    %p114 = pneg %p113
    // Predicated region
    $region9: #{cnn_surrogate_forward.8} parent=5 // pred_check
      _
    $region10: #{cnn_surrogate_forward.8} parent=5 // pred_check_branch
      %116 = sbr.rel (%p113) target = $region12
    $region11: #{cnn_surrogate_forward.8} parent=5 // pred_region
      %s117 = ssub.s32 %s9, 1
      // Predicated region
      $region13: #{cnn_surrogate_forward.8} parent=11 // pred_check
        %p118 = pneg %p30
      $region14: #{cnn_surrogate_forward.8} parent=11 // pred_check_branch
        %120 = sbr.rel (%p118) target = $region16
      $region15: #{cnn_surrogate_forward.8} parent=11 // pred_region
        _
      $region16: #{cnn_surrogate_forward.8} parent=11 // pred_fallthru
        _
      // Predicated region
      $region17: #{cnn_surrogate_forward.8} parent=11 // pred_check
        %p121 = pneg %p77
      $region18: #{cnn_surrogate_forward.8} parent=11 // pred_check_branch
        %123 = sbr.rel (%p121) target = $region20
      $region19: #{cnn_surrogate_forward.8} parent=11 // pred_region
        _
      $region20: #{cnn_surrogate_forward.8} parent=11 // pred_fallthru
        _
    $region12: #{cnn_surrogate_forward.8} parent=5 // pred_fallthru
      _
    %p124 = scmp.lt.s32.totalorder %s9, 2
    // Predicated region
    $region21: #{cnn_surrogate_forward.8} parent=5 // pred_check
      %p125 = pneg %p124
    $region22: #{cnn_surrogate_forward.8} parent=5 // pred_check_branch
      %127 = sbr.rel (%p125) target = $region24
    $region23: #{cnn_surrogate_forward.8} parent=5 // pred_region
      // Predicated region
      $region25: #{cnn_surrogate_forward.8} parent=23 // pred_check
        %p128 = pneg %p50
      $region26: #{cnn_surrogate_forward.8} parent=23 // pred_check_branch
        %130 = sbr.rel (%p128) target = $region28
      $region27: #{cnn_surrogate_forward.8} parent=23 // pred_region
        %p131 = scmp.lt.s32.totalorder %s9, 1
        %s132 = scalar_select %p131, %s9, 1
        %s133 = smul.addr %s132, 368
        %s134 = smul.addr %s133, 4
        %s135 = scalar_lea.vmem %s1, %s134
      $region28: #{cnn_surrogate_forward.8} parent=23 // pred_fallthru
        _
    $region24: #{cnn_surrogate_forward.8} parent=5 // pred_fallthru
      _
    %p136 = scmp.le.s32.totalorder 1, %s9
    %p137 = scmp.lt.s32.totalorder %s9, 3
    %p138 = pnand %p136, %p137
    %p139 = pneg %p138
    // Predicated region
    $region29: #{cnn_surrogate_forward.8} parent=5 // pred_check
      _
    $region30: #{cnn_surrogate_forward.8} parent=5 // pred_check_branch
      %141 = sbr.rel (%p138) target = $region32
    $region31: #{cnn_surrogate_forward.8} parent=5 // pred_region
      %s142 = ssub.s32 %s9, 1
      %p143 = pneg %p30
      %p144 = pneg %p27
      %p145 = scmp.lt.s32.totalorder %s14, 1
      %s146 = scalar_select %p145, %s14, 1
      %s147 = smul.addr %s146, 368
      %s148 = smul.addr %s147, 4
      %s149 = scalar_lea.vmem %s1, %s148
      %p150 = pneg %p56
      %p151 = pneg %p53
      %p152 = pneg %p77
      %p153 = pneg %p74
      %p154 = pneg %p103
      %p155 = pneg %p100
      %p156 = scmp.lt.s32.totalorder %s14, 1
      %s157 = scalar_select %p156, %s14, 1
      %s158 = smul.addr %s157, 16
      %s159 = smul.addr %s158, 4
      %s160 = scalar_lea.vmem %s3, %s159
      %p161 = scmp.lt.s32.totalorder %s14, 1
      %s162 = scalar_select %p161, %s14, 1
      %s163 = smul.addr %s162, 368
      %s164 = smul.addr %s163, 4
      %s165 = scalar_lea.vmem %s1, %s164
      %p166 = scmp.lt.s32.totalorder %s14, 1
      %s167 = scalar_select %p166, %s14, 1
      %s168 = smul.addr %s167, 16
      %s169 = smul.addr %s168, 4
      %s170 = scalar_lea.vmem %s3, %s169
      %v172 = vld [vmem:[%s0] sm:$0xff]
      %v173 = vld [vmem:[%s165] sm:$0xff]
      %v174 = vld [vmem:[%s165 + $0x8] sm:$0xff]
      %v175 = vld [vmem:[%s165 + $0x10] sm:$0xff]
      %v176 = vld [vmem:[%s165 + $0x18] sm:$0xff]
      %v177 = vld [vmem:[%s165 + $0x20] sm:$0xff]
      %v178 = vld [vmem:[%s165 + $0x28] sm:$0xff]
      %v179 = vld [vmem:[%s165 + $0x30] sm:$0xff]
      %v180 = vld [vmem:[%s165 + $0x38] sm:$0xff]
      %v181 = vld [vmem:[%s165 + $0x40] sm:$0xff]
      %v182 = vld [vmem:[%s165 + $0x48] sm:$0xff]
      %v183 = vld [vmem:[%s165 + $0x50] sm:$0xff]
      %v184 = vld [vmem:[%s165 + $0x58] sm:$0xff]
      %v185 = vld [vmem:[%s165 + $0x60] sm:$0xff]
      %v186 = vld [vmem:[%s165 + $0x68] sm:$0xff]
      %v187 = vld [vmem:[%s165 + $0x70] sm:$0xff]
      %v188 = vld [vmem:[%s165 + $0x78] sm:$0xff]
      %v189 = vld [vmem:[%s165 + $0x80] sm:$0xff]
      %v190 = vld [vmem:[%s165 + $0x88] sm:$0xff]
      %v191 = vld [vmem:[%s165 + $0x90] sm:$0xff]
      %v192 = vld [vmem:[%s165 + $0x98] sm:$0xff]
      %v193 = vld [vmem:[%s165 + $0xa0] sm:$0xff]
      %v194 = vld [vmem:[%s165 + $0xa8] sm:$0xff]
      %v195 = vld [vmem:[%s165 + $0xb0] sm:$0xff]
      %v196 = vld [vmem:[%s165 + $0xb8] sm:$0xff]
      %v197 = vld [vmem:[%s165 + $0xc0] sm:$0xff]
      %v198 = vld [vmem:[%s165 + $0xc8] sm:$0xff]
      %v199 = vld [vmem:[%s165 + $0xd0] sm:$0xff]
      %v200 = vld [vmem:[%s165 + $0xd8] sm:$0xff]
      %v201 = vld [vmem:[%s165 + $0xe0] sm:$0xff]
      %v202 = vld [vmem:[%s165 + $0xe8] sm:$0xff]
      %v203 = vld [vmem:[%s165 + $0xf0] sm:$0xff]
      %v204 = vld [vmem:[%s165 + $0xf8] sm:$0xff]
      %v205 = vld [vmem:[%s165 + $0x100] sm:$0xff]
      %v206 = vld [vmem:[%s165 + $0x108] sm:$0xff]
      %v207 = vld [vmem:[%s165 + $0x110] sm:$0xff]
      %v208 = vld [vmem:[%s165 + $0x118] sm:$0xff]
      %v209 = vld [vmem:[%s165 + $0x120] sm:$0xff]
      %v210 = vld [vmem:[%s165 + $0x128] sm:$0xff]
      %v211 = vld [vmem:[%s165 + $0x130] sm:$0xff]
      %v212 = vld [vmem:[%s165 + $0x138] sm:$0xff]
      %v213 = vld [vmem:[%s165 + $0x140] sm:$0xff]
      %v214 = vld [vmem:[%s165 + $0x148] sm:$0xff]
      %v215 = vld [vmem:[%s165 + $0x150] sm:$0xff]
      %v216 = vld [vmem:[%s165 + $0x158] sm:$0xff]
      %v217 = vld [vmem:[%s165 + $0x160] sm:$0xff]
      %v218 = vld [vmem:[%s165 + $0x168] sm:$0xff]
      %v219 = vld [vmem:[%s165 + $0x170] sm:$0xff]
      %v220 = vld [vmem:[%s165 + $0x178] sm:$0xff]
      %v221 = vld [vmem:[%s165 + $0x180] sm:$0xff]
      %v222 = vld [vmem:[%s165 + $0x188] sm:$0xff]
      %v223 = vld [vmem:[%s165 + $0x190] sm:$0xff]
      %v224 = vld [vmem:[%s165 + $0x198] sm:$0xff]
      %v225 = vld [vmem:[%s165 + $0x1a0] sm:$0xff]
      %v226 = vld [vmem:[%s165 + $0x1a8] sm:$0xff]
      %v227 = vld [vmem:[%s165 + $0x1b0] sm:$0xff]
      %v228 = vld [vmem:[%s165 + $0x1b8] sm:$0xff]
      %v229 = vld [vmem:[%s165 + $0x1c0] sm:$0xff]
      %v230 = vld [vmem:[%s165 + $0x1c8] sm:$0xff]
      %v231 = vld [vmem:[%s165 + $0x1d0] sm:$0xff]
      %v232 = vld [vmem:[%s165 + $0x1d8] sm:$0xff]
      %v233 = vld [vmem:[%s165 + $0x1e0] sm:$0xff]
      %v234 = vld [vmem:[%s165 + $0x1e8] sm:$0xff]
      %v235 = vld [vmem:[%s165 + $0x1f0] sm:$0xff]
      %v236 = vld [vmem:[%s165 + $0x1f8] sm:$0xff]
      %v237 = vld [vmem:[%s165 + $0x200] sm:$0xff]
      %v238 = vld [vmem:[%s165 + $0x208] sm:$0xff]
      %v239 = vld [vmem:[%s165 + $0x210] sm:$0xff]
      %v240 = vld [vmem:[%s165 + $0x218] sm:$0xff]
      %v241 = vld [vmem:[%s165 + $0x220] sm:$0xff]
      %v242 = vld [vmem:[%s165 + $0x228] sm:$0xff]
      %v243 = vld [vmem:[%s165 + $0x230] sm:$0xff]
      %v244 = vld [vmem:[%s165 + $0x238] sm:$0xff]
      %v245 = vld [vmem:[%s165 + $0x240] sm:$0xff]
      %v246 = vld [vmem:[%s165 + $0x248] sm:$0xff]
      %v247 = vld [vmem:[%s165 + $0x250] sm:$0xff]
      %v248 = vld [vmem:[%s165 + $0x258] sm:$0xff]
      %v249 = vld [vmem:[%s165 + $0x260] sm:$0xff]
      %v250 = vld [vmem:[%s165 + $0x268] sm:$0xff]
      %v251 = vld [vmem:[%s165 + $0x270] sm:$0xff]
      %v252 = vld [vmem:[%s165 + $0x278] sm:$0xff]
      %v253 = vld [vmem:[%s165 + $0x280] sm:$0xff]
      %v254 = vld [vmem:[%s165 + $0x288] sm:$0xff]
      %v255 = vld [vmem:[%s165 + $0x290] sm:$0xff]
      %v256 = vld [vmem:[%s165 + $0x298] sm:$0xff]
      %v257 = vld [vmem:[%s165 + $0x2a0] sm:$0xff]
      %v258 = vld [vmem:[%s165 + $0x2a8] sm:$0xff]
      %v259 = vld [vmem:[%s165 + $0x2b0] sm:$0xff]
      %v260 = vld [vmem:[%s165 + $0x2b8] sm:$0xff]
      %v261 = vld [vmem:[%s165 + $0x2c0] sm:$0xff]
      %v262 = vld [vmem:[%s165 + $0x2c8] sm:$0xff]
      %v263 = vld [vmem:[%s165 + $0x2d0] sm:$0xff]
      %v264 = vld [vmem:[%s165 + $0x2d8] sm:$0xff]
      %v265 = vld [vmem:[%s165 + $0x2e0] sm:$0xff]
      %v266 = vld [vmem:[%s165 + $0x2e8] sm:$0xff]
      %v267 = vld [vmem:[%s165 + $0x2f0] sm:$0xff]
      %v268 = vld [vmem:[%s165 + $0x2f8] sm:$0xff]
      %v269 = vld [vmem:[%s165 + $0x300] sm:$0xff]
      %v270 = vld [vmem:[%s165 + $0x308] sm:$0xff]
      %v271 = vld [vmem:[%s165 + $0x310] sm:$0xff]
      %v272 = vld [vmem:[%s165 + $0x318] sm:$0xff]
      %v273 = vld [vmem:[%s165 + $0x320] sm:$0xff]
      %v274 = vld [vmem:[%s165 + $0x328] sm:$0xff]
      %v275 = vld [vmem:[%s165 + $0x330] sm:$0xff]
      %v276 = vld [vmem:[%s165 + $0x338] sm:$0xff]
      %v277 = vld [vmem:[%s165 + $0x340] sm:$0xff]
      %v278 = vld [vmem:[%s165 + $0x348] sm:$0xff]
      %v279 = vld [vmem:[%s165 + $0x350] sm:$0xff]
      %v280 = vld [vmem:[%s165 + $0x358] sm:$0xff]
      %v281 = vld [vmem:[%s165 + $0x360] sm:$0xff]
      %v282 = vld [vmem:[%s165 + $0x368] sm:$0xff]
      %v283 = vld [vmem:[%s165 + $0x370] sm:$0xff]
      %v284 = vld [vmem:[%s165 + $0x378] sm:$0xff]
      %v285 = vld [vmem:[%s165 + $0x380] sm:$0xff]
      %v286 = vld [vmem:[%s165 + $0x388] sm:$0xff]
      %v287 = vld [vmem:[%s165 + $0x390] sm:$0xff]
      %v288 = vld [vmem:[%s165 + $0x398] sm:$0xff]
      %v289 = vld [vmem:[%s165 + $0x3a0] sm:$0xff]
      %v290 = vld [vmem:[%s165 + $0x3a8] sm:$0xff]
      %v291 = vld [vmem:[%s165 + $0x3b0] sm:$0xff]
      %v292 = vld [vmem:[%s165 + $0x3b8] sm:$0xff]
      %v293 = vld [vmem:[%s165 + $0x3c0] sm:$0xff]
      %v294 = vld [vmem:[%s165 + $0x3c8] sm:$0xff]
      %v295 = vld [vmem:[%s165 + $0x3d0] sm:$0xff]
      %v296 = vld [vmem:[%s165 + $0x3d8] sm:$0xff]
      %v297 = vld [vmem:[%s165 + $0x3e0] sm:$0xff]
      %v298 = vld [vmem:[%s165 + $0x3e8] sm:$0xff]
      %v299 = vld [vmem:[%s165 + $0x3f0] sm:$0xff]
      %v300 = vld [vmem:[%s165 + $0x3f8] sm:$0xff]
      %v301 = vld [vmem:[%s165 + $0x400] sm:$0xff]
      %v302 = vld [vmem:[%s165 + $0x408] sm:$0xff]
      %v303 = vld [vmem:[%s165 + $0x410] sm:$0xff]
      %v304 = vld [vmem:[%s165 + $0x418] sm:$0xff]
      %v305 = vld [vmem:[%s165 + $0x420] sm:$0xff]
      %v306 = vld [vmem:[%s165 + $0x428] sm:$0xff]
      %v307 = vld [vmem:[%s165 + $0x430] sm:$0xff]
      %v308 = vld [vmem:[%s165 + $0x438] sm:$0xff]
      %v309 = vld [vmem:[%s165 + $0x440] sm:$0xff]
      %v310 = vld [vmem:[%s165 + $0x448] sm:$0xff]
      %v311 = vld [vmem:[%s165 + $0x450] sm:$0xff]
      %v312 = vld [vmem:[%s165 + $0x458] sm:$0xff]
      %v313 = vld [vmem:[%s165 + $0x460] sm:$0xff]
      %v314 = vld [vmem:[%s165 + $0x468] sm:$0xff]
      %v315 = vld [vmem:[%s165 + $0x470] sm:$0xff]
      %v316 = vld [vmem:[%s165 + $0x478] sm:$0xff]
      %v317 = vld [vmem:[%s165 + $0x480] sm:$0xff]
      %v318 = vld [vmem:[%s165 + $0x488] sm:$0xff]
      %v319 = vld [vmem:[%s165 + $0x490] sm:$0xff]
      %v320 = vld [vmem:[%s165 + $0x498] sm:$0xff]
      %v321 = vld [vmem:[%s165 + $0x4a0] sm:$0xff]
      %v322 = vld [vmem:[%s165 + $0x4a8] sm:$0xff]
      %v323 = vld [vmem:[%s165 + $0x4b0] sm:$0xff]
      %v324 = vld [vmem:[%s165 + $0x4b8] sm:$0xff]
      %v325 = vld [vmem:[%s165 + $0x4c0] sm:$0xff]
      %v326 = vld [vmem:[%s165 + $0x4c8] sm:$0xff]
      %v327 = vld [vmem:[%s165 + $0x4d0] sm:$0xff]
      %v328 = vld [vmem:[%s165 + $0x4d8] sm:$0xff]
      %v329 = vld [vmem:[%s165 + $0x4e0] sm:$0xff]
      %v330 = vld [vmem:[%s165 + $0x4e8] sm:$0xff]
      %v331 = vld [vmem:[%s165 + $0x4f0] sm:$0xff]
      %v332 = vld [vmem:[%s165 + $0x4f8] sm:$0xff]
      %v333 = vld [vmem:[%s165 + $0x500] sm:$0xff]
      %v334 = vld [vmem:[%s165 + $0x508] sm:$0xff]
      %v335 = vld [vmem:[%s165 + $0x510] sm:$0xff]
      %v336 = vld [vmem:[%s165 + $0x518] sm:$0xff]
      %v337 = vld [vmem:[%s165 + $0x520] sm:$0xff]
      %v338 = vld [vmem:[%s165 + $0x528] sm:$0xff]
      %v339 = vld [vmem:[%s165 + $0x530] sm:$0xff]
      %v340 = vld [vmem:[%s165 + $0x538] sm:$0xff]
      %v341 = vld [vmem:[%s165 + $0x540] sm:$0xff]
      %v342 = vld [vmem:[%s165 + $0x548] sm:$0xff]
      %v343 = vld [vmem:[%s165 + $0x550] sm:$0xff]
      %v344 = vld [vmem:[%s165 + $0x558] sm:$0xff]
      %v345 = vld [vmem:[%s165 + $0x560] sm:$0xff]
      %v346 = vld [vmem:[%s165 + $0x568] sm:$0xff]
      %v347 = vld [vmem:[%s165 + $0x570] sm:$0xff]
      %v348 = vld [vmem:[%s165 + $0x578] sm:$0xff]
      %v349 = vld [vmem:[%s165 + $0x580] sm:$0x33]
      %v350 = vld [vmem:[%s165 + $0x588] sm:$0x33]
      %v351 = vld [vmem:[%s165 + $0x590] sm:$0x33]
      %v352 = vld [vmem:[%s165 + $0x598] sm:$0x33]
      %v353 = vld [vmem:[%s165 + $0x5a0] sm:$0x33]
      %v354 = vld [vmem:[%s165 + $0x5a8] sm:$0x33]
      %v355 = vld [vmem:[%s165 + $0x5b0] sm:$0x33]
      %v356 = vld [vmem:[%s165 + $0x5b8] sm:$0x33]
      %v357 = vld [vmem:[%s2] sm:$0xff]
      %359 = vset.pattern.permute.xlu0 0
      %360 = vperm.xlu0 %359, %v357
      %v361 = vpop.permute.xlu0 %360
      %v364 = vunpack.c.l.b16 %v172
      %v365 = vunpack.c.h.b16 %v172
      %v366 = vpack.c.b16 %v364, %v364
      %v367 = vpack.c.b16 %v365, %v365
      %v553 = vunpack.c.l.b16 %v173
      %v554 = vunpack.c.h.b16 %v173
      %v555 = vunpack.c.l.b16 %v174
      %v556 = vunpack.c.h.b16 %v174
      %v557 = vunpack.c.l.b16 %v175
      %v558 = vunpack.c.h.b16 %v175
      %v559 = vunpack.c.l.b16 %v176
      %v560 = vunpack.c.h.b16 %v176
      %v561 = vunpack.c.l.b16 %v177
      %v562 = vunpack.c.h.b16 %v177
      %v563 = vunpack.c.l.b16 %v178
      %v564 = vunpack.c.h.b16 %v178
      %v565 = vunpack.c.l.b16 %v179
      %v566 = vunpack.c.h.b16 %v179
      %v567 = vunpack.c.l.b16 %v180
      %v568 = vunpack.c.h.b16 %v180
      %v569 = vunpack.c.l.b16 %v181
      %v570 = vunpack.c.h.b16 %v181
      %v571 = vunpack.c.l.b16 %v182
      %v572 = vunpack.c.h.b16 %v182
      %v573 = vunpack.c.l.b16 %v183
      %v574 = vunpack.c.h.b16 %v183
      %v575 = vunpack.c.l.b16 %v184
      %v576 = vunpack.c.h.b16 %v184
      %v577 = vunpack.c.l.b16 %v185
      %v578 = vunpack.c.h.b16 %v185
      %v579 = vunpack.c.l.b16 %v186
      %v580 = vunpack.c.h.b16 %v186
      %v581 = vunpack.c.l.b16 %v187
      %v582 = vunpack.c.h.b16 %v187
      %v583 = vunpack.c.l.b16 %v188
      %v584 = vunpack.c.h.b16 %v188
      %v585 = vunpack.c.l.b16 %v189
      %v586 = vunpack.c.h.b16 %v189
      %v587 = vunpack.c.l.b16 %v190
      %v588 = vunpack.c.h.b16 %v190
      %v589 = vunpack.c.l.b16 %v191
      %v590 = vunpack.c.h.b16 %v191
      %v591 = vunpack.c.l.b16 %v192
      %v592 = vunpack.c.h.b16 %v192
      %v593 = vunpack.c.l.b16 %v193
      %v594 = vunpack.c.h.b16 %v193
      %v595 = vunpack.c.l.b16 %v194
      %v596 = vunpack.c.h.b16 %v194
      %v597 = vunpack.c.l.b16 %v195
      %v598 = vunpack.c.h.b16 %v195
      %v599 = vunpack.c.l.b16 %v196
      %v600 = vunpack.c.h.b16 %v196
      %v601 = vunpack.c.l.b16 %v197
      %v602 = vunpack.c.h.b16 %v197
      %v603 = vunpack.c.l.b16 %v198
      %v604 = vunpack.c.h.b16 %v198
      %v605 = vunpack.c.l.b16 %v199
      %v606 = vunpack.c.h.b16 %v199
      %v607 = vunpack.c.l.b16 %v200
      %v608 = vunpack.c.h.b16 %v200
      %v609 = vunpack.c.l.b16 %v201
      %v610 = vunpack.c.h.b16 %v201
      %v611 = vunpack.c.l.b16 %v202
      %v612 = vunpack.c.h.b16 %v202
      %v613 = vunpack.c.l.b16 %v203
      %v614 = vunpack.c.h.b16 %v203
      %v615 = vunpack.c.l.b16 %v204
      %v616 = vunpack.c.h.b16 %v204
      %v617 = vunpack.c.l.b16 %v205
      %v618 = vunpack.c.h.b16 %v205
      %v619 = vunpack.c.l.b16 %v206
      %v620 = vunpack.c.h.b16 %v206
      %v621 = vunpack.c.l.b16 %v207
      %v622 = vunpack.c.h.b16 %v207
      %v623 = vunpack.c.l.b16 %v208
      %v624 = vunpack.c.h.b16 %v208
      %v625 = vunpack.c.l.b16 %v209
      %v626 = vunpack.c.h.b16 %v209
      %v627 = vunpack.c.l.b16 %v210
      %v628 = vunpack.c.h.b16 %v210
      %v629 = vunpack.c.l.b16 %v211
      %v630 = vunpack.c.h.b16 %v211
      %v631 = vunpack.c.l.b16 %v212
      %v632 = vunpack.c.h.b16 %v212
      %v633 = vunpack.c.l.b16 %v213
      %v634 = vunpack.c.h.b16 %v213
      %v635 = vunpack.c.l.b16 %v214
      %v636 = vunpack.c.h.b16 %v214
      %v637 = vunpack.c.l.b16 %v215
      %v638 = vunpack.c.h.b16 %v215
      %v639 = vunpack.c.l.b16 %v216
      %v640 = vunpack.c.h.b16 %v216
      %v641 = vunpack.c.l.b16 %v217
      %v642 = vunpack.c.h.b16 %v217
      %v643 = vunpack.c.l.b16 %v218
      %v644 = vunpack.c.h.b16 %v218
      %v645 = vunpack.c.l.b16 %v219
      %v646 = vunpack.c.h.b16 %v219
      %v647 = vunpack.c.l.b16 %v220
      %v648 = vunpack.c.h.b16 %v220
      %v649 = vunpack.c.l.b16 %v221
      %v650 = vunpack.c.h.b16 %v221
      %v651 = vunpack.c.l.b16 %v222
      %v652 = vunpack.c.h.b16 %v222
      %v653 = vunpack.c.l.b16 %v223
      %v654 = vunpack.c.h.b16 %v223
      %v655 = vunpack.c.l.b16 %v224
      %v656 = vunpack.c.h.b16 %v224
      %v657 = vunpack.c.l.b16 %v225
      %v658 = vunpack.c.h.b16 %v225
      %v659 = vunpack.c.l.b16 %v226
      %v660 = vunpack.c.h.b16 %v226
      %v661 = vunpack.c.l.b16 %v227
      %v662 = vunpack.c.h.b16 %v227
      %v663 = vunpack.c.l.b16 %v228
      %v664 = vunpack.c.h.b16 %v228
      %v665 = vunpack.c.l.b16 %v229
      %v666 = vunpack.c.h.b16 %v229
      %v667 = vunpack.c.l.b16 %v230
      %v668 = vunpack.c.h.b16 %v230
      %v669 = vunpack.c.l.b16 %v231
      %v670 = vunpack.c.h.b16 %v231
      %v671 = vunpack.c.l.b16 %v232
      %v672 = vunpack.c.h.b16 %v232
      %v673 = vunpack.c.l.b16 %v233
      %v674 = vunpack.c.h.b16 %v233
      %v675 = vunpack.c.l.b16 %v234
      %v676 = vunpack.c.h.b16 %v234
      %v677 = vunpack.c.l.b16 %v235
      %v678 = vunpack.c.h.b16 %v235
      %v679 = vunpack.c.l.b16 %v236
      %v680 = vunpack.c.h.b16 %v236
      %v681 = vunpack.c.l.b16 %v237
      %v682 = vunpack.c.h.b16 %v237
      %v683 = vunpack.c.l.b16 %v238
      %v684 = vunpack.c.h.b16 %v238
      %v685 = vunpack.c.l.b16 %v239
      %v686 = vunpack.c.h.b16 %v239
      %v687 = vunpack.c.l.b16 %v240
      %v688 = vunpack.c.h.b16 %v240
      %v689 = vunpack.c.l.b16 %v241
      %v690 = vunpack.c.h.b16 %v241
      %v691 = vunpack.c.l.b16 %v242
      %v692 = vunpack.c.h.b16 %v242
      %v693 = vunpack.c.l.b16 %v243
      %v694 = vunpack.c.h.b16 %v243
      %v695 = vunpack.c.l.b16 %v244
      %v696 = vunpack.c.h.b16 %v244
      %v697 = vunpack.c.l.b16 %v245
      %v698 = vunpack.c.h.b16 %v245
      %v699 = vunpack.c.l.b16 %v246
      %v700 = vunpack.c.h.b16 %v246
      %v701 = vunpack.c.l.b16 %v247
      %v702 = vunpack.c.h.b16 %v247
      %v703 = vunpack.c.l.b16 %v248
      %v704 = vunpack.c.h.b16 %v248
      %v705 = vunpack.c.l.b16 %v249
      %v706 = vunpack.c.h.b16 %v249
      %v707 = vunpack.c.l.b16 %v250
      %v708 = vunpack.c.h.b16 %v250
      %v709 = vunpack.c.l.b16 %v251
      %v710 = vunpack.c.h.b16 %v251
      %v711 = vunpack.c.l.b16 %v252
      %v712 = vunpack.c.h.b16 %v252
      %v713 = vunpack.c.l.b16 %v253
      %v714 = vunpack.c.h.b16 %v253
      %v715 = vunpack.c.l.b16 %v254
      %v716 = vunpack.c.h.b16 %v254
      %v717 = vunpack.c.l.b16 %v255
      %v718 = vunpack.c.h.b16 %v255
      %v719 = vunpack.c.l.b16 %v256
      %v720 = vunpack.c.h.b16 %v256
      %v721 = vunpack.c.l.b16 %v257
      %v722 = vunpack.c.h.b16 %v257
      %v723 = vunpack.c.l.b16 %v258
      %v724 = vunpack.c.h.b16 %v258
      %v725 = vunpack.c.l.b16 %v259
      %v726 = vunpack.c.h.b16 %v259
      %v727 = vunpack.c.l.b16 %v260
      %v728 = vunpack.c.h.b16 %v260
      %v729 = vunpack.c.l.b16 %v261
      %v730 = vunpack.c.h.b16 %v261
      %v731 = vunpack.c.l.b16 %v262
      %v732 = vunpack.c.h.b16 %v262
      %v733 = vunpack.c.l.b16 %v263
      %v734 = vunpack.c.h.b16 %v263
      %v735 = vunpack.c.l.b16 %v264
      %v736 = vunpack.c.h.b16 %v264
      %v737 = vunpack.c.l.b16 %v265
      %v738 = vunpack.c.h.b16 %v265
      %v739 = vunpack.c.l.b16 %v266
      %v740 = vunpack.c.h.b16 %v266
      %v741 = vunpack.c.l.b16 %v267
      %v742 = vunpack.c.h.b16 %v267
      %v743 = vunpack.c.l.b16 %v268
      %v744 = vunpack.c.h.b16 %v268
      %v745 = vunpack.c.l.b16 %v269
      %v746 = vunpack.c.h.b16 %v269
      %v747 = vunpack.c.l.b16 %v270
      %v748 = vunpack.c.h.b16 %v270
      %v749 = vunpack.c.l.b16 %v271
      %v750 = vunpack.c.h.b16 %v271
      %v751 = vunpack.c.l.b16 %v272
      %v752 = vunpack.c.h.b16 %v272
      %v753 = vunpack.c.l.b16 %v273
      %v754 = vunpack.c.h.b16 %v273
      %v755 = vunpack.c.l.b16 %v274
      %v756 = vunpack.c.h.b16 %v274
      %v757 = vunpack.c.l.b16 %v275
      %v758 = vunpack.c.h.b16 %v275
      %v759 = vunpack.c.l.b16 %v276
      %v760 = vunpack.c.h.b16 %v276
      %v761 = vunpack.c.l.b16 %v277
      %v762 = vunpack.c.h.b16 %v277
      %v763 = vunpack.c.l.b16 %v278
      %v764 = vunpack.c.h.b16 %v278
      %v765 = vunpack.c.l.b16 %v279
      %v766 = vunpack.c.h.b16 %v279
      %v767 = vunpack.c.l.b16 %v280
      %v768 = vunpack.c.h.b16 %v280
      %v769 = vunpack.c.l.b16 %v281
      %v770 = vunpack.c.h.b16 %v281
      %v771 = vunpack.c.l.b16 %v282
      %v772 = vunpack.c.h.b16 %v282
      %v773 = vunpack.c.l.b16 %v283
      %v774 = vunpack.c.h.b16 %v283
      %v775 = vunpack.c.l.b16 %v284
      %v776 = vunpack.c.h.b16 %v284
      %v777 = vunpack.c.l.b16 %v285
      %v778 = vunpack.c.h.b16 %v285
      %v779 = vunpack.c.l.b16 %v286
      %v780 = vunpack.c.h.b16 %v286
      %v781 = vunpack.c.l.b16 %v287
      %v782 = vunpack.c.h.b16 %v287
      %v783 = vunpack.c.l.b16 %v288
      %v784 = vunpack.c.h.b16 %v288
      %v785 = vunpack.c.l.b16 %v289
      %v786 = vunpack.c.h.b16 %v289
      %v787 = vunpack.c.l.b16 %v290
      %v788 = vunpack.c.h.b16 %v290
      %v789 = vunpack.c.l.b16 %v291
      %v790 = vunpack.c.h.b16 %v291
      %v791 = vunpack.c.l.b16 %v292
      %v792 = vunpack.c.h.b16 %v292
      %v793 = vunpack.c.l.b16 %v293
      %v794 = vunpack.c.h.b16 %v293
      %v795 = vunpack.c.l.b16 %v294
      %v796 = vunpack.c.h.b16 %v294
      %v797 = vunpack.c.l.b16 %v295
      %v798 = vunpack.c.h.b16 %v295
      %v799 = vunpack.c.l.b16 %v296
      %v800 = vunpack.c.h.b16 %v296
      %v801 = vunpack.c.l.b16 %v297
      %v802 = vunpack.c.h.b16 %v297
      %v803 = vunpack.c.l.b16 %v298
      %v804 = vunpack.c.h.b16 %v298
      %v805 = vunpack.c.l.b16 %v299
      %v806 = vunpack.c.h.b16 %v299
      %v807 = vunpack.c.l.b16 %v300
      %v808 = vunpack.c.h.b16 %v300
      %v809 = vunpack.c.l.b16 %v301
      %v810 = vunpack.c.h.b16 %v301
      %v811 = vunpack.c.l.b16 %v302
      %v812 = vunpack.c.h.b16 %v302
      %v813 = vunpack.c.l.b16 %v303
      %v814 = vunpack.c.h.b16 %v303
      %v815 = vunpack.c.l.b16 %v304
      %v816 = vunpack.c.h.b16 %v304
      %v817 = vunpack.c.l.b16 %v305
      %v818 = vunpack.c.h.b16 %v305
      %v819 = vunpack.c.l.b16 %v306
      %v820 = vunpack.c.h.b16 %v306
      %v821 = vunpack.c.l.b16 %v307
      %v822 = vunpack.c.h.b16 %v307
      %v823 = vunpack.c.l.b16 %v308
      %v824 = vunpack.c.h.b16 %v308
      %v825 = vunpack.c.l.b16 %v309
      %v826 = vunpack.c.h.b16 %v309
      %v827 = vunpack.c.l.b16 %v310
      %v828 = vunpack.c.h.b16 %v310
      %v829 = vunpack.c.l.b16 %v311
      %v830 = vunpack.c.h.b16 %v311
      %v831 = vunpack.c.l.b16 %v312
      %v832 = vunpack.c.h.b16 %v312
      %v833 = vunpack.c.l.b16 %v313
      %v834 = vunpack.c.h.b16 %v313
      %v835 = vunpack.c.l.b16 %v314
      %v836 = vunpack.c.h.b16 %v314
      %v837 = vunpack.c.l.b16 %v315
      %v838 = vunpack.c.h.b16 %v315
      %v839 = vunpack.c.l.b16 %v316
      %v840 = vunpack.c.h.b16 %v316
      %v841 = vunpack.c.l.b16 %v317
      %v842 = vunpack.c.h.b16 %v317
      %v843 = vunpack.c.l.b16 %v318
      %v844 = vunpack.c.h.b16 %v318
      %v845 = vunpack.c.l.b16 %v319
      %v846 = vunpack.c.h.b16 %v319
      %v847 = vunpack.c.l.b16 %v320
      %v848 = vunpack.c.h.b16 %v320
      %v849 = vunpack.c.l.b16 %v321
      %v850 = vunpack.c.h.b16 %v321
      %v851 = vunpack.c.l.b16 %v322
      %v852 = vunpack.c.h.b16 %v322
      %v853 = vunpack.c.l.b16 %v323
      %v854 = vunpack.c.h.b16 %v323
      %v855 = vunpack.c.l.b16 %v324
      %v856 = vunpack.c.h.b16 %v324
      %v857 = vunpack.c.l.b16 %v325
      %v858 = vunpack.c.h.b16 %v325
      %v859 = vunpack.c.l.b16 %v326
      %v860 = vunpack.c.h.b16 %v326
      %v861 = vunpack.c.l.b16 %v327
      %v862 = vunpack.c.h.b16 %v327
      %v863 = vunpack.c.l.b16 %v328
      %v864 = vunpack.c.h.b16 %v328
      %v865 = vunpack.c.l.b16 %v329
      %v866 = vunpack.c.h.b16 %v329
      %v867 = vunpack.c.l.b16 %v330
      %v868 = vunpack.c.h.b16 %v330
      %v869 = vunpack.c.l.b16 %v331
      %v870 = vunpack.c.h.b16 %v331
      %v871 = vunpack.c.l.b16 %v332
      %v872 = vunpack.c.h.b16 %v332
      %v873 = vunpack.c.l.b16 %v333
      %v874 = vunpack.c.h.b16 %v333
      %v875 = vunpack.c.l.b16 %v334
      %v876 = vunpack.c.h.b16 %v334
      %v877 = vunpack.c.l.b16 %v335
      %v878 = vunpack.c.h.b16 %v335
      %v879 = vunpack.c.l.b16 %v336
      %v880 = vunpack.c.h.b16 %v336
      %v881 = vunpack.c.l.b16 %v337
      %v882 = vunpack.c.h.b16 %v337
      %v883 = vunpack.c.l.b16 %v338
      %v884 = vunpack.c.h.b16 %v338
      %v885 = vunpack.c.l.b16 %v339
      %v886 = vunpack.c.h.b16 %v339
      %v887 = vunpack.c.l.b16 %v340
      %v888 = vunpack.c.h.b16 %v340
      %v889 = vunpack.c.l.b16 %v341
      %v890 = vunpack.c.h.b16 %v341
      %v891 = vunpack.c.l.b16 %v342
      %v892 = vunpack.c.h.b16 %v342
      %v893 = vunpack.c.l.b16 %v343
      %v894 = vunpack.c.h.b16 %v343
      %v895 = vunpack.c.l.b16 %v344
      %v896 = vunpack.c.h.b16 %v344
      %v897 = vunpack.c.l.b16 %v345
      %v898 = vunpack.c.h.b16 %v345
      %v899 = vunpack.c.l.b16 %v346
      %v900 = vunpack.c.h.b16 %v346
      %v901 = vunpack.c.l.b16 %v347
      %v902 = vunpack.c.h.b16 %v347
      %v903 = vunpack.c.l.b16 %v348
      %v904 = vunpack.c.h.b16 %v348
      %v905 = vunpack.c.l.b16 %v349
      %v906 = vunpack.c.h.b16 %v349
      %v907 = vunpack.c.l.b16 %v350
      %v908 = vunpack.c.h.b16 %v350
      %v909 = vunpack.c.l.b16 %v351
      %v910 = vunpack.c.h.b16 %v351
      %v911 = vunpack.c.l.b16 %v352
      %v912 = vunpack.c.h.b16 %v352
      %v913 = vunpack.c.l.b16 %v353
      %v914 = vunpack.c.h.b16 %v353
      %v915 = vunpack.c.l.b16 %v354
      %v916 = vunpack.c.h.b16 %v354
      %v917 = vunpack.c.l.b16 %v355
      %v918 = vunpack.c.h.b16 %v355
      %v919 = vunpack.c.l.b16 %v356
      %v920 = vunpack.c.h.b16 %v356
      %v921 = vpack.c.b16 %v569, %v553
      %v922 = vpack.c.b16 %v570, %v554
      %v923 = vpack.c.b16 %v571, %v555
      %v924 = vpack.c.b16 %v572, %v556
      %v925 = vpack.c.b16 %v573, %v557
      %v926 = vpack.c.b16 %v574, %v558
      %v927 = vpack.c.b16 %v575, %v559
      %v928 = vpack.c.b16 %v576, %v560
      %v929 = vpack.c.b16 %v577, %v561
      %v930 = vpack.c.b16 %v578, %v562
      %v931 = vpack.c.b16 %v579, %v563
      %v932 = vpack.c.b16 %v580, %v564
      %v933 = vpack.c.b16 %v581, %v565
      %v934 = vpack.c.b16 %v582, %v566
      %v935 = vpack.c.b16 %v583, %v567
      %v936 = vpack.c.b16 %v584, %v568
      %v937 = vpack.c.b16 %v601, %v585
      %v938 = vpack.c.b16 %v602, %v586
      %v939 = vpack.c.b16 %v603, %v587
      %v940 = vpack.c.b16 %v604, %v588
      %v941 = vpack.c.b16 %v605, %v589
      %v942 = vpack.c.b16 %v606, %v590
      %v943 = vpack.c.b16 %v607, %v591
      %v944 = vpack.c.b16 %v608, %v592
      %v945 = vpack.c.b16 %v609, %v593
      %v946 = vpack.c.b16 %v610, %v594
      %v947 = vpack.c.b16 %v611, %v595
      %v948 = vpack.c.b16 %v612, %v596
      %v949 = vpack.c.b16 %v613, %v597
      %v950 = vpack.c.b16 %v614, %v598
      %v951 = vpack.c.b16 %v615, %v599
      %v952 = vpack.c.b16 %v616, %v600
      %v953 = vpack.c.b16 %v633, %v617
      %v954 = vpack.c.b16 %v634, %v618
      %v955 = vpack.c.b16 %v635, %v619
      %v956 = vpack.c.b16 %v636, %v620
      %v957 = vpack.c.b16 %v637, %v621
      %v958 = vpack.c.b16 %v638, %v622
      %v959 = vpack.c.b16 %v639, %v623
      %v960 = vpack.c.b16 %v640, %v624
      %v961 = vpack.c.b16 %v641, %v625
      %v962 = vpack.c.b16 %v642, %v626
      %v963 = vpack.c.b16 %v643, %v627
      %v964 = vpack.c.b16 %v644, %v628
      %v965 = vpack.c.b16 %v645, %v629
      %v966 = vpack.c.b16 %v646, %v630
      %v967 = vpack.c.b16 %v647, %v631
      %v968 = vpack.c.b16 %v648, %v632
      %v969 = vpack.c.b16 %v665, %v649
      %v970 = vpack.c.b16 %v666, %v650
      %v971 = vpack.c.b16 %v667, %v651
      %v972 = vpack.c.b16 %v668, %v652
      %v973 = vpack.c.b16 %v669, %v653
      %v974 = vpack.c.b16 %v670, %v654
      %v975 = vpack.c.b16 %v671, %v655
      %v976 = vpack.c.b16 %v672, %v656
      %v977 = vpack.c.b16 %v673, %v657
      %v978 = vpack.c.b16 %v674, %v658
      %v979 = vpack.c.b16 %v675, %v659
      %v980 = vpack.c.b16 %v676, %v660
      %v981 = vpack.c.b16 %v677, %v661
      %v982 = vpack.c.b16 %v678, %v662
      %v983 = vpack.c.b16 %v679, %v663
      %v984 = vpack.c.b16 %v680, %v664
      %v985 = vpack.c.b16 %v697, %v681
      %v986 = vpack.c.b16 %v698, %v682
      %v987 = vpack.c.b16 %v699, %v683
      %v988 = vpack.c.b16 %v700, %v684
      %v989 = vpack.c.b16 %v701, %v685
      %v990 = vpack.c.b16 %v702, %v686
      %v991 = vpack.c.b16 %v703, %v687
      %v992 = vpack.c.b16 %v704, %v688
      %v993 = vpack.c.b16 %v705, %v689
      %v994 = vpack.c.b16 %v706, %v690
      %v995 = vpack.c.b16 %v707, %v691
      %v996 = vpack.c.b16 %v708, %v692
      %v997 = vpack.c.b16 %v709, %v693
      %v998 = vpack.c.b16 %v710, %v694
      %v999 = vpack.c.b16 %v711, %v695
      %v1000 = vpack.c.b16 %v712, %v696
      %v1001 = vpack.c.b16 %v729, %v713
      %v1002 = vpack.c.b16 %v730, %v714
      %v1003 = vpack.c.b16 %v731, %v715
      %v1004 = vpack.c.b16 %v732, %v716
      %v1005 = vpack.c.b16 %v733, %v717
      %v1006 = vpack.c.b16 %v734, %v718
      %v1007 = vpack.c.b16 %v735, %v719
      %v1008 = vpack.c.b16 %v736, %v720
      %v1009 = vpack.c.b16 %v737, %v721
      %v1010 = vpack.c.b16 %v738, %v722
      %v1011 = vpack.c.b16 %v739, %v723
      %v1012 = vpack.c.b16 %v740, %v724
      %v1013 = vpack.c.b16 %v741, %v725
      %v1014 = vpack.c.b16 %v742, %v726
      %v1015 = vpack.c.b16 %v743, %v727
      %v1016 = vpack.c.b16 %v744, %v728
      %v1017 = vpack.c.b16 %v761, %v745
      %v1018 = vpack.c.b16 %v762, %v746
      %v1019 = vpack.c.b16 %v763, %v747
      %v1020 = vpack.c.b16 %v764, %v748
      %v1021 = vpack.c.b16 %v765, %v749
      %v1022 = vpack.c.b16 %v766, %v750
      %v1023 = vpack.c.b16 %v767, %v751
      %v1024 = vpack.c.b16 %v768, %v752
      %v1025 = vpack.c.b16 %v769, %v753
      %v1026 = vpack.c.b16 %v770, %v754
      %v1027 = vpack.c.b16 %v771, %v755
      %v1028 = vpack.c.b16 %v772, %v756
      %v1029 = vpack.c.b16 %v773, %v757
      %v1030 = vpack.c.b16 %v774, %v758
      %v1031 = vpack.c.b16 %v775, %v759
      %v1032 = vpack.c.b16 %v776, %v760
      %v1033 = vpack.c.b16 %v793, %v777
      %v1034 = vpack.c.b16 %v794, %v778
      %v1035 = vpack.c.b16 %v795, %v779
      %v1036 = vpack.c.b16 %v796, %v780
      %v1037 = vpack.c.b16 %v797, %v781
      %v1038 = vpack.c.b16 %v798, %v782
      %v1039 = vpack.c.b16 %v799, %v783
      %v1040 = vpack.c.b16 %v800, %v784
      %v1041 = vpack.c.b16 %v801, %v785
      %v1042 = vpack.c.b16 %v802, %v786
      %v1043 = vpack.c.b16 %v803, %v787
      %v1044 = vpack.c.b16 %v804, %v788
      %v1045 = vpack.c.b16 %v805, %v789
      %v1046 = vpack.c.b16 %v806, %v790
      %v1047 = vpack.c.b16 %v807, %v791
      %v1048 = vpack.c.b16 %v808, %v792
      %v1049 = vpack.c.b16 %v825, %v809
      %v1050 = vpack.c.b16 %v826, %v810
      %v1051 = vpack.c.b16 %v827, %v811
      %v1052 = vpack.c.b16 %v828, %v812
      %v1053 = vpack.c.b16 %v829, %v813
      %v1054 = vpack.c.b16 %v830, %v814
      %v1055 = vpack.c.b16 %v831, %v815
      %v1056 = vpack.c.b16 %v832, %v816
      %v1057 = vpack.c.b16 %v833, %v817
      %v1058 = vpack.c.b16 %v834, %v818
      %v1059 = vpack.c.b16 %v835, %v819
      %v1060 = vpack.c.b16 %v836, %v820
      %v1061 = vpack.c.b16 %v837, %v821
      %v1062 = vpack.c.b16 %v838, %v822
      %v1063 = vpack.c.b16 %v839, %v823
      %v1064 = vpack.c.b16 %v840, %v824
      %v1065 = vpack.c.b16 %v857, %v841
      %v1066 = vpack.c.b16 %v858, %v842
      %v1067 = vpack.c.b16 %v859, %v843
      %v1068 = vpack.c.b16 %v860, %v844
      %v1069 = vpack.c.b16 %v861, %v845
      %v1070 = vpack.c.b16 %v862, %v846
      %v1071 = vpack.c.b16 %v863, %v847
      %v1072 = vpack.c.b16 %v864, %v848
      %v1073 = vpack.c.b16 %v865, %v849
      %v1074 = vpack.c.b16 %v866, %v850
      %v1075 = vpack.c.b16 %v867, %v851
      %v1076 = vpack.c.b16 %v868, %v852
      %v1077 = vpack.c.b16 %v869, %v853
      %v1078 = vpack.c.b16 %v870, %v854
      %v1079 = vpack.c.b16 %v871, %v855
      %v1080 = vpack.c.b16 %v872, %v856
      %v1081 = vpack.c.b16 %v889, %v873
      %v1082 = vpack.c.b16 %v890, %v874
      %v1083 = vpack.c.b16 %v891, %v875
      %v1084 = vpack.c.b16 %v892, %v876
      %v1085 = vpack.c.b16 %v893, %v877
      %v1086 = vpack.c.b16 %v894, %v878
      %v1087 = vpack.c.b16 %v895, %v879
      %v1088 = vpack.c.b16 %v896, %v880
      %v1089 = vpack.c.b16 %v897, %v881
      %v1090 = vpack.c.b16 %v898, %v882
      %v1091 = vpack.c.b16 %v899, %v883
      %v1092 = vpack.c.b16 %v900, %v884
      %v1093 = vpack.c.b16 %v901, %v885
      %v1094 = vpack.c.b16 %v902, %v886
      %v1095 = vpack.c.b16 %v903, %v887
      %v1096 = vpack.c.b16 %v904, %v888
      %v1097 = vpack.c.b16 %v905, %v905
      %v1098 = vpack.c.b16 %v906, %v906
      %v1099 = vpack.c.b16 %v907, %v907
      %v1100 = vpack.c.b16 %v908, %v908
      %v1101 = vpack.c.b16 %v909, %v909
      %v1102 = vpack.c.b16 %v910, %v910
      %v1103 = vpack.c.b16 %v911, %v911
      %v1104 = vpack.c.b16 %v912, %v912
      %v1105 = vpack.c.b16 %v913, %v913
      %v1106 = vpack.c.b16 %v914, %v914
      %v1107 = vpack.c.b16 %v915, %v915
      %v1108 = vpack.c.b16 %v916, %v916
      %v1109 = vpack.c.b16 %v917, %v917
      %v1110 = vpack.c.b16 %v918, %v918
      %v1111 = vpack.c.b16 %v919, %v919
      %v1112 = vpack.c.b16 %v920, %v920
      %vm1289 = vcmask 424960
      %v1291 = vsel %vm1289, %v367, 0
      %vm1293 = vcmask 1041408
      %v1295 = vsel %vm1293, %v1097, 0
      %v1298 = vsel %vm1293, %v1098, 0
      %v1301 = vsel %vm1293, %v1099, 0
      %v1304 = vsel %vm1293, %v1100, 0
      %v1307 = vsel %vm1293, %v1101, 0
      %v1310 = vsel %vm1293, %v1102, 0
      %v1313 = vsel %vm1293, %v1103, 0
      %v1316 = vsel %vm1293, %v1104, 0
      %v1319 = vsel %vm1293, %v1105, 0
      %v1322 = vsel %vm1293, %v1106, 0
      %v1325 = vsel %vm1293, %v1107, 0
      %v1328 = vsel %vm1293, %v1108, 0
      %v1331 = vsel %vm1293, %v1109, 0
      %v1334 = vsel %vm1293, %v1110, 0
      %v1337 = vsel %vm1293, %v1111, 0
      %v1340 = vsel %vm1293, %v1112, 0
      %1342 = vmatpush.bf16.msra.mxu0 %v1033
      %1343 = vmatpush.bf16.msra.mxu0 %v1017
      %1344 = vmatpush.bf16.msra.mxu0 %v1001
      %1345 = vmatpush.bf16.msra.mxu0 %v985
      %1346 = vmatpush.bf16.msra.mxu0 %v969
      %1347 = vmatpush.bf16.msra.mxu0 %v953
      %1348 = vmatpush.bf16.msra.mxu0 %v937
      %1349 = vmatpush.bf16.msra.mxu0 %v921
      %1350 = vmatmul.bf16.gmra.mxu0 %v366
      %v1351 = vpop.f32.mrf.mxu0
      %v1352 = vadd.f32 %v361, %v1351
      %v1353 = vpop.f32.mrf.mxu0
      %1354 = vdwg.mxu0
      %1355 = vmatpush.bf16.msra.mxu0 0
      %1356 = vmatpush.bf16.msra.mxu0 0
      %1357 = vmatpush.bf16.msra.mxu0 0
      %1358 = vmatpush.bf16.msra.mxu0 0
      %1359 = vmatpush.bf16.msra.mxu0 %v1295
      %1360 = vmatpush.bf16.msra.mxu0 %v1081
      %1361 = vmatpush.bf16.msra.mxu0 %v1065
      %1362 = vmatpush.bf16.msra.mxu0 %v1049
      %1363 = vmatmul.bf16.gmra.mxu0 %v1291
      %v1364 = vpop.f32.mrf.mxu0
      %v1365 = vadd.f32 %v1352, %v1364
      %v1366 = vpop.f32.mrf.mxu0
      %1367 = vdwg.mxu0
      %1368 = vmatpush.bf16.msra.mxu0 %v1034
      %1369 = vmatpush.bf16.msra.mxu0 %v1018
      %1370 = vmatpush.bf16.msra.mxu0 %v1002
      %1371 = vmatpush.bf16.msra.mxu0 %v986
      %1372 = vmatpush.bf16.msra.mxu0 %v970
      %1373 = vmatpush.bf16.msra.mxu0 %v954
      %1374 = vmatpush.bf16.msra.mxu0 %v938
      %1375 = vmatpush.bf16.msra.mxu0 %v922
      %1376 = vmatmul.bf16.gmra.mxu0 %v366
      %v1377 = vpop.f32.mrf.mxu0
      %v1378 = vadd.f32 %v361, %v1377
      %v1379 = vpop.f32.mrf.mxu0
      %1380 = vdwg.mxu0
      %1381 = vmatpush.bf16.msra.mxu0 0
      %1382 = vmatpush.bf16.msra.mxu0 0
      %1383 = vmatpush.bf16.msra.mxu0 0
      %1384 = vmatpush.bf16.msra.mxu0 0
      %1385 = vmatpush.bf16.msra.mxu0 %v1298
      %1386 = vmatpush.bf16.msra.mxu0 %v1082
      %1387 = vmatpush.bf16.msra.mxu0 %v1066
      %1388 = vmatpush.bf16.msra.mxu0 %v1050
      %1389 = vmatmul.bf16.gmra.mxu0 %v1291
      %v1390 = vpop.f32.mrf.mxu0
      %v1391 = vadd.f32 %v1378, %v1390
      %v1392 = vpop.f32.mrf.mxu0
      %1393 = vdwg.mxu0
      %1394 = vmatpush.bf16.msra.mxu0 %v1035
      %1395 = vmatpush.bf16.msra.mxu0 %v1019
      %1396 = vmatpush.bf16.msra.mxu0 %v1003
      %1397 = vmatpush.bf16.msra.mxu0 %v987
      %1398 = vmatpush.bf16.msra.mxu0 %v971
      %1399 = vmatpush.bf16.msra.mxu0 %v955
      %1400 = vmatpush.bf16.msra.mxu0 %v939
      %1401 = vmatpush.bf16.msra.mxu0 %v923
      %1402 = vmatmul.bf16.gmra.mxu0 %v366
      %v1403 = vpop.f32.mrf.mxu0
      %v1404 = vadd.f32 %v361, %v1403
      %v1405 = vpop.f32.mrf.mxu0
      %1406 = vdwg.mxu0
      %1407 = vmatpush.bf16.msra.mxu0 0
      %1408 = vmatpush.bf16.msra.mxu0 0
      %1409 = vmatpush.bf16.msra.mxu0 0
      %1410 = vmatpush.bf16.msra.mxu0 0
      %1411 = vmatpush.bf16.msra.mxu0 %v1301
      %1412 = vmatpush.bf16.msra.mxu0 %v1083
      %1413 = vmatpush.bf16.msra.mxu0 %v1067
      %1414 = vmatpush.bf16.msra.mxu0 %v1051
      %1415 = vmatmul.bf16.gmra.mxu0 %v1291
      %v1416 = vpop.f32.mrf.mxu0
      %v1417 = vadd.f32 %v1404, %v1416
      %v1418 = vpop.f32.mrf.mxu0
      %1419 = vdwg.mxu0
      %1420 = vmatpush.bf16.msra.mxu0 %v1036
      %1421 = vmatpush.bf16.msra.mxu0 %v1020
      %1422 = vmatpush.bf16.msra.mxu0 %v1004
      %1423 = vmatpush.bf16.msra.mxu0 %v988
      %1424 = vmatpush.bf16.msra.mxu0 %v972
      %1425 = vmatpush.bf16.msra.mxu0 %v956
      %1426 = vmatpush.bf16.msra.mxu0 %v940
      %1427 = vmatpush.bf16.msra.mxu0 %v924
      %1428 = vmatmul.bf16.gmra.mxu0 %v366
      %v1429 = vpop.f32.mrf.mxu0
      %v1430 = vadd.f32 %v361, %v1429
      %v1431 = vpop.f32.mrf.mxu0
      %1432 = vdwg.mxu0
      %1433 = vmatpush.bf16.msra.mxu0 0
      %1434 = vmatpush.bf16.msra.mxu0 0
      %1435 = vmatpush.bf16.msra.mxu0 0
      %1436 = vmatpush.bf16.msra.mxu0 0
      %1437 = vmatpush.bf16.msra.mxu0 %v1304
      %1438 = vmatpush.bf16.msra.mxu0 %v1084
      %1439 = vmatpush.bf16.msra.mxu0 %v1068
      %1440 = vmatpush.bf16.msra.mxu0 %v1052
      %1441 = vmatmul.bf16.gmra.mxu0 %v1291
      %v1442 = vpop.f32.mrf.mxu0
      %v1443 = vadd.f32 %v1430, %v1442
      %v1444 = vpop.f32.mrf.mxu0
      %1445 = vdwg.mxu0
      %1446 = vmatpush.bf16.msra.mxu0 %v1037
      %1447 = vmatpush.bf16.msra.mxu0 %v1021
      %1448 = vmatpush.bf16.msra.mxu0 %v1005
      %1449 = vmatpush.bf16.msra.mxu0 %v989
      %1450 = vmatpush.bf16.msra.mxu0 %v973
      %1451 = vmatpush.bf16.msra.mxu0 %v957
      %1452 = vmatpush.bf16.msra.mxu0 %v941
      %1453 = vmatpush.bf16.msra.mxu0 %v925
      %1454 = vmatmul.bf16.gmra.mxu0 %v366
      %v1455 = vpop.f32.mrf.mxu0
      %v1456 = vadd.f32 %v361, %v1455
      %v1457 = vpop.f32.mrf.mxu0
      %1458 = vdwg.mxu0
      %1459 = vmatpush.bf16.msra.mxu0 0
      %1460 = vmatpush.bf16.msra.mxu0 0
      %1461 = vmatpush.bf16.msra.mxu0 0
      %1462 = vmatpush.bf16.msra.mxu0 0
      %1463 = vmatpush.bf16.msra.mxu0 %v1307
      %1464 = vmatpush.bf16.msra.mxu0 %v1085
      %1465 = vmatpush.bf16.msra.mxu0 %v1069
      %1466 = vmatpush.bf16.msra.mxu0 %v1053
      %1467 = vmatmul.bf16.gmra.mxu0 %v1291
      %v1468 = vpop.f32.mrf.mxu0
      %v1469 = vadd.f32 %v1456, %v1468
      %v1470 = vpop.f32.mrf.mxu0
      %1471 = vdwg.mxu0
      %1472 = vmatpush.bf16.msra.mxu0 %v1038
      %1473 = vmatpush.bf16.msra.mxu0 %v1022
      %1474 = vmatpush.bf16.msra.mxu0 %v1006
      %1475 = vmatpush.bf16.msra.mxu0 %v990
      %1476 = vmatpush.bf16.msra.mxu0 %v974
      %1477 = vmatpush.bf16.msra.mxu0 %v958
      %1478 = vmatpush.bf16.msra.mxu0 %v942
      %1479 = vmatpush.bf16.msra.mxu0 %v926
      %1480 = vmatmul.bf16.gmra.mxu0 %v366
      %v1481 = vpop.f32.mrf.mxu0
      %v1482 = vadd.f32 %v361, %v1481
      %v1483 = vpop.f32.mrf.mxu0
      %1484 = vdwg.mxu0
      %1485 = vmatpush.bf16.msra.mxu0 0
      %1486 = vmatpush.bf16.msra.mxu0 0
      %1487 = vmatpush.bf16.msra.mxu0 0
      %1488 = vmatpush.bf16.msra.mxu0 0
      %1489 = vmatpush.bf16.msra.mxu0 %v1310
      %1490 = vmatpush.bf16.msra.mxu0 %v1086
      %1491 = vmatpush.bf16.msra.mxu0 %v1070
      %1492 = vmatpush.bf16.msra.mxu0 %v1054
      %1493 = vmatmul.bf16.gmra.mxu0 %v1291
      %v1494 = vpop.f32.mrf.mxu0
      %v1495 = vadd.f32 %v1482, %v1494
      %v1496 = vpop.f32.mrf.mxu0
      %1497 = vdwg.mxu0
      %1498 = vmatpush.bf16.msra.mxu0 %v1039
      %1499 = vmatpush.bf16.msra.mxu0 %v1023
      %1500 = vmatpush.bf16.msra.mxu0 %v1007
      %1501 = vmatpush.bf16.msra.mxu0 %v991
      %1502 = vmatpush.bf16.msra.mxu0 %v975
      %1503 = vmatpush.bf16.msra.mxu0 %v959
      %1504 = vmatpush.bf16.msra.mxu0 %v943
      %1505 = vmatpush.bf16.msra.mxu0 %v927
      %1506 = vmatmul.bf16.gmra.mxu0 %v366
      %v1507 = vpop.f32.mrf.mxu0
      %v1508 = vadd.f32 %v361, %v1507
      %v1509 = vpop.f32.mrf.mxu0
      %1510 = vdwg.mxu0
      %1511 = vmatpush.bf16.msra.mxu0 0
      %1512 = vmatpush.bf16.msra.mxu0 0
      %1513 = vmatpush.bf16.msra.mxu0 0
      %1514 = vmatpush.bf16.msra.mxu0 0
      %1515 = vmatpush.bf16.msra.mxu0 %v1313
      %1516 = vmatpush.bf16.msra.mxu0 %v1087
      %1517 = vmatpush.bf16.msra.mxu0 %v1071
      %1518 = vmatpush.bf16.msra.mxu0 %v1055
      %1519 = vmatmul.bf16.gmra.mxu0 %v1291
      %v1520 = vpop.f32.mrf.mxu0
      %v1521 = vadd.f32 %v1508, %v1520
      %v1522 = vpop.f32.mrf.mxu0
      %1523 = vdwg.mxu0
      %1524 = vmatpush.bf16.msra.mxu0 %v1040
      %1525 = vmatpush.bf16.msra.mxu0 %v1024
      %1526 = vmatpush.bf16.msra.mxu0 %v1008
      %1527 = vmatpush.bf16.msra.mxu0 %v992
      %1528 = vmatpush.bf16.msra.mxu0 %v976
      %1529 = vmatpush.bf16.msra.mxu0 %v960
      %1530 = vmatpush.bf16.msra.mxu0 %v944
      %1531 = vmatpush.bf16.msra.mxu0 %v928
      %1532 = vmatmul.bf16.gmra.mxu0 %v366
      %v1533 = vpop.f32.mrf.mxu0
      %v1534 = vadd.f32 %v361, %v1533
      %v1535 = vpop.f32.mrf.mxu0
      %1536 = vdwg.mxu0
      %1537 = vmatpush.bf16.msra.mxu0 0
      %1538 = vmatpush.bf16.msra.mxu0 0
      %1539 = vmatpush.bf16.msra.mxu0 0
      %1540 = vmatpush.bf16.msra.mxu0 0
      %1541 = vmatpush.bf16.msra.mxu0 %v1316
      %1542 = vmatpush.bf16.msra.mxu0 %v1088
      %1543 = vmatpush.bf16.msra.mxu0 %v1072
      %1544 = vmatpush.bf16.msra.mxu0 %v1056
      %1545 = vmatmul.bf16.gmra.mxu0 %v1291
      %v1546 = vpop.f32.mrf.mxu0
      %v1547 = vadd.f32 %v1534, %v1546
      %v1548 = vpop.f32.mrf.mxu0
      %1549 = vdwg.mxu0
      %1550 = vmatpush.bf16.msra.mxu0 %v1041
      %1551 = vmatpush.bf16.msra.mxu0 %v1025
      %1552 = vmatpush.bf16.msra.mxu0 %v1009
      %1553 = vmatpush.bf16.msra.mxu0 %v993
      %1554 = vmatpush.bf16.msra.mxu0 %v977
      %1555 = vmatpush.bf16.msra.mxu0 %v961
      %1556 = vmatpush.bf16.msra.mxu0 %v945
      %1557 = vmatpush.bf16.msra.mxu0 %v929
      %1558 = vmatmul.bf16.gmra.mxu0 %v366
      %v1559 = vpop.f32.mrf.mxu0
      %v1560 = vadd.f32 %v361, %v1559
      %v1561 = vpop.f32.mrf.mxu0
      %1562 = vdwg.mxu0
      %1563 = vmatpush.bf16.msra.mxu0 0
      %1564 = vmatpush.bf16.msra.mxu0 0
      %1565 = vmatpush.bf16.msra.mxu0 0
      %1566 = vmatpush.bf16.msra.mxu0 0
      %1567 = vmatpush.bf16.msra.mxu0 %v1319
      %1568 = vmatpush.bf16.msra.mxu0 %v1089
      %1569 = vmatpush.bf16.msra.mxu0 %v1073
      %1570 = vmatpush.bf16.msra.mxu0 %v1057
      %1571 = vmatmul.bf16.gmra.mxu0 %v1291
      %v1572 = vpop.f32.mrf.mxu0
      %v1573 = vadd.f32 %v1560, %v1572
      %v1574 = vpop.f32.mrf.mxu0
      %1575 = vdwg.mxu0
      %1576 = vmatpush.bf16.msra.mxu0 %v1042
      %1577 = vmatpush.bf16.msra.mxu0 %v1026
      %1578 = vmatpush.bf16.msra.mxu0 %v1010
      %1579 = vmatpush.bf16.msra.mxu0 %v994
      %1580 = vmatpush.bf16.msra.mxu0 %v978
      %1581 = vmatpush.bf16.msra.mxu0 %v962
      %1582 = vmatpush.bf16.msra.mxu0 %v946
      %1583 = vmatpush.bf16.msra.mxu0 %v930
      %1584 = vmatmul.bf16.gmra.mxu0 %v366
      %v1585 = vpop.f32.mrf.mxu0
      %v1586 = vadd.f32 %v361, %v1585
      %v1587 = vpop.f32.mrf.mxu0
      %1588 = vdwg.mxu0
      %1589 = vmatpush.bf16.msra.mxu0 0
      %1590 = vmatpush.bf16.msra.mxu0 0
      %1591 = vmatpush.bf16.msra.mxu0 0
      %1592 = vmatpush.bf16.msra.mxu0 0
      %1593 = vmatpush.bf16.msra.mxu0 %v1322
      %1594 = vmatpush.bf16.msra.mxu0 %v1090
      %1595 = vmatpush.bf16.msra.mxu0 %v1074
      %1596 = vmatpush.bf16.msra.mxu0 %v1058
      %1597 = vmatmul.bf16.gmra.mxu0 %v1291
      %v1598 = vpop.f32.mrf.mxu0
      %v1599 = vadd.f32 %v1586, %v1598
      %v1600 = vpop.f32.mrf.mxu0
      %1601 = vdwg.mxu0
      %1602 = vmatpush.bf16.msra.mxu0 %v1043
      %1603 = vmatpush.bf16.msra.mxu0 %v1027
      %1604 = vmatpush.bf16.msra.mxu0 %v1011
      %1605 = vmatpush.bf16.msra.mxu0 %v995
      %1606 = vmatpush.bf16.msra.mxu0 %v979
      %1607 = vmatpush.bf16.msra.mxu0 %v963
      %1608 = vmatpush.bf16.msra.mxu0 %v947
      %1609 = vmatpush.bf16.msra.mxu0 %v931
      %1610 = vmatmul.bf16.gmra.mxu0 %v366
      %v1611 = vpop.f32.mrf.mxu0
      %v1612 = vadd.f32 %v361, %v1611
      %v1613 = vpop.f32.mrf.mxu0
      %1614 = vdwg.mxu0
      %1615 = vmatpush.bf16.msra.mxu0 0
      %1616 = vmatpush.bf16.msra.mxu0 0
      %1617 = vmatpush.bf16.msra.mxu0 0
      %1618 = vmatpush.bf16.msra.mxu0 0
      %1619 = vmatpush.bf16.msra.mxu0 %v1325
      %1620 = vmatpush.bf16.msra.mxu0 %v1091
      %1621 = vmatpush.bf16.msra.mxu0 %v1075
      %1622 = vmatpush.bf16.msra.mxu0 %v1059
      %1623 = vmatmul.bf16.gmra.mxu0 %v1291
      %v1624 = vpop.f32.mrf.mxu0
      %v1625 = vadd.f32 %v1612, %v1624
      %v1626 = vpop.f32.mrf.mxu0
      %1627 = vdwg.mxu0
      %1628 = vmatpush.bf16.msra.mxu0 %v1044
      %1629 = vmatpush.bf16.msra.mxu0 %v1028
      %1630 = vmatpush.bf16.msra.mxu0 %v1012
      %1631 = vmatpush.bf16.msra.mxu0 %v996
      %1632 = vmatpush.bf16.msra.mxu0 %v980
      %1633 = vmatpush.bf16.msra.mxu0 %v964
      %1634 = vmatpush.bf16.msra.mxu0 %v948
      %1635 = vmatpush.bf16.msra.mxu0 %v932
      %1636 = vmatmul.bf16.gmra.mxu0 %v366
      %v1637 = vpop.f32.mrf.mxu0
      %v1638 = vadd.f32 %v361, %v1637
      %v1639 = vpop.f32.mrf.mxu0
      %1640 = vdwg.mxu0
      %1641 = vmatpush.bf16.msra.mxu0 0
      %1642 = vmatpush.bf16.msra.mxu0 0
      %1643 = vmatpush.bf16.msra.mxu0 0
      %1644 = vmatpush.bf16.msra.mxu0 0
      %1645 = vmatpush.bf16.msra.mxu0 %v1328
      %1646 = vmatpush.bf16.msra.mxu0 %v1092
      %1647 = vmatpush.bf16.msra.mxu0 %v1076
      %1648 = vmatpush.bf16.msra.mxu0 %v1060
      %1649 = vmatmul.bf16.gmra.mxu0 %v1291
      %v1650 = vpop.f32.mrf.mxu0
      %v1651 = vadd.f32 %v1638, %v1650
      %v1652 = vpop.f32.mrf.mxu0
      %1653 = vdwg.mxu0
      %1654 = vmatpush.bf16.msra.mxu0 %v1045
      %1655 = vmatpush.bf16.msra.mxu0 %v1029
      %1656 = vmatpush.bf16.msra.mxu0 %v1013
      %1657 = vmatpush.bf16.msra.mxu0 %v997
      %1658 = vmatpush.bf16.msra.mxu0 %v981
      %1659 = vmatpush.bf16.msra.mxu0 %v965
      %1660 = vmatpush.bf16.msra.mxu0 %v949
      %1661 = vmatpush.bf16.msra.mxu0 %v933
      %1662 = vmatmul.bf16.gmra.mxu0 %v366
      %v1663 = vpop.f32.mrf.mxu0
      %v1664 = vadd.f32 %v361, %v1663
      %v1665 = vpop.f32.mrf.mxu0
      %1666 = vdwg.mxu0
      %1667 = vmatpush.bf16.msra.mxu0 0
      %1668 = vmatpush.bf16.msra.mxu0 0
      %1669 = vmatpush.bf16.msra.mxu0 0
      %1670 = vmatpush.bf16.msra.mxu0 0
      %1671 = vmatpush.bf16.msra.mxu0 %v1331
      %1672 = vmatpush.bf16.msra.mxu0 %v1093
      %1673 = vmatpush.bf16.msra.mxu0 %v1077
      %1674 = vmatpush.bf16.msra.mxu0 %v1061
      %1675 = vmatmul.bf16.gmra.mxu0 %v1291
      %v1676 = vpop.f32.mrf.mxu0
      %v1677 = vadd.f32 %v1664, %v1676
      %v1678 = vpop.f32.mrf.mxu0
      %1679 = vdwg.mxu0
      %1680 = vmatpush.bf16.msra.mxu0 %v1046
      %1681 = vmatpush.bf16.msra.mxu0 %v1030
      %1682 = vmatpush.bf16.msra.mxu0 %v1014
      %1683 = vmatpush.bf16.msra.mxu0 %v998
      %1684 = vmatpush.bf16.msra.mxu0 %v982
      %1685 = vmatpush.bf16.msra.mxu0 %v966
      %1686 = vmatpush.bf16.msra.mxu0 %v950
      %1687 = vmatpush.bf16.msra.mxu0 %v934
      %1688 = vmatmul.bf16.gmra.mxu0 %v366
      %v1689 = vpop.f32.mrf.mxu0
      %v1690 = vadd.f32 %v361, %v1689
      %v1691 = vpop.f32.mrf.mxu0
      %1692 = vdwg.mxu0
      %1693 = vmatpush.bf16.msra.mxu0 0
      %1694 = vmatpush.bf16.msra.mxu0 0
      %1695 = vmatpush.bf16.msra.mxu0 0
      %1696 = vmatpush.bf16.msra.mxu0 0
      %1697 = vmatpush.bf16.msra.mxu0 %v1334
      %1698 = vmatpush.bf16.msra.mxu0 %v1094
      %1699 = vmatpush.bf16.msra.mxu0 %v1078
      %1700 = vmatpush.bf16.msra.mxu0 %v1062
      %1701 = vmatmul.bf16.gmra.mxu0 %v1291
      %v1702 = vpop.f32.mrf.mxu0
      %v1703 = vadd.f32 %v1690, %v1702
      %v1704 = vpop.f32.mrf.mxu0
      %1705 = vdwg.mxu0
      %1706 = vmatpush.bf16.msra.mxu0 %v1047
      %1707 = vmatpush.bf16.msra.mxu0 %v1031
      %1708 = vmatpush.bf16.msra.mxu0 %v1015
      %1709 = vmatpush.bf16.msra.mxu0 %v999
      %1710 = vmatpush.bf16.msra.mxu0 %v983
      %1711 = vmatpush.bf16.msra.mxu0 %v967
      %1712 = vmatpush.bf16.msra.mxu0 %v951
      %1713 = vmatpush.bf16.msra.mxu0 %v935
      %1714 = vmatmul.bf16.gmra.mxu0 %v366
      %v1715 = vpop.f32.mrf.mxu0
      %v1716 = vadd.f32 %v361, %v1715
      %v1717 = vpop.f32.mrf.mxu0
      %1718 = vdwg.mxu0
      %1719 = vmatpush.bf16.msra.mxu0 0
      %1720 = vmatpush.bf16.msra.mxu0 0
      %1721 = vmatpush.bf16.msra.mxu0 0
      %1722 = vmatpush.bf16.msra.mxu0 0
      %1723 = vmatpush.bf16.msra.mxu0 %v1337
      %1724 = vmatpush.bf16.msra.mxu0 %v1095
      %1725 = vmatpush.bf16.msra.mxu0 %v1079
      %1726 = vmatpush.bf16.msra.mxu0 %v1063
      %1727 = vmatmul.bf16.gmra.mxu0 %v1291
      %v1728 = vpop.f32.mrf.mxu0
      %v1729 = vadd.f32 %v1716, %v1728
      %v1730 = vpop.f32.mrf.mxu0
      %1731 = vdwg.mxu0
      %1732 = vmatpush.bf16.msra.mxu0 %v1048
      %1733 = vmatpush.bf16.msra.mxu0 %v1032
      %1734 = vmatpush.bf16.msra.mxu0 %v1016
      %1735 = vmatpush.bf16.msra.mxu0 %v1000
      %1736 = vmatpush.bf16.msra.mxu0 %v984
      %1737 = vmatpush.bf16.msra.mxu0 %v968
      %1738 = vmatpush.bf16.msra.mxu0 %v952
      %1739 = vmatpush.bf16.msra.mxu0 %v936
      %1740 = vmatmul.bf16.gmra.mxu0 %v366
      %v1741 = vpop.f32.mrf.mxu0
      %v1742 = vadd.f32 %v361, %v1741
      %v1743 = vpop.f32.mrf.mxu0
      %1744 = vdwg.mxu0
      %1745 = vmatpush.bf16.msra.mxu0 0
      %1746 = vmatpush.bf16.msra.mxu0 0
      %1747 = vmatpush.bf16.msra.mxu0 0
      %1748 = vmatpush.bf16.msra.mxu0 0
      %1749 = vmatpush.bf16.msra.mxu0 %v1340
      %1750 = vmatpush.bf16.msra.mxu0 %v1096
      %1751 = vmatpush.bf16.msra.mxu0 %v1080
      %1752 = vmatpush.bf16.msra.mxu0 %v1064
      %1753 = vmatmul.bf16.gmra.mxu0 %v1291
      %v1754 = vpop.f32.mrf.mxu0
      %v1755 = vadd.f32 %v1742, %v1754
      %v1756 = vpop.f32.mrf.mxu0
      %1757 = vdwg.mxu0
      %vm1758 = vcmp.ge.f32.partialorder %v1365, 0.0
      %vm1759 = vcmp.ge.f32.partialorder %v1391, 0.0
      %vm1760 = vcmp.ge.f32.partialorder %v1417, 0.0
      %vm1761 = vcmp.ge.f32.partialorder %v1443, 0.0
      %vm1762 = vcmp.ge.f32.partialorder %v1469, 0.0
      %vm1763 = vcmp.ge.f32.partialorder %v1495, 0.0
      %vm1764 = vcmp.ge.f32.partialorder %v1521, 0.0
      %vm1765 = vcmp.ge.f32.partialorder %v1547, 0.0
      %vm1766 = vcmp.ge.f32.partialorder %v1573, 0.0
      %vm1767 = vcmp.ge.f32.partialorder %v1599, 0.0
      %vm1768 = vcmp.ge.f32.partialorder %v1625, 0.0
      %vm1769 = vcmp.ge.f32.partialorder %v1651, 0.0
      %vm1770 = vcmp.ge.f32.partialorder %v1677, 0.0
      %vm1771 = vcmp.ge.f32.partialorder %v1703, 0.0
      %vm1772 = vcmp.ge.f32.partialorder %v1729, 0.0
      %vm1773 = vcmp.ge.f32.partialorder %v1755, 0.0
      %v1774 = vmul.f32 %v1365, 0.2
      %v1775 = vmul.f32 %v1391, 0.2
      %v1776 = vmul.f32 %v1417, 0.2
      %v1777 = vmul.f32 %v1443, 0.2
      %v1778 = vmul.f32 %v1469, 0.2
      %v1779 = vmul.f32 %v1495, 0.2
      %v1780 = vmul.f32 %v1521, 0.2
      %v1781 = vmul.f32 %v1547, 0.2
      %v1782 = vmul.f32 %v1573, 0.2
      %v1783 = vmul.f32 %v1599, 0.2
      %v1784 = vmul.f32 %v1625, 0.2
      %v1785 = vmul.f32 %v1651, 0.2
      %v1786 = vmul.f32 %v1677, 0.2
      %v1787 = vmul.f32 %v1703, 0.2
      %v1788 = vmul.f32 %v1729, 0.2
      %v1789 = vmul.f32 %v1755, 0.2
      %v1790 = vsel %vm1758, %v1365, %v1774
      %v1791 = vsel %vm1759, %v1391, %v1775
      %v1792 = vsel %vm1760, %v1417, %v1776
      %v1793 = vsel %vm1761, %v1443, %v1777
      %v1794 = vsel %vm1762, %v1469, %v1778
      %v1795 = vsel %vm1763, %v1495, %v1779
      %v1796 = vsel %vm1764, %v1521, %v1780
      %v1797 = vsel %vm1765, %v1547, %v1781
      %v1798 = vsel %vm1766, %v1573, %v1782
      %v1799 = vsel %vm1767, %v1599, %v1783
      %v1800 = vsel %vm1768, %v1625, %v1784
      %v1801 = vsel %vm1769, %v1651, %v1785
      %v1802 = vsel %vm1770, %v1677, %v1786
      %v1803 = vsel %vm1771, %v1703, %v1787
      %v1804 = vsel %vm1772, %v1729, %v1788
      %v1805 = vsel %vm1773, %v1755, %v1789
      %1806 = vset.pattern.permute.xlu0 1
      %1807 = vperm.xlu0 %1806, %v357
      %v1808 = vpop.permute.xlu0 %1807
      %v1810 = vmul.f32 %v1790, %v1808
      %v1811 = vmul.f32 %v1791, %v1808
      %v1812 = vmul.f32 %v1792, %v1808
      %v1813 = vmul.f32 %v1793, %v1808
      %v1814 = vmul.f32 %v1794, %v1808
      %v1815 = vmul.f32 %v1795, %v1808
      %v1816 = vmul.f32 %v1796, %v1808
      %v1817 = vmul.f32 %v1797, %v1808
      %v1818 = vmul.f32 %v1798, %v1808
      %v1819 = vmul.f32 %v1799, %v1808
      %v1820 = vmul.f32 %v1800, %v1808
      %v1821 = vmul.f32 %v1801, %v1808
      %v1822 = vmul.f32 %v1802, %v1808
      %v1823 = vmul.f32 %v1803, %v1808
      %v1824 = vmul.f32 %v1804, %v1808
      %v1825 = vmul.f32 %v1805, %v1808
      %1826 = vset.pattern.permute.xlu0 2
      %1827 = vperm.xlu0 %1826, %v357
      %v1828 = vpop.permute.xlu0 %1827
      %v1830 = vadd.f32 %v1810, %v1828
      %v1831 = vadd.f32 %v1811, %v1828
      %v1832 = vadd.f32 %v1812, %v1828
      %v1833 = vadd.f32 %v1813, %v1828
      %v1834 = vadd.f32 %v1814, %v1828
      %v1835 = vadd.f32 %v1815, %v1828
      %v1836 = vadd.f32 %v1816, %v1828
      %v1837 = vadd.f32 %v1817, %v1828
      %v1838 = vadd.f32 %v1818, %v1828
      %v1839 = vadd.f32 %v1819, %v1828
      %v1840 = vadd.f32 %v1820, %v1828
      %v1841 = vadd.f32 %v1821, %v1828
      %v1842 = vadd.f32 %v1822, %v1828
      %v1843 = vadd.f32 %v1823, %v1828
      %v1844 = vadd.f32 %v1824, %v1828
      %v1845 = vadd.f32 %v1825, %v1828
      %v1846 = vpack.c.bf16 %v1831, %v1830
      %v1847 = vpack.c.bf16 %v1833, %v1832
      %v1848 = vpack.c.bf16 %v1835, %v1834
      %v1849 = vpack.c.bf16 %v1837, %v1836
      %v1850 = vpack.c.bf16 %v1839, %v1838
      %v1851 = vpack.c.bf16 %v1841, %v1840
      %v1852 = vpack.c.bf16 %v1843, %v1842
      %v1853 = vpack.c.bf16 %v1845, %v1844
      %1854 = vst [vmem:[%s170] sm:$0xff] %v1846
      %1855 = vst [vmem:[%s170 + $0x8] sm:$0xff] %v1847
      %1856 = vst [vmem:[%s170 + $0x10] sm:$0xff] %v1848
      %1857 = vst [vmem:[%s170 + $0x18] sm:$0xff] %v1849
      %1858 = vst [vmem:[%s170 + $0x20] sm:$0xff] %v1850
      %1859 = vst [vmem:[%s170 + $0x28] sm:$0xff] %v1851
      %1860 = vst [vmem:[%s170 + $0x30] sm:$0xff] %v1852
      %1861 = vst [vmem:[%s170 + $0x38] sm:$0xff] %v1853
      %p1862 = scmp.lt.s32.totalorder %s14, 1
      %s1863 = scalar_select %p1862, %s14, 1
      %s1864 = smul.addr %s1863, 16
      %s1865 = smul.addr %s1864, 4
      %s1866 = scalar_lea.vmem %s3, %s1865
      // Predicated region
      $region33: #{cnn_surrogate_forward.8} parent=31 // pred_check
        %p1867 = pneg %p100
      $region34: #{cnn_surrogate_forward.8} parent=31 // pred_check_branch
        %1869 = sbr.rel (%p1867) target = $region36
      $region35: #{cnn_surrogate_forward.8} parent=31 // pred_region
        _
      $region36: #{cnn_surrogate_forward.8} parent=31 // pred_fallthru
        _
    $region32: #{cnn_surrogate_forward.8} parent=5 // pred_fallthru
      _
    %p1870 = scmp.le.s32.totalorder 2, %s9
    // Predicated region
    $region37: #{cnn_surrogate_forward.8} parent=5 // pred_check
      %p1871 = pneg %p1870
    $region38: #{cnn_surrogate_forward.8} parent=5 // pred_check_branch
      %1873 = sbr.rel (%p1871) target = $region40
    $region39: #{cnn_surrogate_forward.8} parent=5 // pred_region
      %s1874 = ssub.s32 %s9, 2
      // Predicated region
      $region41: #{cnn_surrogate_forward.8} parent=39 // pred_check
        %p1875 = pneg %p106
      $region42: #{cnn_surrogate_forward.8} parent=39 // pred_check_branch
        %1877 = sbr.rel (%p1875) target = $region44
      $region43: #{cnn_surrogate_forward.8} parent=39 // pred_region
        %p1878 = scmp.lt.s32.totalorder %s15, 1
        %s1879 = scalar_select %p1878, %s15, 1
        %s1880 = smul.addr %s1879, 16
        %s1881 = smul.addr %s1880, 4
        %s1882 = scalar_lea.vmem %s3, %s1881
      $region44: #{cnn_surrogate_forward.8} parent=39 // pred_fallthru
        _
    $region40: #{cnn_surrogate_forward.8} parent=5 // pred_fallthru
      _
  $region6: #{cnn_surrogate_forward.8} parent=0 // loop_footer
    %s13 = sadd.s32 1, %s9
  $region7: #{cnn_surrogate_forward.8} parent=0 // loop_footer_branch
    %8 = sbr.rel target = $region3
  $region8: #{cnn_surrogate_forward.8} parent=0 // loop_exit
    _

// kernel: cnn_surrogate_forward.9
$region0: #{cnn_surrogate_forward.9}
  #allocation0 [shape = 'u32[]', space=smem, size = 0x4, offset = 0x4, fixed_abs, tag = 'smem constant byte address 0x4 - core index']
  #allocation1 [shape = 'u32[72,128]{1,0:T(1,128)}', space=vmem, size = 0x9000, scoped, tag = 'internal scratch']
  %s0 = inlined_call_operand.vmem [shape: bf16[16,128], index: 0, kind: input, shape index: {}]
  %s1 = inlined_call_operand.vmem [shape: bf16[2,128,512], index: 1, kind: input, shape index: {}]
  %s2 = inlined_call_operand.vmem [shape: f32[16,3], index: 2, kind: input, shape index: {}]
  %s3 = inlined_call_operand.vmem [shape: bf16[2,16,512], index: 3, kind: output, shape index: {}]
  %s4 = sld [smem:[#allocation0]]
  $region45: #{cnn_surrogate_forward.9} parent=0
    _
  %s6 = ssub.s32 1, %s4
  %s7 = scalar_select 0, %s6, %s4
  loop: start=0, step=1, limit=4
  $region2: #{cnn_surrogate_forward.9} parent=0 // loop_pre_header
    _
  $region3: #{cnn_surrogate_forward.9} parent=0 // loop_header
    %s9 = sphi 0, %s13
    %p10 = scmp.ge.s32.totalorder %s9, 4
    %s17 = sphi 0, %s17
    %s19 = sphi 0, %s17
    %s20 = sphi 0, %s19
    %s34 = sphi 0, %s20
    %s40 = sphi 0, %s42
    %s43 = sphi 0, %s40
    %s44 = sphi 0, %s43
    %s60 = sphi 0, %s44
    %s64 = sphi 0, %s64
    %s66 = sphi 0, %s64
    %s67 = sphi 0, %s66
    %s81 = sphi 0, %s67
    %s87 = sphi 0, %s89
    %s90 = sphi 0, %s87
    %s91 = sphi 0, %s90
    %s107 = sphi 0, %s91
  $region4: #{cnn_surrogate_forward.9} parent=0 // loop_header_branch
    %12 = sbr.rel (%p10) target = $region8
  $region5: #{cnn_surrogate_forward.9} parent=0 // loop_body
    %s14 = ssub.s32 %s9, 1
    %s15 = ssub.s32 %s9, 2
    %s16 = sadd.s32 %s9, 1
    %s18 = sadd.s32 %s17, 1
    %p21 = scmp.eq.s32.totalorder %s9, 1
    %p22 = scmp.ne.s32.totalorder %s17, %s19
    %p23 = scmp.eq.s32.totalorder %s9, 0
    %p24 = por %p22, %p23
    %p25 = scmp.ne.s32.totalorder %s17, %s19
    %p26 = scmp.eq.s32.totalorder %s14, 1
    %p27 = por %p25, %p26
    %p28 = scmp.ne.s32.totalorder %s19, %s20
    %p29 = scmp.eq.s32.totalorder %s14, 0
    %p30 = por %p28, %p29
    %p31 = scmp.ne.s32.totalorder %s19, %s20
    %p32 = scmp.eq.s32.totalorder %s15, 1
    %p33 = por %p31, %p32
    %p35 = scmp.ne.s32.totalorder %s20, %s34
    %p36 = scmp.eq.s32.totalorder %s15, 0
    %p37 = por %p35, %p36
    %s38 = ssub.s32 %s9, %s16
    %p39 = scmp.eq.s32.totalorder %s38, 0
    %s41 = sadd.s32 %s40, 1
    %s42 = scalar_select %p39, %s40, %s41
    %p45 = pneg %p39
    %p46 = scmp.eq.s32.totalorder %s9, 1
    %p47 = por %p45, %p46
    %p48 = scmp.ne.s32.totalorder %s40, %s43
    %p49 = scmp.eq.s32.totalorder %s9, 0
    %p50 = por %p48, %p49
    %p51 = scmp.ne.s32.totalorder %s40, %s43
    %p52 = scmp.eq.s32.totalorder %s14, 1
    %p53 = por %p51, %p52
    %p54 = scmp.ne.s32.totalorder %s43, %s44
    %p55 = scmp.eq.s32.totalorder %s14, 0
    %p56 = por %p54, %p55
    %p57 = scmp.ne.s32.totalorder %s43, %s44
    %p58 = scmp.eq.s32.totalorder %s15, 1
    %p59 = por %p57, %p58
    %p61 = scmp.ne.s32.totalorder %s44, %s60
    %p62 = scmp.eq.s32.totalorder %s15, 0
    %p63 = por %p61, %p62
    %s65 = sadd.s32 %s64, 1
    %p68 = scmp.eq.s32.totalorder %s9, 1
    %p69 = scmp.ne.s32.totalorder %s64, %s66
    %p70 = scmp.eq.s32.totalorder %s9, 0
    %p71 = por %p69, %p70
    %p72 = scmp.ne.s32.totalorder %s64, %s66
    %p73 = scmp.eq.s32.totalorder %s14, 1
    %p74 = por %p72, %p73
    %p75 = scmp.ne.s32.totalorder %s66, %s67
    %p76 = scmp.eq.s32.totalorder %s14, 0
    %p77 = por %p75, %p76
    %p78 = scmp.ne.s32.totalorder %s66, %s67
    %p79 = scmp.eq.s32.totalorder %s15, 1
    %p80 = por %p78, %p79
    %p82 = scmp.ne.s32.totalorder %s67, %s81
    %p83 = scmp.eq.s32.totalorder %s15, 0
    %p84 = por %p82, %p83
    %s85 = ssub.s32 %s9, %s16
    %p86 = scmp.eq.s32.totalorder %s85, 0
    %s88 = sadd.s32 %s87, 1
    %s89 = scalar_select %p86, %s87, %s88
    %p92 = pneg %p86
    %p93 = scmp.eq.s32.totalorder %s9, 1
    %p94 = por %p92, %p93
    %p95 = scmp.ne.s32.totalorder %s87, %s90
    %p96 = scmp.eq.s32.totalorder %s9, 0
    %p97 = por %p95, %p96
    %p98 = scmp.ne.s32.totalorder %s87, %s90
    %p99 = scmp.eq.s32.totalorder %s14, 1
    %p100 = por %p98, %p99
    %p101 = scmp.ne.s32.totalorder %s90, %s91
    %p102 = scmp.eq.s32.totalorder %s14, 0
    %p103 = por %p101, %p102
    %p104 = scmp.ne.s32.totalorder %s90, %s91
    %p105 = scmp.eq.s32.totalorder %s15, 1
    %p106 = por %p104, %p105
    %p108 = scmp.ne.s32.totalorder %s91, %s107
    %p109 = scmp.eq.s32.totalorder %s15, 0
    %p110 = por %p108, %p109
    %p111 = scmp.le.s32.totalorder 1, %s9
    %p112 = scmp.lt.s32.totalorder %s9, 3
    %p113 = pnand %p111, %p112
    %p114 = pneg %p113
    // Predicated region
    $region9: #{cnn_surrogate_forward.9} parent=5 // pred_check
      _
    $region10: #{cnn_surrogate_forward.9} parent=5 // pred_check_branch
      %116 = sbr.rel (%p113) target = $region12
    $region11: #{cnn_surrogate_forward.9} parent=5 // pred_region
      %s117 = ssub.s32 %s9, 1
      // Predicated region
      $region13: #{cnn_surrogate_forward.9} parent=11 // pred_check
        %p118 = pneg %p30
      $region14: #{cnn_surrogate_forward.9} parent=11 // pred_check_branch
        %120 = sbr.rel (%p118) target = $region16
      $region15: #{cnn_surrogate_forward.9} parent=11 // pred_region
        _
      $region16: #{cnn_surrogate_forward.9} parent=11 // pred_fallthru
        _
      // Predicated region
      $region17: #{cnn_surrogate_forward.9} parent=11 // pred_check
        %p121 = pneg %p77
      $region18: #{cnn_surrogate_forward.9} parent=11 // pred_check_branch
        %123 = sbr.rel (%p121) target = $region20
      $region19: #{cnn_surrogate_forward.9} parent=11 // pred_region
        _
      $region20: #{cnn_surrogate_forward.9} parent=11 // pred_fallthru
        _
    $region12: #{cnn_surrogate_forward.9} parent=5 // pred_fallthru
      _
    %p124 = scmp.lt.s32.totalorder %s9, 2
    // Predicated region
    $region21: #{cnn_surrogate_forward.9} parent=5 // pred_check
      %p125 = pneg %p124
    $region22: #{cnn_surrogate_forward.9} parent=5 // pred_check_branch
      %127 = sbr.rel (%p125) target = $region24
    $region23: #{cnn_surrogate_forward.9} parent=5 // pred_region
      // Predicated region
      $region25: #{cnn_surrogate_forward.9} parent=23 // pred_check
        %p128 = pneg %p50
      $region26: #{cnn_surrogate_forward.9} parent=23 // pred_check_branch
        %130 = sbr.rel (%p128) target = $region28
      $region27: #{cnn_surrogate_forward.9} parent=23 // pred_region
        %p131 = scmp.lt.s32.totalorder %s9, 1
        %s132 = scalar_select %p131, %s9, 1
        %s133 = smul.addr %s132, 64
        %s134 = smul.addr %s133, 4
        %s135 = scalar_lea.vmem %s1, %s134
      $region28: #{cnn_surrogate_forward.9} parent=23 // pred_fallthru
        _
    $region24: #{cnn_surrogate_forward.9} parent=5 // pred_fallthru
      _
    %p136 = scmp.le.s32.totalorder 1, %s9
    %p137 = scmp.lt.s32.totalorder %s9, 3
    %p138 = pnand %p136, %p137
    %p139 = pneg %p138
    // Predicated region
    $region29: #{cnn_surrogate_forward.9} parent=5 // pred_check
      _
    $region30: #{cnn_surrogate_forward.9} parent=5 // pred_check_branch
      %141 = sbr.rel (%p138) target = $region32
    $region31: #{cnn_surrogate_forward.9} parent=5 // pred_region
      %s142 = ssub.s32 %s9, 1
      %p143 = pneg %p30
      %p144 = pneg %p27
      %p145 = scmp.lt.s32.totalorder %s14, 1
      %s146 = scalar_select %p145, %s14, 1
      %s147 = smul.addr %s146, 64
      %s148 = smul.addr %s147, 4
      %s149 = scalar_lea.vmem %s1, %s148
      %p150 = pneg %p56
      %p151 = pneg %p53
      %p152 = pneg %p77
      %p153 = pneg %p74
      %p154 = pneg %p103
      %p155 = pneg %p100
      %p156 = scmp.lt.s32.totalorder %s14, 1
      %s157 = scalar_select %p156, %s14, 1
      %s158 = smul.addr %s157, 8
      %s159 = smul.addr %s158, 4
      %s160 = scalar_lea.vmem %s3, %s159
      %p161 = scmp.lt.s32.totalorder %s14, 1
      %s162 = scalar_select %p161, %s14, 1
      %s163 = smul.addr %s162, 64
      %s164 = smul.addr %s163, 4
      %s165 = scalar_lea.vmem %s1, %s164
      %p166 = scmp.lt.s32.totalorder %s14, 1
      %s167 = scalar_select %p166, %s14, 1
      %s168 = smul.addr %s167, 8
      %s169 = smul.addr %s168, 4
      %s170 = scalar_lea.vmem %s3, %s169
      %v171 = vld [vmem:[%s0] sm:$0xf]
      %v172 = vld [vmem:[%s0 + $0x4] sm:$0xf]
      %v173 = vld [vmem:[%s165] sm:$0xff]
      %v174 = vld [vmem:[%s165 + $0x8] sm:$0xff]
      %v175 = vld [vmem:[%s165 + $0x10] sm:$0xff]
      %v176 = vld [vmem:[%s165 + $0x18] sm:$0xff]
      %v177 = vld [vmem:[%s165 + $0x20] sm:$0xff]
      %v178 = vld [vmem:[%s165 + $0x28] sm:$0xff]
      %v179 = vld [vmem:[%s165 + $0x30] sm:$0xff]
      %v180 = vld [vmem:[%s165 + $0x38] sm:$0xff]
      %v181 = vld [vmem:[%s165 + $0x40] sm:$0xff]
      %v182 = vld [vmem:[%s165 + $0x48] sm:$0xff]
      %v183 = vld [vmem:[%s165 + $0x50] sm:$0xff]
      %v184 = vld [vmem:[%s165 + $0x58] sm:$0xff]
      %v185 = vld [vmem:[%s165 + $0x60] sm:$0xff]
      %v186 = vld [vmem:[%s165 + $0x68] sm:$0xff]
      %v187 = vld [vmem:[%s165 + $0x70] sm:$0xff]
      %v188 = vld [vmem:[%s165 + $0x78] sm:$0xff]
      %v189 = vld [vmem:[%s165 + $0x80] sm:$0xff]
      %v190 = vld [vmem:[%s165 + $0x88] sm:$0xff]
      %v191 = vld [vmem:[%s165 + $0x90] sm:$0xff]
      %v192 = vld [vmem:[%s165 + $0x98] sm:$0xff]
      %v193 = vld [vmem:[%s165 + $0xa0] sm:$0xff]
      %v194 = vld [vmem:[%s165 + $0xa8] sm:$0xff]
      %v195 = vld [vmem:[%s165 + $0xb0] sm:$0xff]
      %v196 = vld [vmem:[%s165 + $0xb8] sm:$0xff]
      %v197 = vld [vmem:[%s165 + $0xc0] sm:$0xff]
      %v198 = vld [vmem:[%s165 + $0xc8] sm:$0xff]
      %v199 = vld [vmem:[%s165 + $0xd0] sm:$0xff]
      %v200 = vld [vmem:[%s165 + $0xd8] sm:$0xff]
      %v201 = vld [vmem:[%s165 + $0xe0] sm:$0xff]
      %v202 = vld [vmem:[%s165 + $0xe8] sm:$0xff]
      %v203 = vld [vmem:[%s165 + $0xf0] sm:$0xff]
      %v204 = vld [vmem:[%s165 + $0xf8] sm:$0xff]
      %v205 = vld [vmem:[%s2] sm:$0xff]
      %v206 = vld [vmem:[%s2 + $0x8] sm:$0xff]
      %208 = vset.pattern.permute.xlu0 0
      %209 = vperm.xlu0 %208, %v205
      %v210 = vpop.permute.xlu0 %209
      %213 = vset.pattern.permute.xlu0 0
      %214 = vperm.xlu0 %213, %v206
      %v215 = vpop.permute.xlu0 %214
      %v219 = vunpack.c.l.b16 %v171
      %v220 = vunpack.c.l.b16 %v172
      %v221 = vpack.c.b16 %v220, %v219
      %v255 = vunpack.c.l.b16 %v173
      %v256 = vunpack.c.h.b16 %v173
      %v257 = vunpack.c.l.b16 %v174
      %v258 = vunpack.c.h.b16 %v174
      %v259 = vunpack.c.l.b16 %v175
      %v260 = vunpack.c.h.b16 %v175
      %v261 = vunpack.c.l.b16 %v176
      %v262 = vunpack.c.h.b16 %v176
      %v263 = vunpack.c.l.b16 %v177
      %v264 = vunpack.c.h.b16 %v177
      %v265 = vunpack.c.l.b16 %v178
      %v266 = vunpack.c.h.b16 %v178
      %v267 = vunpack.c.l.b16 %v179
      %v268 = vunpack.c.h.b16 %v179
      %v269 = vunpack.c.l.b16 %v180
      %v270 = vunpack.c.h.b16 %v180
      %v271 = vunpack.c.l.b16 %v181
      %v272 = vunpack.c.h.b16 %v181
      %v273 = vunpack.c.l.b16 %v182
      %v274 = vunpack.c.h.b16 %v182
      %v275 = vunpack.c.l.b16 %v183
      %v276 = vunpack.c.h.b16 %v183
      %v277 = vunpack.c.l.b16 %v184
      %v278 = vunpack.c.h.b16 %v184
      %v279 = vunpack.c.l.b16 %v185
      %v280 = vunpack.c.h.b16 %v185
      %v281 = vunpack.c.l.b16 %v186
      %v282 = vunpack.c.h.b16 %v186
      %v283 = vunpack.c.l.b16 %v187
      %v284 = vunpack.c.h.b16 %v187
      %v285 = vunpack.c.l.b16 %v188
      %v286 = vunpack.c.h.b16 %v188
      %v287 = vunpack.c.l.b16 %v189
      %v288 = vunpack.c.h.b16 %v189
      %v289 = vunpack.c.l.b16 %v190
      %v290 = vunpack.c.h.b16 %v190
      %v291 = vunpack.c.l.b16 %v191
      %v292 = vunpack.c.h.b16 %v191
      %v293 = vunpack.c.l.b16 %v192
      %v294 = vunpack.c.h.b16 %v192
      %v295 = vunpack.c.l.b16 %v193
      %v296 = vunpack.c.h.b16 %v193
      %v297 = vunpack.c.l.b16 %v194
      %v298 = vunpack.c.h.b16 %v194
      %v299 = vunpack.c.l.b16 %v195
      %v300 = vunpack.c.h.b16 %v195
      %v301 = vunpack.c.l.b16 %v196
      %v302 = vunpack.c.h.b16 %v196
      %v303 = vunpack.c.l.b16 %v197
      %v304 = vunpack.c.h.b16 %v197
      %v305 = vunpack.c.l.b16 %v198
      %v306 = vunpack.c.h.b16 %v198
      %v307 = vunpack.c.l.b16 %v199
      %v308 = vunpack.c.h.b16 %v199
      %v309 = vunpack.c.l.b16 %v200
      %v310 = vunpack.c.h.b16 %v200
      %v311 = vunpack.c.l.b16 %v201
      %v312 = vunpack.c.h.b16 %v201
      %v313 = vunpack.c.l.b16 %v202
      %v314 = vunpack.c.h.b16 %v202
      %v315 = vunpack.c.l.b16 %v203
      %v316 = vunpack.c.h.b16 %v203
      %v317 = vunpack.c.l.b16 %v204
      %v318 = vunpack.c.h.b16 %v204
      %v319 = vpack.c.b16 %v259, %v255
      %v320 = vpack.c.b16 %v260, %v256
      %v321 = vpack.c.b16 %v261, %v257
      %v322 = vpack.c.b16 %v262, %v258
      %v323 = vpack.c.b16 %v267, %v263
      %v324 = vpack.c.b16 %v268, %v264
      %v325 = vpack.c.b16 %v269, %v265
      %v326 = vpack.c.b16 %v270, %v266
      %v327 = vpack.c.b16 %v275, %v271
      %v328 = vpack.c.b16 %v276, %v272
      %v329 = vpack.c.b16 %v277, %v273
      %v330 = vpack.c.b16 %v278, %v274
      %v331 = vpack.c.b16 %v283, %v279
      %v332 = vpack.c.b16 %v284, %v280
      %v333 = vpack.c.b16 %v285, %v281
      %v334 = vpack.c.b16 %v286, %v282
      %v335 = vpack.c.b16 %v291, %v287
      %v336 = vpack.c.b16 %v292, %v288
      %v337 = vpack.c.b16 %v293, %v289
      %v338 = vpack.c.b16 %v294, %v290
      %v339 = vpack.c.b16 %v299, %v295
      %v340 = vpack.c.b16 %v300, %v296
      %v341 = vpack.c.b16 %v301, %v297
      %v342 = vpack.c.b16 %v302, %v298
      %v343 = vpack.c.b16 %v307, %v303
      %v344 = vpack.c.b16 %v308, %v304
      %v345 = vpack.c.b16 %v309, %v305
      %v346 = vpack.c.b16 %v310, %v306
      %v347 = vpack.c.b16 %v315, %v311
      %v348 = vpack.c.b16 %v316, %v312
      %v349 = vpack.c.b16 %v317, %v313
      %v350 = vpack.c.b16 %v318, %v314
      %383 = vmatpush.bf16.msra.mxu0 %v347
      %384 = vmatpush.bf16.msra.mxu0 %v343
      %385 = vmatpush.bf16.msra.mxu0 %v339
      %386 = vmatpush.bf16.msra.mxu0 %v335
      %387 = vmatpush.bf16.msra.mxu0 %v331
      %388 = vmatpush.bf16.msra.mxu0 %v327
      %389 = vmatpush.bf16.msra.mxu0 %v323
      %390 = vmatpush.bf16.msra.mxu0 %v319
      %391 = vmatmul.bf16.gmra.mxu0 %v221
      %v392 = vpop.f32.mrf.mxu0
      %v393 = vadd.f32 %v210, %v392
      %v394 = vpop.f32.mrf.mxu0
      %v395 = vadd.f32 %v215, %v394
      %396 = vdwg.mxu0
      %397 = vmatpush.bf16.msra.mxu0 %v348
      %398 = vmatpush.bf16.msra.mxu0 %v344
      %399 = vmatpush.bf16.msra.mxu0 %v340
      %400 = vmatpush.bf16.msra.mxu0 %v336
      %401 = vmatpush.bf16.msra.mxu0 %v332
      %402 = vmatpush.bf16.msra.mxu0 %v328
      %403 = vmatpush.bf16.msra.mxu0 %v324
      %404 = vmatpush.bf16.msra.mxu0 %v320
      %405 = vmatmul.bf16.gmra.mxu0 %v221
      %v406 = vpop.f32.mrf.mxu0
      %v407 = vadd.f32 %v210, %v406
      %v408 = vpop.f32.mrf.mxu0
      %v409 = vadd.f32 %v215, %v408
      %410 = vdwg.mxu0
      %411 = vmatpush.bf16.msra.mxu0 %v349
      %412 = vmatpush.bf16.msra.mxu0 %v345
      %413 = vmatpush.bf16.msra.mxu0 %v341
      %414 = vmatpush.bf16.msra.mxu0 %v337
      %415 = vmatpush.bf16.msra.mxu0 %v333
      %416 = vmatpush.bf16.msra.mxu0 %v329
      %417 = vmatpush.bf16.msra.mxu0 %v325
      %418 = vmatpush.bf16.msra.mxu0 %v321
      %419 = vmatmul.bf16.gmra.mxu0 %v221
      %v420 = vpop.f32.mrf.mxu0
      %v421 = vadd.f32 %v210, %v420
      %v422 = vpop.f32.mrf.mxu0
      %v423 = vadd.f32 %v215, %v422
      %424 = vdwg.mxu0
      %425 = vmatpush.bf16.msra.mxu0 %v350
      %426 = vmatpush.bf16.msra.mxu0 %v346
      %427 = vmatpush.bf16.msra.mxu0 %v342
      %428 = vmatpush.bf16.msra.mxu0 %v338
      %429 = vmatpush.bf16.msra.mxu0 %v334
      %430 = vmatpush.bf16.msra.mxu0 %v330
      %431 = vmatpush.bf16.msra.mxu0 %v326
      %432 = vmatpush.bf16.msra.mxu0 %v322
      %433 = vmatmul.bf16.gmra.mxu0 %v221
      %v434 = vpop.f32.mrf.mxu0
      %v435 = vadd.f32 %v210, %v434
      %v436 = vpop.f32.mrf.mxu0
      %v437 = vadd.f32 %v215, %v436
      %438 = vdwg.mxu0
      %vm439 = vcmp.ge.f32.partialorder %v393, 0.0
      %vm440 = vcmp.ge.f32.partialorder %v407, 0.0
      %vm441 = vcmp.ge.f32.partialorder %v421, 0.0
      %vm442 = vcmp.ge.f32.partialorder %v435, 0.0
      %vm443 = vcmp.ge.f32.partialorder %v395, 0.0
      %vm444 = vcmp.ge.f32.partialorder %v409, 0.0
      %vm445 = vcmp.ge.f32.partialorder %v423, 0.0
      %vm446 = vcmp.ge.f32.partialorder %v437, 0.0
      %v447 = vmul.f32 %v393, 0.2
      %v448 = vmul.f32 %v407, 0.2
      %v449 = vmul.f32 %v421, 0.2
      %v450 = vmul.f32 %v435, 0.2
      %v451 = vmul.f32 %v395, 0.2
      %v452 = vmul.f32 %v409, 0.2
      %v453 = vmul.f32 %v423, 0.2
      %v454 = vmul.f32 %v437, 0.2
      %v455 = vsel %vm439, %v393, %v447
      %v456 = vsel %vm440, %v407, %v448
      %v457 = vsel %vm441, %v421, %v449
      %v458 = vsel %vm442, %v435, %v450
      %v459 = vsel %vm443, %v395, %v451
      %v460 = vsel %vm444, %v409, %v452
      %v461 = vsel %vm445, %v423, %v453
      %v462 = vsel %vm446, %v437, %v454
      %463 = vset.pattern.permute.xlu0 1
      %464 = vperm.xlu0 %463, %v205
      %v465 = vpop.permute.xlu0 %464
      %467 = vset.pattern.permute.xlu0 1
      %468 = vperm.xlu0 %467, %v206
      %v469 = vpop.permute.xlu0 %468
      %v471 = vmul.f32 %v455, %v465
      %v472 = vmul.f32 %v456, %v465
      %v473 = vmul.f32 %v457, %v465
      %v474 = vmul.f32 %v458, %v465
      %v475 = vmul.f32 %v459, %v469
      %v476 = vmul.f32 %v460, %v469
      %v477 = vmul.f32 %v461, %v469
      %v478 = vmul.f32 %v462, %v469
      %479 = vset.pattern.permute.xlu0 2
      %480 = vperm.xlu0 %479, %v205
      %v481 = vpop.permute.xlu0 %480
      %483 = vset.pattern.permute.xlu0 2
      %484 = vperm.xlu0 %483, %v206
      %v485 = vpop.permute.xlu0 %484
      %v487 = vadd.f32 %v471, %v481
      %v488 = vadd.f32 %v472, %v481
      %v489 = vadd.f32 %v473, %v481
      %v490 = vadd.f32 %v474, %v481
      %v491 = vadd.f32 %v475, %v485
      %v492 = vadd.f32 %v476, %v485
      %v493 = vadd.f32 %v477, %v485
      %v494 = vadd.f32 %v478, %v485
      %v495 = vpack.c.bf16 %v488, %v487
      %v496 = vpack.c.bf16 %v490, %v489
      %v497 = vpack.c.bf16 %v492, %v491
      %v498 = vpack.c.bf16 %v494, %v493
      %499 = vst [vmem:[%s170] sm:$0xff] %v495
      %500 = vst [vmem:[%s170 + $0x8] sm:$0xff] %v496
      %501 = vst [vmem:[%s170 + $0x10] sm:$0xff] %v497
      %502 = vst [vmem:[%s170 + $0x18] sm:$0xff] %v498
      %p503 = scmp.lt.s32.totalorder %s14, 1
      %s504 = scalar_select %p503, %s14, 1
      %s505 = smul.addr %s504, 8
      %s506 = smul.addr %s505, 4
      %s507 = scalar_lea.vmem %s3, %s506
      // Predicated region
      $region33: #{cnn_surrogate_forward.9} parent=31 // pred_check
        %p508 = pneg %p100
      $region34: #{cnn_surrogate_forward.9} parent=31 // pred_check_branch
        %510 = sbr.rel (%p508) target = $region36
      $region35: #{cnn_surrogate_forward.9} parent=31 // pred_region
        _
      $region36: #{cnn_surrogate_forward.9} parent=31 // pred_fallthru
        _
    $region32: #{cnn_surrogate_forward.9} parent=5 // pred_fallthru
      _
    %p511 = scmp.le.s32.totalorder 2, %s9
    // Predicated region
    $region37: #{cnn_surrogate_forward.9} parent=5 // pred_check
      %p512 = pneg %p511
    $region38: #{cnn_surrogate_forward.9} parent=5 // pred_check_branch
      %514 = sbr.rel (%p512) target = $region40
    $region39: #{cnn_surrogate_forward.9} parent=5 // pred_region
      %s515 = ssub.s32 %s9, 2
      // Predicated region
      $region41: #{cnn_surrogate_forward.9} parent=39 // pred_check
        %p516 = pneg %p106
      $region42: #{cnn_surrogate_forward.9} parent=39 // pred_check_branch
        %518 = sbr.rel (%p516) target = $region44
      $region43: #{cnn_surrogate_forward.9} parent=39 // pred_region
        %p519 = scmp.lt.s32.totalorder %s15, 1
        %s520 = scalar_select %p519, %s15, 1
        %s521 = smul.addr %s520, 8
        %s522 = smul.addr %s521, 4
        %s523 = scalar_lea.vmem %s3, %s522
      $region44: #{cnn_surrogate_forward.9} parent=39 // pred_fallthru
        _
    $region40: #{cnn_surrogate_forward.9} parent=5 // pred_fallthru
      _
  $region6: #{cnn_surrogate_forward.9} parent=0 // loop_footer
    %s13 = sadd.s32 1, %s9
  $region7: #{cnn_surrogate_forward.9} parent=0 // loop_footer_branch
    %8 = sbr.rel target = $region3
  $region8: #{cnn_surrogate_forward.9} parent=0 // loop_exit
    _

// kernel: cnn_surrogate_forward.10
$region0: #{cnn_surrogate_forward.10}
  #allocation0 [shape = 'u32[]', space=smem, size = 0x4, offset = 0x4, fixed_abs, tag = 'smem constant byte address 0x4 - core index']
  #allocation1 [shape = 'u32[72,128]{1,0:T(1,128)}', space=vmem, size = 0x9000, scoped, tag = 'internal scratch']
  %s0 = inlined_call_operand.vmem [shape: bf16[32,256], index: 0, kind: input, shape index: {}]
  %s1 = inlined_call_operand.vmem [shape: bf16[2,256,128], index: 1, kind: input, shape index: {}]
  %s2 = inlined_call_operand.vmem [shape: f32[32,3], index: 2, kind: input, shape index: {}]
  %s3 = inlined_call_operand.vmem [shape: bf16[2,32,128], index: 3, kind: output, shape index: {}]
  %s4 = sld [smem:[#allocation0]]
  $region45: #{cnn_surrogate_forward.10} parent=0
    _
  %s6 = ssub.s32 1, %s4
  %s7 = scalar_select 0, %s6, %s4
  loop: start=0, step=1, limit=4
  $region2: #{cnn_surrogate_forward.10} parent=0 // loop_pre_header
    _
  $region3: #{cnn_surrogate_forward.10} parent=0 // loop_header
    %s9 = sphi 0, %s13
    %p10 = scmp.ge.s32.totalorder %s9, 4
    %s17 = sphi 0, %s17
    %s19 = sphi 0, %s17
    %s20 = sphi 0, %s19
    %s34 = sphi 0, %s20
    %s40 = sphi 0, %s42
    %s43 = sphi 0, %s40
    %s44 = sphi 0, %s43
    %s60 = sphi 0, %s44
    %s64 = sphi 0, %s64
    %s66 = sphi 0, %s64
    %s67 = sphi 0, %s66
    %s81 = sphi 0, %s67
    %s87 = sphi 0, %s89
    %s90 = sphi 0, %s87
    %s91 = sphi 0, %s90
    %s107 = sphi 0, %s91
  $region4: #{cnn_surrogate_forward.10} parent=0 // loop_header_branch
    %12 = sbr.rel (%p10) target = $region8
  $region5: #{cnn_surrogate_forward.10} parent=0 // loop_body
    %s14 = ssub.s32 %s9, 1
    %s15 = ssub.s32 %s9, 2
    %s16 = sadd.s32 %s9, 1
    %s18 = sadd.s32 %s17, 1
    %p21 = scmp.eq.s32.totalorder %s9, 1
    %p22 = scmp.ne.s32.totalorder %s17, %s19
    %p23 = scmp.eq.s32.totalorder %s9, 0
    %p24 = por %p22, %p23
    %p25 = scmp.ne.s32.totalorder %s17, %s19
    %p26 = scmp.eq.s32.totalorder %s14, 1
    %p27 = por %p25, %p26
    %p28 = scmp.ne.s32.totalorder %s19, %s20
    %p29 = scmp.eq.s32.totalorder %s14, 0
    %p30 = por %p28, %p29
    %p31 = scmp.ne.s32.totalorder %s19, %s20
    %p32 = scmp.eq.s32.totalorder %s15, 1
    %p33 = por %p31, %p32
    %p35 = scmp.ne.s32.totalorder %s20, %s34
    %p36 = scmp.eq.s32.totalorder %s15, 0
    %p37 = por %p35, %p36
    %s38 = ssub.s32 %s9, %s16
    %p39 = scmp.eq.s32.totalorder %s38, 0
    %s41 = sadd.s32 %s40, 1
    %s42 = scalar_select %p39, %s40, %s41
    %p45 = pneg %p39
    %p46 = scmp.eq.s32.totalorder %s9, 1
    %p47 = por %p45, %p46
    %p48 = scmp.ne.s32.totalorder %s40, %s43
    %p49 = scmp.eq.s32.totalorder %s9, 0
    %p50 = por %p48, %p49
    %p51 = scmp.ne.s32.totalorder %s40, %s43
    %p52 = scmp.eq.s32.totalorder %s14, 1
    %p53 = por %p51, %p52
    %p54 = scmp.ne.s32.totalorder %s43, %s44
    %p55 = scmp.eq.s32.totalorder %s14, 0
    %p56 = por %p54, %p55
    %p57 = scmp.ne.s32.totalorder %s43, %s44
    %p58 = scmp.eq.s32.totalorder %s15, 1
    %p59 = por %p57, %p58
    %p61 = scmp.ne.s32.totalorder %s44, %s60
    %p62 = scmp.eq.s32.totalorder %s15, 0
    %p63 = por %p61, %p62
    %s65 = sadd.s32 %s64, 1
    %p68 = scmp.eq.s32.totalorder %s9, 1
    %p69 = scmp.ne.s32.totalorder %s64, %s66
    %p70 = scmp.eq.s32.totalorder %s9, 0
    %p71 = por %p69, %p70
    %p72 = scmp.ne.s32.totalorder %s64, %s66
    %p73 = scmp.eq.s32.totalorder %s14, 1
    %p74 = por %p72, %p73
    %p75 = scmp.ne.s32.totalorder %s66, %s67
    %p76 = scmp.eq.s32.totalorder %s14, 0
    %p77 = por %p75, %p76
    %p78 = scmp.ne.s32.totalorder %s66, %s67
    %p79 = scmp.eq.s32.totalorder %s15, 1
    %p80 = por %p78, %p79
    %p82 = scmp.ne.s32.totalorder %s67, %s81
    %p83 = scmp.eq.s32.totalorder %s15, 0
    %p84 = por %p82, %p83
    %s85 = ssub.s32 %s9, %s16
    %p86 = scmp.eq.s32.totalorder %s85, 0
    %s88 = sadd.s32 %s87, 1
    %s89 = scalar_select %p86, %s87, %s88
    %p92 = pneg %p86
    %p93 = scmp.eq.s32.totalorder %s9, 1
    %p94 = por %p92, %p93
    %p95 = scmp.ne.s32.totalorder %s87, %s90
    %p96 = scmp.eq.s32.totalorder %s9, 0
    %p97 = por %p95, %p96
    %p98 = scmp.ne.s32.totalorder %s87, %s90
    %p99 = scmp.eq.s32.totalorder %s14, 1
    %p100 = por %p98, %p99
    %p101 = scmp.ne.s32.totalorder %s90, %s91
    %p102 = scmp.eq.s32.totalorder %s14, 0
    %p103 = por %p101, %p102
    %p104 = scmp.ne.s32.totalorder %s90, %s91
    %p105 = scmp.eq.s32.totalorder %s15, 1
    %p106 = por %p104, %p105
    %p108 = scmp.ne.s32.totalorder %s91, %s107
    %p109 = scmp.eq.s32.totalorder %s15, 0
    %p110 = por %p108, %p109
    %p111 = scmp.le.s32.totalorder 1, %s9
    %p112 = scmp.lt.s32.totalorder %s9, 3
    %p113 = pnand %p111, %p112
    %p114 = pneg %p113
    // Predicated region
    $region9: #{cnn_surrogate_forward.10} parent=5 // pred_check
      _
    $region10: #{cnn_surrogate_forward.10} parent=5 // pred_check_branch
      %116 = sbr.rel (%p113) target = $region12
    $region11: #{cnn_surrogate_forward.10} parent=5 // pred_region
      %s117 = ssub.s32 %s9, 1
      // Predicated region
      $region13: #{cnn_surrogate_forward.10} parent=11 // pred_check
        %p118 = pneg %p30
      $region14: #{cnn_surrogate_forward.10} parent=11 // pred_check_branch
        %120 = sbr.rel (%p118) target = $region16
      $region15: #{cnn_surrogate_forward.10} parent=11 // pred_region
        _
      $region16: #{cnn_surrogate_forward.10} parent=11 // pred_fallthru
        _
      // Predicated region
      $region17: #{cnn_surrogate_forward.10} parent=11 // pred_check
        %p121 = pneg %p77
      $region18: #{cnn_surrogate_forward.10} parent=11 // pred_check_branch
        %123 = sbr.rel (%p121) target = $region20
      $region19: #{cnn_surrogate_forward.10} parent=11 // pred_region
        _
      $region20: #{cnn_surrogate_forward.10} parent=11 // pred_fallthru
        _
    $region12: #{cnn_surrogate_forward.10} parent=5 // pred_fallthru
      _
    %p124 = scmp.lt.s32.totalorder %s9, 2
    // Predicated region
    $region21: #{cnn_surrogate_forward.10} parent=5 // pred_check
      %p125 = pneg %p124
    $region22: #{cnn_surrogate_forward.10} parent=5 // pred_check_branch
      %127 = sbr.rel (%p125) target = $region24
    $region23: #{cnn_surrogate_forward.10} parent=5 // pred_region
      // Predicated region
      $region25: #{cnn_surrogate_forward.10} parent=23 // pred_check
        %p128 = pneg %p50
      $region26: #{cnn_surrogate_forward.10} parent=23 // pred_check_branch
        %130 = sbr.rel (%p128) target = $region28
      $region27: #{cnn_surrogate_forward.10} parent=23 // pred_region
        %p131 = scmp.lt.s32.totalorder %s9, 1
        %s132 = scalar_select %p131, %s9, 1
        %s133 = smul.addr %s132, 32
        %s134 = smul.addr %s133, 4
        %s135 = scalar_lea.vmem %s1, %s134
      $region28: #{cnn_surrogate_forward.10} parent=23 // pred_fallthru
        _
    $region24: #{cnn_surrogate_forward.10} parent=5 // pred_fallthru
      _
    %p136 = scmp.le.s32.totalorder 1, %s9
    %p137 = scmp.lt.s32.totalorder %s9, 3
    %p138 = pnand %p136, %p137
    %p139 = pneg %p138
    // Predicated region
    $region29: #{cnn_surrogate_forward.10} parent=5 // pred_check
      _
    $region30: #{cnn_surrogate_forward.10} parent=5 // pred_check_branch
      %141 = sbr.rel (%p138) target = $region32
    $region31: #{cnn_surrogate_forward.10} parent=5 // pred_region
      %s142 = ssub.s32 %s9, 1
      %p143 = pneg %p30
      %p144 = pneg %p27
      %p145 = scmp.lt.s32.totalorder %s14, 1
      %s146 = scalar_select %p145, %s14, 1
      %s147 = smul.addr %s146, 32
      %s148 = smul.addr %s147, 4
      %s149 = scalar_lea.vmem %s1, %s148
      %p150 = pneg %p56
      %p151 = pneg %p53
      %p152 = pneg %p77
      %p153 = pneg %p74
      %p154 = pneg %p103
      %p155 = pneg %p100
      %p156 = scmp.lt.s32.totalorder %s14, 1
      %s157 = scalar_select %p156, %s14, 1
      %s158 = smul.addr %s157, 4
      %s159 = smul.addr %s158, 4
      %s160 = scalar_lea.vmem %s3, %s159
      %p161 = scmp.lt.s32.totalorder %s14, 1
      %s162 = scalar_select %p161, %s14, 1
      %s163 = smul.addr %s162, 32
      %s164 = smul.addr %s163, 4
      %s165 = scalar_lea.vmem %s1, %s164
      %p166 = scmp.lt.s32.totalorder %s14, 1
      %s167 = scalar_select %p166, %s14, 1
      %s168 = smul.addr %s167, 4
      %s169 = smul.addr %s168, 4
      %s170 = scalar_lea.vmem %s3, %s169
      %v171 = vld [vmem:[%s0] sm:$0xff]
      %v172 = vld [vmem:[%s0 + $0x8] sm:$0xff]
      %v173 = vld [vmem:[%s0 + $0x10] sm:$0xff]
      %v174 = vld [vmem:[%s0 + $0x18] sm:$0xff]
      %v175 = vld [vmem:[%s165] sm:$0xf]
      %v176 = vld [vmem:[%s165 + $0x4] sm:$0xf]
      %v177 = vld [vmem:[%s165 + $0x8] sm:$0xf]
      %v178 = vld [vmem:[%s165 + $0xc] sm:$0xf]
      %v179 = vld [vmem:[%s165 + $0x10] sm:$0xf]
      %v180 = vld [vmem:[%s165 + $0x14] sm:$0xf]
      %v181 = vld [vmem:[%s165 + $0x18] sm:$0xf]
      %v182 = vld [vmem:[%s165 + $0x1c] sm:$0xf]
      %v183 = vld [vmem:[%s165 + $0x20] sm:$0xf]
      %v184 = vld [vmem:[%s165 + $0x24] sm:$0xf]
      %v185 = vld [vmem:[%s165 + $0x28] sm:$0xf]
      %v186 = vld [vmem:[%s165 + $0x2c] sm:$0xf]
      %v187 = vld [vmem:[%s165 + $0x30] sm:$0xf]
      %v188 = vld [vmem:[%s165 + $0x34] sm:$0xf]
      %v189 = vld [vmem:[%s165 + $0x38] sm:$0xf]
      %v190 = vld [vmem:[%s165 + $0x3c] sm:$0xf]
      %v191 = vld [vmem:[%s165 + $0x40] sm:$0xf]
      %v192 = vld [vmem:[%s165 + $0x44] sm:$0xf]
      %v193 = vld [vmem:[%s165 + $0x48] sm:$0xf]
      %v194 = vld [vmem:[%s165 + $0x4c] sm:$0xf]
      %v195 = vld [vmem:[%s165 + $0x50] sm:$0xf]
      %v196 = vld [vmem:[%s165 + $0x54] sm:$0xf]
      %v197 = vld [vmem:[%s165 + $0x58] sm:$0xf]
      %v198 = vld [vmem:[%s165 + $0x5c] sm:$0xf]
      %v199 = vld [vmem:[%s165 + $0x60] sm:$0xf]
      %v200 = vld [vmem:[%s165 + $0x64] sm:$0xf]
      %v201 = vld [vmem:[%s165 + $0x68] sm:$0xf]
      %v202 = vld [vmem:[%s165 + $0x6c] sm:$0xf]
      %v203 = vld [vmem:[%s165 + $0x70] sm:$0xf]
      %v204 = vld [vmem:[%s165 + $0x74] sm:$0xf]
      %v205 = vld [vmem:[%s165 + $0x78] sm:$0xf]
      %v206 = vld [vmem:[%s165 + $0x7c] sm:$0xf]
      %v207 = vld [vmem:[%s2] sm:$0xff]
      %v208 = vld [vmem:[%s2 + $0x8] sm:$0xff]
      %v209 = vld [vmem:[%s2 + $0x10] sm:$0xff]
      %v210 = vld [vmem:[%s2 + $0x18] sm:$0xff]
      %212 = vset.pattern.permute.xlu0 0
      %213 = vperm.xlu0 %212, %v207
      %v214 = vpop.permute.xlu0 %213
      %217 = vset.pattern.permute.xlu0 0
      %218 = vperm.xlu0 %217, %v208
      %v219 = vpop.permute.xlu0 %218
      %222 = vset.pattern.permute.xlu0 0
      %223 = vperm.xlu0 %222, %v209
      %v224 = vpop.permute.xlu0 %223
      %227 = vset.pattern.permute.xlu0 0
      %228 = vperm.xlu0 %227, %v210
      %v229 = vpop.permute.xlu0 %228
      %v235 = vunpack.c.l.b16 %v171
      %v236 = vunpack.c.h.b16 %v171
      %v237 = vunpack.c.l.b16 %v172
      %v238 = vunpack.c.h.b16 %v172
      %v239 = vunpack.c.l.b16 %v173
      %v240 = vunpack.c.h.b16 %v173
      %v241 = vunpack.c.l.b16 %v174
      %v242 = vunpack.c.h.b16 %v174
      %v243 = vpack.c.b16 %v237, %v235
      %v244 = vpack.c.b16 %v238, %v236
      %v245 = vpack.c.b16 %v241, %v239
      %v246 = vpack.c.b16 %v242, %v240
      %v283 = vunpack.c.l.b16 %v175
      %v284 = vunpack.c.l.b16 %v176
      %v285 = vunpack.c.l.b16 %v177
      %v286 = vunpack.c.l.b16 %v178
      %v287 = vunpack.c.l.b16 %v179
      %v288 = vunpack.c.l.b16 %v180
      %v289 = vunpack.c.l.b16 %v181
      %v290 = vunpack.c.l.b16 %v182
      %v291 = vunpack.c.l.b16 %v183
      %v292 = vunpack.c.l.b16 %v184
      %v293 = vunpack.c.l.b16 %v185
      %v294 = vunpack.c.l.b16 %v186
      %v295 = vunpack.c.l.b16 %v187
      %v296 = vunpack.c.l.b16 %v188
      %v297 = vunpack.c.l.b16 %v189
      %v298 = vunpack.c.l.b16 %v190
      %v299 = vunpack.c.l.b16 %v191
      %v300 = vunpack.c.l.b16 %v192
      %v301 = vunpack.c.l.b16 %v193
      %v302 = vunpack.c.l.b16 %v194
      %v303 = vunpack.c.l.b16 %v195
      %v304 = vunpack.c.l.b16 %v196
      %v305 = vunpack.c.l.b16 %v197
      %v306 = vunpack.c.l.b16 %v198
      %v307 = vunpack.c.l.b16 %v199
      %v308 = vunpack.c.l.b16 %v200
      %v309 = vunpack.c.l.b16 %v201
      %v310 = vunpack.c.l.b16 %v202
      %v311 = vunpack.c.l.b16 %v203
      %v312 = vunpack.c.l.b16 %v204
      %v313 = vunpack.c.l.b16 %v205
      %v314 = vunpack.c.l.b16 %v206
      %v315 = vpack.c.b16 %v284, %v283
      %v316 = vpack.c.b16 %v286, %v285
      %v317 = vpack.c.b16 %v288, %v287
      %v318 = vpack.c.b16 %v290, %v289
      %v319 = vpack.c.b16 %v292, %v291
      %v320 = vpack.c.b16 %v294, %v293
      %v321 = vpack.c.b16 %v296, %v295
      %v322 = vpack.c.b16 %v298, %v297
      %v323 = vpack.c.b16 %v300, %v299
      %v324 = vpack.c.b16 %v302, %v301
      %v325 = vpack.c.b16 %v304, %v303
      %v326 = vpack.c.b16 %v306, %v305
      %v327 = vpack.c.b16 %v308, %v307
      %v328 = vpack.c.b16 %v310, %v309
      %v329 = vpack.c.b16 %v312, %v311
      %v330 = vpack.c.b16 %v314, %v313
      %347 = vmatpush.bf16.msra.mxu0 %v322
      %348 = vmatpush.bf16.msra.mxu0 %v321
      %349 = vmatpush.bf16.msra.mxu0 %v320
      %350 = vmatpush.bf16.msra.mxu0 %v319
      %351 = vmatpush.bf16.msra.mxu0 %v318
      %352 = vmatpush.bf16.msra.mxu0 %v317
      %353 = vmatpush.bf16.msra.mxu0 %v316
      %354 = vmatpush.bf16.msra.mxu0 %v315
      %355 = vmatmul.bf16.gmra.mxu0 %v243
      %v356 = vpop.f32.mrf.mxu0
      %v357 = vadd.f32 %v214, %v356
      %v358 = vpop.f32.mrf.mxu0
      %v359 = vadd.f32 %v219, %v358
      %360 = vmatmul.bf16.gmra.mxu0 %v245
      %v361 = vpop.f32.mrf.mxu0
      %v362 = vadd.f32 %v224, %v361
      %v363 = vpop.f32.mrf.mxu0
      %v364 = vadd.f32 %v229, %v363
      %365 = vdwg.mxu0
      %366 = vmatpush.bf16.msra.mxu0 %v330
      %367 = vmatpush.bf16.msra.mxu0 %v329
      %368 = vmatpush.bf16.msra.mxu0 %v328
      %369 = vmatpush.bf16.msra.mxu0 %v327
      %370 = vmatpush.bf16.msra.mxu0 %v326
      %371 = vmatpush.bf16.msra.mxu0 %v325
      %372 = vmatpush.bf16.msra.mxu0 %v324
      %373 = vmatpush.bf16.msra.mxu0 %v323
      %374 = vmatmul.bf16.gmra.mxu0 %v244
      %v375 = vpop.f32.mrf.mxu0
      %v376 = vadd.f32 %v357, %v375
      %v377 = vpop.f32.mrf.mxu0
      %v378 = vadd.f32 %v359, %v377
      %379 = vmatmul.bf16.gmra.mxu0 %v246
      %v380 = vpop.f32.mrf.mxu0
      %v381 = vadd.f32 %v362, %v380
      %v382 = vpop.f32.mrf.mxu0
      %v383 = vadd.f32 %v364, %v382
      %384 = vdwg.mxu0
      %vm385 = vcmp.ge.f32.partialorder %v376, 0.0
      %vm386 = vcmp.ge.f32.partialorder %v378, 0.0
      %vm387 = vcmp.ge.f32.partialorder %v381, 0.0
      %vm388 = vcmp.ge.f32.partialorder %v383, 0.0
      %v389 = vmul.f32 %v376, 0.2
      %v390 = vmul.f32 %v378, 0.2
      %v391 = vmul.f32 %v381, 0.2
      %v392 = vmul.f32 %v383, 0.2
      %v393 = vsel %vm385, %v376, %v389
      %v394 = vsel %vm386, %v378, %v390
      %v395 = vsel %vm387, %v381, %v391
      %v396 = vsel %vm388, %v383, %v392
      %397 = vset.pattern.permute.xlu0 1
      %398 = vperm.xlu0 %397, %v207
      %v399 = vpop.permute.xlu0 %398
      %401 = vset.pattern.permute.xlu0 1
      %402 = vperm.xlu0 %401, %v208
      %v403 = vpop.permute.xlu0 %402
      %405 = vset.pattern.permute.xlu0 1
      %406 = vperm.xlu0 %405, %v209
      %v407 = vpop.permute.xlu0 %406
      %409 = vset.pattern.permute.xlu0 1
      %410 = vperm.xlu0 %409, %v210
      %v411 = vpop.permute.xlu0 %410
      %v413 = vmul.f32 %v393, %v399
      %v414 = vmul.f32 %v394, %v403
      %v415 = vmul.f32 %v395, %v407
      %v416 = vmul.f32 %v396, %v411
      %417 = vset.pattern.permute.xlu0 2
      %418 = vperm.xlu0 %417, %v207
      %v419 = vpop.permute.xlu0 %418
      %421 = vset.pattern.permute.xlu0 2
      %422 = vperm.xlu0 %421, %v208
      %v423 = vpop.permute.xlu0 %422
      %425 = vset.pattern.permute.xlu0 2
      %426 = vperm.xlu0 %425, %v209
      %v427 = vpop.permute.xlu0 %426
      %429 = vset.pattern.permute.xlu0 2
      %430 = vperm.xlu0 %429, %v210
      %v431 = vpop.permute.xlu0 %430
      %v433 = vadd.f32 %v413, %v419
      %v434 = vadd.f32 %v414, %v423
      %v435 = vadd.f32 %v415, %v427
      %v436 = vadd.f32 %v416, %v431
      %v437 = vpack.c.bf16 %v433, %v433
      %v438 = vpack.c.bf16 %v434, %v434
      %v439 = vpack.c.bf16 %v435, %v435
      %v440 = vpack.c.bf16 %v436, %v436
      %441 = vst [vmem:[%s170] sm:$0xf] %v437
      %442 = vst [vmem:[%s170 + $0x4] sm:$0xf] %v438
      %443 = vst [vmem:[%s170 + $0x8] sm:$0xf] %v439
      %444 = vst [vmem:[%s170 + $0xc] sm:$0xf] %v440
      %p445 = scmp.lt.s32.totalorder %s14, 1
      %s446 = scalar_select %p445, %s14, 1
      %s447 = smul.addr %s446, 4
      %s448 = smul.addr %s447, 4
      %s449 = scalar_lea.vmem %s3, %s448
      // Predicated region
      $region33: #{cnn_surrogate_forward.10} parent=31 // pred_check
        %p450 = pneg %p100
      $region34: #{cnn_surrogate_forward.10} parent=31 // pred_check_branch
        %452 = sbr.rel (%p450) target = $region36
      $region35: #{cnn_surrogate_forward.10} parent=31 // pred_region
        _
      $region36: #{cnn_surrogate_forward.10} parent=31 // pred_fallthru
        _
    $region32: #{cnn_surrogate_forward.10} parent=5 // pred_fallthru
      _
    %p453 = scmp.le.s32.totalorder 2, %s9
    // Predicated region
    $region37: #{cnn_surrogate_forward.10} parent=5 // pred_check
      %p454 = pneg %p453
    $region38: #{cnn_surrogate_forward.10} parent=5 // pred_check_branch
      %456 = sbr.rel (%p454) target = $region40
    $region39: #{cnn_surrogate_forward.10} parent=5 // pred_region
      %s457 = ssub.s32 %s9, 2
      // Predicated region
      $region41: #{cnn_surrogate_forward.10} parent=39 // pred_check
        %p458 = pneg %p106
      $region42: #{cnn_surrogate_forward.10} parent=39 // pred_check_branch
        %460 = sbr.rel (%p458) target = $region44
      $region43: #{cnn_surrogate_forward.10} parent=39 // pred_region
        %p461 = scmp.lt.s32.totalorder %s15, 1
        %s462 = scalar_select %p461, %s15, 1
        %s463 = smul.addr %s462, 4
        %s464 = smul.addr %s463, 4
        %s465 = scalar_lea.vmem %s3, %s464
      $region44: #{cnn_surrogate_forward.10} parent=39 // pred_fallthru
        _
    $region40: #{cnn_surrogate_forward.10} parent=5 // pred_fallthru
      _
  $region6: #{cnn_surrogate_forward.10} parent=0 // loop_footer
    %s13 = sadd.s32 1, %s9
  $region7: #{cnn_surrogate_forward.10} parent=0 // loop_footer_branch
    %8 = sbr.rel target = $region3
  $region8: #{cnn_surrogate_forward.10} parent=0 // loop_exit
    _

// kernel: cnn_surrogate_forward.11
$region0: #{cnn_surrogate_forward.11}
  #allocation0 [shape = 'u32[]', space=smem, size = 0x4, offset = 0x4, fixed_abs, tag = 'smem constant byte address 0x4 - core index']
  #allocation1 [shape = 'u32[72,128]{1,0:T(1,128)}', space=vmem, size = 0x9000, scoped, tag = 'internal scratch']
  %s0 = inlined_call_operand.vmem [shape: bf16[64,512], index: 0, kind: input, shape index: {}]
  %s1 = inlined_call_operand.vmem [shape: bf16[2,512,32], index: 1, kind: input, shape index: {}]
  %s2 = inlined_call_operand.vmem [shape: f32[64,3], index: 2, kind: input, shape index: {}]
  %s3 = inlined_call_operand.vmem [shape: bf16[2,64,32], index: 3, kind: output, shape index: {}]
  %s4 = sld [smem:[#allocation0]]
  $region45: #{cnn_surrogate_forward.11} parent=0
    _
  %s6 = ssub.s32 1, %s4
  %s7 = scalar_select 0, %s6, %s4
  loop: start=0, step=1, limit=4
  $region2: #{cnn_surrogate_forward.11} parent=0 // loop_pre_header
    _
  $region3: #{cnn_surrogate_forward.11} parent=0 // loop_header
    %s9 = sphi 0, %s13
    %p10 = scmp.ge.s32.totalorder %s9, 4
    %s17 = sphi 0, %s17
    %s19 = sphi 0, %s17
    %s20 = sphi 0, %s19
    %s34 = sphi 0, %s20
    %s40 = sphi 0, %s42
    %s43 = sphi 0, %s40
    %s44 = sphi 0, %s43
    %s60 = sphi 0, %s44
    %s64 = sphi 0, %s64
    %s66 = sphi 0, %s64
    %s67 = sphi 0, %s66
    %s81 = sphi 0, %s67
    %s87 = sphi 0, %s89
    %s90 = sphi 0, %s87
    %s91 = sphi 0, %s90
    %s107 = sphi 0, %s91
  $region4: #{cnn_surrogate_forward.11} parent=0 // loop_header_branch
    %12 = sbr.rel (%p10) target = $region8
  $region5: #{cnn_surrogate_forward.11} parent=0 // loop_body
    %s14 = ssub.s32 %s9, 1
    %s15 = ssub.s32 %s9, 2
    %s16 = sadd.s32 %s9, 1
    %s18 = sadd.s32 %s17, 1
    %p21 = scmp.eq.s32.totalorder %s9, 1
    %p22 = scmp.ne.s32.totalorder %s17, %s19
    %p23 = scmp.eq.s32.totalorder %s9, 0
    %p24 = por %p22, %p23
    %p25 = scmp.ne.s32.totalorder %s17, %s19
    %p26 = scmp.eq.s32.totalorder %s14, 1
    %p27 = por %p25, %p26
    %p28 = scmp.ne.s32.totalorder %s19, %s20
    %p29 = scmp.eq.s32.totalorder %s14, 0
    %p30 = por %p28, %p29
    %p31 = scmp.ne.s32.totalorder %s19, %s20
    %p32 = scmp.eq.s32.totalorder %s15, 1
    %p33 = por %p31, %p32
    %p35 = scmp.ne.s32.totalorder %s20, %s34
    %p36 = scmp.eq.s32.totalorder %s15, 0
    %p37 = por %p35, %p36
    %s38 = ssub.s32 %s9, %s16
    %p39 = scmp.eq.s32.totalorder %s38, 0
    %s41 = sadd.s32 %s40, 1
    %s42 = scalar_select %p39, %s40, %s41
    %p45 = pneg %p39
    %p46 = scmp.eq.s32.totalorder %s9, 1
    %p47 = por %p45, %p46
    %p48 = scmp.ne.s32.totalorder %s40, %s43
    %p49 = scmp.eq.s32.totalorder %s9, 0
    %p50 = por %p48, %p49
    %p51 = scmp.ne.s32.totalorder %s40, %s43
    %p52 = scmp.eq.s32.totalorder %s14, 1
    %p53 = por %p51, %p52
    %p54 = scmp.ne.s32.totalorder %s43, %s44
    %p55 = scmp.eq.s32.totalorder %s14, 0
    %p56 = por %p54, %p55
    %p57 = scmp.ne.s32.totalorder %s43, %s44
    %p58 = scmp.eq.s32.totalorder %s15, 1
    %p59 = por %p57, %p58
    %p61 = scmp.ne.s32.totalorder %s44, %s60
    %p62 = scmp.eq.s32.totalorder %s15, 0
    %p63 = por %p61, %p62
    %s65 = sadd.s32 %s64, 1
    %p68 = scmp.eq.s32.totalorder %s9, 1
    %p69 = scmp.ne.s32.totalorder %s64, %s66
    %p70 = scmp.eq.s32.totalorder %s9, 0
    %p71 = por %p69, %p70
    %p72 = scmp.ne.s32.totalorder %s64, %s66
    %p73 = scmp.eq.s32.totalorder %s14, 1
    %p74 = por %p72, %p73
    %p75 = scmp.ne.s32.totalorder %s66, %s67
    %p76 = scmp.eq.s32.totalorder %s14, 0
    %p77 = por %p75, %p76
    %p78 = scmp.ne.s32.totalorder %s66, %s67
    %p79 = scmp.eq.s32.totalorder %s15, 1
    %p80 = por %p78, %p79
    %p82 = scmp.ne.s32.totalorder %s67, %s81
    %p83 = scmp.eq.s32.totalorder %s15, 0
    %p84 = por %p82, %p83
    %s85 = ssub.s32 %s9, %s16
    %p86 = scmp.eq.s32.totalorder %s85, 0
    %s88 = sadd.s32 %s87, 1
    %s89 = scalar_select %p86, %s87, %s88
    %p92 = pneg %p86
    %p93 = scmp.eq.s32.totalorder %s9, 1
    %p94 = por %p92, %p93
    %p95 = scmp.ne.s32.totalorder %s87, %s90
    %p96 = scmp.eq.s32.totalorder %s9, 0
    %p97 = por %p95, %p96
    %p98 = scmp.ne.s32.totalorder %s87, %s90
    %p99 = scmp.eq.s32.totalorder %s14, 1
    %p100 = por %p98, %p99
    %p101 = scmp.ne.s32.totalorder %s90, %s91
    %p102 = scmp.eq.s32.totalorder %s14, 0
    %p103 = por %p101, %p102
    %p104 = scmp.ne.s32.totalorder %s90, %s91
    %p105 = scmp.eq.s32.totalorder %s15, 1
    %p106 = por %p104, %p105
    %p108 = scmp.ne.s32.totalorder %s91, %s107
    %p109 = scmp.eq.s32.totalorder %s15, 0
    %p110 = por %p108, %p109
    %p111 = scmp.le.s32.totalorder 1, %s9
    %p112 = scmp.lt.s32.totalorder %s9, 3
    %p113 = pnand %p111, %p112
    %p114 = pneg %p113
    // Predicated region
    $region9: #{cnn_surrogate_forward.11} parent=5 // pred_check
      _
    $region10: #{cnn_surrogate_forward.11} parent=5 // pred_check_branch
      %116 = sbr.rel (%p113) target = $region12
    $region11: #{cnn_surrogate_forward.11} parent=5 // pred_region
      %s117 = ssub.s32 %s9, 1
      // Predicated region
      $region13: #{cnn_surrogate_forward.11} parent=11 // pred_check
        %p118 = pneg %p30
      $region14: #{cnn_surrogate_forward.11} parent=11 // pred_check_branch
        %120 = sbr.rel (%p118) target = $region16
      $region15: #{cnn_surrogate_forward.11} parent=11 // pred_region
        _
      $region16: #{cnn_surrogate_forward.11} parent=11 // pred_fallthru
        _
      // Predicated region
      $region17: #{cnn_surrogate_forward.11} parent=11 // pred_check
        %p121 = pneg %p77
      $region18: #{cnn_surrogate_forward.11} parent=11 // pred_check_branch
        %123 = sbr.rel (%p121) target = $region20
      $region19: #{cnn_surrogate_forward.11} parent=11 // pred_region
        _
      $region20: #{cnn_surrogate_forward.11} parent=11 // pred_fallthru
        _
    $region12: #{cnn_surrogate_forward.11} parent=5 // pred_fallthru
      _
    %p124 = scmp.lt.s32.totalorder %s9, 2
    // Predicated region
    $region21: #{cnn_surrogate_forward.11} parent=5 // pred_check
      %p125 = pneg %p124
    $region22: #{cnn_surrogate_forward.11} parent=5 // pred_check_branch
      %127 = sbr.rel (%p125) target = $region24
    $region23: #{cnn_surrogate_forward.11} parent=5 // pred_region
      // Predicated region
      $region25: #{cnn_surrogate_forward.11} parent=23 // pred_check
        %p128 = pneg %p50
      $region26: #{cnn_surrogate_forward.11} parent=23 // pred_check_branch
        %130 = sbr.rel (%p128) target = $region28
      $region27: #{cnn_surrogate_forward.11} parent=23 // pred_region
        %p131 = scmp.lt.s32.totalorder %s9, 1
        %s132 = scalar_select %p131, %s9, 1
        %s133 = smul.addr %s132, 64
        %s134 = smul.addr %s133, 4
        %s135 = scalar_lea.vmem %s1, %s134
      $region28: #{cnn_surrogate_forward.11} parent=23 // pred_fallthru
        _
    $region24: #{cnn_surrogate_forward.11} parent=5 // pred_fallthru
      _
    %p136 = scmp.le.s32.totalorder 1, %s9
    %p137 = scmp.lt.s32.totalorder %s9, 3
    %p138 = pnand %p136, %p137
    %p139 = pneg %p138
    // Predicated region
    $region29: #{cnn_surrogate_forward.11} parent=5 // pred_check
      _
    $region30: #{cnn_surrogate_forward.11} parent=5 // pred_check_branch
      %141 = sbr.rel (%p138) target = $region32
    $region31: #{cnn_surrogate_forward.11} parent=5 // pred_region
      %s142 = ssub.s32 %s9, 1
      %p143 = pneg %p30
      %p144 = pneg %p27
      %p145 = scmp.lt.s32.totalorder %s14, 1
      %s146 = scalar_select %p145, %s14, 1
      %s147 = smul.addr %s146, 64
      %s148 = smul.addr %s147, 4
      %s149 = scalar_lea.vmem %s1, %s148
      %p150 = pneg %p56
      %p151 = pneg %p53
      %p152 = pneg %p77
      %p153 = pneg %p74
      %p154 = pneg %p103
      %p155 = pneg %p100
      %p156 = scmp.lt.s32.totalorder %s14, 1
      %s157 = scalar_select %p156, %s14, 1
      %s158 = smul.addr %s157, 8
      %s159 = smul.addr %s158, 4
      %s160 = scalar_lea.vmem %s3, %s159
      %p161 = scmp.lt.s32.totalorder %s14, 1
      %s162 = scalar_select %p161, %s14, 1
      %s163 = smul.addr %s162, 64
      %s164 = smul.addr %s163, 4
      %s165 = scalar_lea.vmem %s1, %s164
      %p166 = scmp.lt.s32.totalorder %s14, 1
      %s167 = scalar_select %p166, %s14, 1
      %s168 = smul.addr %s167, 8
      %s169 = smul.addr %s168, 4
      %s170 = scalar_lea.vmem %s3, %s169
      %v171 = vld [vmem:[%s0] sm:$0xff]
      %v172 = vld [vmem:[%s0 + $0x8] sm:$0xff]
      %v173 = vld [vmem:[%s0 + $0x10] sm:$0xff]
      %v174 = vld [vmem:[%s0 + $0x18] sm:$0xff]
      %v175 = vld [vmem:[%s0 + $0x20] sm:$0xff]
      %v176 = vld [vmem:[%s0 + $0x28] sm:$0xff]
      %v177 = vld [vmem:[%s0 + $0x30] sm:$0xff]
      %v178 = vld [vmem:[%s0 + $0x38] sm:$0xff]
      %v179 = vld [vmem:[%s0 + $0x40] sm:$0xff]
      %v180 = vld [vmem:[%s0 + $0x48] sm:$0xff]
      %v181 = vld [vmem:[%s0 + $0x50] sm:$0xff]
      %v182 = vld [vmem:[%s0 + $0x58] sm:$0xff]
      %v183 = vld [vmem:[%s0 + $0x60] sm:$0xff]
      %v184 = vld [vmem:[%s0 + $0x68] sm:$0xff]
      %v185 = vld [vmem:[%s0 + $0x70] sm:$0xff]
      %v186 = vld [vmem:[%s0 + $0x78] sm:$0xff]
      %v187 = vld [vmem:[%s165] sm:$0xf]
      %v188 = vld [vmem:[%s165 + $0x4] sm:$0xf]
      %v189 = vld [vmem:[%s165 + $0x8] sm:$0xf]
      %v190 = vld [vmem:[%s165 + $0xc] sm:$0xf]
      %v191 = vld [vmem:[%s165 + $0x10] sm:$0xf]
      %v192 = vld [vmem:[%s165 + $0x14] sm:$0xf]
      %v193 = vld [vmem:[%s165 + $0x18] sm:$0xf]
      %v194 = vld [vmem:[%s165 + $0x1c] sm:$0xf]
      %v195 = vld [vmem:[%s165 + $0x20] sm:$0xf]
      %v196 = vld [vmem:[%s165 + $0x24] sm:$0xf]
      %v197 = vld [vmem:[%s165 + $0x28] sm:$0xf]
      %v198 = vld [vmem:[%s165 + $0x2c] sm:$0xf]
      %v199 = vld [vmem:[%s165 + $0x30] sm:$0xf]
      %v200 = vld [vmem:[%s165 + $0x34] sm:$0xf]
      %v201 = vld [vmem:[%s165 + $0x38] sm:$0xf]
      %v202 = vld [vmem:[%s165 + $0x3c] sm:$0xf]
      %v203 = vld [vmem:[%s165 + $0x40] sm:$0xf]
      %v204 = vld [vmem:[%s165 + $0x44] sm:$0xf]
      %v205 = vld [vmem:[%s165 + $0x48] sm:$0xf]
      %v206 = vld [vmem:[%s165 + $0x4c] sm:$0xf]
      %v207 = vld [vmem:[%s165 + $0x50] sm:$0xf]
      %v208 = vld [vmem:[%s165 + $0x54] sm:$0xf]
      %v209 = vld [vmem:[%s165 + $0x58] sm:$0xf]
      %v210 = vld [vmem:[%s165 + $0x5c] sm:$0xf]
      %v211 = vld [vmem:[%s165 + $0x60] sm:$0xf]
      %v212 = vld [vmem:[%s165 + $0x64] sm:$0xf]
      %v213 = vld [vmem:[%s165 + $0x68] sm:$0xf]
      %v214 = vld [vmem:[%s165 + $0x6c] sm:$0xf]
      %v215 = vld [vmem:[%s165 + $0x70] sm:$0xf]
      %v216 = vld [vmem:[%s165 + $0x74] sm:$0xf]
      %v217 = vld [vmem:[%s165 + $0x78] sm:$0xf]
      %v218 = vld [vmem:[%s165 + $0x7c] sm:$0xf]
      %v219 = vld [vmem:[%s165 + $0x80] sm:$0xf]
      %v220 = vld [vmem:[%s165 + $0x84] sm:$0xf]
      %v221 = vld [vmem:[%s165 + $0x88] sm:$0xf]
      %v222 = vld [vmem:[%s165 + $0x8c] sm:$0xf]
      %v223 = vld [vmem:[%s165 + $0x90] sm:$0xf]
      %v224 = vld [vmem:[%s165 + $0x94] sm:$0xf]
      %v225 = vld [vmem:[%s165 + $0x98] sm:$0xf]
      %v226 = vld [vmem:[%s165 + $0x9c] sm:$0xf]
      %v227 = vld [vmem:[%s165 + $0xa0] sm:$0xf]
      %v228 = vld [vmem:[%s165 + $0xa4] sm:$0xf]
      %v229 = vld [vmem:[%s165 + $0xa8] sm:$0xf]
      %v230 = vld [vmem:[%s165 + $0xac] sm:$0xf]
      %v231 = vld [vmem:[%s165 + $0xb0] sm:$0xf]
      %v232 = vld [vmem:[%s165 + $0xb4] sm:$0xf]
      %v233 = vld [vmem:[%s165 + $0xb8] sm:$0xf]
      %v234 = vld [vmem:[%s165 + $0xbc] sm:$0xf]
      %v235 = vld [vmem:[%s165 + $0xc0] sm:$0xf]
      %v236 = vld [vmem:[%s165 + $0xc4] sm:$0xf]
      %v237 = vld [vmem:[%s165 + $0xc8] sm:$0xf]
      %v238 = vld [vmem:[%s165 + $0xcc] sm:$0xf]
      %v239 = vld [vmem:[%s165 + $0xd0] sm:$0xf]
      %v240 = vld [vmem:[%s165 + $0xd4] sm:$0xf]
      %v241 = vld [vmem:[%s165 + $0xd8] sm:$0xf]
      %v242 = vld [vmem:[%s165 + $0xdc] sm:$0xf]
      %v243 = vld [vmem:[%s165 + $0xe0] sm:$0xf]
      %v244 = vld [vmem:[%s165 + $0xe4] sm:$0xf]
      %v245 = vld [vmem:[%s165 + $0xe8] sm:$0xf]
      %v246 = vld [vmem:[%s165 + $0xec] sm:$0xf]
      %v247 = vld [vmem:[%s165 + $0xf0] sm:$0xf]
      %v248 = vld [vmem:[%s165 + $0xf4] sm:$0xf]
      %v249 = vld [vmem:[%s165 + $0xf8] sm:$0xf]
      %v250 = vld [vmem:[%s165 + $0xfc] sm:$0xf]
      %v251 = vld [vmem:[%s2] sm:$0xff]
      %v252 = vld [vmem:[%s2 + $0x8] sm:$0xff]
      %v253 = vld [vmem:[%s2 + $0x10] sm:$0xff]
      %v254 = vld [vmem:[%s2 + $0x18] sm:$0xff]
      %v255 = vld [vmem:[%s2 + $0x20] sm:$0xff]
      %v256 = vld [vmem:[%s2 + $0x28] sm:$0xff]
      %v257 = vld [vmem:[%s2 + $0x30] sm:$0xff]
      %v258 = vld [vmem:[%s2 + $0x38] sm:$0xff]
      %260 = vset.pattern.permute.xlu0 0
      %261 = vperm.xlu0 %260, %v251
      %v262 = vpop.permute.xlu0 %261
      %265 = vset.pattern.permute.xlu0 0
      %266 = vperm.xlu0 %265, %v252
      %v267 = vpop.permute.xlu0 %266
      %270 = vset.pattern.permute.xlu0 0
      %271 = vperm.xlu0 %270, %v253
      %v272 = vpop.permute.xlu0 %271
      %275 = vset.pattern.permute.xlu0 0
      %276 = vperm.xlu0 %275, %v254
      %v277 = vpop.permute.xlu0 %276
      %280 = vset.pattern.permute.xlu0 0
      %281 = vperm.xlu0 %280, %v255
      %v282 = vpop.permute.xlu0 %281
      %285 = vset.pattern.permute.xlu0 0
      %286 = vperm.xlu0 %285, %v256
      %v287 = vpop.permute.xlu0 %286
      %290 = vset.pattern.permute.xlu0 0
      %291 = vperm.xlu0 %290, %v257
      %v292 = vpop.permute.xlu0 %291
      %295 = vset.pattern.permute.xlu0 0
      %296 = vperm.xlu0 %295, %v258
      %v297 = vpop.permute.xlu0 %296
      %v315 = vunpack.c.l.b16 %v171
      %v316 = vunpack.c.h.b16 %v171
      %v317 = vunpack.c.l.b16 %v172
      %v318 = vunpack.c.h.b16 %v172
      %v319 = vunpack.c.l.b16 %v173
      %v320 = vunpack.c.h.b16 %v173
      %v321 = vunpack.c.l.b16 %v174
      %v322 = vunpack.c.h.b16 %v174
      %v323 = vunpack.c.l.b16 %v175
      %v324 = vunpack.c.h.b16 %v175
      %v325 = vunpack.c.l.b16 %v176
      %v326 = vunpack.c.h.b16 %v176
      %v327 = vunpack.c.l.b16 %v177
      %v328 = vunpack.c.h.b16 %v177
      %v329 = vunpack.c.l.b16 %v178
      %v330 = vunpack.c.h.b16 %v178
      %v331 = vunpack.c.l.b16 %v179
      %v332 = vunpack.c.h.b16 %v179
      %v333 = vunpack.c.l.b16 %v180
      %v334 = vunpack.c.h.b16 %v180
      %v335 = vunpack.c.l.b16 %v181
      %v336 = vunpack.c.h.b16 %v181
      %v337 = vunpack.c.l.b16 %v182
      %v338 = vunpack.c.h.b16 %v182
      %v339 = vunpack.c.l.b16 %v183
      %v340 = vunpack.c.h.b16 %v183
      %v341 = vunpack.c.l.b16 %v184
      %v342 = vunpack.c.h.b16 %v184
      %v343 = vunpack.c.l.b16 %v185
      %v344 = vunpack.c.h.b16 %v185
      %v345 = vunpack.c.l.b16 %v186
      %v346 = vunpack.c.h.b16 %v186
      %v347 = vpack.c.b16 %v319, %v315
      %v348 = vpack.c.b16 %v320, %v316
      %v349 = vpack.c.b16 %v321, %v317
      %v350 = vpack.c.b16 %v322, %v318
      %v351 = vpack.c.b16 %v327, %v323
      %v352 = vpack.c.b16 %v328, %v324
      %v353 = vpack.c.b16 %v329, %v325
      %v354 = vpack.c.b16 %v330, %v326
      %v355 = vpack.c.b16 %v335, %v331
      %v356 = vpack.c.b16 %v336, %v332
      %v357 = vpack.c.b16 %v337, %v333
      %v358 = vpack.c.b16 %v338, %v334
      %v359 = vpack.c.b16 %v343, %v339
      %v360 = vpack.c.b16 %v344, %v340
      %v361 = vpack.c.b16 %v345, %v341
      %v362 = vpack.c.b16 %v346, %v342
      %v443 = vunpack.c.l.b16 %v187
      %v444 = vunpack.c.l.b16 %v188
      %v445 = vunpack.c.l.b16 %v189
      %v446 = vunpack.c.l.b16 %v190
      %v447 = vunpack.c.l.b16 %v191
      %v448 = vunpack.c.l.b16 %v192
      %v449 = vunpack.c.l.b16 %v193
      %v450 = vunpack.c.l.b16 %v194
      %v451 = vunpack.c.l.b16 %v195
      %v452 = vunpack.c.l.b16 %v196
      %v453 = vunpack.c.l.b16 %v197
      %v454 = vunpack.c.l.b16 %v198
      %v455 = vunpack.c.l.b16 %v199
      %v456 = vunpack.c.l.b16 %v200
      %v457 = vunpack.c.l.b16 %v201
      %v458 = vunpack.c.l.b16 %v202
      %v459 = vunpack.c.l.b16 %v203
      %v460 = vunpack.c.l.b16 %v204
      %v461 = vunpack.c.l.b16 %v205
      %v462 = vunpack.c.l.b16 %v206
      %v463 = vunpack.c.l.b16 %v207
      %v464 = vunpack.c.l.b16 %v208
      %v465 = vunpack.c.l.b16 %v209
      %v466 = vunpack.c.l.b16 %v210
      %v467 = vunpack.c.l.b16 %v211
      %v468 = vunpack.c.l.b16 %v212
      %v469 = vunpack.c.l.b16 %v213
      %v470 = vunpack.c.l.b16 %v214
      %v471 = vunpack.c.l.b16 %v215
      %v472 = vunpack.c.l.b16 %v216
      %v473 = vunpack.c.l.b16 %v217
      %v474 = vunpack.c.l.b16 %v218
      %v475 = vunpack.c.l.b16 %v219
      %v476 = vunpack.c.l.b16 %v220
      %v477 = vunpack.c.l.b16 %v221
      %v478 = vunpack.c.l.b16 %v222
      %v479 = vunpack.c.l.b16 %v223
      %v480 = vunpack.c.l.b16 %v224
      %v481 = vunpack.c.l.b16 %v225
      %v482 = vunpack.c.l.b16 %v226
      %v483 = vunpack.c.l.b16 %v227
      %v484 = vunpack.c.l.b16 %v228
      %v485 = vunpack.c.l.b16 %v229
      %v486 = vunpack.c.l.b16 %v230
      %v487 = vunpack.c.l.b16 %v231
      %v488 = vunpack.c.l.b16 %v232
      %v489 = vunpack.c.l.b16 %v233
      %v490 = vunpack.c.l.b16 %v234
      %v491 = vunpack.c.l.b16 %v235
      %v492 = vunpack.c.l.b16 %v236
      %v493 = vunpack.c.l.b16 %v237
      %v494 = vunpack.c.l.b16 %v238
      %v495 = vunpack.c.l.b16 %v239
      %v496 = vunpack.c.l.b16 %v240
      %v497 = vunpack.c.l.b16 %v241
      %v498 = vunpack.c.l.b16 %v242
      %v499 = vunpack.c.l.b16 %v243
      %v500 = vunpack.c.l.b16 %v244
      %v501 = vunpack.c.l.b16 %v245
      %v502 = vunpack.c.l.b16 %v246
      %v503 = vunpack.c.l.b16 %v247
      %v504 = vunpack.c.l.b16 %v248
      %v505 = vunpack.c.l.b16 %v249
      %v506 = vunpack.c.l.b16 %v250
      %v507 = vpack.c.b16 %v444, %v443
      %v508 = vpack.c.b16 %v446, %v445
      %v509 = vpack.c.b16 %v448, %v447
      %v510 = vpack.c.b16 %v450, %v449
      %v511 = vpack.c.b16 %v452, %v451
      %v512 = vpack.c.b16 %v454, %v453
      %v513 = vpack.c.b16 %v456, %v455
      %v514 = vpack.c.b16 %v458, %v457
      %v515 = vpack.c.b16 %v460, %v459
      %v516 = vpack.c.b16 %v462, %v461
      %v517 = vpack.c.b16 %v464, %v463
      %v518 = vpack.c.b16 %v466, %v465
      %v519 = vpack.c.b16 %v468, %v467
      %v520 = vpack.c.b16 %v470, %v469
      %v521 = vpack.c.b16 %v472, %v471
      %v522 = vpack.c.b16 %v474, %v473
      %v523 = vpack.c.b16 %v476, %v475
      %v524 = vpack.c.b16 %v478, %v477
      %v525 = vpack.c.b16 %v480, %v479
      %v526 = vpack.c.b16 %v482, %v481
      %v527 = vpack.c.b16 %v484, %v483
      %v528 = vpack.c.b16 %v486, %v485
      %v529 = vpack.c.b16 %v488, %v487
      %v530 = vpack.c.b16 %v490, %v489
      %v531 = vpack.c.b16 %v492, %v491
      %v532 = vpack.c.b16 %v494, %v493
      %v533 = vpack.c.b16 %v496, %v495
      %v534 = vpack.c.b16 %v498, %v497
      %v535 = vpack.c.b16 %v500, %v499
      %v536 = vpack.c.b16 %v502, %v501
      %v537 = vpack.c.b16 %v504, %v503
      %v538 = vpack.c.b16 %v506, %v505
      %571 = vmatpush.bf16.msra.mxu0 %v514
      %572 = vmatpush.bf16.msra.mxu0 %v513
      %573 = vmatpush.bf16.msra.mxu0 %v512
      %574 = vmatpush.bf16.msra.mxu0 %v511
      %575 = vmatpush.bf16.msra.mxu0 %v510
      %576 = vmatpush.bf16.msra.mxu0 %v509
      %577 = vmatpush.bf16.msra.mxu0 %v508
      %578 = vmatpush.bf16.msra.mxu0 %v507
      %579 = vmatmul.bf16.gmra.mxu0 %v347
      %v580 = vpop.f32.mrf.mxu0
      %v581 = vadd.f32 %v262, %v580
      %v582 = vpop.f32.mrf.mxu0
      %v583 = vadd.f32 %v267, %v582
      %584 = vmatmul.bf16.gmra.mxu0 %v351
      %v585 = vpop.f32.mrf.mxu0
      %v586 = vadd.f32 %v272, %v585
      %v587 = vpop.f32.mrf.mxu0
      %v588 = vadd.f32 %v277, %v587
      %589 = vmatmul.bf16.gmra.mxu0 %v355
      %v590 = vpop.f32.mrf.mxu0
      %v591 = vadd.f32 %v282, %v590
      %v592 = vpop.f32.mrf.mxu0
      %v593 = vadd.f32 %v287, %v592
      %594 = vmatmul.bf16.gmra.mxu0 %v359
      %v595 = vpop.f32.mrf.mxu0
      %v596 = vadd.f32 %v292, %v595
      %v597 = vpop.f32.mrf.mxu0
      %v598 = vadd.f32 %v297, %v597
      %599 = vdwg.mxu0
      %600 = vmatpush.bf16.msra.mxu0 %v522
      %601 = vmatpush.bf16.msra.mxu0 %v521
      %602 = vmatpush.bf16.msra.mxu0 %v520
      %603 = vmatpush.bf16.msra.mxu0 %v519
      %604 = vmatpush.bf16.msra.mxu0 %v518
      %605 = vmatpush.bf16.msra.mxu0 %v517
      %606 = vmatpush.bf16.msra.mxu0 %v516
      %607 = vmatpush.bf16.msra.mxu0 %v515
      %608 = vmatmul.bf16.gmra.mxu0 %v348
      %v609 = vpop.f32.mrf.mxu0
      %v610 = vadd.f32 %v581, %v609
      %v611 = vpop.f32.mrf.mxu0
      %v612 = vadd.f32 %v583, %v611
      %613 = vmatmul.bf16.gmra.mxu0 %v352
      %v614 = vpop.f32.mrf.mxu0
      %v615 = vadd.f32 %v586, %v614
      %v616 = vpop.f32.mrf.mxu0
      %v617 = vadd.f32 %v588, %v616
      %618 = vmatmul.bf16.gmra.mxu0 %v356
      %v619 = vpop.f32.mrf.mxu0
      %v620 = vadd.f32 %v591, %v619
      %v621 = vpop.f32.mrf.mxu0
      %v622 = vadd.f32 %v593, %v621
      %623 = vmatmul.bf16.gmra.mxu0 %v360
      %v624 = vpop.f32.mrf.mxu0
      %v625 = vadd.f32 %v596, %v624
      %v626 = vpop.f32.mrf.mxu0
      %v627 = vadd.f32 %v598, %v626
      %628 = vdwg.mxu0
      %629 = vmatpush.bf16.msra.mxu0 %v530
      %630 = vmatpush.bf16.msra.mxu0 %v529
      %631 = vmatpush.bf16.msra.mxu0 %v528
      %632 = vmatpush.bf16.msra.mxu0 %v527
      %633 = vmatpush.bf16.msra.mxu0 %v526
      %634 = vmatpush.bf16.msra.mxu0 %v525
      %635 = vmatpush.bf16.msra.mxu0 %v524
      %636 = vmatpush.bf16.msra.mxu0 %v523
      %637 = vmatmul.bf16.gmra.mxu0 %v349
      %v638 = vpop.f32.mrf.mxu0
      %v639 = vadd.f32 %v610, %v638
      %v640 = vpop.f32.mrf.mxu0
      %v641 = vadd.f32 %v612, %v640
      %642 = vmatmul.bf16.gmra.mxu0 %v353
      %v643 = vpop.f32.mrf.mxu0
      %v644 = vadd.f32 %v615, %v643
      %v645 = vpop.f32.mrf.mxu0
      %v646 = vadd.f32 %v617, %v645
      %647 = vmatmul.bf16.gmra.mxu0 %v357
      %v648 = vpop.f32.mrf.mxu0
      %v649 = vadd.f32 %v620, %v648
      %v650 = vpop.f32.mrf.mxu0
      %v651 = vadd.f32 %v622, %v650
      %652 = vmatmul.bf16.gmra.mxu0 %v361
      %v653 = vpop.f32.mrf.mxu0
      %v654 = vadd.f32 %v625, %v653
      %v655 = vpop.f32.mrf.mxu0
      %v656 = vadd.f32 %v627, %v655
      %657 = vdwg.mxu0
      %658 = vmatpush.bf16.msra.mxu0 %v538
      %659 = vmatpush.bf16.msra.mxu0 %v537
      %660 = vmatpush.bf16.msra.mxu0 %v536
      %661 = vmatpush.bf16.msra.mxu0 %v535
      %662 = vmatpush.bf16.msra.mxu0 %v534
      %663 = vmatpush.bf16.msra.mxu0 %v533
      %664 = vmatpush.bf16.msra.mxu0 %v532
      %665 = vmatpush.bf16.msra.mxu0 %v531
      %666 = vmatmul.bf16.gmra.mxu0 %v350
      %v667 = vpop.f32.mrf.mxu0
      %v668 = vadd.f32 %v639, %v667
      %v669 = vpop.f32.mrf.mxu0
      %v670 = vadd.f32 %v641, %v669
      %671 = vmatmul.bf16.gmra.mxu0 %v354
      %v672 = vpop.f32.mrf.mxu0
      %v673 = vadd.f32 %v644, %v672
      %v674 = vpop.f32.mrf.mxu0
      %v675 = vadd.f32 %v646, %v674
      %676 = vmatmul.bf16.gmra.mxu0 %v358
      %v677 = vpop.f32.mrf.mxu0
      %v678 = vadd.f32 %v649, %v677
      %v679 = vpop.f32.mrf.mxu0
      %v680 = vadd.f32 %v651, %v679
      %681 = vmatmul.bf16.gmra.mxu0 %v362
      %v682 = vpop.f32.mrf.mxu0
      %v683 = vadd.f32 %v654, %v682
      %v684 = vpop.f32.mrf.mxu0
      %v685 = vadd.f32 %v656, %v684
      %686 = vdwg.mxu0
      %vm687 = vcmp.ge.f32.partialorder %v668, 0.0
      %vm688 = vcmp.ge.f32.partialorder %v670, 0.0
      %vm689 = vcmp.ge.f32.partialorder %v673, 0.0
      %vm690 = vcmp.ge.f32.partialorder %v675, 0.0
      %vm691 = vcmp.ge.f32.partialorder %v678, 0.0
      %vm692 = vcmp.ge.f32.partialorder %v680, 0.0
      %vm693 = vcmp.ge.f32.partialorder %v683, 0.0
      %vm694 = vcmp.ge.f32.partialorder %v685, 0.0
      %v695 = vmul.f32 %v668, 0.2
      %v696 = vmul.f32 %v670, 0.2
      %v697 = vmul.f32 %v673, 0.2
      %v698 = vmul.f32 %v675, 0.2
      %v699 = vmul.f32 %v678, 0.2
      %v700 = vmul.f32 %v680, 0.2
      %v701 = vmul.f32 %v683, 0.2
      %v702 = vmul.f32 %v685, 0.2
      %v703 = vsel %vm687, %v668, %v695
      %v704 = vsel %vm688, %v670, %v696
      %v705 = vsel %vm689, %v673, %v697
      %v706 = vsel %vm690, %v675, %v698
      %v707 = vsel %vm691, %v678, %v699
      %v708 = vsel %vm692, %v680, %v700
      %v709 = vsel %vm693, %v683, %v701
      %v710 = vsel %vm694, %v685, %v702
      %711 = vset.pattern.permute.xlu0 1
      %712 = vperm.xlu0 %711, %v251
      %v713 = vpop.permute.xlu0 %712
      %715 = vset.pattern.permute.xlu0 1
      %716 = vperm.xlu0 %715, %v252
      %v717 = vpop.permute.xlu0 %716
      %719 = vset.pattern.permute.xlu0 1
      %720 = vperm.xlu0 %719, %v253
      %v721 = vpop.permute.xlu0 %720
      %723 = vset.pattern.permute.xlu0 1
      %724 = vperm.xlu0 %723, %v254
      %v725 = vpop.permute.xlu0 %724
      %727 = vset.pattern.permute.xlu0 1
      %728 = vperm.xlu0 %727, %v255
      %v729 = vpop.permute.xlu0 %728
      %731 = vset.pattern.permute.xlu0 1
      %732 = vperm.xlu0 %731, %v256
      %v733 = vpop.permute.xlu0 %732
      %735 = vset.pattern.permute.xlu0 1
      %736 = vperm.xlu0 %735, %v257
      %v737 = vpop.permute.xlu0 %736
      %739 = vset.pattern.permute.xlu0 1
      %740 = vperm.xlu0 %739, %v258
      %v741 = vpop.permute.xlu0 %740
      %v743 = vmul.f32 %v703, %v713
      %v744 = vmul.f32 %v704, %v717
      %v745 = vmul.f32 %v705, %v721
      %v746 = vmul.f32 %v706, %v725
      %v747 = vmul.f32 %v707, %v729
      %v748 = vmul.f32 %v708, %v733
      %v749 = vmul.f32 %v709, %v737
      %v750 = vmul.f32 %v710, %v741
      %751 = vset.pattern.permute.xlu0 2
      %752 = vperm.xlu0 %751, %v251
      %v753 = vpop.permute.xlu0 %752
      %755 = vset.pattern.permute.xlu0 2
      %756 = vperm.xlu0 %755, %v252
      %v757 = vpop.permute.xlu0 %756
      %759 = vset.pattern.permute.xlu0 2
      %760 = vperm.xlu0 %759, %v253
      %v761 = vpop.permute.xlu0 %760
      %763 = vset.pattern.permute.xlu0 2
      %764 = vperm.xlu0 %763, %v254
      %v765 = vpop.permute.xlu0 %764
      %767 = vset.pattern.permute.xlu0 2
      %768 = vperm.xlu0 %767, %v255
      %v769 = vpop.permute.xlu0 %768
      %771 = vset.pattern.permute.xlu0 2
      %772 = vperm.xlu0 %771, %v256
      %v773 = vpop.permute.xlu0 %772
      %775 = vset.pattern.permute.xlu0 2
      %776 = vperm.xlu0 %775, %v257
      %v777 = vpop.permute.xlu0 %776
      %779 = vset.pattern.permute.xlu0 2
      %780 = vperm.xlu0 %779, %v258
      %v781 = vpop.permute.xlu0 %780
      %v783 = vadd.f32 %v743, %v753
      %v784 = vadd.f32 %v744, %v757
      %v785 = vadd.f32 %v745, %v761
      %v786 = vadd.f32 %v746, %v765
      %v787 = vadd.f32 %v747, %v769
      %v788 = vadd.f32 %v748, %v773
      %v789 = vadd.f32 %v749, %v777
      %v790 = vadd.f32 %v750, %v781
      %v791 = vpack.c.bf16 %v783, %v783
      %v792 = vpack.c.bf16 %v784, %v784
      %v793 = vpack.c.bf16 %v785, %v785
      %v794 = vpack.c.bf16 %v786, %v786
      %v795 = vpack.c.bf16 %v787, %v787
      %v796 = vpack.c.bf16 %v788, %v788
      %v797 = vpack.c.bf16 %v789, %v789
      %v798 = vpack.c.bf16 %v790, %v790
      %vm799 = vcmask 257024
      %800 = vst.msk [vmem:[%s170] sm:$0xf] %vm799, %v791
      %801 = vst.msk [vmem:[%s170 + $0x4] sm:$0xf] %vm799, %v792
      %802 = vst.msk [vmem:[%s170 + $0x8] sm:$0xf] %vm799, %v793
      %803 = vst.msk [vmem:[%s170 + $0xc] sm:$0xf] %vm799, %v794
      %804 = vst.msk [vmem:[%s170 + $0x10] sm:$0xf] %vm799, %v795
      %805 = vst.msk [vmem:[%s170 + $0x14] sm:$0xf] %vm799, %v796
      %806 = vst.msk [vmem:[%s170 + $0x18] sm:$0xf] %vm799, %v797
      %807 = vst.msk [vmem:[%s170 + $0x1c] sm:$0xf] %vm799, %v798
      %p808 = scmp.lt.s32.totalorder %s14, 1
      %s809 = scalar_select %p808, %s14, 1
      %s810 = smul.addr %s809, 8
      %s811 = smul.addr %s810, 4
      %s812 = scalar_lea.vmem %s3, %s811
      // Predicated region
      $region33: #{cnn_surrogate_forward.11} parent=31 // pred_check
        %p813 = pneg %p100
      $region34: #{cnn_surrogate_forward.11} parent=31 // pred_check_branch
        %815 = sbr.rel (%p813) target = $region36
      $region35: #{cnn_surrogate_forward.11} parent=31 // pred_region
        _
      $region36: #{cnn_surrogate_forward.11} parent=31 // pred_fallthru
        _
    $region32: #{cnn_surrogate_forward.11} parent=5 // pred_fallthru
      _
    %p816 = scmp.le.s32.totalorder 2, %s9
    // Predicated region
    $region37: #{cnn_surrogate_forward.11} parent=5 // pred_check
      %p817 = pneg %p816
    $region38: #{cnn_surrogate_forward.11} parent=5 // pred_check_branch
      %819 = sbr.rel (%p817) target = $region40
    $region39: #{cnn_surrogate_forward.11} parent=5 // pred_region
      %s820 = ssub.s32 %s9, 2
      // Predicated region
      $region41: #{cnn_surrogate_forward.11} parent=39 // pred_check
        %p821 = pneg %p106
      $region42: #{cnn_surrogate_forward.11} parent=39 // pred_check_branch
        %823 = sbr.rel (%p821) target = $region44
      $region43: #{cnn_surrogate_forward.11} parent=39 // pred_region
        %p824 = scmp.lt.s32.totalorder %s15, 1
        %s825 = scalar_select %p824, %s15, 1
        %s826 = smul.addr %s825, 8
        %s827 = smul.addr %s826, 4
        %s828 = scalar_lea.vmem %s3, %s827
      $region44: #{cnn_surrogate_forward.11} parent=39 // pred_fallthru
        _
    $region40: #{cnn_surrogate_forward.11} parent=5 // pred_fallthru
      _
  $region6: #{cnn_surrogate_forward.11} parent=0 // loop_footer
    %s13 = sadd.s32 1, %s9
  $region7: #{cnn_surrogate_forward.11} parent=0 // loop_footer_branch
    %8 = sbr.rel target = $region3
  $region8: #{cnn_surrogate_forward.11} parent=0 // loop_exit
    _

// kernel: cnn_surrogate_forward.12
$region0: #{cnn_surrogate_forward.12}
  #allocation0 [shape = 'u32[]', space=smem, size = 0x4, offset = 0x4, fixed_abs, tag = 'smem constant byte address 0x4 - core index']
  #allocation1 [shape = 'u32[72,128]{1,0:T(1,128)}', space=vmem, size = 0x9000, scoped, tag = 'internal scratch']
  %s0 = inlined_call_operand.vmem [shape: bf16[64,1024], index: 0, kind: input, shape index: {}]
  %s1 = inlined_call_operand.vmem [shape: bf16[2,1024,8], index: 1, kind: input, shape index: {}]
  %s2 = inlined_call_operand.vmem [shape: f32[64,3], index: 2, kind: input, shape index: {}]
  %s3 = inlined_call_operand.vmem [shape: bf16[2,64,8], index: 3, kind: output, shape index: {}]
  %s4 = sld [smem:[#allocation0]]
  $region45: #{cnn_surrogate_forward.12} parent=0
    _
  %s6 = ssub.s32 1, %s4
  %s7 = scalar_select 0, %s6, %s4
  loop: start=0, step=1, limit=4
  $region2: #{cnn_surrogate_forward.12} parent=0 // loop_pre_header
    _
  $region3: #{cnn_surrogate_forward.12} parent=0 // loop_header
    %s9 = sphi 0, %s13
    %p10 = scmp.ge.s32.totalorder %s9, 4
    %s17 = sphi 0, %s17
    %s19 = sphi 0, %s17
    %s20 = sphi 0, %s19
    %s34 = sphi 0, %s20
    %s40 = sphi 0, %s42
    %s43 = sphi 0, %s40
    %s44 = sphi 0, %s43
    %s60 = sphi 0, %s44
    %s64 = sphi 0, %s64
    %s66 = sphi 0, %s64
    %s67 = sphi 0, %s66
    %s81 = sphi 0, %s67
    %s87 = sphi 0, %s89
    %s90 = sphi 0, %s87
    %s91 = sphi 0, %s90
    %s107 = sphi 0, %s91
  $region4: #{cnn_surrogate_forward.12} parent=0 // loop_header_branch
    %12 = sbr.rel (%p10) target = $region8
  $region5: #{cnn_surrogate_forward.12} parent=0 // loop_body
    %s14 = ssub.s32 %s9, 1
    %s15 = ssub.s32 %s9, 2
    %s16 = sadd.s32 %s9, 1
    %s18 = sadd.s32 %s17, 1
    %p21 = scmp.eq.s32.totalorder %s9, 1
    %p22 = scmp.ne.s32.totalorder %s17, %s19
    %p23 = scmp.eq.s32.totalorder %s9, 0
    %p24 = por %p22, %p23
    %p25 = scmp.ne.s32.totalorder %s17, %s19
    %p26 = scmp.eq.s32.totalorder %s14, 1
    %p27 = por %p25, %p26
    %p28 = scmp.ne.s32.totalorder %s19, %s20
    %p29 = scmp.eq.s32.totalorder %s14, 0
    %p30 = por %p28, %p29
    %p31 = scmp.ne.s32.totalorder %s19, %s20
    %p32 = scmp.eq.s32.totalorder %s15, 1
    %p33 = por %p31, %p32
    %p35 = scmp.ne.s32.totalorder %s20, %s34
    %p36 = scmp.eq.s32.totalorder %s15, 0
    %p37 = por %p35, %p36
    %s38 = ssub.s32 %s9, %s16
    %p39 = scmp.eq.s32.totalorder %s38, 0
    %s41 = sadd.s32 %s40, 1
    %s42 = scalar_select %p39, %s40, %s41
    %p45 = pneg %p39
    %p46 = scmp.eq.s32.totalorder %s9, 1
    %p47 = por %p45, %p46
    %p48 = scmp.ne.s32.totalorder %s40, %s43
    %p49 = scmp.eq.s32.totalorder %s9, 0
    %p50 = por %p48, %p49
    %p51 = scmp.ne.s32.totalorder %s40, %s43
    %p52 = scmp.eq.s32.totalorder %s14, 1
    %p53 = por %p51, %p52
    %p54 = scmp.ne.s32.totalorder %s43, %s44
    %p55 = scmp.eq.s32.totalorder %s14, 0
    %p56 = por %p54, %p55
    %p57 = scmp.ne.s32.totalorder %s43, %s44
    %p58 = scmp.eq.s32.totalorder %s15, 1
    %p59 = por %p57, %p58
    %p61 = scmp.ne.s32.totalorder %s44, %s60
    %p62 = scmp.eq.s32.totalorder %s15, 0
    %p63 = por %p61, %p62
    %s65 = sadd.s32 %s64, 1
    %p68 = scmp.eq.s32.totalorder %s9, 1
    %p69 = scmp.ne.s32.totalorder %s64, %s66
    %p70 = scmp.eq.s32.totalorder %s9, 0
    %p71 = por %p69, %p70
    %p72 = scmp.ne.s32.totalorder %s64, %s66
    %p73 = scmp.eq.s32.totalorder %s14, 1
    %p74 = por %p72, %p73
    %p75 = scmp.ne.s32.totalorder %s66, %s67
    %p76 = scmp.eq.s32.totalorder %s14, 0
    %p77 = por %p75, %p76
    %p78 = scmp.ne.s32.totalorder %s66, %s67
    %p79 = scmp.eq.s32.totalorder %s15, 1
    %p80 = por %p78, %p79
    %p82 = scmp.ne.s32.totalorder %s67, %s81
    %p83 = scmp.eq.s32.totalorder %s15, 0
    %p84 = por %p82, %p83
    %s85 = ssub.s32 %s9, %s16
    %p86 = scmp.eq.s32.totalorder %s85, 0
    %s88 = sadd.s32 %s87, 1
    %s89 = scalar_select %p86, %s87, %s88
    %p92 = pneg %p86
    %p93 = scmp.eq.s32.totalorder %s9, 1
    %p94 = por %p92, %p93
    %p95 = scmp.ne.s32.totalorder %s87, %s90
    %p96 = scmp.eq.s32.totalorder %s9, 0
    %p97 = por %p95, %p96
    %p98 = scmp.ne.s32.totalorder %s87, %s90
    %p99 = scmp.eq.s32.totalorder %s14, 1
    %p100 = por %p98, %p99
    %p101 = scmp.ne.s32.totalorder %s90, %s91
    %p102 = scmp.eq.s32.totalorder %s14, 0
    %p103 = por %p101, %p102
    %p104 = scmp.ne.s32.totalorder %s90, %s91
    %p105 = scmp.eq.s32.totalorder %s15, 1
    %p106 = por %p104, %p105
    %p108 = scmp.ne.s32.totalorder %s91, %s107
    %p109 = scmp.eq.s32.totalorder %s15, 0
    %p110 = por %p108, %p109
    %p111 = scmp.le.s32.totalorder 1, %s9
    %p112 = scmp.lt.s32.totalorder %s9, 3
    %p113 = pnand %p111, %p112
    %p114 = pneg %p113
    // Predicated region
    $region9: #{cnn_surrogate_forward.12} parent=5 // pred_check
      _
    $region10: #{cnn_surrogate_forward.12} parent=5 // pred_check_branch
      %116 = sbr.rel (%p113) target = $region12
    $region11: #{cnn_surrogate_forward.12} parent=5 // pred_region
      %s117 = ssub.s32 %s9, 1
      // Predicated region
      $region13: #{cnn_surrogate_forward.12} parent=11 // pred_check
        %p118 = pneg %p30
      $region14: #{cnn_surrogate_forward.12} parent=11 // pred_check_branch
        %120 = sbr.rel (%p118) target = $region16
      $region15: #{cnn_surrogate_forward.12} parent=11 // pred_region
        _
      $region16: #{cnn_surrogate_forward.12} parent=11 // pred_fallthru
        _
      // Predicated region
      $region17: #{cnn_surrogate_forward.12} parent=11 // pred_check
        %p121 = pneg %p77
      $region18: #{cnn_surrogate_forward.12} parent=11 // pred_check_branch
        %123 = sbr.rel (%p121) target = $region20
      $region19: #{cnn_surrogate_forward.12} parent=11 // pred_region
        _
      $region20: #{cnn_surrogate_forward.12} parent=11 // pred_fallthru
        _
    $region12: #{cnn_surrogate_forward.12} parent=5 // pred_fallthru
      _
    %p124 = scmp.lt.s32.totalorder %s9, 2
    // Predicated region
    $region21: #{cnn_surrogate_forward.12} parent=5 // pred_check
      %p125 = pneg %p124
    $region22: #{cnn_surrogate_forward.12} parent=5 // pred_check_branch
      %127 = sbr.rel (%p125) target = $region24
    $region23: #{cnn_surrogate_forward.12} parent=5 // pred_region
      // Predicated region
      $region25: #{cnn_surrogate_forward.12} parent=23 // pred_check
        %p128 = pneg %p50
      $region26: #{cnn_surrogate_forward.12} parent=23 // pred_check_branch
        %130 = sbr.rel (%p128) target = $region28
      $region27: #{cnn_surrogate_forward.12} parent=23 // pred_region
        %p131 = scmp.lt.s32.totalorder %s9, 1
        %s132 = scalar_select %p131, %s9, 1
        %s133 = smul.addr %s132, 128
        %s134 = smul.addr %s133, 4
        %s135 = scalar_lea.vmem %s1, %s134
      $region28: #{cnn_surrogate_forward.12} parent=23 // pred_fallthru
        _
    $region24: #{cnn_surrogate_forward.12} parent=5 // pred_fallthru
      _
    %p136 = scmp.le.s32.totalorder 1, %s9
    %p137 = scmp.lt.s32.totalorder %s9, 3
    %p138 = pnand %p136, %p137
    %p139 = pneg %p138
    // Predicated region
    $region29: #{cnn_surrogate_forward.12} parent=5 // pred_check
      _
    $region30: #{cnn_surrogate_forward.12} parent=5 // pred_check_branch
      %141 = sbr.rel (%p138) target = $region32
    $region31: #{cnn_surrogate_forward.12} parent=5 // pred_region
      %s142 = ssub.s32 %s9, 1
      %p143 = pneg %p30
      %p144 = pneg %p27
      %p145 = scmp.lt.s32.totalorder %s14, 1
      %s146 = scalar_select %p145, %s14, 1
      %s147 = smul.addr %s146, 128
      %s148 = smul.addr %s147, 4
      %s149 = scalar_lea.vmem %s1, %s148
      %p150 = pneg %p56
      %p151 = pneg %p53
      %p152 = pneg %p77
      %p153 = pneg %p74
      %p154 = pneg %p103
      %p155 = pneg %p100
      %p156 = scmp.lt.s32.totalorder %s14, 1
      %s157 = scalar_select %p156, %s14, 1
      %s158 = smul.addr %s157, 8
      %s159 = smul.addr %s158, 4
      %s160 = scalar_lea.vmem %s3, %s159
      %p161 = scmp.lt.s32.totalorder %s14, 1
      %s162 = scalar_select %p161, %s14, 1
      %s163 = smul.addr %s162, 128
      %s164 = smul.addr %s163, 4
      %s165 = scalar_lea.vmem %s1, %s164
      %p166 = scmp.lt.s32.totalorder %s14, 1
      %s167 = scalar_select %p166, %s14, 1
      %s168 = smul.addr %s167, 8
      %s169 = smul.addr %s168, 4
      %s170 = scalar_lea.vmem %s3, %s169
      %v171 = vld [vmem:[%s0] sm:$0xff]
      %v172 = vld [vmem:[%s0 + $0x8] sm:$0xff]
      %v173 = vld [vmem:[%s0 + $0x10] sm:$0xff]
      %v174 = vld [vmem:[%s0 + $0x18] sm:$0xff]
      %v175 = vld [vmem:[%s0 + $0x20] sm:$0xff]
      %v176 = vld [vmem:[%s0 + $0x28] sm:$0xff]
      %v177 = vld [vmem:[%s0 + $0x30] sm:$0xff]
      %v178 = vld [vmem:[%s0 + $0x38] sm:$0xff]
      %v179 = vld [vmem:[%s0 + $0x40] sm:$0xff]
      %v180 = vld [vmem:[%s0 + $0x48] sm:$0xff]
      %v181 = vld [vmem:[%s0 + $0x50] sm:$0xff]
      %v182 = vld [vmem:[%s0 + $0x58] sm:$0xff]
      %v183 = vld [vmem:[%s0 + $0x60] sm:$0xff]
      %v184 = vld [vmem:[%s0 + $0x68] sm:$0xff]
      %v185 = vld [vmem:[%s0 + $0x70] sm:$0xff]
      %v186 = vld [vmem:[%s0 + $0x78] sm:$0xff]
      %v187 = vld [vmem:[%s0 + $0x80] sm:$0xff]
      %v188 = vld [vmem:[%s0 + $0x88] sm:$0xff]
      %v189 = vld [vmem:[%s0 + $0x90] sm:$0xff]
      %v190 = vld [vmem:[%s0 + $0x98] sm:$0xff]
      %v191 = vld [vmem:[%s0 + $0xa0] sm:$0xff]
      %v192 = vld [vmem:[%s0 + $0xa8] sm:$0xff]
      %v193 = vld [vmem:[%s0 + $0xb0] sm:$0xff]
      %v194 = vld [vmem:[%s0 + $0xb8] sm:$0xff]
      %v195 = vld [vmem:[%s0 + $0xc0] sm:$0xff]
      %v196 = vld [vmem:[%s0 + $0xc8] sm:$0xff]
      %v197 = vld [vmem:[%s0 + $0xd0] sm:$0xff]
      %v198 = vld [vmem:[%s0 + $0xd8] sm:$0xff]
      %v199 = vld [vmem:[%s0 + $0xe0] sm:$0xff]
      %v200 = vld [vmem:[%s0 + $0xe8] sm:$0xff]
      %v201 = vld [vmem:[%s0 + $0xf0] sm:$0xff]
      %v202 = vld [vmem:[%s0 + $0xf8] sm:$0xff]
      %v203 = vld [vmem:[%s165] sm:$0xf]
      %v204 = vld [vmem:[%s165 + $0x4] sm:$0xf]
      %v205 = vld [vmem:[%s165 + $0x8] sm:$0xf]
      %v206 = vld [vmem:[%s165 + $0xc] sm:$0xf]
      %v207 = vld [vmem:[%s165 + $0x10] sm:$0xf]
      %v208 = vld [vmem:[%s165 + $0x14] sm:$0xf]
      %v209 = vld [vmem:[%s165 + $0x18] sm:$0xf]
      %v210 = vld [vmem:[%s165 + $0x1c] sm:$0xf]
      %v211 = vld [vmem:[%s165 + $0x20] sm:$0xf]
      %v212 = vld [vmem:[%s165 + $0x24] sm:$0xf]
      %v213 = vld [vmem:[%s165 + $0x28] sm:$0xf]
      %v214 = vld [vmem:[%s165 + $0x2c] sm:$0xf]
      %v215 = vld [vmem:[%s165 + $0x30] sm:$0xf]
      %v216 = vld [vmem:[%s165 + $0x34] sm:$0xf]
      %v217 = vld [vmem:[%s165 + $0x38] sm:$0xf]
      %v218 = vld [vmem:[%s165 + $0x3c] sm:$0xf]
      %v219 = vld [vmem:[%s165 + $0x40] sm:$0xf]
      %v220 = vld [vmem:[%s165 + $0x44] sm:$0xf]
      %v221 = vld [vmem:[%s165 + $0x48] sm:$0xf]
      %v222 = vld [vmem:[%s165 + $0x4c] sm:$0xf]
      %v223 = vld [vmem:[%s165 + $0x50] sm:$0xf]
      %v224 = vld [vmem:[%s165 + $0x54] sm:$0xf]
      %v225 = vld [vmem:[%s165 + $0x58] sm:$0xf]
      %v226 = vld [vmem:[%s165 + $0x5c] sm:$0xf]
      %v227 = vld [vmem:[%s165 + $0x60] sm:$0xf]
      %v228 = vld [vmem:[%s165 + $0x64] sm:$0xf]
      %v229 = vld [vmem:[%s165 + $0x68] sm:$0xf]
      %v230 = vld [vmem:[%s165 + $0x6c] sm:$0xf]
      %v231 = vld [vmem:[%s165 + $0x70] sm:$0xf]
      %v232 = vld [vmem:[%s165 + $0x74] sm:$0xf]
      %v233 = vld [vmem:[%s165 + $0x78] sm:$0xf]
      %v234 = vld [vmem:[%s165 + $0x7c] sm:$0xf]
      %v235 = vld [vmem:[%s165 + $0x80] sm:$0xf]
      %v236 = vld [vmem:[%s165 + $0x84] sm:$0xf]
      %v237 = vld [vmem:[%s165 + $0x88] sm:$0xf]
      %v238 = vld [vmem:[%s165 + $0x8c] sm:$0xf]
      %v239 = vld [vmem:[%s165 + $0x90] sm:$0xf]
      %v240 = vld [vmem:[%s165 + $0x94] sm:$0xf]
      %v241 = vld [vmem:[%s165 + $0x98] sm:$0xf]
      %v242 = vld [vmem:[%s165 + $0x9c] sm:$0xf]
      %v243 = vld [vmem:[%s165 + $0xa0] sm:$0xf]
      %v244 = vld [vmem:[%s165 + $0xa4] sm:$0xf]
      %v245 = vld [vmem:[%s165 + $0xa8] sm:$0xf]
      %v246 = vld [vmem:[%s165 + $0xac] sm:$0xf]
      %v247 = vld [vmem:[%s165 + $0xb0] sm:$0xf]
      %v248 = vld [vmem:[%s165 + $0xb4] sm:$0xf]
      %v249 = vld [vmem:[%s165 + $0xb8] sm:$0xf]
      %v250 = vld [vmem:[%s165 + $0xbc] sm:$0xf]
      %v251 = vld [vmem:[%s165 + $0xc0] sm:$0xf]
      %v252 = vld [vmem:[%s165 + $0xc4] sm:$0xf]
      %v253 = vld [vmem:[%s165 + $0xc8] sm:$0xf]
      %v254 = vld [vmem:[%s165 + $0xcc] sm:$0xf]
      %v255 = vld [vmem:[%s165 + $0xd0] sm:$0xf]
      %v256 = vld [vmem:[%s165 + $0xd4] sm:$0xf]
      %v257 = vld [vmem:[%s165 + $0xd8] sm:$0xf]
      %v258 = vld [vmem:[%s165 + $0xdc] sm:$0xf]
      %v259 = vld [vmem:[%s165 + $0xe0] sm:$0xf]
      %v260 = vld [vmem:[%s165 + $0xe4] sm:$0xf]
      %v261 = vld [vmem:[%s165 + $0xe8] sm:$0xf]
      %v262 = vld [vmem:[%s165 + $0xec] sm:$0xf]
      %v263 = vld [vmem:[%s165 + $0xf0] sm:$0xf]
      %v264 = vld [vmem:[%s165 + $0xf4] sm:$0xf]
      %v265 = vld [vmem:[%s165 + $0xf8] sm:$0xf]
      %v266 = vld [vmem:[%s165 + $0xfc] sm:$0xf]
      %v267 = vld [vmem:[%s165 + $0x100] sm:$0xf]
      %v268 = vld [vmem:[%s165 + $0x104] sm:$0xf]
      %v269 = vld [vmem:[%s165 + $0x108] sm:$0xf]
      %v270 = vld [vmem:[%s165 + $0x10c] sm:$0xf]
      %v271 = vld [vmem:[%s165 + $0x110] sm:$0xf]
      %v272 = vld [vmem:[%s165 + $0x114] sm:$0xf]
      %v273 = vld [vmem:[%s165 + $0x118] sm:$0xf]
      %v274 = vld [vmem:[%s165 + $0x11c] sm:$0xf]
      %v275 = vld [vmem:[%s165 + $0x120] sm:$0xf]
      %v276 = vld [vmem:[%s165 + $0x124] sm:$0xf]
      %v277 = vld [vmem:[%s165 + $0x128] sm:$0xf]
      %v278 = vld [vmem:[%s165 + $0x12c] sm:$0xf]
      %v279 = vld [vmem:[%s165 + $0x130] sm:$0xf]
      %v280 = vld [vmem:[%s165 + $0x134] sm:$0xf]
      %v281 = vld [vmem:[%s165 + $0x138] sm:$0xf]
      %v282 = vld [vmem:[%s165 + $0x13c] sm:$0xf]
      %v283 = vld [vmem:[%s165 + $0x140] sm:$0xf]
      %v284 = vld [vmem:[%s165 + $0x144] sm:$0xf]
      %v285 = vld [vmem:[%s165 + $0x148] sm:$0xf]
      %v286 = vld [vmem:[%s165 + $0x14c] sm:$0xf]
      %v287 = vld [vmem:[%s165 + $0x150] sm:$0xf]
      %v288 = vld [vmem:[%s165 + $0x154] sm:$0xf]
      %v289 = vld [vmem:[%s165 + $0x158] sm:$0xf]
      %v290 = vld [vmem:[%s165 + $0x15c] sm:$0xf]
      %v291 = vld [vmem:[%s165 + $0x160] sm:$0xf]
      %v292 = vld [vmem:[%s165 + $0x164] sm:$0xf]
      %v293 = vld [vmem:[%s165 + $0x168] sm:$0xf]
      %v294 = vld [vmem:[%s165 + $0x16c] sm:$0xf]
      %v295 = vld [vmem:[%s165 + $0x170] sm:$0xf]
      %v296 = vld [vmem:[%s165 + $0x174] sm:$0xf]
      %v297 = vld [vmem:[%s165 + $0x178] sm:$0xf]
      %v298 = vld [vmem:[%s165 + $0x17c] sm:$0xf]
      %v299 = vld [vmem:[%s165 + $0x180] sm:$0xf]
      %v300 = vld [vmem:[%s165 + $0x184] sm:$0xf]
      %v301 = vld [vmem:[%s165 + $0x188] sm:$0xf]
      %v302 = vld [vmem:[%s165 + $0x18c] sm:$0xf]
      %v303 = vld [vmem:[%s165 + $0x190] sm:$0xf]
      %v304 = vld [vmem:[%s165 + $0x194] sm:$0xf]
      %v305 = vld [vmem:[%s165 + $0x198] sm:$0xf]
      %v306 = vld [vmem:[%s165 + $0x19c] sm:$0xf]
      %v307 = vld [vmem:[%s165 + $0x1a0] sm:$0xf]
      %v308 = vld [vmem:[%s165 + $0x1a4] sm:$0xf]
      %v309 = vld [vmem:[%s165 + $0x1a8] sm:$0xf]
      %v310 = vld [vmem:[%s165 + $0x1ac] sm:$0xf]
      %v311 = vld [vmem:[%s165 + $0x1b0] sm:$0xf]
      %v312 = vld [vmem:[%s165 + $0x1b4] sm:$0xf]
      %v313 = vld [vmem:[%s165 + $0x1b8] sm:$0xf]
      %v314 = vld [vmem:[%s165 + $0x1bc] sm:$0xf]
      %v315 = vld [vmem:[%s165 + $0x1c0] sm:$0xf]
      %v316 = vld [vmem:[%s165 + $0x1c4] sm:$0xf]
      %v317 = vld [vmem:[%s165 + $0x1c8] sm:$0xf]
      %v318 = vld [vmem:[%s165 + $0x1cc] sm:$0xf]
      %v319 = vld [vmem:[%s165 + $0x1d0] sm:$0xf]
      %v320 = vld [vmem:[%s165 + $0x1d4] sm:$0xf]
      %v321 = vld [vmem:[%s165 + $0x1d8] sm:$0xf]
      %v322 = vld [vmem:[%s165 + $0x1dc] sm:$0xf]
      %v323 = vld [vmem:[%s165 + $0x1e0] sm:$0xf]
      %v324 = vld [vmem:[%s165 + $0x1e4] sm:$0xf]
      %v325 = vld [vmem:[%s165 + $0x1e8] sm:$0xf]
      %v326 = vld [vmem:[%s165 + $0x1ec] sm:$0xf]
      %v327 = vld [vmem:[%s165 + $0x1f0] sm:$0xf]
      %v328 = vld [vmem:[%s165 + $0x1f4] sm:$0xf]
      %v329 = vld [vmem:[%s165 + $0x1f8] sm:$0xf]
      %v330 = vld [vmem:[%s165 + $0x1fc] sm:$0xf]
      %v331 = vld [vmem:[%s2] sm:$0xff]
      %v332 = vld [vmem:[%s2 + $0x8] sm:$0xff]
      %v333 = vld [vmem:[%s2 + $0x10] sm:$0xff]
      %v334 = vld [vmem:[%s2 + $0x18] sm:$0xff]
      %v335 = vld [vmem:[%s2 + $0x20] sm:$0xff]
      %v336 = vld [vmem:[%s2 + $0x28] sm:$0xff]
      %v337 = vld [vmem:[%s2 + $0x30] sm:$0xff]
      %v338 = vld [vmem:[%s2 + $0x38] sm:$0xff]
      %340 = vset.pattern.permute.xlu0 0
      %341 = vperm.xlu0 %340, %v331
      %v342 = vpop.permute.xlu0 %341
      %345 = vset.pattern.permute.xlu0 0
      %346 = vperm.xlu0 %345, %v332
      %v347 = vpop.permute.xlu0 %346
      %350 = vset.pattern.permute.xlu0 0
      %351 = vperm.xlu0 %350, %v333
      %v352 = vpop.permute.xlu0 %351
      %355 = vset.pattern.permute.xlu0 0
      %356 = vperm.xlu0 %355, %v334
      %v357 = vpop.permute.xlu0 %356
      %360 = vset.pattern.permute.xlu0 0
      %361 = vperm.xlu0 %360, %v335
      %v362 = vpop.permute.xlu0 %361
      %365 = vset.pattern.permute.xlu0 0
      %366 = vperm.xlu0 %365, %v336
      %v367 = vpop.permute.xlu0 %366
      %370 = vset.pattern.permute.xlu0 0
      %371 = vperm.xlu0 %370, %v337
      %v372 = vpop.permute.xlu0 %371
      %375 = vset.pattern.permute.xlu0 0
      %376 = vperm.xlu0 %375, %v338
      %v377 = vpop.permute.xlu0 %376
      %v411 = vunpack.c.l.b16 %v171
      %v412 = vunpack.c.h.b16 %v171
      %v413 = vunpack.c.l.b16 %v172
      %v414 = vunpack.c.h.b16 %v172
      %v415 = vunpack.c.l.b16 %v173
      %v416 = vunpack.c.h.b16 %v173
      %v417 = vunpack.c.l.b16 %v174
      %v418 = vunpack.c.h.b16 %v174
      %v419 = vunpack.c.l.b16 %v175
      %v420 = vunpack.c.h.b16 %v175
      %v421 = vunpack.c.l.b16 %v176
      %v422 = vunpack.c.h.b16 %v176
      %v423 = vunpack.c.l.b16 %v177
      %v424 = vunpack.c.h.b16 %v177
      %v425 = vunpack.c.l.b16 %v178
      %v426 = vunpack.c.h.b16 %v178
      %v427 = vunpack.c.l.b16 %v179
      %v428 = vunpack.c.h.b16 %v179
      %v429 = vunpack.c.l.b16 %v180
      %v430 = vunpack.c.h.b16 %v180
      %v431 = vunpack.c.l.b16 %v181
      %v432 = vunpack.c.h.b16 %v181
      %v433 = vunpack.c.l.b16 %v182
      %v434 = vunpack.c.h.b16 %v182
      %v435 = vunpack.c.l.b16 %v183
      %v436 = vunpack.c.h.b16 %v183
      %v437 = vunpack.c.l.b16 %v184
      %v438 = vunpack.c.h.b16 %v184
      %v439 = vunpack.c.l.b16 %v185
      %v440 = vunpack.c.h.b16 %v185
      %v441 = vunpack.c.l.b16 %v186
      %v442 = vunpack.c.h.b16 %v186
      %v443 = vunpack.c.l.b16 %v187
      %v444 = vunpack.c.h.b16 %v187
      %v445 = vunpack.c.l.b16 %v188
      %v446 = vunpack.c.h.b16 %v188
      %v447 = vunpack.c.l.b16 %v189
      %v448 = vunpack.c.h.b16 %v189
      %v449 = vunpack.c.l.b16 %v190
      %v450 = vunpack.c.h.b16 %v190
      %v451 = vunpack.c.l.b16 %v191
      %v452 = vunpack.c.h.b16 %v191
      %v453 = vunpack.c.l.b16 %v192
      %v454 = vunpack.c.h.b16 %v192
      %v455 = vunpack.c.l.b16 %v193
      %v456 = vunpack.c.h.b16 %v193
      %v457 = vunpack.c.l.b16 %v194
      %v458 = vunpack.c.h.b16 %v194
      %v459 = vunpack.c.l.b16 %v195
      %v460 = vunpack.c.h.b16 %v195
      %v461 = vunpack.c.l.b16 %v196
      %v462 = vunpack.c.h.b16 %v196
      %v463 = vunpack.c.l.b16 %v197
      %v464 = vunpack.c.h.b16 %v197
      %v465 = vunpack.c.l.b16 %v198
      %v466 = vunpack.c.h.b16 %v198
      %v467 = vunpack.c.l.b16 %v199
      %v468 = vunpack.c.h.b16 %v199
      %v469 = vunpack.c.l.b16 %v200
      %v470 = vunpack.c.h.b16 %v200
      %v471 = vunpack.c.l.b16 %v201
      %v472 = vunpack.c.h.b16 %v201
      %v473 = vunpack.c.l.b16 %v202
      %v474 = vunpack.c.h.b16 %v202
      %v475 = vpack.c.b16 %v419, %v411
      %v476 = vpack.c.b16 %v420, %v412
      %v477 = vpack.c.b16 %v421, %v413
      %v478 = vpack.c.b16 %v422, %v414
      %v479 = vpack.c.b16 %v423, %v415
      %v480 = vpack.c.b16 %v424, %v416
      %v481 = vpack.c.b16 %v425, %v417
      %v482 = vpack.c.b16 %v426, %v418
      %v483 = vpack.c.b16 %v435, %v427
      %v484 = vpack.c.b16 %v436, %v428
      %v485 = vpack.c.b16 %v437, %v429
      %v486 = vpack.c.b16 %v438, %v430
      %v487 = vpack.c.b16 %v439, %v431
      %v488 = vpack.c.b16 %v440, %v432
      %v489 = vpack.c.b16 %v441, %v433
      %v490 = vpack.c.b16 %v442, %v434
      %v491 = vpack.c.b16 %v451, %v443
      %v492 = vpack.c.b16 %v452, %v444
      %v493 = vpack.c.b16 %v453, %v445
      %v494 = vpack.c.b16 %v454, %v446
      %v495 = vpack.c.b16 %v455, %v447
      %v496 = vpack.c.b16 %v456, %v448
      %v497 = vpack.c.b16 %v457, %v449
      %v498 = vpack.c.b16 %v458, %v450
      %v499 = vpack.c.b16 %v467, %v459
      %v500 = vpack.c.b16 %v468, %v460
      %v501 = vpack.c.b16 %v469, %v461
      %v502 = vpack.c.b16 %v470, %v462
      %v503 = vpack.c.b16 %v471, %v463
      %v504 = vpack.c.b16 %v472, %v464
      %v505 = vpack.c.b16 %v473, %v465
      %v506 = vpack.c.b16 %v474, %v466
      %v667 = vunpack.c.l.b16 %v203
      %v668 = vunpack.c.l.b16 %v204
      %v669 = vunpack.c.l.b16 %v205
      %v670 = vunpack.c.l.b16 %v206
      %v671 = vunpack.c.l.b16 %v207
      %v672 = vunpack.c.l.b16 %v208
      %v673 = vunpack.c.l.b16 %v209
      %v674 = vunpack.c.l.b16 %v210
      %v675 = vunpack.c.l.b16 %v211
      %v676 = vunpack.c.l.b16 %v212
      %v677 = vunpack.c.l.b16 %v213
      %v678 = vunpack.c.l.b16 %v214
      %v679 = vunpack.c.l.b16 %v215
      %v680 = vunpack.c.l.b16 %v216
      %v681 = vunpack.c.l.b16 %v217
      %v682 = vunpack.c.l.b16 %v218
      %v683 = vunpack.c.l.b16 %v219
      %v684 = vunpack.c.l.b16 %v220
      %v685 = vunpack.c.l.b16 %v221
      %v686 = vunpack.c.l.b16 %v222
      %v687 = vunpack.c.l.b16 %v223
      %v688 = vunpack.c.l.b16 %v224
      %v689 = vunpack.c.l.b16 %v225
      %v690 = vunpack.c.l.b16 %v226
      %v691 = vunpack.c.l.b16 %v227
      %v692 = vunpack.c.l.b16 %v228
      %v693 = vunpack.c.l.b16 %v229
      %v694 = vunpack.c.l.b16 %v230
      %v695 = vunpack.c.l.b16 %v231
      %v696 = vunpack.c.l.b16 %v232
      %v697 = vunpack.c.l.b16 %v233
      %v698 = vunpack.c.l.b16 %v234
      %v699 = vunpack.c.l.b16 %v235
      %v700 = vunpack.c.l.b16 %v236
      %v701 = vunpack.c.l.b16 %v237
      %v702 = vunpack.c.l.b16 %v238
      %v703 = vunpack.c.l.b16 %v239
      %v704 = vunpack.c.l.b16 %v240
      %v705 = vunpack.c.l.b16 %v241
      %v706 = vunpack.c.l.b16 %v242
      %v707 = vunpack.c.l.b16 %v243
      %v708 = vunpack.c.l.b16 %v244
      %v709 = vunpack.c.l.b16 %v245
      %v710 = vunpack.c.l.b16 %v246
      %v711 = vunpack.c.l.b16 %v247
      %v712 = vunpack.c.l.b16 %v248
      %v713 = vunpack.c.l.b16 %v249
      %v714 = vunpack.c.l.b16 %v250
      %v715 = vunpack.c.l.b16 %v251
      %v716 = vunpack.c.l.b16 %v252
      %v717 = vunpack.c.l.b16 %v253
      %v718 = vunpack.c.l.b16 %v254
      %v719 = vunpack.c.l.b16 %v255
      %v720 = vunpack.c.l.b16 %v256
      %v721 = vunpack.c.l.b16 %v257
      %v722 = vunpack.c.l.b16 %v258
      %v723 = vunpack.c.l.b16 %v259
      %v724 = vunpack.c.l.b16 %v260
      %v725 = vunpack.c.l.b16 %v261
      %v726 = vunpack.c.l.b16 %v262
      %v727 = vunpack.c.l.b16 %v263
      %v728 = vunpack.c.l.b16 %v264
      %v729 = vunpack.c.l.b16 %v265
      %v730 = vunpack.c.l.b16 %v266
      %v731 = vunpack.c.l.b16 %v267
      %v732 = vunpack.c.l.b16 %v268
      %v733 = vunpack.c.l.b16 %v269
      %v734 = vunpack.c.l.b16 %v270
      %v735 = vunpack.c.l.b16 %v271
      %v736 = vunpack.c.l.b16 %v272
      %v737 = vunpack.c.l.b16 %v273
      %v738 = vunpack.c.l.b16 %v274
      %v739 = vunpack.c.l.b16 %v275
      %v740 = vunpack.c.l.b16 %v276
      %v741 = vunpack.c.l.b16 %v277
      %v742 = vunpack.c.l.b16 %v278
      %v743 = vunpack.c.l.b16 %v279
      %v744 = vunpack.c.l.b16 %v280
      %v745 = vunpack.c.l.b16 %v281
      %v746 = vunpack.c.l.b16 %v282
      %v747 = vunpack.c.l.b16 %v283
      %v748 = vunpack.c.l.b16 %v284
      %v749 = vunpack.c.l.b16 %v285
      %v750 = vunpack.c.l.b16 %v286
      %v751 = vunpack.c.l.b16 %v287
      %v752 = vunpack.c.l.b16 %v288
      %v753 = vunpack.c.l.b16 %v289
      %v754 = vunpack.c.l.b16 %v290
      %v755 = vunpack.c.l.b16 %v291
      %v756 = vunpack.c.l.b16 %v292
      %v757 = vunpack.c.l.b16 %v293
      %v758 = vunpack.c.l.b16 %v294
      %v759 = vunpack.c.l.b16 %v295
      %v760 = vunpack.c.l.b16 %v296
      %v761 = vunpack.c.l.b16 %v297
      %v762 = vunpack.c.l.b16 %v298
      %v763 = vunpack.c.l.b16 %v299
      %v764 = vunpack.c.l.b16 %v300
      %v765 = vunpack.c.l.b16 %v301
      %v766 = vunpack.c.l.b16 %v302
      %v767 = vunpack.c.l.b16 %v303
      %v768 = vunpack.c.l.b16 %v304
      %v769 = vunpack.c.l.b16 %v305
      %v770 = vunpack.c.l.b16 %v306
      %v771 = vunpack.c.l.b16 %v307
      %v772 = vunpack.c.l.b16 %v308
      %v773 = vunpack.c.l.b16 %v309
      %v774 = vunpack.c.l.b16 %v310
      %v775 = vunpack.c.l.b16 %v311
      %v776 = vunpack.c.l.b16 %v312
      %v777 = vunpack.c.l.b16 %v313
      %v778 = vunpack.c.l.b16 %v314
      %v779 = vunpack.c.l.b16 %v315
      %v780 = vunpack.c.l.b16 %v316
      %v781 = vunpack.c.l.b16 %v317
      %v782 = vunpack.c.l.b16 %v318
      %v783 = vunpack.c.l.b16 %v319
      %v784 = vunpack.c.l.b16 %v320
      %v785 = vunpack.c.l.b16 %v321
      %v786 = vunpack.c.l.b16 %v322
      %v787 = vunpack.c.l.b16 %v323
      %v788 = vunpack.c.l.b16 %v324
      %v789 = vunpack.c.l.b16 %v325
      %v790 = vunpack.c.l.b16 %v326
      %v791 = vunpack.c.l.b16 %v327
      %v792 = vunpack.c.l.b16 %v328
      %v793 = vunpack.c.l.b16 %v329
      %v794 = vunpack.c.l.b16 %v330
      %v795 = vpack.c.b16 %v668, %v667
      %v796 = vpack.c.b16 %v670, %v669
      %v797 = vpack.c.b16 %v672, %v671
      %v798 = vpack.c.b16 %v674, %v673
      %v799 = vpack.c.b16 %v676, %v675
      %v800 = vpack.c.b16 %v678, %v677
      %v801 = vpack.c.b16 %v680, %v679
      %v802 = vpack.c.b16 %v682, %v681
      %v803 = vpack.c.b16 %v684, %v683
      %v804 = vpack.c.b16 %v686, %v685
      %v805 = vpack.c.b16 %v688, %v687
      %v806 = vpack.c.b16 %v690, %v689
      %v807 = vpack.c.b16 %v692, %v691
      %v808 = vpack.c.b16 %v694, %v693
      %v809 = vpack.c.b16 %v696, %v695
      %v810 = vpack.c.b16 %v698, %v697
      %v811 = vpack.c.b16 %v700, %v699
      %v812 = vpack.c.b16 %v702, %v701
      %v813 = vpack.c.b16 %v704, %v703
      %v814 = vpack.c.b16 %v706, %v705
      %v815 = vpack.c.b16 %v708, %v707
      %v816 = vpack.c.b16 %v710, %v709
      %v817 = vpack.c.b16 %v712, %v711
      %v818 = vpack.c.b16 %v714, %v713
      %v819 = vpack.c.b16 %v716, %v715
      %v820 = vpack.c.b16 %v718, %v717
      %v821 = vpack.c.b16 %v720, %v719
      %v822 = vpack.c.b16 %v722, %v721
      %v823 = vpack.c.b16 %v724, %v723
      %v824 = vpack.c.b16 %v726, %v725
      %v825 = vpack.c.b16 %v728, %v727
      %v826 = vpack.c.b16 %v730, %v729
      %v827 = vpack.c.b16 %v732, %v731
      %v828 = vpack.c.b16 %v734, %v733
      %v829 = vpack.c.b16 %v736, %v735
      %v830 = vpack.c.b16 %v738, %v737
      %v831 = vpack.c.b16 %v740, %v739
      %v832 = vpack.c.b16 %v742, %v741
      %v833 = vpack.c.b16 %v744, %v743
      %v834 = vpack.c.b16 %v746, %v745
      %v835 = vpack.c.b16 %v748, %v747
      %v836 = vpack.c.b16 %v750, %v749
      %v837 = vpack.c.b16 %v752, %v751
      %v838 = vpack.c.b16 %v754, %v753
      %v839 = vpack.c.b16 %v756, %v755
      %v840 = vpack.c.b16 %v758, %v757
      %v841 = vpack.c.b16 %v760, %v759
      %v842 = vpack.c.b16 %v762, %v761
      %v843 = vpack.c.b16 %v764, %v763
      %v844 = vpack.c.b16 %v766, %v765
      %v845 = vpack.c.b16 %v768, %v767
      %v846 = vpack.c.b16 %v770, %v769
      %v847 = vpack.c.b16 %v772, %v771
      %v848 = vpack.c.b16 %v774, %v773
      %v849 = vpack.c.b16 %v776, %v775
      %v850 = vpack.c.b16 %v778, %v777
      %v851 = vpack.c.b16 %v780, %v779
      %v852 = vpack.c.b16 %v782, %v781
      %v853 = vpack.c.b16 %v784, %v783
      %v854 = vpack.c.b16 %v786, %v785
      %v855 = vpack.c.b16 %v788, %v787
      %v856 = vpack.c.b16 %v790, %v789
      %v857 = vpack.c.b16 %v792, %v791
      %v858 = vpack.c.b16 %v794, %v793
      %923 = vmatpush.bf16.msra.mxu0 %v802
      %924 = vmatpush.bf16.msra.mxu0 %v801
      %925 = vmatpush.bf16.msra.mxu0 %v800
      %926 = vmatpush.bf16.msra.mxu0 %v799
      %927 = vmatpush.bf16.msra.mxu0 %v798
      %928 = vmatpush.bf16.msra.mxu0 %v797
      %929 = vmatpush.bf16.msra.mxu0 %v796
      %930 = vmatpush.bf16.msra.mxu0 %v795
      %931 = vmatmul.bf16.gmra.mxu0 %v475
      %v932 = vpop.f32.mrf.mxu0
      %v933 = vadd.f32 %v342, %v932
      %v934 = vpop.f32.mrf.mxu0
      %v935 = vadd.f32 %v347, %v934
      %936 = vmatmul.bf16.gmra.mxu0 %v483
      %v937 = vpop.f32.mrf.mxu0
      %v938 = vadd.f32 %v352, %v937
      %v939 = vpop.f32.mrf.mxu0
      %v940 = vadd.f32 %v357, %v939
      %941 = vmatmul.bf16.gmra.mxu0 %v491
      %v942 = vpop.f32.mrf.mxu0
      %v943 = vadd.f32 %v362, %v942
      %v944 = vpop.f32.mrf.mxu0
      %v945 = vadd.f32 %v367, %v944
      %946 = vmatmul.bf16.gmra.mxu0 %v499
      %v947 = vpop.f32.mrf.mxu0
      %v948 = vadd.f32 %v372, %v947
      %v949 = vpop.f32.mrf.mxu0
      %v950 = vadd.f32 %v377, %v949
      %951 = vdwg.mxu0
      %952 = vmatpush.bf16.msra.mxu0 %v810
      %953 = vmatpush.bf16.msra.mxu0 %v809
      %954 = vmatpush.bf16.msra.mxu0 %v808
      %955 = vmatpush.bf16.msra.mxu0 %v807
      %956 = vmatpush.bf16.msra.mxu0 %v806
      %957 = vmatpush.bf16.msra.mxu0 %v805
      %958 = vmatpush.bf16.msra.mxu0 %v804
      %959 = vmatpush.bf16.msra.mxu0 %v803
      %960 = vmatmul.bf16.gmra.mxu0 %v476
      %v961 = vpop.f32.mrf.mxu0
      %v962 = vadd.f32 %v933, %v961
      %v963 = vpop.f32.mrf.mxu0
      %v964 = vadd.f32 %v935, %v963
      %965 = vmatmul.bf16.gmra.mxu0 %v484
      %v966 = vpop.f32.mrf.mxu0
      %v967 = vadd.f32 %v938, %v966
      %v968 = vpop.f32.mrf.mxu0
      %v969 = vadd.f32 %v940, %v968
      %970 = vmatmul.bf16.gmra.mxu0 %v492
      %v971 = vpop.f32.mrf.mxu0
      %v972 = vadd.f32 %v943, %v971
      %v973 = vpop.f32.mrf.mxu0
      %v974 = vadd.f32 %v945, %v973
      %975 = vmatmul.bf16.gmra.mxu0 %v500
      %v976 = vpop.f32.mrf.mxu0
      %v977 = vadd.f32 %v948, %v976
      %v978 = vpop.f32.mrf.mxu0
      %v979 = vadd.f32 %v950, %v978
      %980 = vdwg.mxu0
      %981 = vmatpush.bf16.msra.mxu0 %v818
      %982 = vmatpush.bf16.msra.mxu0 %v817
      %983 = vmatpush.bf16.msra.mxu0 %v816
      %984 = vmatpush.bf16.msra.mxu0 %v815
      %985 = vmatpush.bf16.msra.mxu0 %v814
      %986 = vmatpush.bf16.msra.mxu0 %v813
      %987 = vmatpush.bf16.msra.mxu0 %v812
      %988 = vmatpush.bf16.msra.mxu0 %v811
      %989 = vmatmul.bf16.gmra.mxu0 %v477
      %v990 = vpop.f32.mrf.mxu0
      %v991 = vadd.f32 %v962, %v990
      %v992 = vpop.f32.mrf.mxu0
      %v993 = vadd.f32 %v964, %v992
      %994 = vmatmul.bf16.gmra.mxu0 %v485
      %v995 = vpop.f32.mrf.mxu0
      %v996 = vadd.f32 %v967, %v995
      %v997 = vpop.f32.mrf.mxu0
      %v998 = vadd.f32 %v969, %v997
      %999 = vmatmul.bf16.gmra.mxu0 %v493
      %v1000 = vpop.f32.mrf.mxu0
      %v1001 = vadd.f32 %v972, %v1000
      %v1002 = vpop.f32.mrf.mxu0
      %v1003 = vadd.f32 %v974, %v1002
      %1004 = vmatmul.bf16.gmra.mxu0 %v501
      %v1005 = vpop.f32.mrf.mxu0
      %v1006 = vadd.f32 %v977, %v1005
      %v1007 = vpop.f32.mrf.mxu0
      %v1008 = vadd.f32 %v979, %v1007
      %1009 = vdwg.mxu0
      %1010 = vmatpush.bf16.msra.mxu0 %v826
      %1011 = vmatpush.bf16.msra.mxu0 %v825
      %1012 = vmatpush.bf16.msra.mxu0 %v824
      %1013 = vmatpush.bf16.msra.mxu0 %v823
      %1014 = vmatpush.bf16.msra.mxu0 %v822
      %1015 = vmatpush.bf16.msra.mxu0 %v821
      %1016 = vmatpush.bf16.msra.mxu0 %v820
      %1017 = vmatpush.bf16.msra.mxu0 %v819
      %1018 = vmatmul.bf16.gmra.mxu0 %v478
      %v1019 = vpop.f32.mrf.mxu0
      %v1020 = vadd.f32 %v991, %v1019
      %v1021 = vpop.f32.mrf.mxu0
      %v1022 = vadd.f32 %v993, %v1021
      %1023 = vmatmul.bf16.gmra.mxu0 %v486
      %v1024 = vpop.f32.mrf.mxu0
      %v1025 = vadd.f32 %v996, %v1024
      %v1026 = vpop.f32.mrf.mxu0
      %v1027 = vadd.f32 %v998, %v1026
      %1028 = vmatmul.bf16.gmra.mxu0 %v494
      %v1029 = vpop.f32.mrf.mxu0
      %v1030 = vadd.f32 %v1001, %v1029
      %v1031 = vpop.f32.mrf.mxu0
      %v1032 = vadd.f32 %v1003, %v1031
      %1033 = vmatmul.bf16.gmra.mxu0 %v502
      %v1034 = vpop.f32.mrf.mxu0
      %v1035 = vadd.f32 %v1006, %v1034
      %v1036 = vpop.f32.mrf.mxu0
      %v1037 = vadd.f32 %v1008, %v1036
      %1038 = vdwg.mxu0
      %1039 = vmatpush.bf16.msra.mxu0 %v834
      %1040 = vmatpush.bf16.msra.mxu0 %v833
      %1041 = vmatpush.bf16.msra.mxu0 %v832
      %1042 = vmatpush.bf16.msra.mxu0 %v831
      %1043 = vmatpush.bf16.msra.mxu0 %v830
      %1044 = vmatpush.bf16.msra.mxu0 %v829
      %1045 = vmatpush.bf16.msra.mxu0 %v828
      %1046 = vmatpush.bf16.msra.mxu0 %v827
      %1047 = vmatmul.bf16.gmra.mxu0 %v479
      %v1048 = vpop.f32.mrf.mxu0
      %v1049 = vadd.f32 %v1020, %v1048
      %v1050 = vpop.f32.mrf.mxu0
      %v1051 = vadd.f32 %v1022, %v1050
      %1052 = vmatmul.bf16.gmra.mxu0 %v487
      %v1053 = vpop.f32.mrf.mxu0
      %v1054 = vadd.f32 %v1025, %v1053
      %v1055 = vpop.f32.mrf.mxu0
      %v1056 = vadd.f32 %v1027, %v1055
      %1057 = vmatmul.bf16.gmra.mxu0 %v495
      %v1058 = vpop.f32.mrf.mxu0
      %v1059 = vadd.f32 %v1030, %v1058
      %v1060 = vpop.f32.mrf.mxu0
      %v1061 = vadd.f32 %v1032, %v1060
      %1062 = vmatmul.bf16.gmra.mxu0 %v503
      %v1063 = vpop.f32.mrf.mxu0
      %v1064 = vadd.f32 %v1035, %v1063
      %v1065 = vpop.f32.mrf.mxu0
      %v1066 = vadd.f32 %v1037, %v1065
      %1067 = vdwg.mxu0
      %1068 = vmatpush.bf16.msra.mxu0 %v842
      %1069 = vmatpush.bf16.msra.mxu0 %v841
      %1070 = vmatpush.bf16.msra.mxu0 %v840
      %1071 = vmatpush.bf16.msra.mxu0 %v839
      %1072 = vmatpush.bf16.msra.mxu0 %v838
      %1073 = vmatpush.bf16.msra.mxu0 %v837
      %1074 = vmatpush.bf16.msra.mxu0 %v836
      %1075 = vmatpush.bf16.msra.mxu0 %v835
      %1076 = vmatmul.bf16.gmra.mxu0 %v480
      %v1077 = vpop.f32.mrf.mxu0
      %v1078 = vadd.f32 %v1049, %v1077
      %v1079 = vpop.f32.mrf.mxu0
      %v1080 = vadd.f32 %v1051, %v1079
      %1081 = vmatmul.bf16.gmra.mxu0 %v488
      %v1082 = vpop.f32.mrf.mxu0
      %v1083 = vadd.f32 %v1054, %v1082
      %v1084 = vpop.f32.mrf.mxu0
      %v1085 = vadd.f32 %v1056, %v1084
      %1086 = vmatmul.bf16.gmra.mxu0 %v496
      %v1087 = vpop.f32.mrf.mxu0
      %v1088 = vadd.f32 %v1059, %v1087
      %v1089 = vpop.f32.mrf.mxu0
      %v1090 = vadd.f32 %v1061, %v1089
      %1091 = vmatmul.bf16.gmra.mxu0 %v504
      %v1092 = vpop.f32.mrf.mxu0
      %v1093 = vadd.f32 %v1064, %v1092
      %v1094 = vpop.f32.mrf.mxu0
      %v1095 = vadd.f32 %v1066, %v1094
      %1096 = vdwg.mxu0
      %1097 = vmatpush.bf16.msra.mxu0 %v850
      %1098 = vmatpush.bf16.msra.mxu0 %v849
      %1099 = vmatpush.bf16.msra.mxu0 %v848
      %1100 = vmatpush.bf16.msra.mxu0 %v847
      %1101 = vmatpush.bf16.msra.mxu0 %v846
      %1102 = vmatpush.bf16.msra.mxu0 %v845
      %1103 = vmatpush.bf16.msra.mxu0 %v844
      %1104 = vmatpush.bf16.msra.mxu0 %v843
      %1105 = vmatmul.bf16.gmra.mxu0 %v481
      %v1106 = vpop.f32.mrf.mxu0
      %v1107 = vadd.f32 %v1078, %v1106
      %v1108 = vpop.f32.mrf.mxu0
      %v1109 = vadd.f32 %v1080, %v1108
      %1110 = vmatmul.bf16.gmra.mxu0 %v489
      %v1111 = vpop.f32.mrf.mxu0
      %v1112 = vadd.f32 %v1083, %v1111
      %v1113 = vpop.f32.mrf.mxu0
      %v1114 = vadd.f32 %v1085, %v1113
      %1115 = vmatmul.bf16.gmra.mxu0 %v497
      %v1116 = vpop.f32.mrf.mxu0
      %v1117 = vadd.f32 %v1088, %v1116
      %v1118 = vpop.f32.mrf.mxu0
      %v1119 = vadd.f32 %v1090, %v1118
      %1120 = vmatmul.bf16.gmra.mxu0 %v505
      %v1121 = vpop.f32.mrf.mxu0
      %v1122 = vadd.f32 %v1093, %v1121
      %v1123 = vpop.f32.mrf.mxu0
      %v1124 = vadd.f32 %v1095, %v1123
      %1125 = vdwg.mxu0
      %1126 = vmatpush.bf16.msra.mxu0 %v858
      %1127 = vmatpush.bf16.msra.mxu0 %v857
      %1128 = vmatpush.bf16.msra.mxu0 %v856
      %1129 = vmatpush.bf16.msra.mxu0 %v855
      %1130 = vmatpush.bf16.msra.mxu0 %v854
      %1131 = vmatpush.bf16.msra.mxu0 %v853
      %1132 = vmatpush.bf16.msra.mxu0 %v852
      %1133 = vmatpush.bf16.msra.mxu0 %v851
      %1134 = vmatmul.bf16.gmra.mxu0 %v482
      %v1135 = vpop.f32.mrf.mxu0
      %v1136 = vadd.f32 %v1107, %v1135
      %v1137 = vpop.f32.mrf.mxu0
      %v1138 = vadd.f32 %v1109, %v1137
      %1139 = vmatmul.bf16.gmra.mxu0 %v490
      %v1140 = vpop.f32.mrf.mxu0
      %v1141 = vadd.f32 %v1112, %v1140
      %v1142 = vpop.f32.mrf.mxu0
      %v1143 = vadd.f32 %v1114, %v1142
      %1144 = vmatmul.bf16.gmra.mxu0 %v498
      %v1145 = vpop.f32.mrf.mxu0
      %v1146 = vadd.f32 %v1117, %v1145
      %v1147 = vpop.f32.mrf.mxu0
      %v1148 = vadd.f32 %v1119, %v1147
      %1149 = vmatmul.bf16.gmra.mxu0 %v506
      %v1150 = vpop.f32.mrf.mxu0
      %v1151 = vadd.f32 %v1122, %v1150
      %v1152 = vpop.f32.mrf.mxu0
      %v1153 = vadd.f32 %v1124, %v1152
      %1154 = vdwg.mxu0
      %vm1155 = vcmp.ge.f32.partialorder %v1136, 0.0
      %vm1156 = vcmp.ge.f32.partialorder %v1138, 0.0
      %vm1157 = vcmp.ge.f32.partialorder %v1141, 0.0
      %vm1158 = vcmp.ge.f32.partialorder %v1143, 0.0
      %vm1159 = vcmp.ge.f32.partialorder %v1146, 0.0
      %vm1160 = vcmp.ge.f32.partialorder %v1148, 0.0
      %vm1161 = vcmp.ge.f32.partialorder %v1151, 0.0
      %vm1162 = vcmp.ge.f32.partialorder %v1153, 0.0
      %v1163 = vmul.f32 %v1136, 0.2
      %v1164 = vmul.f32 %v1138, 0.2
      %v1165 = vmul.f32 %v1141, 0.2
      %v1166 = vmul.f32 %v1143, 0.2
      %v1167 = vmul.f32 %v1146, 0.2
      %v1168 = vmul.f32 %v1148, 0.2
      %v1169 = vmul.f32 %v1151, 0.2
      %v1170 = vmul.f32 %v1153, 0.2
      %v1171 = vsel %vm1155, %v1136, %v1163
      %v1172 = vsel %vm1156, %v1138, %v1164
      %v1173 = vsel %vm1157, %v1141, %v1165
      %v1174 = vsel %vm1158, %v1143, %v1166
      %v1175 = vsel %vm1159, %v1146, %v1167
      %v1176 = vsel %vm1160, %v1148, %v1168
      %v1177 = vsel %vm1161, %v1151, %v1169
      %v1178 = vsel %vm1162, %v1153, %v1170
      %1179 = vset.pattern.permute.xlu0 1
      %1180 = vperm.xlu0 %1179, %v331
      %v1181 = vpop.permute.xlu0 %1180
      %1183 = vset.pattern.permute.xlu0 1
      %1184 = vperm.xlu0 %1183, %v332
      %v1185 = vpop.permute.xlu0 %1184
      %1187 = vset.pattern.permute.xlu0 1
      %1188 = vperm.xlu0 %1187, %v333
      %v1189 = vpop.permute.xlu0 %1188
      %1191 = vset.pattern.permute.xlu0 1
      %1192 = vperm.xlu0 %1191, %v334
      %v1193 = vpop.permute.xlu0 %1192
      %1195 = vset.pattern.permute.xlu0 1
      %1196 = vperm.xlu0 %1195, %v335
      %v1197 = vpop.permute.xlu0 %1196
      %1199 = vset.pattern.permute.xlu0 1
      %1200 = vperm.xlu0 %1199, %v336
      %v1201 = vpop.permute.xlu0 %1200
      %1203 = vset.pattern.permute.xlu0 1
      %1204 = vperm.xlu0 %1203, %v337
      %v1205 = vpop.permute.xlu0 %1204
      %1207 = vset.pattern.permute.xlu0 1
      %1208 = vperm.xlu0 %1207, %v338
      %v1209 = vpop.permute.xlu0 %1208
      %v1211 = vmul.f32 %v1171, %v1181
      %v1212 = vmul.f32 %v1172, %v1185
      %v1213 = vmul.f32 %v1173, %v1189
      %v1214 = vmul.f32 %v1174, %v1193
      %v1215 = vmul.f32 %v1175, %v1197
      %v1216 = vmul.f32 %v1176, %v1201
      %v1217 = vmul.f32 %v1177, %v1205
      %v1218 = vmul.f32 %v1178, %v1209
      %1219 = vset.pattern.permute.xlu0 2
      %1220 = vperm.xlu0 %1219, %v331
      %v1221 = vpop.permute.xlu0 %1220
      %1223 = vset.pattern.permute.xlu0 2
      %1224 = vperm.xlu0 %1223, %v332
      %v1225 = vpop.permute.xlu0 %1224
      %1227 = vset.pattern.permute.xlu0 2
      %1228 = vperm.xlu0 %1227, %v333
      %v1229 = vpop.permute.xlu0 %1228
      %1231 = vset.pattern.permute.xlu0 2
      %1232 = vperm.xlu0 %1231, %v334
      %v1233 = vpop.permute.xlu0 %1232
      %1235 = vset.pattern.permute.xlu0 2
      %1236 = vperm.xlu0 %1235, %v335
      %v1237 = vpop.permute.xlu0 %1236
      %1239 = vset.pattern.permute.xlu0 2
      %1240 = vperm.xlu0 %1239, %v336
      %v1241 = vpop.permute.xlu0 %1240
      %1243 = vset.pattern.permute.xlu0 2
      %1244 = vperm.xlu0 %1243, %v337
      %v1245 = vpop.permute.xlu0 %1244
      %1247 = vset.pattern.permute.xlu0 2
      %1248 = vperm.xlu0 %1247, %v338
      %v1249 = vpop.permute.xlu0 %1248
      %v1251 = vadd.f32 %v1211, %v1221
      %v1252 = vadd.f32 %v1212, %v1225
      %v1253 = vadd.f32 %v1213, %v1229
      %v1254 = vadd.f32 %v1214, %v1233
      %v1255 = vadd.f32 %v1215, %v1237
      %v1256 = vadd.f32 %v1216, %v1241
      %v1257 = vadd.f32 %v1217, %v1245
      %v1258 = vadd.f32 %v1218, %v1249
      %v1259 = vpack.c.bf16 %v1251, %v1251
      %v1260 = vpack.c.bf16 %v1252, %v1252
      %v1261 = vpack.c.bf16 %v1253, %v1253
      %v1262 = vpack.c.bf16 %v1254, %v1254
      %v1263 = vpack.c.bf16 %v1255, %v1255
      %v1264 = vpack.c.bf16 %v1256, %v1256
      %v1265 = vpack.c.bf16 %v1257, %v1257
      %v1266 = vpack.c.bf16 %v1258, %v1258
      %vm1267 = vcmask 60416
      %1268 = vst.msk [vmem:[%s170] sm:$0xf] %vm1267, %v1259
      %1269 = vst.msk [vmem:[%s170 + $0x4] sm:$0xf] %vm1267, %v1260
      %1270 = vst.msk [vmem:[%s170 + $0x8] sm:$0xf] %vm1267, %v1261
      %1271 = vst.msk [vmem:[%s170 + $0xc] sm:$0xf] %vm1267, %v1262
      %1272 = vst.msk [vmem:[%s170 + $0x10] sm:$0xf] %vm1267, %v1263
      %1273 = vst.msk [vmem:[%s170 + $0x14] sm:$0xf] %vm1267, %v1264
      %1274 = vst.msk [vmem:[%s170 + $0x18] sm:$0xf] %vm1267, %v1265
      %1275 = vst.msk [vmem:[%s170 + $0x1c] sm:$0xf] %vm1267, %v1266
      %p1276 = scmp.lt.s32.totalorder %s14, 1
      %s1277 = scalar_select %p1276, %s14, 1
      %s1278 = smul.addr %s1277, 8
      %s1279 = smul.addr %s1278, 4
      %s1280 = scalar_lea.vmem %s3, %s1279
      // Predicated region
      $region33: #{cnn_surrogate_forward.12} parent=31 // pred_check
        %p1281 = pneg %p100
      $region34: #{cnn_surrogate_forward.12} parent=31 // pred_check_branch
        %1283 = sbr.rel (%p1281) target = $region36
      $region35: #{cnn_surrogate_forward.12} parent=31 // pred_region
        _
      $region36: #{cnn_surrogate_forward.12} parent=31 // pred_fallthru
        _
    $region32: #{cnn_surrogate_forward.12} parent=5 // pred_fallthru
      _
    %p1284 = scmp.le.s32.totalorder 2, %s9
    // Predicated region
    $region37: #{cnn_surrogate_forward.12} parent=5 // pred_check
      %p1285 = pneg %p1284
    $region38: #{cnn_surrogate_forward.12} parent=5 // pred_check_branch
      %1287 = sbr.rel (%p1285) target = $region40
    $region39: #{cnn_surrogate_forward.12} parent=5 // pred_region
      %s1288 = ssub.s32 %s9, 2
      // Predicated region
      $region41: #{cnn_surrogate_forward.12} parent=39 // pred_check
        %p1289 = pneg %p106
      $region42: #{cnn_surrogate_forward.12} parent=39 // pred_check_branch
        %1291 = sbr.rel (%p1289) target = $region44
      $region43: #{cnn_surrogate_forward.12} parent=39 // pred_region
        %p1292 = scmp.lt.s32.totalorder %s15, 1
        %s1293 = scalar_select %p1292, %s15, 1
        %s1294 = smul.addr %s1293, 8
        %s1295 = smul.addr %s1294, 4
        %s1296 = scalar_lea.vmem %s3, %s1295
      $region44: #{cnn_surrogate_forward.12} parent=39 // pred_fallthru
        _
    $region40: #{cnn_surrogate_forward.12} parent=5 // pred_fallthru
      _
  $region6: #{cnn_surrogate_forward.12} parent=0 // loop_footer
    %s13 = sadd.s32 1, %s9
  $region7: #{cnn_surrogate_forward.12} parent=0 // loop_footer_branch
    %8 = sbr.rel target = $region3
  $region8: #{cnn_surrogate_forward.12} parent=0 // loop_exit
    _

// kernel: cnn_surrogate_forward.13
$region0: #{cnn_surrogate_forward.13}
  #allocation0 [shape = 'u32[]', space=smem, size = 0x4, offset = 0x4, fixed_abs, tag = 'smem constant byte address 0x4 - core index']
  #allocation1 [shape = 'u32[72,128]{1,0:T(1,128)}', space=vmem, size = 0x9000, scoped, tag = 'internal scratch']
  %s0 = inlined_call_operand.vmem [shape: bf16[2,512], index: 0, kind: input, shape index: {}]
  %s1 = inlined_call_operand.vmem [shape: f32[512,512], index: 1, kind: input, shape index: {}]
  %s2 = inlined_call_operand.vmem [shape: f32[1,512], index: 2, kind: input, shape index: {}]
  %s3 = inlined_call_operand.vmem [shape: f32[512,423], index: 3, kind: input, shape index: {}]
  %s4 = inlined_call_operand.vmem [shape: f32[1,423], index: 4, kind: input, shape index: {}]
  %s5 = inlined_call_operand.hbm [shape: f32[2,423], index: 5, kind: output, shape index: {}]
  %s6 = sld [smem:[#allocation0]]
  $region30: #{cnn_surrogate_forward.13} parent=0
    _
  %s8 = ssub.s32 1, %s6
  %s9 = scalar_select 0, %s8, %s6
  $region1: #{cnn_surrogate_forward.13} parent=0
    #allocation2 [shape = 'u8[4096]{0}', space=vmem, size = 0x1000, scoped, tag = 'output window, operand 0, single buffered']
    #allocation3 [shape = 's32[1]{0}', space=sflag, size = 0x4, scoped, tag = 'scoped memory for cnn_surrogate_forward.13']
    %10 = vsyncpa [#allocation3], 0
    // Predicated region
    $region2: #{cnn_surrogate_forward.13} parent=1 // pred_check
      _
    $region3: #{cnn_surrogate_forward.13} parent=1 // pred_check_branch
      %12 = sbr.rel (0) target = $region5
    $region4: #{cnn_surrogate_forward.13} parent=1 // pred_region
      _
    $region5: #{cnn_surrogate_forward.13} parent=1 // pred_fallthru
      _
    // Predicated region
    $region6: #{cnn_surrogate_forward.13} parent=1 // pred_check
      _
    $region7: #{cnn_surrogate_forward.13} parent=1 // pred_check_branch
      %14 = sbr.rel (0) target = $region9
    $region8: #{cnn_surrogate_forward.13} parent=1 // pred_region
      _
    $region9: #{cnn_surrogate_forward.13} parent=1 // pred_fallthru
      _
    // Predicated region
    $region10: #{cnn_surrogate_forward.13} parent=1 // pred_check
      _
    $region11: #{cnn_surrogate_forward.13} parent=1 // pred_check_branch
      %16 = sbr.rel (0) target = $region13
    $region12: #{cnn_surrogate_forward.13} parent=1 // pred_region
      _
    $region13: #{cnn_surrogate_forward.13} parent=1 // pred_fallthru
      _
    // Predicated region
    $region14: #{cnn_surrogate_forward.13} parent=1 // pred_check
      _
    $region15: #{cnn_surrogate_forward.13} parent=1 // pred_check_branch
      %18 = sbr.rel (0) target = $region17
    $region16: #{cnn_surrogate_forward.13} parent=1 // pred_region
      _
    $region17: #{cnn_surrogate_forward.13} parent=1 // pred_fallthru
      _
    // Predicated region
    $region18: #{cnn_surrogate_forward.13} parent=1 // pred_check
      _
    $region19: #{cnn_surrogate_forward.13} parent=1 // pred_check_branch
      %20 = sbr.rel (0) target = $region21
    $region20: #{cnn_surrogate_forward.13} parent=1 // pred_region
      _
    $region21: #{cnn_surrogate_forward.13} parent=1 // pred_fallthru
      _
    %v21 = vld [vmem:[%s0] sm:$0xf]
    %v22 = vunpack.c.l.bf16 %v21
    %v23 = vld [vmem:[%s1] sm:$0xff]
    %v24 = vld [vmem:[%s1 + $0x8] sm:$0xff]
    %v25 = vld [vmem:[%s1 + $0x10] sm:$0xff]
    %v26 = vld [vmem:[%s1 + $0x18] sm:$0xff]
    %v27 = vld [vmem:[%s1 + $0x20] sm:$0xff]
    %v28 = vld [vmem:[%s1 + $0x28] sm:$0xff]
    %v29 = vld [vmem:[%s1 + $0x30] sm:$0xff]
    %v30 = vld [vmem:[%s1 + $0x38] sm:$0xff]
    %v31 = vld [vmem:[%s1 + $0x40] sm:$0xff]
    %v32 = vld [vmem:[%s1 + $0x48] sm:$0xff]
    %v33 = vld [vmem:[%s1 + $0x50] sm:$0xff]
    %v34 = vld [vmem:[%s1 + $0x58] sm:$0xff]
    %v35 = vld [vmem:[%s1 + $0x60] sm:$0xff]
    %v36 = vld [vmem:[%s1 + $0x68] sm:$0xff]
    %v37 = vld [vmem:[%s1 + $0x70] sm:$0xff]
    %v38 = vld [vmem:[%s1 + $0x78] sm:$0xff]
    %v39 = vld [vmem:[%s1 + $0x80] sm:$0xff]
    %v40 = vld [vmem:[%s1 + $0x88] sm:$0xff]
    %v41 = vld [vmem:[%s1 + $0x90] sm:$0xff]
    %v42 = vld [vmem:[%s1 + $0x98] sm:$0xff]
    %v43 = vld [vmem:[%s1 + $0xa0] sm:$0xff]
    %v44 = vld [vmem:[%s1 + $0xa8] sm:$0xff]
    %v45 = vld [vmem:[%s1 + $0xb0] sm:$0xff]
    %v46 = vld [vmem:[%s1 + $0xb8] sm:$0xff]
    %v47 = vld [vmem:[%s1 + $0xc0] sm:$0xff]
    %v48 = vld [vmem:[%s1 + $0xc8] sm:$0xff]
    %v49 = vld [vmem:[%s1 + $0xd0] sm:$0xff]
    %v50 = vld [vmem:[%s1 + $0xd8] sm:$0xff]
    %v51 = vld [vmem:[%s1 + $0xe0] sm:$0xff]
    %v52 = vld [vmem:[%s1 + $0xe8] sm:$0xff]
    %v53 = vld [vmem:[%s1 + $0xf0] sm:$0xff]
    %v54 = vld [vmem:[%s1 + $0xf8] sm:$0xff]
    %v55 = vld [vmem:[%s1 + $0x100] sm:$0xff]
    %v56 = vld [vmem:[%s1 + $0x108] sm:$0xff]
    %v57 = vld [vmem:[%s1 + $0x110] sm:$0xff]
    %v58 = vld [vmem:[%s1 + $0x118] sm:$0xff]
    %v59 = vld [vmem:[%s1 + $0x120] sm:$0xff]
    %v60 = vld [vmem:[%s1 + $0x128] sm:$0xff]
    %v61 = vld [vmem:[%s1 + $0x130] sm:$0xff]
    %v62 = vld [vmem:[%s1 + $0x138] sm:$0xff]
    %v63 = vld [vmem:[%s1 + $0x140] sm:$0xff]
    %v64 = vld [vmem:[%s1 + $0x148] sm:$0xff]
    %v65 = vld [vmem:[%s1 + $0x150] sm:$0xff]
    %v66 = vld [vmem:[%s1 + $0x158] sm:$0xff]
    %v67 = vld [vmem:[%s1 + $0x160] sm:$0xff]
    %v68 = vld [vmem:[%s1 + $0x168] sm:$0xff]
    %v69 = vld [vmem:[%s1 + $0x170] sm:$0xff]
    %v70 = vld [vmem:[%s1 + $0x178] sm:$0xff]
    %v71 = vld [vmem:[%s1 + $0x180] sm:$0xff]
    %v72 = vld [vmem:[%s1 + $0x188] sm:$0xff]
    %v73 = vld [vmem:[%s1 + $0x190] sm:$0xff]
    %v74 = vld [vmem:[%s1 + $0x198] sm:$0xff]
    %v75 = vld [vmem:[%s1 + $0x1a0] sm:$0xff]
    %v76 = vld [vmem:[%s1 + $0x1a8] sm:$0xff]
    %v77 = vld [vmem:[%s1 + $0x1b0] sm:$0xff]
    %v78 = vld [vmem:[%s1 + $0x1b8] sm:$0xff]
    %v79 = vld [vmem:[%s1 + $0x1c0] sm:$0xff]
    %v80 = vld [vmem:[%s1 + $0x1c8] sm:$0xff]
    %v81 = vld [vmem:[%s1 + $0x1d0] sm:$0xff]
    %v82 = vld [vmem:[%s1 + $0x1d8] sm:$0xff]
    %v83 = vld [vmem:[%s1 + $0x1e0] sm:$0xff]
    %v84 = vld [vmem:[%s1 + $0x1e8] sm:$0xff]
    %v85 = vld [vmem:[%s1 + $0x1f0] sm:$0xff]
    %v86 = vld [vmem:[%s1 + $0x1f8] sm:$0xff]
    %v87 = vld [vmem:[%s1 + $0x200] sm:$0xff]
    %v88 = vld [vmem:[%s1 + $0x208] sm:$0xff]
    %v89 = vld [vmem:[%s1 + $0x210] sm:$0xff]
    %v90 = vld [vmem:[%s1 + $0x218] sm:$0xff]
    %v91 = vld [vmem:[%s1 + $0x220] sm:$0xff]
    %v92 = vld [vmem:[%s1 + $0x228] sm:$0xff]
    %v93 = vld [vmem:[%s1 + $0x230] sm:$0xff]
    %v94 = vld [vmem:[%s1 + $0x238] sm:$0xff]
    %v95 = vld [vmem:[%s1 + $0x240] sm:$0xff]
    %v96 = vld [vmem:[%s1 + $0x248] sm:$0xff]
    %v97 = vld [vmem:[%s1 + $0x250] sm:$0xff]
    %v98 = vld [vmem:[%s1 + $0x258] sm:$0xff]
    %v99 = vld [vmem:[%s1 + $0x260] sm:$0xff]
    %v100 = vld [vmem:[%s1 + $0x268] sm:$0xff]
    %v101 = vld [vmem:[%s1 + $0x270] sm:$0xff]
    %v102 = vld [vmem:[%s1 + $0x278] sm:$0xff]
    %v103 = vld [vmem:[%s1 + $0x280] sm:$0xff]
    %v104 = vld [vmem:[%s1 + $0x288] sm:$0xff]
    %v105 = vld [vmem:[%s1 + $0x290] sm:$0xff]
    %v106 = vld [vmem:[%s1 + $0x298] sm:$0xff]
    %v107 = vld [vmem:[%s1 + $0x2a0] sm:$0xff]
    %v108 = vld [vmem:[%s1 + $0x2a8] sm:$0xff]
    %v109 = vld [vmem:[%s1 + $0x2b0] sm:$0xff]
    %v110 = vld [vmem:[%s1 + $0x2b8] sm:$0xff]
    %v111 = vld [vmem:[%s1 + $0x2c0] sm:$0xff]
    %v112 = vld [vmem:[%s1 + $0x2c8] sm:$0xff]
    %v113 = vld [vmem:[%s1 + $0x2d0] sm:$0xff]
    %v114 = vld [vmem:[%s1 + $0x2d8] sm:$0xff]
    %v115 = vld [vmem:[%s1 + $0x2e0] sm:$0xff]
    %v116 = vld [vmem:[%s1 + $0x2e8] sm:$0xff]
    %v117 = vld [vmem:[%s1 + $0x2f0] sm:$0xff]
    %v118 = vld [vmem:[%s1 + $0x2f8] sm:$0xff]
    %v119 = vld [vmem:[%s1 + $0x300] sm:$0xff]
    %v120 = vld [vmem:[%s1 + $0x308] sm:$0xff]
    %v121 = vld [vmem:[%s1 + $0x310] sm:$0xff]
    %v122 = vld [vmem:[%s1 + $0x318] sm:$0xff]
    %v123 = vld [vmem:[%s1 + $0x320] sm:$0xff]
    %v124 = vld [vmem:[%s1 + $0x328] sm:$0xff]
    %v125 = vld [vmem:[%s1 + $0x330] sm:$0xff]
    %v126 = vld [vmem:[%s1 + $0x338] sm:$0xff]
    %v127 = vld [vmem:[%s1 + $0x340] sm:$0xff]
    %v128 = vld [vmem:[%s1 + $0x348] sm:$0xff]
    %v129 = vld [vmem:[%s1 + $0x350] sm:$0xff]
    %v130 = vld [vmem:[%s1 + $0x358] sm:$0xff]
    %v131 = vld [vmem:[%s1 + $0x360] sm:$0xff]
    %v132 = vld [vmem:[%s1 + $0x368] sm:$0xff]
    %v133 = vld [vmem:[%s1 + $0x370] sm:$0xff]
    %v134 = vld [vmem:[%s1 + $0x378] sm:$0xff]
    %v135 = vld [vmem:[%s1 + $0x380] sm:$0xff]
    %v136 = vld [vmem:[%s1 + $0x388] sm:$0xff]
    %v137 = vld [vmem:[%s1 + $0x390] sm:$0xff]
    %v138 = vld [vmem:[%s1 + $0x398] sm:$0xff]
    %v139 = vld [vmem:[%s1 + $0x3a0] sm:$0xff]
    %v140 = vld [vmem:[%s1 + $0x3a8] sm:$0xff]
    %v141 = vld [vmem:[%s1 + $0x3b0] sm:$0xff]
    %v142 = vld [vmem:[%s1 + $0x3b8] sm:$0xff]
    %v143 = vld [vmem:[%s1 + $0x3c0] sm:$0xff]
    %v144 = vld [vmem:[%s1 + $0x3c8] sm:$0xff]
    %v145 = vld [vmem:[%s1 + $0x3d0] sm:$0xff]
    %v146 = vld [vmem:[%s1 + $0x3d8] sm:$0xff]
    %v147 = vld [vmem:[%s1 + $0x3e0] sm:$0xff]
    %v148 = vld [vmem:[%s1 + $0x3e8] sm:$0xff]
    %v149 = vld [vmem:[%s1 + $0x3f0] sm:$0xff]
    %v150 = vld [vmem:[%s1 + $0x3f8] sm:$0xff]
    %v151 = vld [vmem:[%s1 + $0x400] sm:$0xff]
    %v152 = vld [vmem:[%s1 + $0x408] sm:$0xff]
    %v153 = vld [vmem:[%s1 + $0x410] sm:$0xff]
    %v154 = vld [vmem:[%s1 + $0x418] sm:$0xff]
    %v155 = vld [vmem:[%s1 + $0x420] sm:$0xff]
    %v156 = vld [vmem:[%s1 + $0x428] sm:$0xff]
    %v157 = vld [vmem:[%s1 + $0x430] sm:$0xff]
    %v158 = vld [vmem:[%s1 + $0x438] sm:$0xff]
    %v159 = vld [vmem:[%s1 + $0x440] sm:$0xff]
    %v160 = vld [vmem:[%s1 + $0x448] sm:$0xff]
    %v161 = vld [vmem:[%s1 + $0x450] sm:$0xff]
    %v162 = vld [vmem:[%s1 + $0x458] sm:$0xff]
    %v163 = vld [vmem:[%s1 + $0x460] sm:$0xff]
    %v164 = vld [vmem:[%s1 + $0x468] sm:$0xff]
    %v165 = vld [vmem:[%s1 + $0x470] sm:$0xff]
    %v166 = vld [vmem:[%s1 + $0x478] sm:$0xff]
    %v167 = vld [vmem:[%s1 + $0x480] sm:$0xff]
    %v168 = vld [vmem:[%s1 + $0x488] sm:$0xff]
    %v169 = vld [vmem:[%s1 + $0x490] sm:$0xff]
    %v170 = vld [vmem:[%s1 + $0x498] sm:$0xff]
    %v171 = vld [vmem:[%s1 + $0x4a0] sm:$0xff]
    %v172 = vld [vmem:[%s1 + $0x4a8] sm:$0xff]
    %v173 = vld [vmem:[%s1 + $0x4b0] sm:$0xff]
    %v174 = vld [vmem:[%s1 + $0x4b8] sm:$0xff]
    %v175 = vld [vmem:[%s1 + $0x4c0] sm:$0xff]
    %v176 = vld [vmem:[%s1 + $0x4c8] sm:$0xff]
    %v177 = vld [vmem:[%s1 + $0x4d0] sm:$0xff]
    %v178 = vld [vmem:[%s1 + $0x4d8] sm:$0xff]
    %v179 = vld [vmem:[%s1 + $0x4e0] sm:$0xff]
    %v180 = vld [vmem:[%s1 + $0x4e8] sm:$0xff]
    %v181 = vld [vmem:[%s1 + $0x4f0] sm:$0xff]
    %v182 = vld [vmem:[%s1 + $0x4f8] sm:$0xff]
    %v183 = vld [vmem:[%s1 + $0x500] sm:$0xff]
    %v184 = vld [vmem:[%s1 + $0x508] sm:$0xff]
    %v185 = vld [vmem:[%s1 + $0x510] sm:$0xff]
    %v186 = vld [vmem:[%s1 + $0x518] sm:$0xff]
    %v187 = vld [vmem:[%s1 + $0x520] sm:$0xff]
    %v188 = vld [vmem:[%s1 + $0x528] sm:$0xff]
    %v189 = vld [vmem:[%s1 + $0x530] sm:$0xff]
    %v190 = vld [vmem:[%s1 + $0x538] sm:$0xff]
    %v191 = vld [vmem:[%s1 + $0x540] sm:$0xff]
    %v192 = vld [vmem:[%s1 + $0x548] sm:$0xff]
    %v193 = vld [vmem:[%s1 + $0x550] sm:$0xff]
    %v194 = vld [vmem:[%s1 + $0x558] sm:$0xff]
    %v195 = vld [vmem:[%s1 + $0x560] sm:$0xff]
    %v196 = vld [vmem:[%s1 + $0x568] sm:$0xff]
    %v197 = vld [vmem:[%s1 + $0x570] sm:$0xff]
    %v198 = vld [vmem:[%s1 + $0x578] sm:$0xff]
    %v199 = vld [vmem:[%s1 + $0x580] sm:$0xff]
    %v200 = vld [vmem:[%s1 + $0x588] sm:$0xff]
    %v201 = vld [vmem:[%s1 + $0x590] sm:$0xff]
    %v202 = vld [vmem:[%s1 + $0x598] sm:$0xff]
    %v203 = vld [vmem:[%s1 + $0x5a0] sm:$0xff]
    %v204 = vld [vmem:[%s1 + $0x5a8] sm:$0xff]
    %v205 = vld [vmem:[%s1 + $0x5b0] sm:$0xff]
    %v206 = vld [vmem:[%s1 + $0x5b8] sm:$0xff]
    %v207 = vld [vmem:[%s1 + $0x5c0] sm:$0xff]
    %v208 = vld [vmem:[%s1 + $0x5c8] sm:$0xff]
    %v209 = vld [vmem:[%s1 + $0x5d0] sm:$0xff]
    %v210 = vld [vmem:[%s1 + $0x5d8] sm:$0xff]
    %v211 = vld [vmem:[%s1 + $0x5e0] sm:$0xff]
    %v212 = vld [vmem:[%s1 + $0x5e8] sm:$0xff]
    %v213 = vld [vmem:[%s1 + $0x5f0] sm:$0xff]
    %v214 = vld [vmem:[%s1 + $0x5f8] sm:$0xff]
    %v215 = vld [vmem:[%s1 + $0x600] sm:$0xff]
    %v216 = vld [vmem:[%s1 + $0x608] sm:$0xff]
    %v217 = vld [vmem:[%s1 + $0x610] sm:$0xff]
    %v218 = vld [vmem:[%s1 + $0x618] sm:$0xff]
    %v219 = vld [vmem:[%s1 + $0x620] sm:$0xff]
    %v220 = vld [vmem:[%s1 + $0x628] sm:$0xff]
    %v221 = vld [vmem:[%s1 + $0x630] sm:$0xff]
    %v222 = vld [vmem:[%s1 + $0x638] sm:$0xff]
    %v223 = vld [vmem:[%s1 + $0x640] sm:$0xff]
    %v224 = vld [vmem:[%s1 + $0x648] sm:$0xff]
    %v225 = vld [vmem:[%s1 + $0x650] sm:$0xff]
    %v226 = vld [vmem:[%s1 + $0x658] sm:$0xff]
    %v227 = vld [vmem:[%s1 + $0x660] sm:$0xff]
    %v228 = vld [vmem:[%s1 + $0x668] sm:$0xff]
    %v229 = vld [vmem:[%s1 + $0x670] sm:$0xff]
    %v230 = vld [vmem:[%s1 + $0x678] sm:$0xff]
    %v231 = vld [vmem:[%s1 + $0x680] sm:$0xff]
    %v232 = vld [vmem:[%s1 + $0x688] sm:$0xff]
    %v233 = vld [vmem:[%s1 + $0x690] sm:$0xff]
    %v234 = vld [vmem:[%s1 + $0x698] sm:$0xff]
    %v235 = vld [vmem:[%s1 + $0x6a0] sm:$0xff]
    %v236 = vld [vmem:[%s1 + $0x6a8] sm:$0xff]
    %v237 = vld [vmem:[%s1 + $0x6b0] sm:$0xff]
    %v238 = vld [vmem:[%s1 + $0x6b8] sm:$0xff]
    %v239 = vld [vmem:[%s1 + $0x6c0] sm:$0xff]
    %v240 = vld [vmem:[%s1 + $0x6c8] sm:$0xff]
    %v241 = vld [vmem:[%s1 + $0x6d0] sm:$0xff]
    %v242 = vld [vmem:[%s1 + $0x6d8] sm:$0xff]
    %v243 = vld [vmem:[%s1 + $0x6e0] sm:$0xff]
    %v244 = vld [vmem:[%s1 + $0x6e8] sm:$0xff]
    %v245 = vld [vmem:[%s1 + $0x6f0] sm:$0xff]
    %v246 = vld [vmem:[%s1 + $0x6f8] sm:$0xff]
    %v247 = vld [vmem:[%s1 + $0x700] sm:$0xff]
    %v248 = vld [vmem:[%s1 + $0x708] sm:$0xff]
    %v249 = vld [vmem:[%s1 + $0x710] sm:$0xff]
    %v250 = vld [vmem:[%s1 + $0x718] sm:$0xff]
    %v251 = vld [vmem:[%s1 + $0x720] sm:$0xff]
    %v252 = vld [vmem:[%s1 + $0x728] sm:$0xff]
    %v253 = vld [vmem:[%s1 + $0x730] sm:$0xff]
    %v254 = vld [vmem:[%s1 + $0x738] sm:$0xff]
    %v255 = vld [vmem:[%s1 + $0x740] sm:$0xff]
    %v256 = vld [vmem:[%s1 + $0x748] sm:$0xff]
    %v257 = vld [vmem:[%s1 + $0x750] sm:$0xff]
    %v258 = vld [vmem:[%s1 + $0x758] sm:$0xff]
    %v259 = vld [vmem:[%s1 + $0x760] sm:$0xff]
    %v260 = vld [vmem:[%s1 + $0x768] sm:$0xff]
    %v261 = vld [vmem:[%s1 + $0x770] sm:$0xff]
    %v262 = vld [vmem:[%s1 + $0x778] sm:$0xff]
    %v263 = vld [vmem:[%s1 + $0x780] sm:$0xff]
    %v264 = vld [vmem:[%s1 + $0x788] sm:$0xff]
    %v265 = vld [vmem:[%s1 + $0x790] sm:$0xff]
    %v266 = vld [vmem:[%s1 + $0x798] sm:$0xff]
    %v267 = vld [vmem:[%s1 + $0x7a0] sm:$0xff]
    %v268 = vld [vmem:[%s1 + $0x7a8] sm:$0xff]
    %v269 = vld [vmem:[%s1 + $0x7b0] sm:$0xff]
    %v270 = vld [vmem:[%s1 + $0x7b8] sm:$0xff]
    %v271 = vld [vmem:[%s1 + $0x7c0] sm:$0xff]
    %v272 = vld [vmem:[%s1 + $0x7c8] sm:$0xff]
    %v273 = vld [vmem:[%s1 + $0x7d0] sm:$0xff]
    %v274 = vld [vmem:[%s1 + $0x7d8] sm:$0xff]
    %v275 = vld [vmem:[%s1 + $0x7e0] sm:$0xff]
    %v276 = vld [vmem:[%s1 + $0x7e8] sm:$0xff]
    %v277 = vld [vmem:[%s1 + $0x7f0] sm:$0xff]
    %v278 = vld [vmem:[%s1 + $0x7f8] sm:$0xff]
    %v279 = vld [vmem:[%s2] sm:$0xf]
    %v281 = vperm.slane %v279, 0
    %v282 = vperm.slane %v279, 1
    %v283 = vperm.slane %v279, 2
    %v284 = vperm.slane %v279, 3
    %290 = vst [vmem:[#allocation1] ss:$4 sm:$0xff] %v22
    %v291 = vld.sshfl [vmem:[#allocation1] sm:$0xff pattern:$0x73625140]
    %v292 = vld.sshfl [vmem:[#allocation1 + $0x8] sm:$0xff pattern:$0x73625140]
    %v293 = vld.sshfl [vmem:[#allocation1 + $0x10] sm:$0xff pattern:$0x73625140]
    %v294 = vld.sshfl [vmem:[#allocation1 + $0x18] sm:$0xff pattern:$0x73625140]
    %299 = vmatpush.msra.mxu0 %v83
    %300 = vmatpush.msra.mxu0 %v79
    %301 = vmatpush.msra.mxu0 %v75
    %302 = vmatpush.msra.mxu0 %v71
    %303 = vmatpush.msra.mxu0 %v67
    %304 = vmatpush.msra.mxu0 %v63
    %305 = vmatpush.msra.mxu0 %v59
    %306 = vmatpush.msra.mxu0 %v55
    %307 = vmatpush.msra.mxu0 %v51
    %308 = vmatpush.msra.mxu0 %v47
    %309 = vmatpush.msra.mxu0 %v43
    %310 = vmatpush.msra.mxu0 %v39
    %311 = vmatpush.msra.mxu0 %v35
    %312 = vmatpush.msra.mxu0 %v31
    %313 = vmatpush.msra.mxu0 %v27
    %314 = vmatpush.msra.mxu0 %v23
    %315 = vmatmul.f32.gmra.mxu0 %v291
    %v316 = vpop.f32.mrf.mxu0
    %v317 = vadd.f32 %v281, %v316
    %318 = vdwg.mxu0
    %319 = vmatpush.msra.mxu0 %v147
    %320 = vmatpush.msra.mxu0 %v143
    %321 = vmatpush.msra.mxu0 %v139
    %322 = vmatpush.msra.mxu0 %v135
    %323 = vmatpush.msra.mxu0 %v131
    %324 = vmatpush.msra.mxu0 %v127
    %325 = vmatpush.msra.mxu0 %v123
    %326 = vmatpush.msra.mxu0 %v119
    %327 = vmatpush.msra.mxu0 %v115
    %328 = vmatpush.msra.mxu0 %v111
    %329 = vmatpush.msra.mxu0 %v107
    %330 = vmatpush.msra.mxu0 %v103
    %331 = vmatpush.msra.mxu0 %v99
    %332 = vmatpush.msra.mxu0 %v95
    %333 = vmatpush.msra.mxu0 %v91
    %334 = vmatpush.msra.mxu0 %v87
    %335 = vmatmul.f32.gmra.mxu0 %v292
    %v336 = vpop.f32.mrf.mxu0
    %v337 = vadd.f32 %v317, %v336
    %338 = vdwg.mxu0
    %339 = vmatpush.msra.mxu0 %v211
    %340 = vmatpush.msra.mxu0 %v207
    %341 = vmatpush.msra.mxu0 %v203
    %342 = vmatpush.msra.mxu0 %v199
    %343 = vmatpush.msra.mxu0 %v195
    %344 = vmatpush.msra.mxu0 %v191
    %345 = vmatpush.msra.mxu0 %v187
    %346 = vmatpush.msra.mxu0 %v183
    %347 = vmatpush.msra.mxu0 %v179
    %348 = vmatpush.msra.mxu0 %v175
    %349 = vmatpush.msra.mxu0 %v171
    %350 = vmatpush.msra.mxu0 %v167
    %351 = vmatpush.msra.mxu0 %v163
    %352 = vmatpush.msra.mxu0 %v159
    %353 = vmatpush.msra.mxu0 %v155
    %354 = vmatpush.msra.mxu0 %v151
    %355 = vmatmul.f32.gmra.mxu0 %v293
    %v356 = vpop.f32.mrf.mxu0
    %v357 = vadd.f32 %v337, %v356
    %358 = vdwg.mxu0
    %359 = vmatpush.msra.mxu0 %v275
    %360 = vmatpush.msra.mxu0 %v271
    %361 = vmatpush.msra.mxu0 %v267
    %362 = vmatpush.msra.mxu0 %v263
    %363 = vmatpush.msra.mxu0 %v259
    %364 = vmatpush.msra.mxu0 %v255
    %365 = vmatpush.msra.mxu0 %v251
    %366 = vmatpush.msra.mxu0 %v247
    %367 = vmatpush.msra.mxu0 %v243
    %368 = vmatpush.msra.mxu0 %v239
    %369 = vmatpush.msra.mxu0 %v235
    %370 = vmatpush.msra.mxu0 %v231
    %371 = vmatpush.msra.mxu0 %v227
    %372 = vmatpush.msra.mxu0 %v223
    %373 = vmatpush.msra.mxu0 %v219
    %374 = vmatpush.msra.mxu0 %v215
    %375 = vmatmul.f32.gmra.mxu0 %v294
    %v376 = vpop.f32.mrf.mxu0
    %v377 = vadd.f32 %v357, %v376
    %378 = vdwg.mxu0
    %379 = vmatpush.msra.mxu0 %v84
    %380 = vmatpush.msra.mxu0 %v80
    %381 = vmatpush.msra.mxu0 %v76
    %382 = vmatpush.msra.mxu0 %v72
    %383 = vmatpush.msra.mxu0 %v68
    %384 = vmatpush.msra.mxu0 %v64
    %385 = vmatpush.msra.mxu0 %v60
    %386 = vmatpush.msra.mxu0 %v56
    %387 = vmatpush.msra.mxu0 %v52
    %388 = vmatpush.msra.mxu0 %v48
    %389 = vmatpush.msra.mxu0 %v44
    %390 = vmatpush.msra.mxu0 %v40
    %391 = vmatpush.msra.mxu0 %v36
    %392 = vmatpush.msra.mxu0 %v32
    %393 = vmatpush.msra.mxu0 %v28
    %394 = vmatpush.msra.mxu0 %v24
    %395 = vmatmul.f32.gmra.mxu0 %v291
    %v396 = vpop.f32.mrf.mxu0
    %v397 = vadd.f32 %v282, %v396
    %398 = vdwg.mxu0
    %399 = vmatpush.msra.mxu0 %v148
    %400 = vmatpush.msra.mxu0 %v144
    %401 = vmatpush.msra.mxu0 %v140
    %402 = vmatpush.msra.mxu0 %v136
    %403 = vmatpush.msra.mxu0 %v132
    %404 = vmatpush.msra.mxu0 %v128
    %405 = vmatpush.msra.mxu0 %v124
    %406 = vmatpush.msra.mxu0 %v120
    %407 = vmatpush.msra.mxu0 %v116
    %408 = vmatpush.msra.mxu0 %v112
    %409 = vmatpush.msra.mxu0 %v108
    %410 = vmatpush.msra.mxu0 %v104
    %411 = vmatpush.msra.mxu0 %v100
    %412 = vmatpush.msra.mxu0 %v96
    %413 = vmatpush.msra.mxu0 %v92
    %414 = vmatpush.msra.mxu0 %v88
    %415 = vmatmul.f32.gmra.mxu0 %v292
    %v416 = vpop.f32.mrf.mxu0
    %v417 = vadd.f32 %v397, %v416
    %418 = vdwg.mxu0
    %419 = vmatpush.msra.mxu0 %v212
    %420 = vmatpush.msra.mxu0 %v208
    %421 = vmatpush.msra.mxu0 %v204
    %422 = vmatpush.msra.mxu0 %v200
    %423 = vmatpush.msra.mxu0 %v196
    %424 = vmatpush.msra.mxu0 %v192
    %425 = vmatpush.msra.mxu0 %v188
    %426 = vmatpush.msra.mxu0 %v184
    %427 = vmatpush.msra.mxu0 %v180
    %428 = vmatpush.msra.mxu0 %v176
    %429 = vmatpush.msra.mxu0 %v172
    %430 = vmatpush.msra.mxu0 %v168
    %431 = vmatpush.msra.mxu0 %v164
    %432 = vmatpush.msra.mxu0 %v160
    %433 = vmatpush.msra.mxu0 %v156
    %434 = vmatpush.msra.mxu0 %v152
    %435 = vmatmul.f32.gmra.mxu0 %v293
    %v436 = vpop.f32.mrf.mxu0
    %v437 = vadd.f32 %v417, %v436
    %438 = vdwg.mxu0
    %439 = vmatpush.msra.mxu0 %v276
    %440 = vmatpush.msra.mxu0 %v272
    %441 = vmatpush.msra.mxu0 %v268
    %442 = vmatpush.msra.mxu0 %v264
    %443 = vmatpush.msra.mxu0 %v260
    %444 = vmatpush.msra.mxu0 %v256
    %445 = vmatpush.msra.mxu0 %v252
    %446 = vmatpush.msra.mxu0 %v248
    %447 = vmatpush.msra.mxu0 %v244
    %448 = vmatpush.msra.mxu0 %v240
    %449 = vmatpush.msra.mxu0 %v236
    %450 = vmatpush.msra.mxu0 %v232
    %451 = vmatpush.msra.mxu0 %v228
    %452 = vmatpush.msra.mxu0 %v224
    %453 = vmatpush.msra.mxu0 %v220
    %454 = vmatpush.msra.mxu0 %v216
    %455 = vmatmul.f32.gmra.mxu0 %v294
    %v456 = vpop.f32.mrf.mxu0
    %v457 = vadd.f32 %v437, %v456
    %458 = vdwg.mxu0
    %459 = vmatpush.msra.mxu0 %v85
    %460 = vmatpush.msra.mxu0 %v81
    %461 = vmatpush.msra.mxu0 %v77
    %462 = vmatpush.msra.mxu0 %v73
    %463 = vmatpush.msra.mxu0 %v69
    %464 = vmatpush.msra.mxu0 %v65
    %465 = vmatpush.msra.mxu0 %v61
    %466 = vmatpush.msra.mxu0 %v57
    %467 = vmatpush.msra.mxu0 %v53
    %468 = vmatpush.msra.mxu0 %v49
    %469 = vmatpush.msra.mxu0 %v45
    %470 = vmatpush.msra.mxu0 %v41
    %471 = vmatpush.msra.mxu0 %v37
    %472 = vmatpush.msra.mxu0 %v33
    %473 = vmatpush.msra.mxu0 %v29
    %474 = vmatpush.msra.mxu0 %v25
    %475 = vmatmul.f32.gmra.mxu0 %v291
    %v476 = vpop.f32.mrf.mxu0
    %v477 = vadd.f32 %v283, %v476
    %478 = vdwg.mxu0
    %479 = vmatpush.msra.mxu0 %v149
    %480 = vmatpush.msra.mxu0 %v145
    %481 = vmatpush.msra.mxu0 %v141
    %482 = vmatpush.msra.mxu0 %v137
    %483 = vmatpush.msra.mxu0 %v133
    %484 = vmatpush.msra.mxu0 %v129
    %485 = vmatpush.msra.mxu0 %v125
    %486 = vmatpush.msra.mxu0 %v121
    %487 = vmatpush.msra.mxu0 %v117
    %488 = vmatpush.msra.mxu0 %v113
    %489 = vmatpush.msra.mxu0 %v109
    %490 = vmatpush.msra.mxu0 %v105
    %491 = vmatpush.msra.mxu0 %v101
    %492 = vmatpush.msra.mxu0 %v97
    %493 = vmatpush.msra.mxu0 %v93
    %494 = vmatpush.msra.mxu0 %v89
    %495 = vmatmul.f32.gmra.mxu0 %v292
    %v496 = vpop.f32.mrf.mxu0
    %v497 = vadd.f32 %v477, %v496
    %498 = vdwg.mxu0
    %499 = vmatpush.msra.mxu0 %v213
    %500 = vmatpush.msra.mxu0 %v209
    %501 = vmatpush.msra.mxu0 %v205
    %502 = vmatpush.msra.mxu0 %v201
    %503 = vmatpush.msra.mxu0 %v197
    %504 = vmatpush.msra.mxu0 %v193
    %505 = vmatpush.msra.mxu0 %v189
    %506 = vmatpush.msra.mxu0 %v185
    %507 = vmatpush.msra.mxu0 %v181
    %508 = vmatpush.msra.mxu0 %v177
    %509 = vmatpush.msra.mxu0 %v173
    %510 = vmatpush.msra.mxu0 %v169
    %511 = vmatpush.msra.mxu0 %v165
    %512 = vmatpush.msra.mxu0 %v161
    %513 = vmatpush.msra.mxu0 %v157
    %514 = vmatpush.msra.mxu0 %v153
    %515 = vmatmul.f32.gmra.mxu0 %v293
    %v516 = vpop.f32.mrf.mxu0
    %v517 = vadd.f32 %v497, %v516
    %518 = vdwg.mxu0
    %519 = vmatpush.msra.mxu0 %v277
    %520 = vmatpush.msra.mxu0 %v273
    %521 = vmatpush.msra.mxu0 %v269
    %522 = vmatpush.msra.mxu0 %v265
    %523 = vmatpush.msra.mxu0 %v261
    %524 = vmatpush.msra.mxu0 %v257
    %525 = vmatpush.msra.mxu0 %v253
    %526 = vmatpush.msra.mxu0 %v249
    %527 = vmatpush.msra.mxu0 %v245
    %528 = vmatpush.msra.mxu0 %v241
    %529 = vmatpush.msra.mxu0 %v237
    %530 = vmatpush.msra.mxu0 %v233
    %531 = vmatpush.msra.mxu0 %v229
    %532 = vmatpush.msra.mxu0 %v225
    %533 = vmatpush.msra.mxu0 %v221
    %534 = vmatpush.msra.mxu0 %v217
    %535 = vmatmul.f32.gmra.mxu0 %v294
    %v536 = vpop.f32.mrf.mxu0
    %v537 = vadd.f32 %v517, %v536
    %538 = vdwg.mxu0
    %539 = vmatpush.msra.mxu0 %v86
    %540 = vmatpush.msra.mxu0 %v82
    %541 = vmatpush.msra.mxu0 %v78
    %542 = vmatpush.msra.mxu0 %v74
    %543 = vmatpush.msra.mxu0 %v70
    %544 = vmatpush.msra.mxu0 %v66
    %545 = vmatpush.msra.mxu0 %v62
    %546 = vmatpush.msra.mxu0 %v58
    %547 = vmatpush.msra.mxu0 %v54
    %548 = vmatpush.msra.mxu0 %v50
    %549 = vmatpush.msra.mxu0 %v46
    %550 = vmatpush.msra.mxu0 %v42
    %551 = vmatpush.msra.mxu0 %v38
    %552 = vmatpush.msra.mxu0 %v34
    %553 = vmatpush.msra.mxu0 %v30
    %554 = vmatpush.msra.mxu0 %v26
    %555 = vmatmul.f32.gmra.mxu0 %v291
    %v556 = vpop.f32.mrf.mxu0
    %v557 = vadd.f32 %v284, %v556
    %558 = vdwg.mxu0
    %559 = vmatpush.msra.mxu0 %v150
    %560 = vmatpush.msra.mxu0 %v146
    %561 = vmatpush.msra.mxu0 %v142
    %562 = vmatpush.msra.mxu0 %v138
    %563 = vmatpush.msra.mxu0 %v134
    %564 = vmatpush.msra.mxu0 %v130
    %565 = vmatpush.msra.mxu0 %v126
    %566 = vmatpush.msra.mxu0 %v122
    %567 = vmatpush.msra.mxu0 %v118
    %568 = vmatpush.msra.mxu0 %v114
    %569 = vmatpush.msra.mxu0 %v110
    %570 = vmatpush.msra.mxu0 %v106
    %571 = vmatpush.msra.mxu0 %v102
    %572 = vmatpush.msra.mxu0 %v98
    %573 = vmatpush.msra.mxu0 %v94
    %574 = vmatpush.msra.mxu0 %v90
    %575 = vmatmul.f32.gmra.mxu0 %v292
    %v576 = vpop.f32.mrf.mxu0
    %v577 = vadd.f32 %v557, %v576
    %578 = vdwg.mxu0
    %579 = vmatpush.msra.mxu0 %v214
    %580 = vmatpush.msra.mxu0 %v210
    %581 = vmatpush.msra.mxu0 %v206
    %582 = vmatpush.msra.mxu0 %v202
    %583 = vmatpush.msra.mxu0 %v198
    %584 = vmatpush.msra.mxu0 %v194
    %585 = vmatpush.msra.mxu0 %v190
    %586 = vmatpush.msra.mxu0 %v186
    %587 = vmatpush.msra.mxu0 %v182
    %588 = vmatpush.msra.mxu0 %v178
    %589 = vmatpush.msra.mxu0 %v174
    %590 = vmatpush.msra.mxu0 %v170
    %591 = vmatpush.msra.mxu0 %v166
    %592 = vmatpush.msra.mxu0 %v162
    %593 = vmatpush.msra.mxu0 %v158
    %594 = vmatpush.msra.mxu0 %v154
    %595 = vmatmul.f32.gmra.mxu0 %v293
    %v596 = vpop.f32.mrf.mxu0
    %v597 = vadd.f32 %v577, %v596
    %598 = vdwg.mxu0
    %599 = vmatpush.msra.mxu0 %v278
    %600 = vmatpush.msra.mxu0 %v274
    %601 = vmatpush.msra.mxu0 %v270
    %602 = vmatpush.msra.mxu0 %v266
    %603 = vmatpush.msra.mxu0 %v262
    %604 = vmatpush.msra.mxu0 %v258
    %605 = vmatpush.msra.mxu0 %v254
    %606 = vmatpush.msra.mxu0 %v250
    %607 = vmatpush.msra.mxu0 %v246
    %608 = vmatpush.msra.mxu0 %v242
    %609 = vmatpush.msra.mxu0 %v238
    %610 = vmatpush.msra.mxu0 %v234
    %611 = vmatpush.msra.mxu0 %v230
    %612 = vmatpush.msra.mxu0 %v226
    %613 = vmatpush.msra.mxu0 %v222
    %614 = vmatpush.msra.mxu0 %v218
    %615 = vmatmul.f32.gmra.mxu0 %v294
    %v616 = vpop.f32.mrf.mxu0
    %v617 = vadd.f32 %v597, %v616
    %618 = vdwg.mxu0
    %vm619 = vcmp.ge.f32.partialorder %v377, 0.0
    %vm620 = vcmp.ge.f32.partialorder %v457, 0.0
    %vm621 = vcmp.ge.f32.partialorder %v537, 0.0
    %vm622 = vcmp.ge.f32.partialorder %v617, 0.0
    %v623 = vmul.f32 %v377, 0.2
    %v624 = vmul.f32 %v457, 0.2
    %v625 = vmul.f32 %v537, 0.2
    %v626 = vmul.f32 %v617, 0.2
    %v627 = vsel %vm619, %v377, %v623
    %v628 = vsel %vm620, %v457, %v624
    %v629 = vsel %vm621, %v537, %v625
    %v630 = vsel %vm622, %v617, %v626
    %v631 = vld [vmem:[%s3] sm:$0xff]
    %v632 = vld [vmem:[%s3 + $0x8] sm:$0xff]
    %v633 = vld [vmem:[%s3 + $0x10] sm:$0xff]
    %v634 = vld [vmem:[%s3 + $0x18] sm:$0xff]
    %v635 = vld [vmem:[%s3 + $0x20] sm:$0xff]
    %v636 = vld [vmem:[%s3 + $0x28] sm:$0xff]
    %v637 = vld [vmem:[%s3 + $0x30] sm:$0xff]
    %v638 = vld [vmem:[%s3 + $0x38] sm:$0xff]
    %v639 = vld [vmem:[%s3 + $0x40] sm:$0xff]
    %v640 = vld [vmem:[%s3 + $0x48] sm:$0xff]
    %v641 = vld [vmem:[%s3 + $0x50] sm:$0xff]
    %v642 = vld [vmem:[%s3 + $0x58] sm:$0xff]
    %v643 = vld [vmem:[%s3 + $0x60] sm:$0xff]
    %v644 = vld [vmem:[%s3 + $0x68] sm:$0xff]
    %v645 = vld [vmem:[%s3 + $0x70] sm:$0xff]
    %v646 = vld [vmem:[%s3 + $0x78] sm:$0xff]
    %v647 = vld [vmem:[%s3 + $0x80] sm:$0xff]
    %v648 = vld [vmem:[%s3 + $0x88] sm:$0xff]
    %v649 = vld [vmem:[%s3 + $0x90] sm:$0xff]
    %v650 = vld [vmem:[%s3 + $0x98] sm:$0xff]
    %v651 = vld [vmem:[%s3 + $0xa0] sm:$0xff]
    %v652 = vld [vmem:[%s3 + $0xa8] sm:$0xff]
    %v653 = vld [vmem:[%s3 + $0xb0] sm:$0xff]
    %v654 = vld [vmem:[%s3 + $0xb8] sm:$0xff]
    %v655 = vld [vmem:[%s3 + $0xc0] sm:$0xff]
    %v656 = vld [vmem:[%s3 + $0xc8] sm:$0xff]
    %v657 = vld [vmem:[%s3 + $0xd0] sm:$0xff]
    %v658 = vld [vmem:[%s3 + $0xd8] sm:$0xff]
    %v659 = vld [vmem:[%s3 + $0xe0] sm:$0xff]
    %v660 = vld [vmem:[%s3 + $0xe8] sm:$0xff]
    %v661 = vld [vmem:[%s3 + $0xf0] sm:$0xff]
    %v662 = vld [vmem:[%s3 + $0xf8] sm:$0xff]
    %v663 = vld [vmem:[%s3 + $0x100] sm:$0xff]
    %v664 = vld [vmem:[%s3 + $0x108] sm:$0xff]
    %v665 = vld [vmem:[%s3 + $0x110] sm:$0xff]
    %v666 = vld [vmem:[%s3 + $0x118] sm:$0xff]
    %v667 = vld [vmem:[%s3 + $0x120] sm:$0xff]
    %v668 = vld [vmem:[%s3 + $0x128] sm:$0xff]
    %v669 = vld [vmem:[%s3 + $0x130] sm:$0xff]
    %v670 = vld [vmem:[%s3 + $0x138] sm:$0xff]
    %v671 = vld [vmem:[%s3 + $0x140] sm:$0xff]
    %v672 = vld [vmem:[%s3 + $0x148] sm:$0xff]
    %v673 = vld [vmem:[%s3 + $0x150] sm:$0xff]
    %v674 = vld [vmem:[%s3 + $0x158] sm:$0xff]
    %v675 = vld [vmem:[%s3 + $0x160] sm:$0xff]
    %v676 = vld [vmem:[%s3 + $0x168] sm:$0xff]
    %v677 = vld [vmem:[%s3 + $0x170] sm:$0xff]
    %v678 = vld [vmem:[%s3 + $0x178] sm:$0xff]
    %v679 = vld [vmem:[%s3 + $0x180] sm:$0xff]
    %v680 = vld [vmem:[%s3 + $0x188] sm:$0xff]
    %v681 = vld [vmem:[%s3 + $0x190] sm:$0xff]
    %v682 = vld [vmem:[%s3 + $0x198] sm:$0xff]
    %v683 = vld [vmem:[%s3 + $0x1a0] sm:$0xff]
    %v684 = vld [vmem:[%s3 + $0x1a8] sm:$0xff]
    %v685 = vld [vmem:[%s3 + $0x1b0] sm:$0xff]
    %v686 = vld [vmem:[%s3 + $0x1b8] sm:$0xff]
    %v687 = vld [vmem:[%s3 + $0x1c0] sm:$0xff]
    %v688 = vld [vmem:[%s3 + $0x1c8] sm:$0xff]
    %v689 = vld [vmem:[%s3 + $0x1d0] sm:$0xff]
    %v690 = vld [vmem:[%s3 + $0x1d8] sm:$0xff]
    %v691 = vld [vmem:[%s3 + $0x1e0] sm:$0xff]
    %v692 = vld [vmem:[%s3 + $0x1e8] sm:$0xff]
    %v693 = vld [vmem:[%s3 + $0x1f0] sm:$0xff]
    %v694 = vld [vmem:[%s3 + $0x1f8] sm:$0xff]
    %v695 = vld [vmem:[%s3 + $0x200] sm:$0xff]
    %v696 = vld [vmem:[%s3 + $0x208] sm:$0xff]
    %v697 = vld [vmem:[%s3 + $0x210] sm:$0xff]
    %v698 = vld [vmem:[%s3 + $0x218] sm:$0xff]
    %v699 = vld [vmem:[%s3 + $0x220] sm:$0xff]
    %v700 = vld [vmem:[%s3 + $0x228] sm:$0xff]
    %v701 = vld [vmem:[%s3 + $0x230] sm:$0xff]
    %v702 = vld [vmem:[%s3 + $0x238] sm:$0xff]
    %v703 = vld [vmem:[%s3 + $0x240] sm:$0xff]
    %v704 = vld [vmem:[%s3 + $0x248] sm:$0xff]
    %v705 = vld [vmem:[%s3 + $0x250] sm:$0xff]
    %v706 = vld [vmem:[%s3 + $0x258] sm:$0xff]
    %v707 = vld [vmem:[%s3 + $0x260] sm:$0xff]
    %v708 = vld [vmem:[%s3 + $0x268] sm:$0xff]
    %v709 = vld [vmem:[%s3 + $0x270] sm:$0xff]
    %v710 = vld [vmem:[%s3 + $0x278] sm:$0xff]
    %v711 = vld [vmem:[%s3 + $0x280] sm:$0xff]
    %v712 = vld [vmem:[%s3 + $0x288] sm:$0xff]
    %v713 = vld [vmem:[%s3 + $0x290] sm:$0xff]
    %v714 = vld [vmem:[%s3 + $0x298] sm:$0xff]
    %v715 = vld [vmem:[%s3 + $0x2a0] sm:$0xff]
    %v716 = vld [vmem:[%s3 + $0x2a8] sm:$0xff]
    %v717 = vld [vmem:[%s3 + $0x2b0] sm:$0xff]
    %v718 = vld [vmem:[%s3 + $0x2b8] sm:$0xff]
    %v719 = vld [vmem:[%s3 + $0x2c0] sm:$0xff]
    %v720 = vld [vmem:[%s3 + $0x2c8] sm:$0xff]
    %v721 = vld [vmem:[%s3 + $0x2d0] sm:$0xff]
    %v722 = vld [vmem:[%s3 + $0x2d8] sm:$0xff]
    %v723 = vld [vmem:[%s3 + $0x2e0] sm:$0xff]
    %v724 = vld [vmem:[%s3 + $0x2e8] sm:$0xff]
    %v725 = vld [vmem:[%s3 + $0x2f0] sm:$0xff]
    %v726 = vld [vmem:[%s3 + $0x2f8] sm:$0xff]
    %v727 = vld [vmem:[%s3 + $0x300] sm:$0xff]
    %v728 = vld [vmem:[%s3 + $0x308] sm:$0xff]
    %v729 = vld [vmem:[%s3 + $0x310] sm:$0xff]
    %v730 = vld [vmem:[%s3 + $0x318] sm:$0xff]
    %v731 = vld [vmem:[%s3 + $0x320] sm:$0xff]
    %v732 = vld [vmem:[%s3 + $0x328] sm:$0xff]
    %v733 = vld [vmem:[%s3 + $0x330] sm:$0xff]
    %v734 = vld [vmem:[%s3 + $0x338] sm:$0xff]
    %v735 = vld [vmem:[%s3 + $0x340] sm:$0xff]
    %v736 = vld [vmem:[%s3 + $0x348] sm:$0xff]
    %v737 = vld [vmem:[%s3 + $0x350] sm:$0xff]
    %v738 = vld [vmem:[%s3 + $0x358] sm:$0xff]
    %v739 = vld [vmem:[%s3 + $0x360] sm:$0xff]
    %v740 = vld [vmem:[%s3 + $0x368] sm:$0xff]
    %v741 = vld [vmem:[%s3 + $0x370] sm:$0xff]
    %v742 = vld [vmem:[%s3 + $0x378] sm:$0xff]
    %v743 = vld [vmem:[%s3 + $0x380] sm:$0xff]
    %v744 = vld [vmem:[%s3 + $0x388] sm:$0xff]
    %v745 = vld [vmem:[%s3 + $0x390] sm:$0xff]
    %v746 = vld [vmem:[%s3 + $0x398] sm:$0xff]
    %v747 = vld [vmem:[%s3 + $0x3a0] sm:$0xff]
    %v748 = vld [vmem:[%s3 + $0x3a8] sm:$0xff]
    %v749 = vld [vmem:[%s3 + $0x3b0] sm:$0xff]
    %v750 = vld [vmem:[%s3 + $0x3b8] sm:$0xff]
    %v751 = vld [vmem:[%s3 + $0x3c0] sm:$0xff]
    %v752 = vld [vmem:[%s3 + $0x3c8] sm:$0xff]
    %v753 = vld [vmem:[%s3 + $0x3d0] sm:$0xff]
    %v754 = vld [vmem:[%s3 + $0x3d8] sm:$0xff]
    %v755 = vld [vmem:[%s3 + $0x3e0] sm:$0xff]
    %v756 = vld [vmem:[%s3 + $0x3e8] sm:$0xff]
    %v757 = vld [vmem:[%s3 + $0x3f0] sm:$0xff]
    %v758 = vld [vmem:[%s3 + $0x3f8] sm:$0xff]
    %v759 = vld [vmem:[%s3 + $0x400] sm:$0xff]
    %v760 = vld [vmem:[%s3 + $0x408] sm:$0xff]
    %v761 = vld [vmem:[%s3 + $0x410] sm:$0xff]
    %v762 = vld [vmem:[%s3 + $0x418] sm:$0xff]
    %v763 = vld [vmem:[%s3 + $0x420] sm:$0xff]
    %v764 = vld [vmem:[%s3 + $0x428] sm:$0xff]
    %v765 = vld [vmem:[%s3 + $0x430] sm:$0xff]
    %v766 = vld [vmem:[%s3 + $0x438] sm:$0xff]
    %v767 = vld [vmem:[%s3 + $0x440] sm:$0xff]
    %v768 = vld [vmem:[%s3 + $0x448] sm:$0xff]
    %v769 = vld [vmem:[%s3 + $0x450] sm:$0xff]
    %v770 = vld [vmem:[%s3 + $0x458] sm:$0xff]
    %v771 = vld [vmem:[%s3 + $0x460] sm:$0xff]
    %v772 = vld [vmem:[%s3 + $0x468] sm:$0xff]
    %v773 = vld [vmem:[%s3 + $0x470] sm:$0xff]
    %v774 = vld [vmem:[%s3 + $0x478] sm:$0xff]
    %v775 = vld [vmem:[%s3 + $0x480] sm:$0xff]
    %v776 = vld [vmem:[%s3 + $0x488] sm:$0xff]
    %v777 = vld [vmem:[%s3 + $0x490] sm:$0xff]
    %v778 = vld [vmem:[%s3 + $0x498] sm:$0xff]
    %v779 = vld [vmem:[%s3 + $0x4a0] sm:$0xff]
    %v780 = vld [vmem:[%s3 + $0x4a8] sm:$0xff]
    %v781 = vld [vmem:[%s3 + $0x4b0] sm:$0xff]
    %v782 = vld [vmem:[%s3 + $0x4b8] sm:$0xff]
    %v783 = vld [vmem:[%s3 + $0x4c0] sm:$0xff]
    %v784 = vld [vmem:[%s3 + $0x4c8] sm:$0xff]
    %v785 = vld [vmem:[%s3 + $0x4d0] sm:$0xff]
    %v786 = vld [vmem:[%s3 + $0x4d8] sm:$0xff]
    %v787 = vld [vmem:[%s3 + $0x4e0] sm:$0xff]
    %v788 = vld [vmem:[%s3 + $0x4e8] sm:$0xff]
    %v789 = vld [vmem:[%s3 + $0x4f0] sm:$0xff]
    %v790 = vld [vmem:[%s3 + $0x4f8] sm:$0xff]
    %v791 = vld [vmem:[%s3 + $0x500] sm:$0xff]
    %v792 = vld [vmem:[%s3 + $0x508] sm:$0xff]
    %v793 = vld [vmem:[%s3 + $0x510] sm:$0xff]
    %v794 = vld [vmem:[%s3 + $0x518] sm:$0xff]
    %v795 = vld [vmem:[%s3 + $0x520] sm:$0xff]
    %v796 = vld [vmem:[%s3 + $0x528] sm:$0xff]
    %v797 = vld [vmem:[%s3 + $0x530] sm:$0xff]
    %v798 = vld [vmem:[%s3 + $0x538] sm:$0xff]
    %v799 = vld [vmem:[%s3 + $0x540] sm:$0xff]
    %v800 = vld [vmem:[%s3 + $0x548] sm:$0xff]
    %v801 = vld [vmem:[%s3 + $0x550] sm:$0xff]
    %v802 = vld [vmem:[%s3 + $0x558] sm:$0xff]
    %v803 = vld [vmem:[%s3 + $0x560] sm:$0xff]
    %v804 = vld [vmem:[%s3 + $0x568] sm:$0xff]
    %v805 = vld [vmem:[%s3 + $0x570] sm:$0xff]
    %v806 = vld [vmem:[%s3 + $0x578] sm:$0xff]
    %v807 = vld [vmem:[%s3 + $0x580] sm:$0xff]
    %v808 = vld [vmem:[%s3 + $0x588] sm:$0xff]
    %v809 = vld [vmem:[%s3 + $0x590] sm:$0xff]
    %v810 = vld [vmem:[%s3 + $0x598] sm:$0xff]
    %v811 = vld [vmem:[%s3 + $0x5a0] sm:$0xff]
    %v812 = vld [vmem:[%s3 + $0x5a8] sm:$0xff]
    %v813 = vld [vmem:[%s3 + $0x5b0] sm:$0xff]
    %v814 = vld [vmem:[%s3 + $0x5b8] sm:$0xff]
    %v815 = vld [vmem:[%s3 + $0x5c0] sm:$0xff]
    %v816 = vld [vmem:[%s3 + $0x5c8] sm:$0xff]
    %v817 = vld [vmem:[%s3 + $0x5d0] sm:$0xff]
    %v818 = vld [vmem:[%s3 + $0x5d8] sm:$0xff]
    %v819 = vld [vmem:[%s3 + $0x5e0] sm:$0xff]
    %v820 = vld [vmem:[%s3 + $0x5e8] sm:$0xff]
    %v821 = vld [vmem:[%s3 + $0x5f0] sm:$0xff]
    %v822 = vld [vmem:[%s3 + $0x5f8] sm:$0xff]
    %v823 = vld [vmem:[%s3 + $0x600] sm:$0xff]
    %v824 = vld [vmem:[%s3 + $0x608] sm:$0xff]
    %v825 = vld [vmem:[%s3 + $0x610] sm:$0xff]
    %v826 = vld [vmem:[%s3 + $0x618] sm:$0xff]
    %v827 = vld [vmem:[%s3 + $0x620] sm:$0xff]
    %v828 = vld [vmem:[%s3 + $0x628] sm:$0xff]
    %v829 = vld [vmem:[%s3 + $0x630] sm:$0xff]
    %v830 = vld [vmem:[%s3 + $0x638] sm:$0xff]
    %v831 = vld [vmem:[%s3 + $0x640] sm:$0xff]
    %v832 = vld [vmem:[%s3 + $0x648] sm:$0xff]
    %v833 = vld [vmem:[%s3 + $0x650] sm:$0xff]
    %v834 = vld [vmem:[%s3 + $0x658] sm:$0xff]
    %v835 = vld [vmem:[%s3 + $0x660] sm:$0xff]
    %v836 = vld [vmem:[%s3 + $0x668] sm:$0xff]
    %v837 = vld [vmem:[%s3 + $0x670] sm:$0xff]
    %v838 = vld [vmem:[%s3 + $0x678] sm:$0xff]
    %v839 = vld [vmem:[%s3 + $0x680] sm:$0xff]
    %v840 = vld [vmem:[%s3 + $0x688] sm:$0xff]
    %v841 = vld [vmem:[%s3 + $0x690] sm:$0xff]
    %v842 = vld [vmem:[%s3 + $0x698] sm:$0xff]
    %v843 = vld [vmem:[%s3 + $0x6a0] sm:$0xff]
    %v844 = vld [vmem:[%s3 + $0x6a8] sm:$0xff]
    %v845 = vld [vmem:[%s3 + $0x6b0] sm:$0xff]
    %v846 = vld [vmem:[%s3 + $0x6b8] sm:$0xff]
    %v847 = vld [vmem:[%s3 + $0x6c0] sm:$0xff]
    %v848 = vld [vmem:[%s3 + $0x6c8] sm:$0xff]
    %v849 = vld [vmem:[%s3 + $0x6d0] sm:$0xff]
    %v850 = vld [vmem:[%s3 + $0x6d8] sm:$0xff]
    %v851 = vld [vmem:[%s3 + $0x6e0] sm:$0xff]
    %v852 = vld [vmem:[%s3 + $0x6e8] sm:$0xff]
    %v853 = vld [vmem:[%s3 + $0x6f0] sm:$0xff]
    %v854 = vld [vmem:[%s3 + $0x6f8] sm:$0xff]
    %v855 = vld [vmem:[%s3 + $0x700] sm:$0xff]
    %v856 = vld [vmem:[%s3 + $0x708] sm:$0xff]
    %v857 = vld [vmem:[%s3 + $0x710] sm:$0xff]
    %v858 = vld [vmem:[%s3 + $0x718] sm:$0xff]
    %v859 = vld [vmem:[%s3 + $0x720] sm:$0xff]
    %v860 = vld [vmem:[%s3 + $0x728] sm:$0xff]
    %v861 = vld [vmem:[%s3 + $0x730] sm:$0xff]
    %v862 = vld [vmem:[%s3 + $0x738] sm:$0xff]
    %v863 = vld [vmem:[%s3 + $0x740] sm:$0xff]
    %v864 = vld [vmem:[%s3 + $0x748] sm:$0xff]
    %v865 = vld [vmem:[%s3 + $0x750] sm:$0xff]
    %v866 = vld [vmem:[%s3 + $0x758] sm:$0xff]
    %v867 = vld [vmem:[%s3 + $0x760] sm:$0xff]
    %v868 = vld [vmem:[%s3 + $0x768] sm:$0xff]
    %v869 = vld [vmem:[%s3 + $0x770] sm:$0xff]
    %v870 = vld [vmem:[%s3 + $0x778] sm:$0xff]
    %v871 = vld [vmem:[%s3 + $0x780] sm:$0xff]
    %v872 = vld [vmem:[%s3 + $0x788] sm:$0xff]
    %v873 = vld [vmem:[%s3 + $0x790] sm:$0xff]
    %v874 = vld [vmem:[%s3 + $0x798] sm:$0xff]
    %v875 = vld [vmem:[%s3 + $0x7a0] sm:$0xff]
    %v876 = vld [vmem:[%s3 + $0x7a8] sm:$0xff]
    %v877 = vld [vmem:[%s3 + $0x7b0] sm:$0xff]
    %v878 = vld [vmem:[%s3 + $0x7b8] sm:$0xff]
    %v879 = vld [vmem:[%s3 + $0x7c0] sm:$0xff]
    %v880 = vld [vmem:[%s3 + $0x7c8] sm:$0xff]
    %v881 = vld [vmem:[%s3 + $0x7d0] sm:$0xff]
    %v882 = vld [vmem:[%s3 + $0x7d8] sm:$0xff]
    %v883 = vld [vmem:[%s3 + $0x7e0] sm:$0xff]
    %v884 = vld [vmem:[%s3 + $0x7e8] sm:$0xff]
    %v885 = vld [vmem:[%s3 + $0x7f0] sm:$0xff]
    %v886 = vld [vmem:[%s3 + $0x7f8] sm:$0xff]
    %v887 = vld [vmem:[%s4] sm:$0xf]
    %v889 = vperm.slane %v887, 0
    %v890 = vperm.slane %v887, 1
    %v891 = vperm.slane %v887, 2
    %v892 = vperm.slane %v887, 3
    %897 = vmatpush.msra.mxu0 %v691
    %898 = vmatpush.msra.mxu0 %v687
    %899 = vmatpush.msra.mxu0 %v683
    %900 = vmatpush.msra.mxu0 %v679
    %901 = vmatpush.msra.mxu0 %v675
    %902 = vmatpush.msra.mxu0 %v671
    %903 = vmatpush.msra.mxu0 %v667
    %904 = vmatpush.msra.mxu0 %v663
    %905 = vmatpush.msra.mxu0 %v659
    %906 = vmatpush.msra.mxu0 %v655
    %907 = vmatpush.msra.mxu0 %v651
    %908 = vmatpush.msra.mxu0 %v647
    %909 = vmatpush.msra.mxu0 %v643
    %910 = vmatpush.msra.mxu0 %v639
    %911 = vmatpush.msra.mxu0 %v635
    %912 = vmatpush.msra.mxu0 %v631
    %913 = vmatmul.f32.gmra.mxu0 %v627
    %v914 = vpop.f32.mrf.mxu0
    %v915 = vadd.f32 %v889, %v914
    %916 = vdwg.mxu0
    %917 = vmatpush.msra.mxu0 %v755
    %918 = vmatpush.msra.mxu0 %v751
    %919 = vmatpush.msra.mxu0 %v747
    %920 = vmatpush.msra.mxu0 %v743
    %921 = vmatpush.msra.mxu0 %v739
    %922 = vmatpush.msra.mxu0 %v735
    %923 = vmatpush.msra.mxu0 %v731
    %924 = vmatpush.msra.mxu0 %v727
    %925 = vmatpush.msra.mxu0 %v723
    %926 = vmatpush.msra.mxu0 %v719
    %927 = vmatpush.msra.mxu0 %v715
    %928 = vmatpush.msra.mxu0 %v711
    %929 = vmatpush.msra.mxu0 %v707
    %930 = vmatpush.msra.mxu0 %v703
    %931 = vmatpush.msra.mxu0 %v699
    %932 = vmatpush.msra.mxu0 %v695
    %933 = vmatmul.f32.gmra.mxu0 %v628
    %v934 = vpop.f32.mrf.mxu0
    %v935 = vadd.f32 %v915, %v934
    %936 = vdwg.mxu0
    %937 = vmatpush.msra.mxu0 %v819
    %938 = vmatpush.msra.mxu0 %v815
    %939 = vmatpush.msra.mxu0 %v811
    %940 = vmatpush.msra.mxu0 %v807
    %941 = vmatpush.msra.mxu0 %v803
    %942 = vmatpush.msra.mxu0 %v799
    %943 = vmatpush.msra.mxu0 %v795
    %944 = vmatpush.msra.mxu0 %v791
    %945 = vmatpush.msra.mxu0 %v787
    %946 = vmatpush.msra.mxu0 %v783
    %947 = vmatpush.msra.mxu0 %v779
    %948 = vmatpush.msra.mxu0 %v775
    %949 = vmatpush.msra.mxu0 %v771
    %950 = vmatpush.msra.mxu0 %v767
    %951 = vmatpush.msra.mxu0 %v763
    %952 = vmatpush.msra.mxu0 %v759
    %953 = vmatmul.f32.gmra.mxu0 %v629
    %v954 = vpop.f32.mrf.mxu0
    %v955 = vadd.f32 %v935, %v954
    %956 = vdwg.mxu0
    %957 = vmatpush.msra.mxu0 %v883
    %958 = vmatpush.msra.mxu0 %v879
    %959 = vmatpush.msra.mxu0 %v875
    %960 = vmatpush.msra.mxu0 %v871
    %961 = vmatpush.msra.mxu0 %v867
    %962 = vmatpush.msra.mxu0 %v863
    %963 = vmatpush.msra.mxu0 %v859
    %964 = vmatpush.msra.mxu0 %v855
    %965 = vmatpush.msra.mxu0 %v851
    %966 = vmatpush.msra.mxu0 %v847
    %967 = vmatpush.msra.mxu0 %v843
    %968 = vmatpush.msra.mxu0 %v839
    %969 = vmatpush.msra.mxu0 %v835
    %970 = vmatpush.msra.mxu0 %v831
    %971 = vmatpush.msra.mxu0 %v827
    %972 = vmatpush.msra.mxu0 %v823
    %973 = vmatmul.f32.gmra.mxu0 %v630
    %v974 = vpop.f32.mrf.mxu0
    %v975 = vadd.f32 %v955, %v974
    %976 = vdwg.mxu0
    %977 = vmatpush.msra.mxu0 %v692
    %978 = vmatpush.msra.mxu0 %v688
    %979 = vmatpush.msra.mxu0 %v684
    %980 = vmatpush.msra.mxu0 %v680
    %981 = vmatpush.msra.mxu0 %v676
    %982 = vmatpush.msra.mxu0 %v672
    %983 = vmatpush.msra.mxu0 %v668
    %984 = vmatpush.msra.mxu0 %v664
    %985 = vmatpush.msra.mxu0 %v660
    %986 = vmatpush.msra.mxu0 %v656
    %987 = vmatpush.msra.mxu0 %v652
    %988 = vmatpush.msra.mxu0 %v648
    %989 = vmatpush.msra.mxu0 %v644
    %990 = vmatpush.msra.mxu0 %v640
    %991 = vmatpush.msra.mxu0 %v636
    %992 = vmatpush.msra.mxu0 %v632
    %993 = vmatmul.f32.gmra.mxu0 %v627
    %v994 = vpop.f32.mrf.mxu0
    %v995 = vadd.f32 %v890, %v994
    %996 = vdwg.mxu0
    %997 = vmatpush.msra.mxu0 %v756
    %998 = vmatpush.msra.mxu0 %v752
    %999 = vmatpush.msra.mxu0 %v748
    %1000 = vmatpush.msra.mxu0 %v744
    %1001 = vmatpush.msra.mxu0 %v740
    %1002 = vmatpush.msra.mxu0 %v736
    %1003 = vmatpush.msra.mxu0 %v732
    %1004 = vmatpush.msra.mxu0 %v728
    %1005 = vmatpush.msra.mxu0 %v724
    %1006 = vmatpush.msra.mxu0 %v720
    %1007 = vmatpush.msra.mxu0 %v716
    %1008 = vmatpush.msra.mxu0 %v712
    %1009 = vmatpush.msra.mxu0 %v708
    %1010 = vmatpush.msra.mxu0 %v704
    %1011 = vmatpush.msra.mxu0 %v700
    %1012 = vmatpush.msra.mxu0 %v696
    %1013 = vmatmul.f32.gmra.mxu0 %v628
    %v1014 = vpop.f32.mrf.mxu0
    %v1015 = vadd.f32 %v995, %v1014
    %1016 = vdwg.mxu0
    %1017 = vmatpush.msra.mxu0 %v820
    %1018 = vmatpush.msra.mxu0 %v816
    %1019 = vmatpush.msra.mxu0 %v812
    %1020 = vmatpush.msra.mxu0 %v808
    %1021 = vmatpush.msra.mxu0 %v804
    %1022 = vmatpush.msra.mxu0 %v800
    %1023 = vmatpush.msra.mxu0 %v796
    %1024 = vmatpush.msra.mxu0 %v792
    %1025 = vmatpush.msra.mxu0 %v788
    %1026 = vmatpush.msra.mxu0 %v784
    %1027 = vmatpush.msra.mxu0 %v780
    %1028 = vmatpush.msra.mxu0 %v776
    %1029 = vmatpush.msra.mxu0 %v772
    %1030 = vmatpush.msra.mxu0 %v768
    %1031 = vmatpush.msra.mxu0 %v764
    %1032 = vmatpush.msra.mxu0 %v760
    %1033 = vmatmul.f32.gmra.mxu0 %v629
    %v1034 = vpop.f32.mrf.mxu0
    %v1035 = vadd.f32 %v1015, %v1034
    %1036 = vdwg.mxu0
    %1037 = vmatpush.msra.mxu0 %v884
    %1038 = vmatpush.msra.mxu0 %v880
    %1039 = vmatpush.msra.mxu0 %v876
    %1040 = vmatpush.msra.mxu0 %v872
    %1041 = vmatpush.msra.mxu0 %v868
    %1042 = vmatpush.msra.mxu0 %v864
    %1043 = vmatpush.msra.mxu0 %v860
    %1044 = vmatpush.msra.mxu0 %v856
    %1045 = vmatpush.msra.mxu0 %v852
    %1046 = vmatpush.msra.mxu0 %v848
    %1047 = vmatpush.msra.mxu0 %v844
    %1048 = vmatpush.msra.mxu0 %v840
    %1049 = vmatpush.msra.mxu0 %v836
    %1050 = vmatpush.msra.mxu0 %v832
    %1051 = vmatpush.msra.mxu0 %v828
    %1052 = vmatpush.msra.mxu0 %v824
    %1053 = vmatmul.f32.gmra.mxu0 %v630
    %v1054 = vpop.f32.mrf.mxu0
    %v1055 = vadd.f32 %v1035, %v1054
    %1056 = vdwg.mxu0
    %1057 = vmatpush.msra.mxu0 %v693
    %1058 = vmatpush.msra.mxu0 %v689
    %1059 = vmatpush.msra.mxu0 %v685
    %1060 = vmatpush.msra.mxu0 %v681
    %1061 = vmatpush.msra.mxu0 %v677
    %1062 = vmatpush.msra.mxu0 %v673
    %1063 = vmatpush.msra.mxu0 %v669
    %1064 = vmatpush.msra.mxu0 %v665
    %1065 = vmatpush.msra.mxu0 %v661
    %1066 = vmatpush.msra.mxu0 %v657
    %1067 = vmatpush.msra.mxu0 %v653
    %1068 = vmatpush.msra.mxu0 %v649
    %1069 = vmatpush.msra.mxu0 %v645
    %1070 = vmatpush.msra.mxu0 %v641
    %1071 = vmatpush.msra.mxu0 %v637
    %1072 = vmatpush.msra.mxu0 %v633
    %1073 = vmatmul.f32.gmra.mxu0 %v627
    %v1074 = vpop.f32.mrf.mxu0
    %v1075 = vadd.f32 %v891, %v1074
    %1076 = vdwg.mxu0
    %1077 = vmatpush.msra.mxu0 %v757
    %1078 = vmatpush.msra.mxu0 %v753
    %1079 = vmatpush.msra.mxu0 %v749
    %1080 = vmatpush.msra.mxu0 %v745
    %1081 = vmatpush.msra.mxu0 %v741
    %1082 = vmatpush.msra.mxu0 %v737
    %1083 = vmatpush.msra.mxu0 %v733
    %1084 = vmatpush.msra.mxu0 %v729
    %1085 = vmatpush.msra.mxu0 %v725
    %1086 = vmatpush.msra.mxu0 %v721
    %1087 = vmatpush.msra.mxu0 %v717
    %1088 = vmatpush.msra.mxu0 %v713
    %1089 = vmatpush.msra.mxu0 %v709
    %1090 = vmatpush.msra.mxu0 %v705
    %1091 = vmatpush.msra.mxu0 %v701
    %1092 = vmatpush.msra.mxu0 %v697
    %1093 = vmatmul.f32.gmra.mxu0 %v628
    %v1094 = vpop.f32.mrf.mxu0
    %v1095 = vadd.f32 %v1075, %v1094
    %1096 = vdwg.mxu0
    %1097 = vmatpush.msra.mxu0 %v821
    %1098 = vmatpush.msra.mxu0 %v817
    %1099 = vmatpush.msra.mxu0 %v813
    %1100 = vmatpush.msra.mxu0 %v809
    %1101 = vmatpush.msra.mxu0 %v805
    %1102 = vmatpush.msra.mxu0 %v801
    %1103 = vmatpush.msra.mxu0 %v797
    %1104 = vmatpush.msra.mxu0 %v793
    %1105 = vmatpush.msra.mxu0 %v789
    %1106 = vmatpush.msra.mxu0 %v785
    %1107 = vmatpush.msra.mxu0 %v781
    %1108 = vmatpush.msra.mxu0 %v777
    %1109 = vmatpush.msra.mxu0 %v773
    %1110 = vmatpush.msra.mxu0 %v769
    %1111 = vmatpush.msra.mxu0 %v765
    %1112 = vmatpush.msra.mxu0 %v761
    %1113 = vmatmul.f32.gmra.mxu0 %v629
    %v1114 = vpop.f32.mrf.mxu0
    %v1115 = vadd.f32 %v1095, %v1114
    %1116 = vdwg.mxu0
    %1117 = vmatpush.msra.mxu0 %v885
    %1118 = vmatpush.msra.mxu0 %v881
    %1119 = vmatpush.msra.mxu0 %v877
    %1120 = vmatpush.msra.mxu0 %v873
    %1121 = vmatpush.msra.mxu0 %v869
    %1122 = vmatpush.msra.mxu0 %v865
    %1123 = vmatpush.msra.mxu0 %v861
    %1124 = vmatpush.msra.mxu0 %v857
    %1125 = vmatpush.msra.mxu0 %v853
    %1126 = vmatpush.msra.mxu0 %v849
    %1127 = vmatpush.msra.mxu0 %v845
    %1128 = vmatpush.msra.mxu0 %v841
    %1129 = vmatpush.msra.mxu0 %v837
    %1130 = vmatpush.msra.mxu0 %v833
    %1131 = vmatpush.msra.mxu0 %v829
    %1132 = vmatpush.msra.mxu0 %v825
    %1133 = vmatmul.f32.gmra.mxu0 %v630
    %v1134 = vpop.f32.mrf.mxu0
    %v1135 = vadd.f32 %v1115, %v1134
    %1136 = vdwg.mxu0
    %1137 = vmatpush.msra.mxu0 %v694
    %1138 = vmatpush.msra.mxu0 %v690
    %1139 = vmatpush.msra.mxu0 %v686
    %1140 = vmatpush.msra.mxu0 %v682
    %1141 = vmatpush.msra.mxu0 %v678
    %1142 = vmatpush.msra.mxu0 %v674
    %1143 = vmatpush.msra.mxu0 %v670
    %1144 = vmatpush.msra.mxu0 %v666
    %1145 = vmatpush.msra.mxu0 %v662
    %1146 = vmatpush.msra.mxu0 %v658
    %1147 = vmatpush.msra.mxu0 %v654
    %1148 = vmatpush.msra.mxu0 %v650
    %1149 = vmatpush.msra.mxu0 %v646
    %1150 = vmatpush.msra.mxu0 %v642
    %1151 = vmatpush.msra.mxu0 %v638
    %1152 = vmatpush.msra.mxu0 %v634
    %1153 = vmatmul.f32.gmra.mxu0 %v627
    %v1154 = vpop.f32.mrf.mxu0
    %v1155 = vadd.f32 %v892, %v1154
    %1156 = vdwg.mxu0
    %1157 = vmatpush.msra.mxu0 %v758
    %1158 = vmatpush.msra.mxu0 %v754
    %1159 = vmatpush.msra.mxu0 %v750
    %1160 = vmatpush.msra.mxu0 %v746
    %1161 = vmatpush.msra.mxu0 %v742
    %1162 = vmatpush.msra.mxu0 %v738
    %1163 = vmatpush.msra.mxu0 %v734
    %1164 = vmatpush.msra.mxu0 %v730
    %1165 = vmatpush.msra.mxu0 %v726
    %1166 = vmatpush.msra.mxu0 %v722
    %1167 = vmatpush.msra.mxu0 %v718
    %1168 = vmatpush.msra.mxu0 %v714
    %1169 = vmatpush.msra.mxu0 %v710
    %1170 = vmatpush.msra.mxu0 %v706
    %1171 = vmatpush.msra.mxu0 %v702
    %1172 = vmatpush.msra.mxu0 %v698
    %1173 = vmatmul.f32.gmra.mxu0 %v628
    %v1174 = vpop.f32.mrf.mxu0
    %v1175 = vadd.f32 %v1155, %v1174
    %1176 = vdwg.mxu0
    %1177 = vmatpush.msra.mxu0 %v822
    %1178 = vmatpush.msra.mxu0 %v818
    %1179 = vmatpush.msra.mxu0 %v814
    %1180 = vmatpush.msra.mxu0 %v810
    %1181 = vmatpush.msra.mxu0 %v806
    %1182 = vmatpush.msra.mxu0 %v802
    %1183 = vmatpush.msra.mxu0 %v798
    %1184 = vmatpush.msra.mxu0 %v794
    %1185 = vmatpush.msra.mxu0 %v790
    %1186 = vmatpush.msra.mxu0 %v786
    %1187 = vmatpush.msra.mxu0 %v782
    %1188 = vmatpush.msra.mxu0 %v778
    %1189 = vmatpush.msra.mxu0 %v774
    %1190 = vmatpush.msra.mxu0 %v770
    %1191 = vmatpush.msra.mxu0 %v766
    %1192 = vmatpush.msra.mxu0 %v762
    %1193 = vmatmul.f32.gmra.mxu0 %v629
    %v1194 = vpop.f32.mrf.mxu0
    %v1195 = vadd.f32 %v1175, %v1194
    %1196 = vdwg.mxu0
    %1197 = vmatpush.msra.mxu0 %v886
    %1198 = vmatpush.msra.mxu0 %v882
    %1199 = vmatpush.msra.mxu0 %v878
    %1200 = vmatpush.msra.mxu0 %v874
    %1201 = vmatpush.msra.mxu0 %v870
    %1202 = vmatpush.msra.mxu0 %v866
    %1203 = vmatpush.msra.mxu0 %v862
    %1204 = vmatpush.msra.mxu0 %v858
    %1205 = vmatpush.msra.mxu0 %v854
    %1206 = vmatpush.msra.mxu0 %v850
    %1207 = vmatpush.msra.mxu0 %v846
    %1208 = vmatpush.msra.mxu0 %v842
    %1209 = vmatpush.msra.mxu0 %v838
    %1210 = vmatpush.msra.mxu0 %v834
    %1211 = vmatpush.msra.mxu0 %v830
    %1212 = vmatpush.msra.mxu0 %v826
    %1213 = vmatmul.f32.gmra.mxu0 %v630
    %v1214 = vpop.f32.mrf.mxu0
    %v1215 = vadd.f32 %v1195, %v1214
    %1216 = vdwg.mxu0
    %v1221 = vrot.slane %v1055, 6
    %v1222 = vrot.slane %v1135, 4
    %v1223 = vrot.slane %v1215, 2
    %vm1224 = vcmask 1041408
    %v1225 = vsel %vm1224, %v975, %v1221
    %vm1226 = vcmask 1045508
    %v1227 = vsel %vm1226, %v1222, %v1223
    %vm1228 = vcmask 1043456
    %v1229 = vsel %vm1228, %v1225, %v1227
    %vm1231 = vcmask 1043458
    %vm1232 = vmor %vm1231, %vm1224
    %vm1233 = vmor %vm1226, %vm1232
    %vm1234 = vcmask 318470
    %vm1235 = vmor %vm1234, %vm1233
    %1236 = vst.msk [vmem:[#allocation2] sm:$0xff] %vm1235, %v1229
    // Predicated region
    $region22: #{cnn_surrogate_forward.13} parent=1 // pred_check
      _
    $region23: #{cnn_surrogate_forward.13} parent=1 // pred_check_branch
      %1238 = sbr.rel (0) target = $region25
    $region24: #{cnn_surrogate_forward.13} parent=1 // pred_region
      %1240 = vsyncadd [#allocation3], 0
      %s1242 = sshll.u32 [#allocation2], 4
      %s1243 = int_to_ptr.vmem [resolvable:$true] %s1242
      %s1244 = sshll.u32 %s5, 4
      %s1245 = int_to_ptr.hbm [resolvable:$true] %s1244
      %1247 = dma.vmem_to_hbm [thread:$0]  %s1243, 128, %s1245, [#allocation3]
    $region25: #{cnn_surrogate_forward.13} parent=1 // pred_fallthru
      _
    // Predicated region
    $region26: #{cnn_surrogate_forward.13} parent=1 // pred_check
      _
    $region27: #{cnn_surrogate_forward.13} parent=1 // pred_check_branch
      %1249 = sbr.rel (0) target = $region29
    $region28: #{cnn_surrogate_forward.13} parent=1 // pred_region
      %1251 = dma.done [#allocation3], 128
    $region29: #{cnn_surrogate_forward.13} parent=1 // pred_fallthru
      _
    %1252 = vsyncpa [#allocation3], 1

</llo_original>
